<compile_context>
chip_gen: v6e
topology: v6e:2x2x1
jax: 0.10.0
libtpu: 0.0.40
codegen_flags: <defaults>
</compile_context>

<pallas_src>
import functools

import numpy as np
import jax
import jax.numpy as jnp
from jax.experimental import pallas as pl
from jax.experimental.pallas import tpu as pltpu


# ----------------------------------------------------------------------------
# fused kernel: base conv + tanh -> per-scale (avg-pool + 3x3 head)
# ----------------------------------------------------------------------------
def _fused_kernel(x_ref, bw_ref, bb_ref, hw_ref, hb_ref, out_ref, *,
                  scales, C, H, W, L, Cms):
    """Single-step fused kernel on lane-dense (H, L) planes, L = B*T*W."""
    # grid-invariant index planes (kernel runs exactly once -> computed once)
    row = jax.lax.broadcasted_iota(jnp.int32, (H, L), 0)
    col = jax.lax.broadcasted_iota(jnp.int32, (H, L), 1)
    xif = col % W                      # within-frame column (W = power of 2)

    def shift(v, d, axis):
        # result[i] = v[i + d] (circular); callers mask invalid positions.
        n = v.shape[axis]
        return pltpu.roll(v, (-d) % n, axis)

    def conv3x3(planes, w_ref, b_ref, cout, t, w_off=0, b_off=0):
        """3x3 'same' conv with tap stride t on lane-packed frames.

        For t > 1 the input holds pooled data at strided positions
        (row % t == 0, within-frame col % t == 0); outputs are only valid at
        those positions (host slices them out), and the masked taps guarantee
        valid outputs never read garbage positions.
        """
        cin = len(planes)
        rm = {-1: row >= t, 1: row < H - t}        # dy validity (image rows)
        cm = {-1: xif >= t, 1: xif < W - t}        # dx validity (per frame)
        accs = [None] * cout
        for ci in range(cin):
            p = planes[ci]
            for dy in (-1, 0, 1):
                rp = p if dy == 0 else jnp.where(rm[dy], shift(p, dy * t, 0), 0.0)
                for dx in (-1, 0, 1):
                    tap = rp if dx == 0 else jnp.where(cm[dx], shift(rp, dx * t, 1), 0.0)
                    for co in range(cout):
                        w = w_ref[w_off + ((co * 3 + dy + 1) * 3 + dx + 1) * cin + ci]
                        term = w * tap
                        accs[co] = term if accs[co] is None else accs[co] + term
        return [accs[co] + b_ref[b_off + co] for co in range(cout)]

    def avg_pool(planes, s):
        # exact s x s average pooling on the VPU (shifted adds); result kept at
        # strided (top-left) positions of the same (H, L) plane -> no compaction.
        if s == 1:
            return planes
        out = []
        for p in planes:
            a = p
            step = 1
            while step < s:                         # rows (log-doubling)
                a = a + shift(a, step, 0)
                step *= 2
            step = 1
            while step < s:                         # cols (stay within frame)
                a = a + shift(a, step, 1)
                step *= 2
            out.append(a * (1.0 / (s * s)))
        return out

    # 1. base model (stand-in): shared per-frame 3x3 conv + tanh on all frames.
    # TODO(synk): depth_convlstm source is not provided; this per-frame
    # conv+tanh keeps the (T,B,C,H,W) contract but not the real recurrence.
    xs = [x_ref[ci] for ci in range(C)]
    pred = [jnp.tanh(v) for v in conv3x3(xs, bw_ref, bb_ref, C, 1)]

    # 2. per scale: avg pool + 3x3 head conv (tap stride = scale).
    hw_stride = Cms * 9 * C
    for si, s in enumerate(scales):
        pooled = avg_pool(pred, s)
        ys = conv3x3(pooled, hw_ref, hb_ref, Cms, s,
                     w_off=si * hw_stride, b_off=si * Cms)
        for co in range(Cms):
            out_ref[si * Cms + co, :, :] = ys[co]      # full 128-lane stores


# ----------------------------------------------------------------------------
# wrapper: BaseModel_WithMultiScale.forward
# ----------------------------------------------------------------------------
@functools.partial(jax.jit, static_argnames=("scales", "out_ch_ms"))
def base_model_with_multiscale_forward(params, x, *, scales, out_ch_ms):
    # x: (B, T_obs, C, H, W)
    if x.ndim != 5:
        raise ValueError("Input shape must be (B, T_obs, C, H, W)")
    B, T, C, H, W = x.shape
    ns = len(scales)
    Cms = out_ch_ms
    L = B * T * W                         # frames packed along the lane axis

    # host-side lane packing (layout plumbing only):
    # (B,T,C,H,W) -> (C,H,B,T,W) -> (C,H,L); B=2,T=4,W=16 -> L=128 lanes exactly.
    xp = jnp.transpose(x.astype(jnp.float32), (2, 3, 0, 1, 4)).reshape(C, H, L)

    bw = params["base_w"].reshape(-1).astype(jnp.float32)       # (C*9*C,)
    bb = params["base_b"].astype(jnp.float32)                   # (C,)
    hw = jnp.stack(params["ms_w"]).reshape(-1).astype(jnp.float32)  # (ns*Cms*9*C,)
    hb = jnp.stack(params["ms_b"]).reshape(-1).astype(jnp.float32)  # (ns*Cms,)

    kernel = functools.partial(_fused_kernel, scales=tuple(scales),
                               C=C, H=H, W=W, L=L, Cms=Cms)

    out = pl.pallas_call(
        kernel,
        out_shape=jax.ShapeDtypeStruct((ns * Cms, H, L), jnp.float32),
        grid=(1,),       # single step: no per-step overhead, full-lane planes
        in_specs=[pl.BlockSpec((C, H, L), lambda i: (0, 0, 0))]
                 + [pl.BlockSpec(memory_space=pltpu.MemorySpace.SMEM)] * 4,
        out_specs=pl.BlockSpec((ns * Cms, H, L), lambda i: (0, 0, 0)),
        compiler_params=pltpu.CompilerParams(
            dimension_semantics=("arbitrary",)),
    )(xp, bw, bb, hw, hb)

    # unpack (host-side layout plumbing): strided rows/cols -> (B,T,Cms,Hs,Ws)
    results = []
    for si, s in enumerate(scales):
        Hs, Ws = H // s, W // s
        y = out[si * Cms:(si + 1) * Cms, ::s, :]             # (Cms, Hs, L)
        y = y.reshape(Cms, Hs, B, T, W)[..., ::s]            # (Cms, Hs, B, T, Ws)
        results.append(jnp.transpose(y, (2, 3, 0, 1, 4)))    # (B, T, Cms, Hs, Ws)
    return results


# ----------------------------------------------------------------------------
# deterministic parameter init (shapes implied by the module config)
# ----------------------------------------------------------------------------
def init_params(key, C, out_ch_ms, scales):
    keys = jax.random.split(key, 2 + 2 * len(scales))
    params = {
        "base_w": jax.random.normal(keys[0], (C, 3, 3, C), jnp.float32) * 0.1,
        "base_b": jax.random.normal(keys[1], (C,), jnp.float32) * 0.1,
        "ms_w": [],
        "ms_b": [],
    }
    for i, _ in enumerate(scales):
        params["ms_w"].append(
            jax.random.normal(keys[2 + 2 * i], (out_ch_ms, 3, 3, C), jnp.float32) * 0.1)
        params["ms_b"].append(
            jax.random.normal(keys[3 + 2 * i], (out_ch_ms,), jnp.float32) * 0.1)
    return params


# ----------------------------------------------------------------------------
# pure-JAX reference (tolerance self-check; no Pallas)
# ----------------------------------------------------------------------------
def _ref_conv3x3(x, w, b, activation=None):
    N, Cin, H, W = x.shape
    xp = jnp.pad(x, ((0, 0), (0, 0), (1, 1), (1, 1)))
    out = jnp.zeros((N, w.shape[0], H, W), jnp.float32)
    for dy in range(3):
        for dx in range(3):
            patch = xp[:, :, dy:dy + H, dx:dx + W]
            out = out + jnp.einsum("nchw,oc->nohw", patch, w[:, dy, dx, :],
                                   precision="highest")
    out = out + b[None, :, None, None]
    if activation == "tanh":
        out = jnp.tanh(out)
    return out


def _ref_forward(params, x, *, scales, out_ch_ms):
    B, T, C, H, W = x.shape
    xf = x.reshape(B * T, C, H, W)
    xp = _ref_conv3x3(xf, params["base_w"], params["base_b"], activation="tanh")
    outs = []
    for i, s in enumerate(scales):
        pooled = xp if s == 1 else xp.reshape(
            B * T, C, H // s, s, W // s, s).mean(axis=(3, 5))
        y = _ref_conv3x3(pooled, params["ms_w"][i], params["ms_b"][i])
        outs.append(y.reshape(B, T, out_ch_ms, H // s, W // s))
    return outs


if __name__ == "__main__":
    # config: scales=[1,2,4], input_channels_multiscale=4,
    # output_channels_multiscale=2, image_spatial_size=(16,16), pooling='avg'
    B, T, C, H, W = 2, 4, 4, 16, 16
    scales = (1, 2, 4)
    out_ch_ms = 2

    key = jax.random.PRNGKey(0)
    k_x, k_p = jax.random.split(key)
    x = jax.random.normal(k_x, (B, T, C, H, W), jnp.float32)
    params = init_params(k_p, C, out_ch_ms, scales)

    outs = base_model_with_multiscale_forward(params, x, scales=scales,
                                              out_ch_ms=out_ch_ms)
    outs = jax.block_until_ready(outs)

    expected = [(B, T, out_ch_ms, H // s, W // s) for s in scales]
    got = [tuple(o.shape) for o in outs]
    assert got == expected, f"got {got}, expected {expected}"
    assert all(bool(jnp.all(jnp.isfinite(o))) for o in outs)

    # tolerance check vs pure-JAX reference (pooling now exact VPU adds;
    # remaining diffs are tanh-approximation / summation-order level)
    refs = _ref_forward(params, x, scales=scales, out_ch_ms=out_ch_ms)
    for o, r in zip(outs, refs):
        np.testing.assert_allclose(np.asarray(o), np.asarray(r),
                                   rtol=2e-3, atol=2e-3)

    print("KERNEL_OK")
</pallas_src>

<mosaic_0001>
module attributes {stable_mosaic.version = 11 : i64} {
  func.func @_fused_kernel(%arg0: i32, %arg1: memref<4x16x128xf32, #tpu.memory_space<vmem>>, %arg2: memref<144xf32, #tpu.memory_space<smem>>, %arg3: memref<4xf32, #tpu.memory_space<smem>>, %arg4: memref<216xf32, #tpu.memory_space<smem>>, %arg5: memref<6xf32, #tpu.memory_space<smem>>, %arg6: memref<6x16x128xf32, #tpu.memory_space<vmem>>) attributes {dimension_semantics = [#tpu.dimension_semantics<arbitrary>], iteration_bounds = array<i64: 1>, scalar_prefetch = 0 : i64, scratch_operands = 0 : i64, tpu.core_type = #tpu.core_type<tc>, window_params = [{pipeline_mode = #tpu.pipeline_mode<synchronous>, transform_indices = @transform_0, window_bounds = array<i64: 4, 16, 128>}, {transform_indices = @transform_1, window_bounds = array<i64: 144>}, {transform_indices = @transform_2, window_bounds = array<i64: 4>}, {transform_indices = @transform_3, window_bounds = array<i64: 216>}, {transform_indices = @transform_4, window_bounds = array<i64: 6>}, {pipeline_mode = #tpu.pipeline_mode<synchronous>, transform_indices = @transform_5, window_bounds = array<i64: 6, 16, 128>}]} {
    %0 = tpu.iota {dimensions = array<i32: 0>} : vector<16x128xi32>
    %1 = tpu.iota {dimensions = array<i32: 1>} : vector<16x128xi32>
    %c16_i32 = arith.constant 16 : i32
    %c0_i32 = arith.constant 0 : i32
    %2 = arith.cmpi eq, %c16_i32, %c0_i32 : i32
    %c1_i32 = arith.constant 1 : i32
    %3 = arith.select %2, %c1_i32, %c16_i32 : i32
    %4 = vector.broadcast %3 : i32 to vector<16x128xi32>
    %5 = arith.remsi %1, %4 : vector<16x128xi32>
    %c0_i32_0 = arith.constant 0 : i32
    %6 = vector.broadcast %c0_i32_0 : i32 to vector<16x128xi32>
    %7 = arith.cmpi ne, %5, %6 : vector<16x128xi32>
    %c0_i32_1 = arith.constant 0 : i32
    %8 = vector.broadcast %c0_i32_1 : i32 to vector<16x128xi32>
    %9 = arith.cmpi slt, %5, %8 : vector<16x128xi32>
    %c0_i32_2 = arith.constant 0 : i32
    %10 = arith.cmpi slt, %3, %c0_i32_2 : i32
    %11 = vector.broadcast %10 : i1 to vector<16x128xi1>
    %12 = vector.broadcast %11 : vector<16x128xi1> to vector<16x128xi1>
    %13 = arith.xori %9, %12 : vector<16x128xi1>
    %14 = arith.andi %13, %7 : vector<16x128xi1>
    %15 = vector.broadcast %3 : i32 to vector<16x128xi32>
    %16 = arith.addi %5, %15 : vector<16x128xi32>
    %17 = arith.select %14, %16, %5 : vector<16x128xi1>, vector<16x128xi32>
    %c0 = arith.constant 0 : index
    %c0_3 = arith.constant 0 : index
    %c0_4 = arith.constant 0 : index
    %18 = vector.load %arg1[%c0, %c0_3, %c0_4] : memref<4x16x128xf32, #tpu.memory_space<vmem>>, vector<1x16x128xf32>
    %19 = vector.shape_cast %18 : vector<1x16x128xf32> to vector<16x128xf32>
    %c1 = arith.constant 1 : index
    %c0_5 = arith.constant 0 : index
    %c0_6 = arith.constant 0 : index
    %20 = vector.load %arg1[%c1, %c0_5, %c0_6] : memref<4x16x128xf32, #tpu.memory_space<vmem>>, vector<1x16x128xf32>
    %21 = vector.shape_cast %20 : vector<1x16x128xf32> to vector<16x128xf32>
    %c2 = arith.constant 2 : index
    %c0_7 = arith.constant 0 : index
    %c0_8 = arith.constant 0 : index
    %22 = vector.load %arg1[%c2, %c0_7, %c0_8] : memref<4x16x128xf32, #tpu.memory_space<vmem>>, vector<1x16x128xf32>
    %23 = vector.shape_cast %22 : vector<1x16x128xf32> to vector<16x128xf32>
    %c3 = arith.constant 3 : index
    %c0_9 = arith.constant 0 : index
    %c0_10 = arith.constant 0 : index
    %24 = vector.load %arg1[%c3, %c0_9, %c0_10] : memref<4x16x128xf32, #tpu.memory_space<vmem>>, vector<1x16x128xf32>
    %25 = vector.shape_cast %24 : vector<1x16x128xf32> to vector<16x128xf32>
    %c1_i32_11 = arith.constant 1 : i32
    %26 = vector.broadcast %c1_i32_11 : i32 to vector<16x128xi32>
    %27 = arith.cmpi sge, %0, %26 : vector<16x128xi32>
    %c15_i32 = arith.constant 15 : i32
    %28 = vector.broadcast %c15_i32 : i32 to vector<16x128xi32>
    %29 = arith.cmpi slt, %0, %28 : vector<16x128xi32>
    %c1_i32_12 = arith.constant 1 : i32
    %30 = vector.broadcast %c1_i32_12 : i32 to vector<16x128xi32>
    %31 = arith.cmpi sge, %17, %30 : vector<16x128xi32>
    %c15_i32_13 = arith.constant 15 : i32
    %32 = vector.broadcast %c15_i32_13 : i32 to vector<16x128xi32>
    %33 = arith.cmpi slt, %17, %32 : vector<16x128xi32>
    %c1_i32_14 = arith.constant 1 : i32
    %34 = tpu.dynamic_rotate %19 by %c1_i32_14 dim 0 : vector<16x128xf32>, i32 -> vector<16x128xf32>
    %cst = arith.constant 0.000000e+00 : f32
    %35 = vector.broadcast %cst : f32 to vector<16x128xf32>
    %36 = arith.select %27, %34, %35 : vector<16x128xi1>, vector<16x128xf32>
    %c1_i32_15 = arith.constant 1 : i32
    %37 = tpu.dynamic_rotate %36 by %c1_i32_15 dim 1 : vector<16x128xf32>, i32 -> vector<16x128xf32>
    %cst_16 = arith.constant 0.000000e+00 : f32
    %38 = vector.broadcast %cst_16 : f32 to vector<16x128xf32>
    %39 = arith.select %31, %37, %38 : vector<16x128xi1>, vector<16x128xf32>
    %c0_17 = arith.constant 0 : index
    %40 = memref.load %arg2[%c0_17] : memref<144xf32, #tpu.memory_space<smem>>
    %41 = vector.broadcast %40 : f32 to vector<16x128xf32>
    %42 = arith.mulf %41, %39 : vector<16x128xf32>
    %c36 = arith.constant 36 : index
    %43 = memref.load %arg2[%c36] : memref<144xf32, #tpu.memory_space<smem>>
    %44 = vector.broadcast %43 : f32 to vector<16x128xf32>
    %45 = arith.mulf %44, %39 : vector<16x128xf32>
    %c72 = arith.constant 72 : index
    %46 = memref.load %arg2[%c72] : memref<144xf32, #tpu.memory_space<smem>>
    %47 = vector.broadcast %46 : f32 to vector<16x128xf32>
    %48 = arith.mulf %47, %39 : vector<16x128xf32>
    %c108 = arith.constant 108 : index
    %49 = memref.load %arg2[%c108] : memref<144xf32, #tpu.memory_space<smem>>
    %50 = vector.broadcast %49 : f32 to vector<16x128xf32>
    %51 = arith.mulf %50, %39 : vector<16x128xf32>
    %c4 = arith.constant 4 : index
    %52 = memref.load %arg2[%c4] : memref<144xf32, #tpu.memory_space<smem>>
    %53 = vector.broadcast %52 : f32 to vector<16x128xf32>
    %54 = arith.mulf %53, %36 : vector<16x128xf32>
    %55 = arith.addf %42, %54 : vector<16x128xf32>
    %c40 = arith.constant 40 : index
    %56 = memref.load %arg2[%c40] : memref<144xf32, #tpu.memory_space<smem>>
    %57 = vector.broadcast %56 : f32 to vector<16x128xf32>
    %58 = arith.mulf %57, %36 : vector<16x128xf32>
    %59 = arith.addf %45, %58 : vector<16x128xf32>
    %c76 = arith.constant 76 : index
    %60 = memref.load %arg2[%c76] : memref<144xf32, #tpu.memory_space<smem>>
    %61 = vector.broadcast %60 : f32 to vector<16x128xf32>
    %62 = arith.mulf %61, %36 : vector<16x128xf32>
    %63 = arith.addf %48, %62 : vector<16x128xf32>
    %c112 = arith.constant 112 : index
    %64 = memref.load %arg2[%c112] : memref<144xf32, #tpu.memory_space<smem>>
    %65 = vector.broadcast %64 : f32 to vector<16x128xf32>
    %66 = arith.mulf %65, %36 : vector<16x128xf32>
    %67 = arith.addf %51, %66 : vector<16x128xf32>
    %c127_i32 = arith.constant 127 : i32
    %68 = tpu.dynamic_rotate %36 by %c127_i32 dim 1 : vector<16x128xf32>, i32 -> vector<16x128xf32>
    %cst_18 = arith.constant 0.000000e+00 : f32
    %69 = vector.broadcast %cst_18 : f32 to vector<16x128xf32>
    %70 = arith.select %33, %68, %69 : vector<16x128xi1>, vector<16x128xf32>
    %c8 = arith.constant 8 : index
    %71 = memref.load %arg2[%c8] : memref<144xf32, #tpu.memory_space<smem>>
    %72 = vector.broadcast %71 : f32 to vector<16x128xf32>
    %73 = arith.mulf %72, %70 : vector<16x128xf32>
    %74 = arith.addf %55, %73 : vector<16x128xf32>
    %c44 = arith.constant 44 : index
    %75 = memref.load %arg2[%c44] : memref<144xf32, #tpu.memory_space<smem>>
    %76 = vector.broadcast %75 : f32 to vector<16x128xf32>
    %77 = arith.mulf %76, %70 : vector<16x128xf32>
    %78 = arith.addf %59, %77 : vector<16x128xf32>
    %c80 = arith.constant 80 : index
    %79 = memref.load %arg2[%c80] : memref<144xf32, #tpu.memory_space<smem>>
    %80 = vector.broadcast %79 : f32 to vector<16x128xf32>
    %81 = arith.mulf %80, %70 : vector<16x128xf32>
    %82 = arith.addf %63, %81 : vector<16x128xf32>
    %c116 = arith.constant 116 : index
    %83 = memref.load %arg2[%c116] : memref<144xf32, #tpu.memory_space<smem>>
    %84 = vector.broadcast %83 : f32 to vector<16x128xf32>
    %85 = arith.mulf %84, %70 : vector<16x128xf32>
    %86 = arith.addf %67, %85 : vector<16x128xf32>
    %c1_i32_19 = arith.constant 1 : i32
    %87 = tpu.dynamic_rotate %19 by %c1_i32_19 dim 1 : vector<16x128xf32>, i32 -> vector<16x128xf32>
    %cst_20 = arith.constant 0.000000e+00 : f32
    %88 = vector.broadcast %cst_20 : f32 to vector<16x128xf32>
    %89 = arith.select %31, %87, %88 : vector<16x128xi1>, vector<16x128xf32>
    %c12 = arith.constant 12 : index
    %90 = memref.load %arg2[%c12] : memref<144xf32, #tpu.memory_space<smem>>
    %91 = vector.broadcast %90 : f32 to vector<16x128xf32>
    %92 = arith.mulf %91, %89 : vector<16x128xf32>
    %93 = arith.addf %74, %92 : vector<16x128xf32>
    %c48 = arith.constant 48 : index
    %94 = memref.load %arg2[%c48] : memref<144xf32, #tpu.memory_space<smem>>
    %95 = vector.broadcast %94 : f32 to vector<16x128xf32>
    %96 = arith.mulf %95, %89 : vector<16x128xf32>
    %97 = arith.addf %78, %96 : vector<16x128xf32>
    %c84 = arith.constant 84 : index
    %98 = memref.load %arg2[%c84] : memref<144xf32, #tpu.memory_space<smem>>
    %99 = vector.broadcast %98 : f32 to vector<16x128xf32>
    %100 = arith.mulf %99, %89 : vector<16x128xf32>
    %101 = arith.addf %82, %100 : vector<16x128xf32>
    %c120 = arith.constant 120 : index
    %102 = memref.load %arg2[%c120] : memref<144xf32, #tpu.memory_space<smem>>
    %103 = vector.broadcast %102 : f32 to vector<16x128xf32>
    %104 = arith.mulf %103, %89 : vector<16x128xf32>
    %105 = arith.addf %86, %104 : vector<16x128xf32>
    %c16 = arith.constant 16 : index
    %106 = memref.load %arg2[%c16] : memref<144xf32, #tpu.memory_space<smem>>
    %107 = vector.broadcast %106 : f32 to vector<16x128xf32>
    %108 = arith.mulf %107, %19 : vector<16x128xf32>
    %109 = arith.addf %93, %108 : vector<16x128xf32>
    %c52 = arith.constant 52 : index
    %110 = memref.load %arg2[%c52] : memref<144xf32, #tpu.memory_space<smem>>
    %111 = vector.broadcast %110 : f32 to vector<16x128xf32>
    %112 = arith.mulf %111, %19 : vector<16x128xf32>
    %113 = arith.addf %97, %112 : vector<16x128xf32>
    %c88 = arith.constant 88 : index
    %114 = memref.load %arg2[%c88] : memref<144xf32, #tpu.memory_space<smem>>
    %115 = vector.broadcast %114 : f32 to vector<16x128xf32>
    %116 = arith.mulf %115, %19 : vector<16x128xf32>
    %117 = arith.addf %101, %116 : vector<16x128xf32>
    %c124 = arith.constant 124 : index
    %118 = memref.load %arg2[%c124] : memref<144xf32, #tpu.memory_space<smem>>
    %119 = vector.broadcast %118 : f32 to vector<16x128xf32>
    %120 = arith.mulf %119, %19 : vector<16x128xf32>
    %121 = arith.addf %105, %120 : vector<16x128xf32>
    %c127_i32_21 = arith.constant 127 : i32
    %122 = tpu.dynamic_rotate %19 by %c127_i32_21 dim 1 : vector<16x128xf32>, i32 -> vector<16x128xf32>
    %cst_22 = arith.constant 0.000000e+00 : f32
    %123 = vector.broadcast %cst_22 : f32 to vector<16x128xf32>
    %124 = arith.select %33, %122, %123 : vector<16x128xi1>, vector<16x128xf32>
    %c20 = arith.constant 20 : index
    %125 = memref.load %arg2[%c20] : memref<144xf32, #tpu.memory_space<smem>>
    %126 = vector.broadcast %125 : f32 to vector<16x128xf32>
    %127 = arith.mulf %126, %124 : vector<16x128xf32>
    %128 = arith.addf %109, %127 : vector<16x128xf32>
    %c56 = arith.constant 56 : index
    %129 = memref.load %arg2[%c56] : memref<144xf32, #tpu.memory_space<smem>>
    %130 = vector.broadcast %129 : f32 to vector<16x128xf32>
    %131 = arith.mulf %130, %124 : vector<16x128xf32>
    %132 = arith.addf %113, %131 : vector<16x128xf32>
    %c92 = arith.constant 92 : index
    %133 = memref.load %arg2[%c92] : memref<144xf32, #tpu.memory_space<smem>>
    %134 = vector.broadcast %133 : f32 to vector<16x128xf32>
    %135 = arith.mulf %134, %124 : vector<16x128xf32>
    %136 = arith.addf %117, %135 : vector<16x128xf32>
    %c128 = arith.constant 128 : index
    %137 = memref.load %arg2[%c128] : memref<144xf32, #tpu.memory_space<smem>>
    %138 = vector.broadcast %137 : f32 to vector<16x128xf32>
    %139 = arith.mulf %138, %124 : vector<16x128xf32>
    %140 = arith.addf %121, %139 : vector<16x128xf32>
    %c15_i32_23 = arith.constant 15 : i32
    %141 = tpu.dynamic_rotate %19 by %c15_i32_23 dim 0 : vector<16x128xf32>, i32 -> vector<16x128xf32>
    %cst_24 = arith.constant 0.000000e+00 : f32
    %142 = vector.broadcast %cst_24 : f32 to vector<16x128xf32>
    %143 = arith.select %29, %141, %142 : vector<16x128xi1>, vector<16x128xf32>
    %c1_i32_25 = arith.constant 1 : i32
    %144 = tpu.dynamic_rotate %143 by %c1_i32_25 dim 1 : vector<16x128xf32>, i32 -> vector<16x128xf32>
    %cst_26 = arith.constant 0.000000e+00 : f32
    %145 = vector.broadcast %cst_26 : f32 to vector<16x128xf32>
    %146 = arith.select %31, %144, %145 : vector<16x128xi1>, vector<16x128xf32>
    %c24 = arith.constant 24 : index
    %147 = memref.load %arg2[%c24] : memref<144xf32, #tpu.memory_space<smem>>
    %148 = vector.broadcast %147 : f32 to vector<16x128xf32>
    %149 = arith.mulf %148, %146 : vector<16x128xf32>
    %150 = arith.addf %128, %149 : vector<16x128xf32>
    %c60 = arith.constant 60 : index
    %151 = memref.load %arg2[%c60] : memref<144xf32, #tpu.memory_space<smem>>
    %152 = vector.broadcast %151 : f32 to vector<16x128xf32>
    %153 = arith.mulf %152, %146 : vector<16x128xf32>
    %154 = arith.addf %132, %153 : vector<16x128xf32>
    %c96 = arith.constant 96 : index
    %155 = memref.load %arg2[%c96] : memref<144xf32, #tpu.memory_space<smem>>
    %156 = vector.broadcast %155 : f32 to vector<16x128xf32>
    %157 = arith.mulf %156, %146 : vector<16x128xf32>
    %158 = arith.addf %136, %157 : vector<16x128xf32>
    %c132 = arith.constant 132 : index
    %159 = memref.load %arg2[%c132] : memref<144xf32, #tpu.memory_space<smem>>
    %160 = vector.broadcast %159 : f32 to vector<16x128xf32>
    %161 = arith.mulf %160, %146 : vector<16x128xf32>
    %162 = arith.addf %140, %161 : vector<16x128xf32>
    %c28 = arith.constant 28 : index
    %163 = memref.load %arg2[%c28] : memref<144xf32, #tpu.memory_space<smem>>
    %164 = vector.broadcast %163 : f32 to vector<16x128xf32>
    %165 = arith.mulf %164, %143 : vector<16x128xf32>
    %166 = arith.addf %150, %165 : vector<16x128xf32>
    %c64 = arith.constant 64 : index
    %167 = memref.load %arg2[%c64] : memref<144xf32, #tpu.memory_space<smem>>
    %168 = vector.broadcast %167 : f32 to vector<16x128xf32>
    %169 = arith.mulf %168, %143 : vector<16x128xf32>
    %170 = arith.addf %154, %169 : vector<16x128xf32>
    %c100 = arith.constant 100 : index
    %171 = memref.load %arg2[%c100] : memref<144xf32, #tpu.memory_space<smem>>
    %172 = vector.broadcast %171 : f32 to vector<16x128xf32>
    %173 = arith.mulf %172, %143 : vector<16x128xf32>
    %174 = arith.addf %158, %173 : vector<16x128xf32>
    %c136 = arith.constant 136 : index
    %175 = memref.load %arg2[%c136] : memref<144xf32, #tpu.memory_space<smem>>
    %176 = vector.broadcast %175 : f32 to vector<16x128xf32>
    %177 = arith.mulf %176, %143 : vector<16x128xf32>
    %178 = arith.addf %162, %177 : vector<16x128xf32>
    %c127_i32_27 = arith.constant 127 : i32
    %179 = tpu.dynamic_rotate %143 by %c127_i32_27 dim 1 : vector<16x128xf32>, i32 -> vector<16x128xf32>
    %cst_28 = arith.constant 0.000000e+00 : f32
    %180 = vector.broadcast %cst_28 : f32 to vector<16x128xf32>
    %181 = arith.select %33, %179, %180 : vector<16x128xi1>, vector<16x128xf32>
    %c32 = arith.constant 32 : index
    %182 = memref.load %arg2[%c32] : memref<144xf32, #tpu.memory_space<smem>>
    %183 = vector.broadcast %182 : f32 to vector<16x128xf32>
    %184 = arith.mulf %183, %181 : vector<16x128xf32>
    %185 = arith.addf %166, %184 : vector<16x128xf32>
    %c68 = arith.constant 68 : index
    %186 = memref.load %arg2[%c68] : memref<144xf32, #tpu.memory_space<smem>>
    %187 = vector.broadcast %186 : f32 to vector<16x128xf32>
    %188 = arith.mulf %187, %181 : vector<16x128xf32>
    %189 = arith.addf %170, %188 : vector<16x128xf32>
    %c104 = arith.constant 104 : index
    %190 = memref.load %arg2[%c104] : memref<144xf32, #tpu.memory_space<smem>>
    %191 = vector.broadcast %190 : f32 to vector<16x128xf32>
    %192 = arith.mulf %191, %181 : vector<16x128xf32>
    %193 = arith.addf %174, %192 : vector<16x128xf32>
    %c140 = arith.constant 140 : index
    %194 = memref.load %arg2[%c140] : memref<144xf32, #tpu.memory_space<smem>>
    %195 = vector.broadcast %194 : f32 to vector<16x128xf32>
    %196 = arith.mulf %195, %181 : vector<16x128xf32>
    %197 = arith.addf %178, %196 : vector<16x128xf32>
    %c1_i32_29 = arith.constant 1 : i32
    %198 = tpu.dynamic_rotate %21 by %c1_i32_29 dim 0 : vector<16x128xf32>, i32 -> vector<16x128xf32>
    %cst_30 = arith.constant 0.000000e+00 : f32
    %199 = vector.broadcast %cst_30 : f32 to vector<16x128xf32>
    %200 = arith.select %27, %198, %199 : vector<16x128xi1>, vector<16x128xf32>
    %c1_i32_31 = arith.constant 1 : i32
    %201 = tpu.dynamic_rotate %200 by %c1_i32_31 dim 1 : vector<16x128xf32>, i32 -> vector<16x128xf32>
    %cst_32 = arith.constant 0.000000e+00 : f32
    %202 = vector.broadcast %cst_32 : f32 to vector<16x128xf32>
    %203 = arith.select %31, %201, %202 : vector<16x128xi1>, vector<16x128xf32>
    %c1_33 = arith.constant 1 : index
    %204 = memref.load %arg2[%c1_33] : memref<144xf32, #tpu.memory_space<smem>>
    %205 = vector.broadcast %204 : f32 to vector<16x128xf32>
    %206 = arith.mulf %205, %203 : vector<16x128xf32>
    %207 = arith.addf %185, %206 : vector<16x128xf32>
    %c37 = arith.constant 37 : index
    %208 = memref.load %arg2[%c37] : memref<144xf32, #tpu.memory_space<smem>>
    %209 = vector.broadcast %208 : f32 to vector<16x128xf32>
    %210 = arith.mulf %209, %203 : vector<16x128xf32>
    %211 = arith.addf %189, %210 : vector<16x128xf32>
    %c73 = arith.constant 73 : index
    %212 = memref.load %arg2[%c73] : memref<144xf32, #tpu.memory_space<smem>>
    %213 = vector.broadcast %212 : f32 to vector<16x128xf32>
    %214 = arith.mulf %213, %203 : vector<16x128xf32>
    %215 = arith.addf %193, %214 : vector<16x128xf32>
    %c109 = arith.constant 109 : index
    %216 = memref.load %arg2[%c109] : memref<144xf32, #tpu.memory_space<smem>>
    %217 = vector.broadcast %216 : f32 to vector<16x128xf32>
    %218 = arith.mulf %217, %203 : vector<16x128xf32>
    %219 = arith.addf %197, %218 : vector<16x128xf32>
    %c5 = arith.constant 5 : index
    %220 = memref.load %arg2[%c5] : memref<144xf32, #tpu.memory_space<smem>>
    %221 = vector.broadcast %220 : f32 to vector<16x128xf32>
    %222 = arith.mulf %221, %200 : vector<16x128xf32>
    %223 = arith.addf %207, %222 : vector<16x128xf32>
    %c41 = arith.constant 41 : index
    %224 = memref.load %arg2[%c41] : memref<144xf32, #tpu.memory_space<smem>>
    %225 = vector.broadcast %224 : f32 to vector<16x128xf32>
    %226 = arith.mulf %225, %200 : vector<16x128xf32>
    %227 = arith.addf %211, %226 : vector<16x128xf32>
    %c77 = arith.constant 77 : index
    %228 = memref.load %arg2[%c77] : memref<144xf32, #tpu.memory_space<smem>>
    %229 = vector.broadcast %228 : f32 to vector<16x128xf32>
    %230 = arith.mulf %229, %200 : vector<16x128xf32>
    %231 = arith.addf %215, %230 : vector<16x128xf32>
    %c113 = arith.constant 113 : index
    %232 = memref.load %arg2[%c113] : memref<144xf32, #tpu.memory_space<smem>>
    %233 = vector.broadcast %232 : f32 to vector<16x128xf32>
    %234 = arith.mulf %233, %200 : vector<16x128xf32>
    %235 = arith.addf %219, %234 : vector<16x128xf32>
    %c127_i32_34 = arith.constant 127 : i32
    %236 = tpu.dynamic_rotate %200 by %c127_i32_34 dim 1 : vector<16x128xf32>, i32 -> vector<16x128xf32>
    %cst_35 = arith.constant 0.000000e+00 : f32
    %237 = vector.broadcast %cst_35 : f32 to vector<16x128xf32>
    %238 = arith.select %33, %236, %237 : vector<16x128xi1>, vector<16x128xf32>
    %c9 = arith.constant 9 : index
    %239 = memref.load %arg2[%c9] : memref<144xf32, #tpu.memory_space<smem>>
    %240 = vector.broadcast %239 : f32 to vector<16x128xf32>
    %241 = arith.mulf %240, %238 : vector<16x128xf32>
    %242 = arith.addf %223, %241 : vector<16x128xf32>
    %c45 = arith.constant 45 : index
    %243 = memref.load %arg2[%c45] : memref<144xf32, #tpu.memory_space<smem>>
    %244 = vector.broadcast %243 : f32 to vector<16x128xf32>
    %245 = arith.mulf %244, %238 : vector<16x128xf32>
    %246 = arith.addf %227, %245 : vector<16x128xf32>
    %c81 = arith.constant 81 : index
    %247 = memref.load %arg2[%c81] : memref<144xf32, #tpu.memory_space<smem>>
    %248 = vector.broadcast %247 : f32 to vector<16x128xf32>
    %249 = arith.mulf %248, %238 : vector<16x128xf32>
    %250 = arith.addf %231, %249 : vector<16x128xf32>
    %c117 = arith.constant 117 : index
    %251 = memref.load %arg2[%c117] : memref<144xf32, #tpu.memory_space<smem>>
    %252 = vector.broadcast %251 : f32 to vector<16x128xf32>
    %253 = arith.mulf %252, %238 : vector<16x128xf32>
    %254 = arith.addf %235, %253 : vector<16x128xf32>
    %c1_i32_36 = arith.constant 1 : i32
    %255 = tpu.dynamic_rotate %21 by %c1_i32_36 dim 1 : vector<16x128xf32>, i32 -> vector<16x128xf32>
    %cst_37 = arith.constant 0.000000e+00 : f32
    %256 = vector.broadcast %cst_37 : f32 to vector<16x128xf32>
    %257 = arith.select %31, %255, %256 : vector<16x128xi1>, vector<16x128xf32>
    %c13 = arith.constant 13 : index
    %258 = memref.load %arg2[%c13] : memref<144xf32, #tpu.memory_space<smem>>
    %259 = vector.broadcast %258 : f32 to vector<16x128xf32>
    %260 = arith.mulf %259, %257 : vector<16x128xf32>
    %261 = arith.addf %242, %260 : vector<16x128xf32>
    %c49 = arith.constant 49 : index
    %262 = memref.load %arg2[%c49] : memref<144xf32, #tpu.memory_space<smem>>
    %263 = vector.broadcast %262 : f32 to vector<16x128xf32>
    %264 = arith.mulf %263, %257 : vector<16x128xf32>
    %265 = arith.addf %246, %264 : vector<16x128xf32>
    %c85 = arith.constant 85 : index
    %266 = memref.load %arg2[%c85] : memref<144xf32, #tpu.memory_space<smem>>
    %267 = vector.broadcast %266 : f32 to vector<16x128xf32>
    %268 = arith.mulf %267, %257 : vector<16x128xf32>
    %269 = arith.addf %250, %268 : vector<16x128xf32>
    %c121 = arith.constant 121 : index
    %270 = memref.load %arg2[%c121] : memref<144xf32, #tpu.memory_space<smem>>
    %271 = vector.broadcast %270 : f32 to vector<16x128xf32>
    %272 = arith.mulf %271, %257 : vector<16x128xf32>
    %273 = arith.addf %254, %272 : vector<16x128xf32>
    %c17 = arith.constant 17 : index
    %274 = memref.load %arg2[%c17] : memref<144xf32, #tpu.memory_space<smem>>
    %275 = vector.broadcast %274 : f32 to vector<16x128xf32>
    %276 = arith.mulf %275, %21 : vector<16x128xf32>
    %277 = arith.addf %261, %276 : vector<16x128xf32>
    %c53 = arith.constant 53 : index
    %278 = memref.load %arg2[%c53] : memref<144xf32, #tpu.memory_space<smem>>
    %279 = vector.broadcast %278 : f32 to vector<16x128xf32>
    %280 = arith.mulf %279, %21 : vector<16x128xf32>
    %281 = arith.addf %265, %280 : vector<16x128xf32>
    %c89 = arith.constant 89 : index
    %282 = memref.load %arg2[%c89] : memref<144xf32, #tpu.memory_space<smem>>
    %283 = vector.broadcast %282 : f32 to vector<16x128xf32>
    %284 = arith.mulf %283, %21 : vector<16x128xf32>
    %285 = arith.addf %269, %284 : vector<16x128xf32>
    %c125 = arith.constant 125 : index
    %286 = memref.load %arg2[%c125] : memref<144xf32, #tpu.memory_space<smem>>
    %287 = vector.broadcast %286 : f32 to vector<16x128xf32>
    %288 = arith.mulf %287, %21 : vector<16x128xf32>
    %289 = arith.addf %273, %288 : vector<16x128xf32>
    %c127_i32_38 = arith.constant 127 : i32
    %290 = tpu.dynamic_rotate %21 by %c127_i32_38 dim 1 : vector<16x128xf32>, i32 -> vector<16x128xf32>
    %cst_39 = arith.constant 0.000000e+00 : f32
    %291 = vector.broadcast %cst_39 : f32 to vector<16x128xf32>
    %292 = arith.select %33, %290, %291 : vector<16x128xi1>, vector<16x128xf32>
    %c21 = arith.constant 21 : index
    %293 = memref.load %arg2[%c21] : memref<144xf32, #tpu.memory_space<smem>>
    %294 = vector.broadcast %293 : f32 to vector<16x128xf32>
    %295 = arith.mulf %294, %292 : vector<16x128xf32>
    %296 = arith.addf %277, %295 : vector<16x128xf32>
    %c57 = arith.constant 57 : index
    %297 = memref.load %arg2[%c57] : memref<144xf32, #tpu.memory_space<smem>>
    %298 = vector.broadcast %297 : f32 to vector<16x128xf32>
    %299 = arith.mulf %298, %292 : vector<16x128xf32>
    %300 = arith.addf %281, %299 : vector<16x128xf32>
    %c93 = arith.constant 93 : index
    %301 = memref.load %arg2[%c93] : memref<144xf32, #tpu.memory_space<smem>>
    %302 = vector.broadcast %301 : f32 to vector<16x128xf32>
    %303 = arith.mulf %302, %292 : vector<16x128xf32>
    %304 = arith.addf %285, %303 : vector<16x128xf32>
    %c129 = arith.constant 129 : index
    %305 = memref.load %arg2[%c129] : memref<144xf32, #tpu.memory_space<smem>>
    %306 = vector.broadcast %305 : f32 to vector<16x128xf32>
    %307 = arith.mulf %306, %292 : vector<16x128xf32>
    %308 = arith.addf %289, %307 : vector<16x128xf32>
    %c15_i32_40 = arith.constant 15 : i32
    %309 = tpu.dynamic_rotate %21 by %c15_i32_40 dim 0 : vector<16x128xf32>, i32 -> vector<16x128xf32>
    %cst_41 = arith.constant 0.000000e+00 : f32
    %310 = vector.broadcast %cst_41 : f32 to vector<16x128xf32>
    %311 = arith.select %29, %309, %310 : vector<16x128xi1>, vector<16x128xf32>
    %c1_i32_42 = arith.constant 1 : i32
    %312 = tpu.dynamic_rotate %311 by %c1_i32_42 dim 1 : vector<16x128xf32>, i32 -> vector<16x128xf32>
    %cst_43 = arith.constant 0.000000e+00 : f32
    %313 = vector.broadcast %cst_43 : f32 to vector<16x128xf32>
    %314 = arith.select %31, %312, %313 : vector<16x128xi1>, vector<16x128xf32>
    %c25 = arith.constant 25 : index
    %315 = memref.load %arg2[%c25] : memref<144xf32, #tpu.memory_space<smem>>
    %316 = vector.broadcast %315 : f32 to vector<16x128xf32>
    %317 = arith.mulf %316, %314 : vector<16x128xf32>
    %318 = arith.addf %296, %317 : vector<16x128xf32>
    %c61 = arith.constant 61 : index
    %319 = memref.load %arg2[%c61] : memref<144xf32, #tpu.memory_space<smem>>
    %320 = vector.broadcast %319 : f32 to vector<16x128xf32>
    %321 = arith.mulf %320, %314 : vector<16x128xf32>
    %322 = arith.addf %300, %321 : vector<16x128xf32>
    %c97 = arith.constant 97 : index
    %323 = memref.load %arg2[%c97] : memref<144xf32, #tpu.memory_space<smem>>
    %324 = vector.broadcast %323 : f32 to vector<16x128xf32>
    %325 = arith.mulf %324, %314 : vector<16x128xf32>
    %326 = arith.addf %304, %325 : vector<16x128xf32>
    %c133 = arith.constant 133 : index
    %327 = memref.load %arg2[%c133] : memref<144xf32, #tpu.memory_space<smem>>
    %328 = vector.broadcast %327 : f32 to vector<16x128xf32>
    %329 = arith.mulf %328, %314 : vector<16x128xf32>
    %330 = arith.addf %308, %329 : vector<16x128xf32>
    %c29 = arith.constant 29 : index
    %331 = memref.load %arg2[%c29] : memref<144xf32, #tpu.memory_space<smem>>
    %332 = vector.broadcast %331 : f32 to vector<16x128xf32>
    %333 = arith.mulf %332, %311 : vector<16x128xf32>
    %334 = arith.addf %318, %333 : vector<16x128xf32>
    %c65 = arith.constant 65 : index
    %335 = memref.load %arg2[%c65] : memref<144xf32, #tpu.memory_space<smem>>
    %336 = vector.broadcast %335 : f32 to vector<16x128xf32>
    %337 = arith.mulf %336, %311 : vector<16x128xf32>
    %338 = arith.addf %322, %337 : vector<16x128xf32>
    %c101 = arith.constant 101 : index
    %339 = memref.load %arg2[%c101] : memref<144xf32, #tpu.memory_space<smem>>
    %340 = vector.broadcast %339 : f32 to vector<16x128xf32>
    %341 = arith.mulf %340, %311 : vector<16x128xf32>
    %342 = arith.addf %326, %341 : vector<16x128xf32>
    %c137 = arith.constant 137 : index
    %343 = memref.load %arg2[%c137] : memref<144xf32, #tpu.memory_space<smem>>
    %344 = vector.broadcast %343 : f32 to vector<16x128xf32>
    %345 = arith.mulf %344, %311 : vector<16x128xf32>
    %346 = arith.addf %330, %345 : vector<16x128xf32>
    %c127_i32_44 = arith.constant 127 : i32
    %347 = tpu.dynamic_rotate %311 by %c127_i32_44 dim 1 : vector<16x128xf32>, i32 -> vector<16x128xf32>
    %cst_45 = arith.constant 0.000000e+00 : f32
    %348 = vector.broadcast %cst_45 : f32 to vector<16x128xf32>
    %349 = arith.select %33, %347, %348 : vector<16x128xi1>, vector<16x128xf32>
    %c33 = arith.constant 33 : index
    %350 = memref.load %arg2[%c33] : memref<144xf32, #tpu.memory_space<smem>>
    %351 = vector.broadcast %350 : f32 to vector<16x128xf32>
    %352 = arith.mulf %351, %349 : vector<16x128xf32>
    %353 = arith.addf %334, %352 : vector<16x128xf32>
    %c69 = arith.constant 69 : index
    %354 = memref.load %arg2[%c69] : memref<144xf32, #tpu.memory_space<smem>>
    %355 = vector.broadcast %354 : f32 to vector<16x128xf32>
    %356 = arith.mulf %355, %349 : vector<16x128xf32>
    %357 = arith.addf %338, %356 : vector<16x128xf32>
    %c105 = arith.constant 105 : index
    %358 = memref.load %arg2[%c105] : memref<144xf32, #tpu.memory_space<smem>>
    %359 = vector.broadcast %358 : f32 to vector<16x128xf32>
    %360 = arith.mulf %359, %349 : vector<16x128xf32>
    %361 = arith.addf %342, %360 : vector<16x128xf32>
    %c141 = arith.constant 141 : index
    %362 = memref.load %arg2[%c141] : memref<144xf32, #tpu.memory_space<smem>>
    %363 = vector.broadcast %362 : f32 to vector<16x128xf32>
    %364 = arith.mulf %363, %349 : vector<16x128xf32>
    %365 = arith.addf %346, %364 : vector<16x128xf32>
    %c1_i32_46 = arith.constant 1 : i32
    %366 = tpu.dynamic_rotate %23 by %c1_i32_46 dim 0 : vector<16x128xf32>, i32 -> vector<16x128xf32>
    %cst_47 = arith.constant 0.000000e+00 : f32
    %367 = vector.broadcast %cst_47 : f32 to vector<16x128xf32>
    %368 = arith.select %27, %366, %367 : vector<16x128xi1>, vector<16x128xf32>
    %c1_i32_48 = arith.constant 1 : i32
    %369 = tpu.dynamic_rotate %368 by %c1_i32_48 dim 1 : vector<16x128xf32>, i32 -> vector<16x128xf32>
    %cst_49 = arith.constant 0.000000e+00 : f32
    %370 = vector.broadcast %cst_49 : f32 to vector<16x128xf32>
    %371 = arith.select %31, %369, %370 : vector<16x128xi1>, vector<16x128xf32>
    %c2_50 = arith.constant 2 : index
    %372 = memref.load %arg2[%c2_50] : memref<144xf32, #tpu.memory_space<smem>>
    %373 = vector.broadcast %372 : f32 to vector<16x128xf32>
    %374 = arith.mulf %373, %371 : vector<16x128xf32>
    %375 = arith.addf %353, %374 : vector<16x128xf32>
    %c38 = arith.constant 38 : index
    %376 = memref.load %arg2[%c38] : memref<144xf32, #tpu.memory_space<smem>>
    %377 = vector.broadcast %376 : f32 to vector<16x128xf32>
    %378 = arith.mulf %377, %371 : vector<16x128xf32>
    %379 = arith.addf %357, %378 : vector<16x128xf32>
    %c74 = arith.constant 74 : index
    %380 = memref.load %arg2[%c74] : memref<144xf32, #tpu.memory_space<smem>>
    %381 = vector.broadcast %380 : f32 to vector<16x128xf32>
    %382 = arith.mulf %381, %371 : vector<16x128xf32>
    %383 = arith.addf %361, %382 : vector<16x128xf32>
    %c110 = arith.constant 110 : index
    %384 = memref.load %arg2[%c110] : memref<144xf32, #tpu.memory_space<smem>>
    %385 = vector.broadcast %384 : f32 to vector<16x128xf32>
    %386 = arith.mulf %385, %371 : vector<16x128xf32>
    %387 = arith.addf %365, %386 : vector<16x128xf32>
    %c6 = arith.constant 6 : index
    %388 = memref.load %arg2[%c6] : memref<144xf32, #tpu.memory_space<smem>>
    %389 = vector.broadcast %388 : f32 to vector<16x128xf32>
    %390 = arith.mulf %389, %368 : vector<16x128xf32>
    %391 = arith.addf %375, %390 : vector<16x128xf32>
    %c42 = arith.constant 42 : index
    %392 = memref.load %arg2[%c42] : memref<144xf32, #tpu.memory_space<smem>>
    %393 = vector.broadcast %392 : f32 to vector<16x128xf32>
    %394 = arith.mulf %393, %368 : vector<16x128xf32>
    %395 = arith.addf %379, %394 : vector<16x128xf32>
    %c78 = arith.constant 78 : index
    %396 = memref.load %arg2[%c78] : memref<144xf32, #tpu.memory_space<smem>>
    %397 = vector.broadcast %396 : f32 to vector<16x128xf32>
    %398 = arith.mulf %397, %368 : vector<16x128xf32>
    %399 = arith.addf %383, %398 : vector<16x128xf32>
    %c114 = arith.constant 114 : index
    %400 = memref.load %arg2[%c114] : memref<144xf32, #tpu.memory_space<smem>>
    %401 = vector.broadcast %400 : f32 to vector<16x128xf32>
    %402 = arith.mulf %401, %368 : vector<16x128xf32>
    %403 = arith.addf %387, %402 : vector<16x128xf32>
    %c127_i32_51 = arith.constant 127 : i32
    %404 = tpu.dynamic_rotate %368 by %c127_i32_51 dim 1 : vector<16x128xf32>, i32 -> vector<16x128xf32>
    %cst_52 = arith.constant 0.000000e+00 : f32
    %405 = vector.broadcast %cst_52 : f32 to vector<16x128xf32>
    %406 = arith.select %33, %404, %405 : vector<16x128xi1>, vector<16x128xf32>
    %c10 = arith.constant 10 : index
    %407 = memref.load %arg2[%c10] : memref<144xf32, #tpu.memory_space<smem>>
    %408 = vector.broadcast %407 : f32 to vector<16x128xf32>
    %409 = arith.mulf %408, %406 : vector<16x128xf32>
    %410 = arith.addf %391, %409 : vector<16x128xf32>
    %c46 = arith.constant 46 : index
    %411 = memref.load %arg2[%c46] : memref<144xf32, #tpu.memory_space<smem>>
    %412 = vector.broadcast %411 : f32 to vector<16x128xf32>
    %413 = arith.mulf %412, %406 : vector<16x128xf32>
    %414 = arith.addf %395, %413 : vector<16x128xf32>
    %c82 = arith.constant 82 : index
    %415 = memref.load %arg2[%c82] : memref<144xf32, #tpu.memory_space<smem>>
    %416 = vector.broadcast %415 : f32 to vector<16x128xf32>
    %417 = arith.mulf %416, %406 : vector<16x128xf32>
    %418 = arith.addf %399, %417 : vector<16x128xf32>
    %c118 = arith.constant 118 : index
    %419 = memref.load %arg2[%c118] : memref<144xf32, #tpu.memory_space<smem>>
    %420 = vector.broadcast %419 : f32 to vector<16x128xf32>
    %421 = arith.mulf %420, %406 : vector<16x128xf32>
    %422 = arith.addf %403, %421 : vector<16x128xf32>
    %c1_i32_53 = arith.constant 1 : i32
    %423 = tpu.dynamic_rotate %23 by %c1_i32_53 dim 1 : vector<16x128xf32>, i32 -> vector<16x128xf32>
    %cst_54 = arith.constant 0.000000e+00 : f32
    %424 = vector.broadcast %cst_54 : f32 to vector<16x128xf32>
    %425 = arith.select %31, %423, %424 : vector<16x128xi1>, vector<16x128xf32>
    %c14 = arith.constant 14 : index
    %426 = memref.load %arg2[%c14] : memref<144xf32, #tpu.memory_space<smem>>
    %427 = vector.broadcast %426 : f32 to vector<16x128xf32>
    %428 = arith.mulf %427, %425 : vector<16x128xf32>
    %429 = arith.addf %410, %428 : vector<16x128xf32>
    %c50 = arith.constant 50 : index
    %430 = memref.load %arg2[%c50] : memref<144xf32, #tpu.memory_space<smem>>
    %431 = vector.broadcast %430 : f32 to vector<16x128xf32>
    %432 = arith.mulf %431, %425 : vector<16x128xf32>
    %433 = arith.addf %414, %432 : vector<16x128xf32>
    %c86 = arith.constant 86 : index
    %434 = memref.load %arg2[%c86] : memref<144xf32, #tpu.memory_space<smem>>
    %435 = vector.broadcast %434 : f32 to vector<16x128xf32>
    %436 = arith.mulf %435, %425 : vector<16x128xf32>
    %437 = arith.addf %418, %436 : vector<16x128xf32>
    %c122 = arith.constant 122 : index
    %438 = memref.load %arg2[%c122] : memref<144xf32, #tpu.memory_space<smem>>
    %439 = vector.broadcast %438 : f32 to vector<16x128xf32>
    %440 = arith.mulf %439, %425 : vector<16x128xf32>
    %441 = arith.addf %422, %440 : vector<16x128xf32>
    %c18 = arith.constant 18 : index
    %442 = memref.load %arg2[%c18] : memref<144xf32, #tpu.memory_space<smem>>
    %443 = vector.broadcast %442 : f32 to vector<16x128xf32>
    %444 = arith.mulf %443, %23 : vector<16x128xf32>
    %445 = arith.addf %429, %444 : vector<16x128xf32>
    %c54 = arith.constant 54 : index
    %446 = memref.load %arg2[%c54] : memref<144xf32, #tpu.memory_space<smem>>
    %447 = vector.broadcast %446 : f32 to vector<16x128xf32>
    %448 = arith.mulf %447, %23 : vector<16x128xf32>
    %449 = arith.addf %433, %448 : vector<16x128xf32>
    %c90 = arith.constant 90 : index
    %450 = memref.load %arg2[%c90] : memref<144xf32, #tpu.memory_space<smem>>
    %451 = vector.broadcast %450 : f32 to vector<16x128xf32>
    %452 = arith.mulf %451, %23 : vector<16x128xf32>
    %453 = arith.addf %437, %452 : vector<16x128xf32>
    %c126 = arith.constant 126 : index
    %454 = memref.load %arg2[%c126] : memref<144xf32, #tpu.memory_space<smem>>
    %455 = vector.broadcast %454 : f32 to vector<16x128xf32>
    %456 = arith.mulf %455, %23 : vector<16x128xf32>
    %457 = arith.addf %441, %456 : vector<16x128xf32>
    %c127_i32_55 = arith.constant 127 : i32
    %458 = tpu.dynamic_rotate %23 by %c127_i32_55 dim 1 : vector<16x128xf32>, i32 -> vector<16x128xf32>
    %cst_56 = arith.constant 0.000000e+00 : f32
    %459 = vector.broadcast %cst_56 : f32 to vector<16x128xf32>
    %460 = arith.select %33, %458, %459 : vector<16x128xi1>, vector<16x128xf32>
    %c22 = arith.constant 22 : index
    %461 = memref.load %arg2[%c22] : memref<144xf32, #tpu.memory_space<smem>>
    %462 = vector.broadcast %461 : f32 to vector<16x128xf32>
    %463 = arith.mulf %462, %460 : vector<16x128xf32>
    %464 = arith.addf %445, %463 : vector<16x128xf32>
    %c58 = arith.constant 58 : index
    %465 = memref.load %arg2[%c58] : memref<144xf32, #tpu.memory_space<smem>>
    %466 = vector.broadcast %465 : f32 to vector<16x128xf32>
    %467 = arith.mulf %466, %460 : vector<16x128xf32>
    %468 = arith.addf %449, %467 : vector<16x128xf32>
    %c94 = arith.constant 94 : index
    %469 = memref.load %arg2[%c94] : memref<144xf32, #tpu.memory_space<smem>>
    %470 = vector.broadcast %469 : f32 to vector<16x128xf32>
    %471 = arith.mulf %470, %460 : vector<16x128xf32>
    %472 = arith.addf %453, %471 : vector<16x128xf32>
    %c130 = arith.constant 130 : index
    %473 = memref.load %arg2[%c130] : memref<144xf32, #tpu.memory_space<smem>>
    %474 = vector.broadcast %473 : f32 to vector<16x128xf32>
    %475 = arith.mulf %474, %460 : vector<16x128xf32>
    %476 = arith.addf %457, %475 : vector<16x128xf32>
    %c15_i32_57 = arith.constant 15 : i32
    %477 = tpu.dynamic_rotate %23 by %c15_i32_57 dim 0 : vector<16x128xf32>, i32 -> vector<16x128xf32>
    %cst_58 = arith.constant 0.000000e+00 : f32
    %478 = vector.broadcast %cst_58 : f32 to vector<16x128xf32>
    %479 = arith.select %29, %477, %478 : vector<16x128xi1>, vector<16x128xf32>
    %c1_i32_59 = arith.constant 1 : i32
    %480 = tpu.dynamic_rotate %479 by %c1_i32_59 dim 1 : vector<16x128xf32>, i32 -> vector<16x128xf32>
    %cst_60 = arith.constant 0.000000e+00 : f32
    %481 = vector.broadcast %cst_60 : f32 to vector<16x128xf32>
    %482 = arith.select %31, %480, %481 : vector<16x128xi1>, vector<16x128xf32>
    %c26 = arith.constant 26 : index
    %483 = memref.load %arg2[%c26] : memref<144xf32, #tpu.memory_space<smem>>
    %484 = vector.broadcast %483 : f32 to vector<16x128xf32>
    %485 = arith.mulf %484, %482 : vector<16x128xf32>
    %486 = arith.addf %464, %485 : vector<16x128xf32>
    %c62 = arith.constant 62 : index
    %487 = memref.load %arg2[%c62] : memref<144xf32, #tpu.memory_space<smem>>
    %488 = vector.broadcast %487 : f32 to vector<16x128xf32>
    %489 = arith.mulf %488, %482 : vector<16x128xf32>
    %490 = arith.addf %468, %489 : vector<16x128xf32>
    %c98 = arith.constant 98 : index
    %491 = memref.load %arg2[%c98] : memref<144xf32, #tpu.memory_space<smem>>
    %492 = vector.broadcast %491 : f32 to vector<16x128xf32>
    %493 = arith.mulf %492, %482 : vector<16x128xf32>
    %494 = arith.addf %472, %493 : vector<16x128xf32>
    %c134 = arith.constant 134 : index
    %495 = memref.load %arg2[%c134] : memref<144xf32, #tpu.memory_space<smem>>
    %496 = vector.broadcast %495 : f32 to vector<16x128xf32>
    %497 = arith.mulf %496, %482 : vector<16x128xf32>
    %498 = arith.addf %476, %497 : vector<16x128xf32>
    %c30 = arith.constant 30 : index
    %499 = memref.load %arg2[%c30] : memref<144xf32, #tpu.memory_space<smem>>
    %500 = vector.broadcast %499 : f32 to vector<16x128xf32>
    %501 = arith.mulf %500, %479 : vector<16x128xf32>
    %502 = arith.addf %486, %501 : vector<16x128xf32>
    %c66 = arith.constant 66 : index
    %503 = memref.load %arg2[%c66] : memref<144xf32, #tpu.memory_space<smem>>
    %504 = vector.broadcast %503 : f32 to vector<16x128xf32>
    %505 = arith.mulf %504, %479 : vector<16x128xf32>
    %506 = arith.addf %490, %505 : vector<16x128xf32>
    %c102 = arith.constant 102 : index
    %507 = memref.load %arg2[%c102] : memref<144xf32, #tpu.memory_space<smem>>
    %508 = vector.broadcast %507 : f32 to vector<16x128xf32>
    %509 = arith.mulf %508, %479 : vector<16x128xf32>
    %510 = arith.addf %494, %509 : vector<16x128xf32>
    %c138 = arith.constant 138 : index
    %511 = memref.load %arg2[%c138] : memref<144xf32, #tpu.memory_space<smem>>
    %512 = vector.broadcast %511 : f32 to vector<16x128xf32>
    %513 = arith.mulf %512, %479 : vector<16x128xf32>
    %514 = arith.addf %498, %513 : vector<16x128xf32>
    %c127_i32_61 = arith.constant 127 : i32
    %515 = tpu.dynamic_rotate %479 by %c127_i32_61 dim 1 : vector<16x128xf32>, i32 -> vector<16x128xf32>
    %cst_62 = arith.constant 0.000000e+00 : f32
    %516 = vector.broadcast %cst_62 : f32 to vector<16x128xf32>
    %517 = arith.select %33, %515, %516 : vector<16x128xi1>, vector<16x128xf32>
    %c34 = arith.constant 34 : index
    %518 = memref.load %arg2[%c34] : memref<144xf32, #tpu.memory_space<smem>>
    %519 = vector.broadcast %518 : f32 to vector<16x128xf32>
    %520 = arith.mulf %519, %517 : vector<16x128xf32>
    %521 = arith.addf %502, %520 : vector<16x128xf32>
    %c70 = arith.constant 70 : index
    %522 = memref.load %arg2[%c70] : memref<144xf32, #tpu.memory_space<smem>>
    %523 = vector.broadcast %522 : f32 to vector<16x128xf32>
    %524 = arith.mulf %523, %517 : vector<16x128xf32>
    %525 = arith.addf %506, %524 : vector<16x128xf32>
    %c106 = arith.constant 106 : index
    %526 = memref.load %arg2[%c106] : memref<144xf32, #tpu.memory_space<smem>>
    %527 = vector.broadcast %526 : f32 to vector<16x128xf32>
    %528 = arith.mulf %527, %517 : vector<16x128xf32>
    %529 = arith.addf %510, %528 : vector<16x128xf32>
    %c142 = arith.constant 142 : index
    %530 = memref.load %arg2[%c142] : memref<144xf32, #tpu.memory_space<smem>>
    %531 = vector.broadcast %530 : f32 to vector<16x128xf32>
    %532 = arith.mulf %531, %517 : vector<16x128xf32>
    %533 = arith.addf %514, %532 : vector<16x128xf32>
    %c1_i32_63 = arith.constant 1 : i32
    %534 = tpu.dynamic_rotate %25 by %c1_i32_63 dim 0 : vector<16x128xf32>, i32 -> vector<16x128xf32>
    %cst_64 = arith.constant 0.000000e+00 : f32
    %535 = vector.broadcast %cst_64 : f32 to vector<16x128xf32>
    %536 = arith.select %27, %534, %535 : vector<16x128xi1>, vector<16x128xf32>
    %c1_i32_65 = arith.constant 1 : i32
    %537 = tpu.dynamic_rotate %536 by %c1_i32_65 dim 1 : vector<16x128xf32>, i32 -> vector<16x128xf32>
    %cst_66 = arith.constant 0.000000e+00 : f32
    %538 = vector.broadcast %cst_66 : f32 to vector<16x128xf32>
    %539 = arith.select %31, %537, %538 : vector<16x128xi1>, vector<16x128xf32>
    %c3_67 = arith.constant 3 : index
    %540 = memref.load %arg2[%c3_67] : memref<144xf32, #tpu.memory_space<smem>>
    %541 = vector.broadcast %540 : f32 to vector<16x128xf32>
    %542 = arith.mulf %541, %539 : vector<16x128xf32>
    %543 = arith.addf %521, %542 : vector<16x128xf32>
    %c39 = arith.constant 39 : index
    %544 = memref.load %arg2[%c39] : memref<144xf32, #tpu.memory_space<smem>>
    %545 = vector.broadcast %544 : f32 to vector<16x128xf32>
    %546 = arith.mulf %545, %539 : vector<16x128xf32>
    %547 = arith.addf %525, %546 : vector<16x128xf32>
    %c75 = arith.constant 75 : index
    %548 = memref.load %arg2[%c75] : memref<144xf32, #tpu.memory_space<smem>>
    %549 = vector.broadcast %548 : f32 to vector<16x128xf32>
    %550 = arith.mulf %549, %539 : vector<16x128xf32>
    %551 = arith.addf %529, %550 : vector<16x128xf32>
    %c111 = arith.constant 111 : index
    %552 = memref.load %arg2[%c111] : memref<144xf32, #tpu.memory_space<smem>>
    %553 = vector.broadcast %552 : f32 to vector<16x128xf32>
    %554 = arith.mulf %553, %539 : vector<16x128xf32>
    %555 = arith.addf %533, %554 : vector<16x128xf32>
    %c7 = arith.constant 7 : index
    %556 = memref.load %arg2[%c7] : memref<144xf32, #tpu.memory_space<smem>>
    %557 = vector.broadcast %556 : f32 to vector<16x128xf32>
    %558 = arith.mulf %557, %536 : vector<16x128xf32>
    %559 = arith.addf %543, %558 : vector<16x128xf32>
    %c43 = arith.constant 43 : index
    %560 = memref.load %arg2[%c43] : memref<144xf32, #tpu.memory_space<smem>>
    %561 = vector.broadcast %560 : f32 to vector<16x128xf32>
    %562 = arith.mulf %561, %536 : vector<16x128xf32>
    %563 = arith.addf %547, %562 : vector<16x128xf32>
    %c79 = arith.constant 79 : index
    %564 = memref.load %arg2[%c79] : memref<144xf32, #tpu.memory_space<smem>>
    %565 = vector.broadcast %564 : f32 to vector<16x128xf32>
    %566 = arith.mulf %565, %536 : vector<16x128xf32>
    %567 = arith.addf %551, %566 : vector<16x128xf32>
    %c115 = arith.constant 115 : index
    %568 = memref.load %arg2[%c115] : memref<144xf32, #tpu.memory_space<smem>>
    %569 = vector.broadcast %568 : f32 to vector<16x128xf32>
    %570 = arith.mulf %569, %536 : vector<16x128xf32>
    %571 = arith.addf %555, %570 : vector<16x128xf32>
    %c127_i32_68 = arith.constant 127 : i32
    %572 = tpu.dynamic_rotate %536 by %c127_i32_68 dim 1 : vector<16x128xf32>, i32 -> vector<16x128xf32>
    %cst_69 = arith.constant 0.000000e+00 : f32
    %573 = vector.broadcast %cst_69 : f32 to vector<16x128xf32>
    %574 = arith.select %33, %572, %573 : vector<16x128xi1>, vector<16x128xf32>
    %c11 = arith.constant 11 : index
    %575 = memref.load %arg2[%c11] : memref<144xf32, #tpu.memory_space<smem>>
    %576 = vector.broadcast %575 : f32 to vector<16x128xf32>
    %577 = arith.mulf %576, %574 : vector<16x128xf32>
    %578 = arith.addf %559, %577 : vector<16x128xf32>
    %c47 = arith.constant 47 : index
    %579 = memref.load %arg2[%c47] : memref<144xf32, #tpu.memory_space<smem>>
    %580 = vector.broadcast %579 : f32 to vector<16x128xf32>
    %581 = arith.mulf %580, %574 : vector<16x128xf32>
    %582 = arith.addf %563, %581 : vector<16x128xf32>
    %c83 = arith.constant 83 : index
    %583 = memref.load %arg2[%c83] : memref<144xf32, #tpu.memory_space<smem>>
    %584 = vector.broadcast %583 : f32 to vector<16x128xf32>
    %585 = arith.mulf %584, %574 : vector<16x128xf32>
    %586 = arith.addf %567, %585 : vector<16x128xf32>
    %c119 = arith.constant 119 : index
    %587 = memref.load %arg2[%c119] : memref<144xf32, #tpu.memory_space<smem>>
    %588 = vector.broadcast %587 : f32 to vector<16x128xf32>
    %589 = arith.mulf %588, %574 : vector<16x128xf32>
    %590 = arith.addf %571, %589 : vector<16x128xf32>
    %c1_i32_70 = arith.constant 1 : i32
    %591 = tpu.dynamic_rotate %25 by %c1_i32_70 dim 1 : vector<16x128xf32>, i32 -> vector<16x128xf32>
    %cst_71 = arith.constant 0.000000e+00 : f32
    %592 = vector.broadcast %cst_71 : f32 to vector<16x128xf32>
    %593 = arith.select %31, %591, %592 : vector<16x128xi1>, vector<16x128xf32>
    %c15 = arith.constant 15 : index
    %594 = memref.load %arg2[%c15] : memref<144xf32, #tpu.memory_space<smem>>
    %595 = vector.broadcast %594 : f32 to vector<16x128xf32>
    %596 = arith.mulf %595, %593 : vector<16x128xf32>
    %597 = arith.addf %578, %596 : vector<16x128xf32>
    %c51 = arith.constant 51 : index
    %598 = memref.load %arg2[%c51] : memref<144xf32, #tpu.memory_space<smem>>
    %599 = vector.broadcast %598 : f32 to vector<16x128xf32>
    %600 = arith.mulf %599, %593 : vector<16x128xf32>
    %601 = arith.addf %582, %600 : vector<16x128xf32>
    %c87 = arith.constant 87 : index
    %602 = memref.load %arg2[%c87] : memref<144xf32, #tpu.memory_space<smem>>
    %603 = vector.broadcast %602 : f32 to vector<16x128xf32>
    %604 = arith.mulf %603, %593 : vector<16x128xf32>
    %605 = arith.addf %586, %604 : vector<16x128xf32>
    %c123 = arith.constant 123 : index
    %606 = memref.load %arg2[%c123] : memref<144xf32, #tpu.memory_space<smem>>
    %607 = vector.broadcast %606 : f32 to vector<16x128xf32>
    %608 = arith.mulf %607, %593 : vector<16x128xf32>
    %609 = arith.addf %590, %608 : vector<16x128xf32>
    %c19 = arith.constant 19 : index
    %610 = memref.load %arg2[%c19] : memref<144xf32, #tpu.memory_space<smem>>
    %611 = vector.broadcast %610 : f32 to vector<16x128xf32>
    %612 = arith.mulf %611, %25 : vector<16x128xf32>
    %613 = arith.addf %597, %612 : vector<16x128xf32>
    %c55 = arith.constant 55 : index
    %614 = memref.load %arg2[%c55] : memref<144xf32, #tpu.memory_space<smem>>
    %615 = vector.broadcast %614 : f32 to vector<16x128xf32>
    %616 = arith.mulf %615, %25 : vector<16x128xf32>
    %617 = arith.addf %601, %616 : vector<16x128xf32>
    %c91 = arith.constant 91 : index
    %618 = memref.load %arg2[%c91] : memref<144xf32, #tpu.memory_space<smem>>
    %619 = vector.broadcast %618 : f32 to vector<16x128xf32>
    %620 = arith.mulf %619, %25 : vector<16x128xf32>
    %621 = arith.addf %605, %620 : vector<16x128xf32>
    %c127 = arith.constant 127 : index
    %622 = memref.load %arg2[%c127] : memref<144xf32, #tpu.memory_space<smem>>
    %623 = vector.broadcast %622 : f32 to vector<16x128xf32>
    %624 = arith.mulf %623, %25 : vector<16x128xf32>
    %625 = arith.addf %609, %624 : vector<16x128xf32>
    %c127_i32_72 = arith.constant 127 : i32
    %626 = tpu.dynamic_rotate %25 by %c127_i32_72 dim 1 : vector<16x128xf32>, i32 -> vector<16x128xf32>
    %cst_73 = arith.constant 0.000000e+00 : f32
    %627 = vector.broadcast %cst_73 : f32 to vector<16x128xf32>
    %628 = arith.select %33, %626, %627 : vector<16x128xi1>, vector<16x128xf32>
    %c23 = arith.constant 23 : index
    %629 = memref.load %arg2[%c23] : memref<144xf32, #tpu.memory_space<smem>>
    %630 = vector.broadcast %629 : f32 to vector<16x128xf32>
    %631 = arith.mulf %630, %628 : vector<16x128xf32>
    %632 = arith.addf %613, %631 : vector<16x128xf32>
    %c59 = arith.constant 59 : index
    %633 = memref.load %arg2[%c59] : memref<144xf32, #tpu.memory_space<smem>>
    %634 = vector.broadcast %633 : f32 to vector<16x128xf32>
    %635 = arith.mulf %634, %628 : vector<16x128xf32>
    %636 = arith.addf %617, %635 : vector<16x128xf32>
    %c95 = arith.constant 95 : index
    %637 = memref.load %arg2[%c95] : memref<144xf32, #tpu.memory_space<smem>>
    %638 = vector.broadcast %637 : f32 to vector<16x128xf32>
    %639 = arith.mulf %638, %628 : vector<16x128xf32>
    %640 = arith.addf %621, %639 : vector<16x128xf32>
    %c131 = arith.constant 131 : index
    %641 = memref.load %arg2[%c131] : memref<144xf32, #tpu.memory_space<smem>>
    %642 = vector.broadcast %641 : f32 to vector<16x128xf32>
    %643 = arith.mulf %642, %628 : vector<16x128xf32>
    %644 = arith.addf %625, %643 : vector<16x128xf32>
    %c15_i32_74 = arith.constant 15 : i32
    %645 = tpu.dynamic_rotate %25 by %c15_i32_74 dim 0 : vector<16x128xf32>, i32 -> vector<16x128xf32>
    %cst_75 = arith.constant 0.000000e+00 : f32
    %646 = vector.broadcast %cst_75 : f32 to vector<16x128xf32>
    %647 = arith.select %29, %645, %646 : vector<16x128xi1>, vector<16x128xf32>
    %c1_i32_76 = arith.constant 1 : i32
    %648 = tpu.dynamic_rotate %647 by %c1_i32_76 dim 1 : vector<16x128xf32>, i32 -> vector<16x128xf32>
    %cst_77 = arith.constant 0.000000e+00 : f32
    %649 = vector.broadcast %cst_77 : f32 to vector<16x128xf32>
    %650 = arith.select %31, %648, %649 : vector<16x128xi1>, vector<16x128xf32>
    %c27 = arith.constant 27 : index
    %651 = memref.load %arg2[%c27] : memref<144xf32, #tpu.memory_space<smem>>
    %652 = vector.broadcast %651 : f32 to vector<16x128xf32>
    %653 = arith.mulf %652, %650 : vector<16x128xf32>
    %654 = arith.addf %632, %653 : vector<16x128xf32>
    %c63 = arith.constant 63 : index
    %655 = memref.load %arg2[%c63] : memref<144xf32, #tpu.memory_space<smem>>
    %656 = vector.broadcast %655 : f32 to vector<16x128xf32>
    %657 = arith.mulf %656, %650 : vector<16x128xf32>
    %658 = arith.addf %636, %657 : vector<16x128xf32>
    %c99 = arith.constant 99 : index
    %659 = memref.load %arg2[%c99] : memref<144xf32, #tpu.memory_space<smem>>
    %660 = vector.broadcast %659 : f32 to vector<16x128xf32>
    %661 = arith.mulf %660, %650 : vector<16x128xf32>
    %662 = arith.addf %640, %661 : vector<16x128xf32>
    %c135 = arith.constant 135 : index
    %663 = memref.load %arg2[%c135] : memref<144xf32, #tpu.memory_space<smem>>
    %664 = vector.broadcast %663 : f32 to vector<16x128xf32>
    %665 = arith.mulf %664, %650 : vector<16x128xf32>
    %666 = arith.addf %644, %665 : vector<16x128xf32>
    %c31 = arith.constant 31 : index
    %667 = memref.load %arg2[%c31] : memref<144xf32, #tpu.memory_space<smem>>
    %668 = vector.broadcast %667 : f32 to vector<16x128xf32>
    %669 = arith.mulf %668, %647 : vector<16x128xf32>
    %670 = arith.addf %654, %669 : vector<16x128xf32>
    %c67 = arith.constant 67 : index
    %671 = memref.load %arg2[%c67] : memref<144xf32, #tpu.memory_space<smem>>
    %672 = vector.broadcast %671 : f32 to vector<16x128xf32>
    %673 = arith.mulf %672, %647 : vector<16x128xf32>
    %674 = arith.addf %658, %673 : vector<16x128xf32>
    %c103 = arith.constant 103 : index
    %675 = memref.load %arg2[%c103] : memref<144xf32, #tpu.memory_space<smem>>
    %676 = vector.broadcast %675 : f32 to vector<16x128xf32>
    %677 = arith.mulf %676, %647 : vector<16x128xf32>
    %678 = arith.addf %662, %677 : vector<16x128xf32>
    %c139 = arith.constant 139 : index
    %679 = memref.load %arg2[%c139] : memref<144xf32, #tpu.memory_space<smem>>
    %680 = vector.broadcast %679 : f32 to vector<16x128xf32>
    %681 = arith.mulf %680, %647 : vector<16x128xf32>
    %682 = arith.addf %666, %681 : vector<16x128xf32>
    %c127_i32_78 = arith.constant 127 : i32
    %683 = tpu.dynamic_rotate %647 by %c127_i32_78 dim 1 : vector<16x128xf32>, i32 -> vector<16x128xf32>
    %cst_79 = arith.constant 0.000000e+00 : f32
    %684 = vector.broadcast %cst_79 : f32 to vector<16x128xf32>
    %685 = arith.select %33, %683, %684 : vector<16x128xi1>, vector<16x128xf32>
    %c35 = arith.constant 35 : index
    %686 = memref.load %arg2[%c35] : memref<144xf32, #tpu.memory_space<smem>>
    %687 = vector.broadcast %686 : f32 to vector<16x128xf32>
    %688 = arith.mulf %687, %685 : vector<16x128xf32>
    %689 = arith.addf %670, %688 : vector<16x128xf32>
    %c71 = arith.constant 71 : index
    %690 = memref.load %arg2[%c71] : memref<144xf32, #tpu.memory_space<smem>>
    %691 = vector.broadcast %690 : f32 to vector<16x128xf32>
    %692 = arith.mulf %691, %685 : vector<16x128xf32>
    %693 = arith.addf %674, %692 : vector<16x128xf32>
    %c107 = arith.constant 107 : index
    %694 = memref.load %arg2[%c107] : memref<144xf32, #tpu.memory_space<smem>>
    %695 = vector.broadcast %694 : f32 to vector<16x128xf32>
    %696 = arith.mulf %695, %685 : vector<16x128xf32>
    %697 = arith.addf %678, %696 : vector<16x128xf32>
    %c143 = arith.constant 143 : index
    %698 = memref.load %arg2[%c143] : memref<144xf32, #tpu.memory_space<smem>>
    %699 = vector.broadcast %698 : f32 to vector<16x128xf32>
    %700 = arith.mulf %699, %685 : vector<16x128xf32>
    %701 = arith.addf %682, %700 : vector<16x128xf32>
    %c0_80 = arith.constant 0 : index
    %702 = memref.load %arg3[%c0_80] : memref<4xf32, #tpu.memory_space<smem>>
    %703 = vector.broadcast %702 : f32 to vector<16x128xf32>
    %704 = arith.addf %689, %703 : vector<16x128xf32>
    %c1_81 = arith.constant 1 : index
    %705 = memref.load %arg3[%c1_81] : memref<4xf32, #tpu.memory_space<smem>>
    %706 = vector.broadcast %705 : f32 to vector<16x128xf32>
    %707 = arith.addf %693, %706 : vector<16x128xf32>
    %c2_82 = arith.constant 2 : index
    %708 = memref.load %arg3[%c2_82] : memref<4xf32, #tpu.memory_space<smem>>
    %709 = vector.broadcast %708 : f32 to vector<16x128xf32>
    %710 = arith.addf %697, %709 : vector<16x128xf32>
    %c3_83 = arith.constant 3 : index
    %711 = memref.load %arg3[%c3_83] : memref<4xf32, #tpu.memory_space<smem>>
    %712 = vector.broadcast %711 : f32 to vector<16x128xf32>
    %713 = arith.addf %701, %712 : vector<16x128xf32>
    %714 = math.tanh %704 : vector<16x128xf32>
    %715 = math.tanh %707 : vector<16x128xf32>
    %716 = math.tanh %710 : vector<16x128xf32>
    %717 = math.tanh %713 : vector<16x128xf32>
    %c1_i32_84 = arith.constant 1 : i32
    %718 = vector.broadcast %c1_i32_84 : i32 to vector<16x128xi32>
    %719 = arith.cmpi sge, %0, %718 : vector<16x128xi32>
    %c15_i32_85 = arith.constant 15 : i32
    %720 = vector.broadcast %c15_i32_85 : i32 to vector<16x128xi32>
    %721 = arith.cmpi slt, %0, %720 : vector<16x128xi32>
    %c1_i32_86 = arith.constant 1 : i32
    %722 = vector.broadcast %c1_i32_86 : i32 to vector<16x128xi32>
    %723 = arith.cmpi sge, %17, %722 : vector<16x128xi32>
    %c15_i32_87 = arith.constant 15 : i32
    %724 = vector.broadcast %c15_i32_87 : i32 to vector<16x128xi32>
    %725 = arith.cmpi slt, %17, %724 : vector<16x128xi32>
    %c1_i32_88 = arith.constant 1 : i32
    %726 = tpu.dynamic_rotate %714 by %c1_i32_88 dim 0 : vector<16x128xf32>, i32 -> vector<16x128xf32>
    %cst_89 = arith.constant 0.000000e+00 : f32
    %727 = vector.broadcast %cst_89 : f32 to vector<16x128xf32>
    %728 = arith.select %719, %726, %727 : vector<16x128xi1>, vector<16x128xf32>
    %c1_i32_90 = arith.constant 1 : i32
    %729 = tpu.dynamic_rotate %728 by %c1_i32_90 dim 1 : vector<16x128xf32>, i32 -> vector<16x128xf32>
    %cst_91 = arith.constant 0.000000e+00 : f32
    %730 = vector.broadcast %cst_91 : f32 to vector<16x128xf32>
    %731 = arith.select %723, %729, %730 : vector<16x128xi1>, vector<16x128xf32>
    %c0_92 = arith.constant 0 : index
    %732 = memref.load %arg4[%c0_92] : memref<216xf32, #tpu.memory_space<smem>>
    %733 = vector.broadcast %732 : f32 to vector<16x128xf32>
    %734 = arith.mulf %733, %731 : vector<16x128xf32>
    %c36_93 = arith.constant 36 : index
    %735 = memref.load %arg4[%c36_93] : memref<216xf32, #tpu.memory_space<smem>>
    %736 = vector.broadcast %735 : f32 to vector<16x128xf32>
    %737 = arith.mulf %736, %731 : vector<16x128xf32>
    %c4_94 = arith.constant 4 : index
    %738 = memref.load %arg4[%c4_94] : memref<216xf32, #tpu.memory_space<smem>>
    %739 = vector.broadcast %738 : f32 to vector<16x128xf32>
    %740 = arith.mulf %739, %728 : vector<16x128xf32>
    %741 = arith.addf %734, %740 : vector<16x128xf32>
    %c40_95 = arith.constant 40 : index
    %742 = memref.load %arg4[%c40_95] : memref<216xf32, #tpu.memory_space<smem>>
    %743 = vector.broadcast %742 : f32 to vector<16x128xf32>
    %744 = arith.mulf %743, %728 : vector<16x128xf32>
    %745 = arith.addf %737, %744 : vector<16x128xf32>
    %c127_i32_96 = arith.constant 127 : i32
    %746 = tpu.dynamic_rotate %728 by %c127_i32_96 dim 1 : vector<16x128xf32>, i32 -> vector<16x128xf32>
    %cst_97 = arith.constant 0.000000e+00 : f32
    %747 = vector.broadcast %cst_97 : f32 to vector<16x128xf32>
    %748 = arith.select %725, %746, %747 : vector<16x128xi1>, vector<16x128xf32>
    %c8_98 = arith.constant 8 : index
    %749 = memref.load %arg4[%c8_98] : memref<216xf32, #tpu.memory_space<smem>>
    %750 = vector.broadcast %749 : f32 to vector<16x128xf32>
    %751 = arith.mulf %750, %748 : vector<16x128xf32>
    %752 = arith.addf %741, %751 : vector<16x128xf32>
    %c44_99 = arith.constant 44 : index
    %753 = memref.load %arg4[%c44_99] : memref<216xf32, #tpu.memory_space<smem>>
    %754 = vector.broadcast %753 : f32 to vector<16x128xf32>
    %755 = arith.mulf %754, %748 : vector<16x128xf32>
    %756 = arith.addf %745, %755 : vector<16x128xf32>
    %c1_i32_100 = arith.constant 1 : i32
    %757 = tpu.dynamic_rotate %714 by %c1_i32_100 dim 1 : vector<16x128xf32>, i32 -> vector<16x128xf32>
    %cst_101 = arith.constant 0.000000e+00 : f32
    %758 = vector.broadcast %cst_101 : f32 to vector<16x128xf32>
    %759 = arith.select %723, %757, %758 : vector<16x128xi1>, vector<16x128xf32>
    %c12_102 = arith.constant 12 : index
    %760 = memref.load %arg4[%c12_102] : memref<216xf32, #tpu.memory_space<smem>>
    %761 = vector.broadcast %760 : f32 to vector<16x128xf32>
    %762 = arith.mulf %761, %759 : vector<16x128xf32>
    %763 = arith.addf %752, %762 : vector<16x128xf32>
    %c48_103 = arith.constant 48 : index
    %764 = memref.load %arg4[%c48_103] : memref<216xf32, #tpu.memory_space<smem>>
    %765 = vector.broadcast %764 : f32 to vector<16x128xf32>
    %766 = arith.mulf %765, %759 : vector<16x128xf32>
    %767 = arith.addf %756, %766 : vector<16x128xf32>
    %c16_104 = arith.constant 16 : index
    %768 = memref.load %arg4[%c16_104] : memref<216xf32, #tpu.memory_space<smem>>
    %769 = vector.broadcast %768 : f32 to vector<16x128xf32>
    %770 = arith.mulf %769, %714 : vector<16x128xf32>
    %771 = arith.addf %763, %770 : vector<16x128xf32>
    %c52_105 = arith.constant 52 : index
    %772 = memref.load %arg4[%c52_105] : memref<216xf32, #tpu.memory_space<smem>>
    %773 = vector.broadcast %772 : f32 to vector<16x128xf32>
    %774 = arith.mulf %773, %714 : vector<16x128xf32>
    %775 = arith.addf %767, %774 : vector<16x128xf32>
    %c127_i32_106 = arith.constant 127 : i32
    %776 = tpu.dynamic_rotate %714 by %c127_i32_106 dim 1 : vector<16x128xf32>, i32 -> vector<16x128xf32>
    %cst_107 = arith.constant 0.000000e+00 : f32
    %777 = vector.broadcast %cst_107 : f32 to vector<16x128xf32>
    %778 = arith.select %725, %776, %777 : vector<16x128xi1>, vector<16x128xf32>
    %c20_108 = arith.constant 20 : index
    %779 = memref.load %arg4[%c20_108] : memref<216xf32, #tpu.memory_space<smem>>
    %780 = vector.broadcast %779 : f32 to vector<16x128xf32>
    %781 = arith.mulf %780, %778 : vector<16x128xf32>
    %782 = arith.addf %771, %781 : vector<16x128xf32>
    %c56_109 = arith.constant 56 : index
    %783 = memref.load %arg4[%c56_109] : memref<216xf32, #tpu.memory_space<smem>>
    %784 = vector.broadcast %783 : f32 to vector<16x128xf32>
    %785 = arith.mulf %784, %778 : vector<16x128xf32>
    %786 = arith.addf %775, %785 : vector<16x128xf32>
    %c15_i32_110 = arith.constant 15 : i32
    %787 = tpu.dynamic_rotate %714 by %c15_i32_110 dim 0 : vector<16x128xf32>, i32 -> vector<16x128xf32>
    %cst_111 = arith.constant 0.000000e+00 : f32
    %788 = vector.broadcast %cst_111 : f32 to vector<16x128xf32>
    %789 = arith.select %721, %787, %788 : vector<16x128xi1>, vector<16x128xf32>
    %c1_i32_112 = arith.constant 1 : i32
    %790 = tpu.dynamic_rotate %789 by %c1_i32_112 dim 1 : vector<16x128xf32>, i32 -> vector<16x128xf32>
    %cst_113 = arith.constant 0.000000e+00 : f32
    %791 = vector.broadcast %cst_113 : f32 to vector<16x128xf32>
    %792 = arith.select %723, %790, %791 : vector<16x128xi1>, vector<16x128xf32>
    %c24_114 = arith.constant 24 : index
    %793 = memref.load %arg4[%c24_114] : memref<216xf32, #tpu.memory_space<smem>>
    %794 = vector.broadcast %793 : f32 to vector<16x128xf32>
    %795 = arith.mulf %794, %792 : vector<16x128xf32>
    %796 = arith.addf %782, %795 : vector<16x128xf32>
    %c60_115 = arith.constant 60 : index
    %797 = memref.load %arg4[%c60_115] : memref<216xf32, #tpu.memory_space<smem>>
    %798 = vector.broadcast %797 : f32 to vector<16x128xf32>
    %799 = arith.mulf %798, %792 : vector<16x128xf32>
    %800 = arith.addf %786, %799 : vector<16x128xf32>
    %c28_116 = arith.constant 28 : index
    %801 = memref.load %arg4[%c28_116] : memref<216xf32, #tpu.memory_space<smem>>
    %802 = vector.broadcast %801 : f32 to vector<16x128xf32>
    %803 = arith.mulf %802, %789 : vector<16x128xf32>
    %804 = arith.addf %796, %803 : vector<16x128xf32>
    %c64_117 = arith.constant 64 : index
    %805 = memref.load %arg4[%c64_117] : memref<216xf32, #tpu.memory_space<smem>>
    %806 = vector.broadcast %805 : f32 to vector<16x128xf32>
    %807 = arith.mulf %806, %789 : vector<16x128xf32>
    %808 = arith.addf %800, %807 : vector<16x128xf32>
    %c127_i32_118 = arith.constant 127 : i32
    %809 = tpu.dynamic_rotate %789 by %c127_i32_118 dim 1 : vector<16x128xf32>, i32 -> vector<16x128xf32>
    %cst_119 = arith.constant 0.000000e+00 : f32
    %810 = vector.broadcast %cst_119 : f32 to vector<16x128xf32>
    %811 = arith.select %725, %809, %810 : vector<16x128xi1>, vector<16x128xf32>
    %c32_120 = arith.constant 32 : index
    %812 = memref.load %arg4[%c32_120] : memref<216xf32, #tpu.memory_space<smem>>
    %813 = vector.broadcast %812 : f32 to vector<16x128xf32>
    %814 = arith.mulf %813, %811 : vector<16x128xf32>
    %815 = arith.addf %804, %814 : vector<16x128xf32>
    %c68_121 = arith.constant 68 : index
    %816 = memref.load %arg4[%c68_121] : memref<216xf32, #tpu.memory_space<smem>>
    %817 = vector.broadcast %816 : f32 to vector<16x128xf32>
    %818 = arith.mulf %817, %811 : vector<16x128xf32>
    %819 = arith.addf %808, %818 : vector<16x128xf32>
    %c1_i32_122 = arith.constant 1 : i32
    %820 = tpu.dynamic_rotate %715 by %c1_i32_122 dim 0 : vector<16x128xf32>, i32 -> vector<16x128xf32>
    %cst_123 = arith.constant 0.000000e+00 : f32
    %821 = vector.broadcast %cst_123 : f32 to vector<16x128xf32>
    %822 = arith.select %719, %820, %821 : vector<16x128xi1>, vector<16x128xf32>
    %c1_i32_124 = arith.constant 1 : i32
    %823 = tpu.dynamic_rotate %822 by %c1_i32_124 dim 1 : vector<16x128xf32>, i32 -> vector<16x128xf32>
    %cst_125 = arith.constant 0.000000e+00 : f32
    %824 = vector.broadcast %cst_125 : f32 to vector<16x128xf32>
    %825 = arith.select %723, %823, %824 : vector<16x128xi1>, vector<16x128xf32>
    %c1_126 = arith.constant 1 : index
    %826 = memref.load %arg4[%c1_126] : memref<216xf32, #tpu.memory_space<smem>>
    %827 = vector.broadcast %826 : f32 to vector<16x128xf32>
    %828 = arith.mulf %827, %825 : vector<16x128xf32>
    %829 = arith.addf %815, %828 : vector<16x128xf32>
    %c37_127 = arith.constant 37 : index
    %830 = memref.load %arg4[%c37_127] : memref<216xf32, #tpu.memory_space<smem>>
    %831 = vector.broadcast %830 : f32 to vector<16x128xf32>
    %832 = arith.mulf %831, %825 : vector<16x128xf32>
    %833 = arith.addf %819, %832 : vector<16x128xf32>
    %c5_128 = arith.constant 5 : index
    %834 = memref.load %arg4[%c5_128] : memref<216xf32, #tpu.memory_space<smem>>
    %835 = vector.broadcast %834 : f32 to vector<16x128xf32>
    %836 = arith.mulf %835, %822 : vector<16x128xf32>
    %837 = arith.addf %829, %836 : vector<16x128xf32>
    %c41_129 = arith.constant 41 : index
    %838 = memref.load %arg4[%c41_129] : memref<216xf32, #tpu.memory_space<smem>>
    %839 = vector.broadcast %838 : f32 to vector<16x128xf32>
    %840 = arith.mulf %839, %822 : vector<16x128xf32>
    %841 = arith.addf %833, %840 : vector<16x128xf32>
    %c127_i32_130 = arith.constant 127 : i32
    %842 = tpu.dynamic_rotate %822 by %c127_i32_130 dim 1 : vector<16x128xf32>, i32 -> vector<16x128xf32>
    %cst_131 = arith.constant 0.000000e+00 : f32
    %843 = vector.broadcast %cst_131 : f32 to vector<16x128xf32>
    %844 = arith.select %725, %842, %843 : vector<16x128xi1>, vector<16x128xf32>
    %c9_132 = arith.constant 9 : index
    %845 = memref.load %arg4[%c9_132] : memref<216xf32, #tpu.memory_space<smem>>
    %846 = vector.broadcast %845 : f32 to vector<16x128xf32>
    %847 = arith.mulf %846, %844 : vector<16x128xf32>
    %848 = arith.addf %837, %847 : vector<16x128xf32>
    %c45_133 = arith.constant 45 : index
    %849 = memref.load %arg4[%c45_133] : memref<216xf32, #tpu.memory_space<smem>>
    %850 = vector.broadcast %849 : f32 to vector<16x128xf32>
    %851 = arith.mulf %850, %844 : vector<16x128xf32>
    %852 = arith.addf %841, %851 : vector<16x128xf32>
    %c1_i32_134 = arith.constant 1 : i32
    %853 = tpu.dynamic_rotate %715 by %c1_i32_134 dim 1 : vector<16x128xf32>, i32 -> vector<16x128xf32>
    %cst_135 = arith.constant 0.000000e+00 : f32
    %854 = vector.broadcast %cst_135 : f32 to vector<16x128xf32>
    %855 = arith.select %723, %853, %854 : vector<16x128xi1>, vector<16x128xf32>
    %c13_136 = arith.constant 13 : index
    %856 = memref.load %arg4[%c13_136] : memref<216xf32, #tpu.memory_space<smem>>
    %857 = vector.broadcast %856 : f32 to vector<16x128xf32>
    %858 = arith.mulf %857, %855 : vector<16x128xf32>
    %859 = arith.addf %848, %858 : vector<16x128xf32>
    %c49_137 = arith.constant 49 : index
    %860 = memref.load %arg4[%c49_137] : memref<216xf32, #tpu.memory_space<smem>>
    %861 = vector.broadcast %860 : f32 to vector<16x128xf32>
    %862 = arith.mulf %861, %855 : vector<16x128xf32>
    %863 = arith.addf %852, %862 : vector<16x128xf32>
    %c17_138 = arith.constant 17 : index
    %864 = memref.load %arg4[%c17_138] : memref<216xf32, #tpu.memory_space<smem>>
    %865 = vector.broadcast %864 : f32 to vector<16x128xf32>
    %866 = arith.mulf %865, %715 : vector<16x128xf32>
    %867 = arith.addf %859, %866 : vector<16x128xf32>
    %c53_139 = arith.constant 53 : index
    %868 = memref.load %arg4[%c53_139] : memref<216xf32, #tpu.memory_space<smem>>
    %869 = vector.broadcast %868 : f32 to vector<16x128xf32>
    %870 = arith.mulf %869, %715 : vector<16x128xf32>
    %871 = arith.addf %863, %870 : vector<16x128xf32>
    %c127_i32_140 = arith.constant 127 : i32
    %872 = tpu.dynamic_rotate %715 by %c127_i32_140 dim 1 : vector<16x128xf32>, i32 -> vector<16x128xf32>
    %cst_141 = arith.constant 0.000000e+00 : f32
    %873 = vector.broadcast %cst_141 : f32 to vector<16x128xf32>
    %874 = arith.select %725, %872, %873 : vector<16x128xi1>, vector<16x128xf32>
    %c21_142 = arith.constant 21 : index
    %875 = memref.load %arg4[%c21_142] : memref<216xf32, #tpu.memory_space<smem>>
    %876 = vector.broadcast %875 : f32 to vector<16x128xf32>
    %877 = arith.mulf %876, %874 : vector<16x128xf32>
    %878 = arith.addf %867, %877 : vector<16x128xf32>
    %c57_143 = arith.constant 57 : index
    %879 = memref.load %arg4[%c57_143] : memref<216xf32, #tpu.memory_space<smem>>
    %880 = vector.broadcast %879 : f32 to vector<16x128xf32>
    %881 = arith.mulf %880, %874 : vector<16x128xf32>
    %882 = arith.addf %871, %881 : vector<16x128xf32>
    %c15_i32_144 = arith.constant 15 : i32
    %883 = tpu.dynamic_rotate %715 by %c15_i32_144 dim 0 : vector<16x128xf32>, i32 -> vector<16x128xf32>
    %cst_145 = arith.constant 0.000000e+00 : f32
    %884 = vector.broadcast %cst_145 : f32 to vector<16x128xf32>
    %885 = arith.select %721, %883, %884 : vector<16x128xi1>, vector<16x128xf32>
    %c1_i32_146 = arith.constant 1 : i32
    %886 = tpu.dynamic_rotate %885 by %c1_i32_146 dim 1 : vector<16x128xf32>, i32 -> vector<16x128xf32>
    %cst_147 = arith.constant 0.000000e+00 : f32
    %887 = vector.broadcast %cst_147 : f32 to vector<16x128xf32>
    %888 = arith.select %723, %886, %887 : vector<16x128xi1>, vector<16x128xf32>
    %c25_148 = arith.constant 25 : index
    %889 = memref.load %arg4[%c25_148] : memref<216xf32, #tpu.memory_space<smem>>
    %890 = vector.broadcast %889 : f32 to vector<16x128xf32>
    %891 = arith.mulf %890, %888 : vector<16x128xf32>
    %892 = arith.addf %878, %891 : vector<16x128xf32>
    %c61_149 = arith.constant 61 : index
    %893 = memref.load %arg4[%c61_149] : memref<216xf32, #tpu.memory_space<smem>>
    %894 = vector.broadcast %893 : f32 to vector<16x128xf32>
    %895 = arith.mulf %894, %888 : vector<16x128xf32>
    %896 = arith.addf %882, %895 : vector<16x128xf32>
    %c29_150 = arith.constant 29 : index
    %897 = memref.load %arg4[%c29_150] : memref<216xf32, #tpu.memory_space<smem>>
    %898 = vector.broadcast %897 : f32 to vector<16x128xf32>
    %899 = arith.mulf %898, %885 : vector<16x128xf32>
    %900 = arith.addf %892, %899 : vector<16x128xf32>
    %c65_151 = arith.constant 65 : index
    %901 = memref.load %arg4[%c65_151] : memref<216xf32, #tpu.memory_space<smem>>
    %902 = vector.broadcast %901 : f32 to vector<16x128xf32>
    %903 = arith.mulf %902, %885 : vector<16x128xf32>
    %904 = arith.addf %896, %903 : vector<16x128xf32>
    %c127_i32_152 = arith.constant 127 : i32
    %905 = tpu.dynamic_rotate %885 by %c127_i32_152 dim 1 : vector<16x128xf32>, i32 -> vector<16x128xf32>
    %cst_153 = arith.constant 0.000000e+00 : f32
    %906 = vector.broadcast %cst_153 : f32 to vector<16x128xf32>
    %907 = arith.select %725, %905, %906 : vector<16x128xi1>, vector<16x128xf32>
    %c33_154 = arith.constant 33 : index
    %908 = memref.load %arg4[%c33_154] : memref<216xf32, #tpu.memory_space<smem>>
    %909 = vector.broadcast %908 : f32 to vector<16x128xf32>
    %910 = arith.mulf %909, %907 : vector<16x128xf32>
    %911 = arith.addf %900, %910 : vector<16x128xf32>
    %c69_155 = arith.constant 69 : index
    %912 = memref.load %arg4[%c69_155] : memref<216xf32, #tpu.memory_space<smem>>
    %913 = vector.broadcast %912 : f32 to vector<16x128xf32>
    %914 = arith.mulf %913, %907 : vector<16x128xf32>
    %915 = arith.addf %904, %914 : vector<16x128xf32>
    %c1_i32_156 = arith.constant 1 : i32
    %916 = tpu.dynamic_rotate %716 by %c1_i32_156 dim 0 : vector<16x128xf32>, i32 -> vector<16x128xf32>
    %cst_157 = arith.constant 0.000000e+00 : f32
    %917 = vector.broadcast %cst_157 : f32 to vector<16x128xf32>
    %918 = arith.select %719, %916, %917 : vector<16x128xi1>, vector<16x128xf32>
    %c1_i32_158 = arith.constant 1 : i32
    %919 = tpu.dynamic_rotate %918 by %c1_i32_158 dim 1 : vector<16x128xf32>, i32 -> vector<16x128xf32>
    %cst_159 = arith.constant 0.000000e+00 : f32
    %920 = vector.broadcast %cst_159 : f32 to vector<16x128xf32>
    %921 = arith.select %723, %919, %920 : vector<16x128xi1>, vector<16x128xf32>
    %c2_160 = arith.constant 2 : index
    %922 = memref.load %arg4[%c2_160] : memref<216xf32, #tpu.memory_space<smem>>
    %923 = vector.broadcast %922 : f32 to vector<16x128xf32>
    %924 = arith.mulf %923, %921 : vector<16x128xf32>
    %925 = arith.addf %911, %924 : vector<16x128xf32>
    %c38_161 = arith.constant 38 : index
    %926 = memref.load %arg4[%c38_161] : memref<216xf32, #tpu.memory_space<smem>>
    %927 = vector.broadcast %926 : f32 to vector<16x128xf32>
    %928 = arith.mulf %927, %921 : vector<16x128xf32>
    %929 = arith.addf %915, %928 : vector<16x128xf32>
    %c6_162 = arith.constant 6 : index
    %930 = memref.load %arg4[%c6_162] : memref<216xf32, #tpu.memory_space<smem>>
    %931 = vector.broadcast %930 : f32 to vector<16x128xf32>
    %932 = arith.mulf %931, %918 : vector<16x128xf32>
    %933 = arith.addf %925, %932 : vector<16x128xf32>
    %c42_163 = arith.constant 42 : index
    %934 = memref.load %arg4[%c42_163] : memref<216xf32, #tpu.memory_space<smem>>
    %935 = vector.broadcast %934 : f32 to vector<16x128xf32>
    %936 = arith.mulf %935, %918 : vector<16x128xf32>
    %937 = arith.addf %929, %936 : vector<16x128xf32>
    %c127_i32_164 = arith.constant 127 : i32
    %938 = tpu.dynamic_rotate %918 by %c127_i32_164 dim 1 : vector<16x128xf32>, i32 -> vector<16x128xf32>
    %cst_165 = arith.constant 0.000000e+00 : f32
    %939 = vector.broadcast %cst_165 : f32 to vector<16x128xf32>
    %940 = arith.select %725, %938, %939 : vector<16x128xi1>, vector<16x128xf32>
    %c10_166 = arith.constant 10 : index
    %941 = memref.load %arg4[%c10_166] : memref<216xf32, #tpu.memory_space<smem>>
    %942 = vector.broadcast %941 : f32 to vector<16x128xf32>
    %943 = arith.mulf %942, %940 : vector<16x128xf32>
    %944 = arith.addf %933, %943 : vector<16x128xf32>
    %c46_167 = arith.constant 46 : index
    %945 = memref.load %arg4[%c46_167] : memref<216xf32, #tpu.memory_space<smem>>
    %946 = vector.broadcast %945 : f32 to vector<16x128xf32>
    %947 = arith.mulf %946, %940 : vector<16x128xf32>
    %948 = arith.addf %937, %947 : vector<16x128xf32>
    %c1_i32_168 = arith.constant 1 : i32
    %949 = tpu.dynamic_rotate %716 by %c1_i32_168 dim 1 : vector<16x128xf32>, i32 -> vector<16x128xf32>
    %cst_169 = arith.constant 0.000000e+00 : f32
    %950 = vector.broadcast %cst_169 : f32 to vector<16x128xf32>
    %951 = arith.select %723, %949, %950 : vector<16x128xi1>, vector<16x128xf32>
    %c14_170 = arith.constant 14 : index
    %952 = memref.load %arg4[%c14_170] : memref<216xf32, #tpu.memory_space<smem>>
    %953 = vector.broadcast %952 : f32 to vector<16x128xf32>
    %954 = arith.mulf %953, %951 : vector<16x128xf32>
    %955 = arith.addf %944, %954 : vector<16x128xf32>
    %c50_171 = arith.constant 50 : index
    %956 = memref.load %arg4[%c50_171] : memref<216xf32, #tpu.memory_space<smem>>
    %957 = vector.broadcast %956 : f32 to vector<16x128xf32>
    %958 = arith.mulf %957, %951 : vector<16x128xf32>
    %959 = arith.addf %948, %958 : vector<16x128xf32>
    %c18_172 = arith.constant 18 : index
    %960 = memref.load %arg4[%c18_172] : memref<216xf32, #tpu.memory_space<smem>>
    %961 = vector.broadcast %960 : f32 to vector<16x128xf32>
    %962 = arith.mulf %961, %716 : vector<16x128xf32>
    %963 = arith.addf %955, %962 : vector<16x128xf32>
    %c54_173 = arith.constant 54 : index
    %964 = memref.load %arg4[%c54_173] : memref<216xf32, #tpu.memory_space<smem>>
    %965 = vector.broadcast %964 : f32 to vector<16x128xf32>
    %966 = arith.mulf %965, %716 : vector<16x128xf32>
    %967 = arith.addf %959, %966 : vector<16x128xf32>
    %c127_i32_174 = arith.constant 127 : i32
    %968 = tpu.dynamic_rotate %716 by %c127_i32_174 dim 1 : vector<16x128xf32>, i32 -> vector<16x128xf32>
    %cst_175 = arith.constant 0.000000e+00 : f32
    %969 = vector.broadcast %cst_175 : f32 to vector<16x128xf32>
    %970 = arith.select %725, %968, %969 : vector<16x128xi1>, vector<16x128xf32>
    %c22_176 = arith.constant 22 : index
    %971 = memref.load %arg4[%c22_176] : memref<216xf32, #tpu.memory_space<smem>>
    %972 = vector.broadcast %971 : f32 to vector<16x128xf32>
    %973 = arith.mulf %972, %970 : vector<16x128xf32>
    %974 = arith.addf %963, %973 : vector<16x128xf32>
    %c58_177 = arith.constant 58 : index
    %975 = memref.load %arg4[%c58_177] : memref<216xf32, #tpu.memory_space<smem>>
    %976 = vector.broadcast %975 : f32 to vector<16x128xf32>
    %977 = arith.mulf %976, %970 : vector<16x128xf32>
    %978 = arith.addf %967, %977 : vector<16x128xf32>
    %c15_i32_178 = arith.constant 15 : i32
    %979 = tpu.dynamic_rotate %716 by %c15_i32_178 dim 0 : vector<16x128xf32>, i32 -> vector<16x128xf32>
    %cst_179 = arith.constant 0.000000e+00 : f32
    %980 = vector.broadcast %cst_179 : f32 to vector<16x128xf32>
    %981 = arith.select %721, %979, %980 : vector<16x128xi1>, vector<16x128xf32>
    %c1_i32_180 = arith.constant 1 : i32
    %982 = tpu.dynamic_rotate %981 by %c1_i32_180 dim 1 : vector<16x128xf32>, i32 -> vector<16x128xf32>
    %cst_181 = arith.constant 0.000000e+00 : f32
    %983 = vector.broadcast %cst_181 : f32 to vector<16x128xf32>
    %984 = arith.select %723, %982, %983 : vector<16x128xi1>, vector<16x128xf32>
    %c26_182 = arith.constant 26 : index
    %985 = memref.load %arg4[%c26_182] : memref<216xf32, #tpu.memory_space<smem>>
    %986 = vector.broadcast %985 : f32 to vector<16x128xf32>
    %987 = arith.mulf %986, %984 : vector<16x128xf32>
    %988 = arith.addf %974, %987 : vector<16x128xf32>
    %c62_183 = arith.constant 62 : index
    %989 = memref.load %arg4[%c62_183] : memref<216xf32, #tpu.memory_space<smem>>
    %990 = vector.broadcast %989 : f32 to vector<16x128xf32>
    %991 = arith.mulf %990, %984 : vector<16x128xf32>
    %992 = arith.addf %978, %991 : vector<16x128xf32>
    %c30_184 = arith.constant 30 : index
    %993 = memref.load %arg4[%c30_184] : memref<216xf32, #tpu.memory_space<smem>>
    %994 = vector.broadcast %993 : f32 to vector<16x128xf32>
    %995 = arith.mulf %994, %981 : vector<16x128xf32>
    %996 = arith.addf %988, %995 : vector<16x128xf32>
    %c66_185 = arith.constant 66 : index
    %997 = memref.load %arg4[%c66_185] : memref<216xf32, #tpu.memory_space<smem>>
    %998 = vector.broadcast %997 : f32 to vector<16x128xf32>
    %999 = arith.mulf %998, %981 : vector<16x128xf32>
    %1000 = arith.addf %992, %999 : vector<16x128xf32>
    %c127_i32_186 = arith.constant 127 : i32
    %1001 = tpu.dynamic_rotate %981 by %c127_i32_186 dim 1 : vector<16x128xf32>, i32 -> vector<16x128xf32>
    %cst_187 = arith.constant 0.000000e+00 : f32
    %1002 = vector.broadcast %cst_187 : f32 to vector<16x128xf32>
    %1003 = arith.select %725, %1001, %1002 : vector<16x128xi1>, vector<16x128xf32>
    %c34_188 = arith.constant 34 : index
    %1004 = memref.load %arg4[%c34_188] : memref<216xf32, #tpu.memory_space<smem>>
    %1005 = vector.broadcast %1004 : f32 to vector<16x128xf32>
    %1006 = arith.mulf %1005, %1003 : vector<16x128xf32>
    %1007 = arith.addf %996, %1006 : vector<16x128xf32>
    %c70_189 = arith.constant 70 : index
    %1008 = memref.load %arg4[%c70_189] : memref<216xf32, #tpu.memory_space<smem>>
    %1009 = vector.broadcast %1008 : f32 to vector<16x128xf32>
    %1010 = arith.mulf %1009, %1003 : vector<16x128xf32>
    %1011 = arith.addf %1000, %1010 : vector<16x128xf32>
    %c1_i32_190 = arith.constant 1 : i32
    %1012 = tpu.dynamic_rotate %717 by %c1_i32_190 dim 0 : vector<16x128xf32>, i32 -> vector<16x128xf32>
    %cst_191 = arith.constant 0.000000e+00 : f32
    %1013 = vector.broadcast %cst_191 : f32 to vector<16x128xf32>
    %1014 = arith.select %719, %1012, %1013 : vector<16x128xi1>, vector<16x128xf32>
    %c1_i32_192 = arith.constant 1 : i32
    %1015 = tpu.dynamic_rotate %1014 by %c1_i32_192 dim 1 : vector<16x128xf32>, i32 -> vector<16x128xf32>
    %cst_193 = arith.constant 0.000000e+00 : f32
    %1016 = vector.broadcast %cst_193 : f32 to vector<16x128xf32>
    %1017 = arith.select %723, %1015, %1016 : vector<16x128xi1>, vector<16x128xf32>
    %c3_194 = arith.constant 3 : index
    %1018 = memref.load %arg4[%c3_194] : memref<216xf32, #tpu.memory_space<smem>>
    %1019 = vector.broadcast %1018 : f32 to vector<16x128xf32>
    %1020 = arith.mulf %1019, %1017 : vector<16x128xf32>
    %1021 = arith.addf %1007, %1020 : vector<16x128xf32>
    %c39_195 = arith.constant 39 : index
    %1022 = memref.load %arg4[%c39_195] : memref<216xf32, #tpu.memory_space<smem>>
    %1023 = vector.broadcast %1022 : f32 to vector<16x128xf32>
    %1024 = arith.mulf %1023, %1017 : vector<16x128xf32>
    %1025 = arith.addf %1011, %1024 : vector<16x128xf32>
    %c7_196 = arith.constant 7 : index
    %1026 = memref.load %arg4[%c7_196] : memref<216xf32, #tpu.memory_space<smem>>
    %1027 = vector.broadcast %1026 : f32 to vector<16x128xf32>
    %1028 = arith.mulf %1027, %1014 : vector<16x128xf32>
    %1029 = arith.addf %1021, %1028 : vector<16x128xf32>
    %c43_197 = arith.constant 43 : index
    %1030 = memref.load %arg4[%c43_197] : memref<216xf32, #tpu.memory_space<smem>>
    %1031 = vector.broadcast %1030 : f32 to vector<16x128xf32>
    %1032 = arith.mulf %1031, %1014 : vector<16x128xf32>
    %1033 = arith.addf %1025, %1032 : vector<16x128xf32>
    %c127_i32_198 = arith.constant 127 : i32
    %1034 = tpu.dynamic_rotate %1014 by %c127_i32_198 dim 1 : vector<16x128xf32>, i32 -> vector<16x128xf32>
    %cst_199 = arith.constant 0.000000e+00 : f32
    %1035 = vector.broadcast %cst_199 : f32 to vector<16x128xf32>
    %1036 = arith.select %725, %1034, %1035 : vector<16x128xi1>, vector<16x128xf32>
    %c11_200 = arith.constant 11 : index
    %1037 = memref.load %arg4[%c11_200] : memref<216xf32, #tpu.memory_space<smem>>
    %1038 = vector.broadcast %1037 : f32 to vector<16x128xf32>
    %1039 = arith.mulf %1038, %1036 : vector<16x128xf32>
    %1040 = arith.addf %1029, %1039 : vector<16x128xf32>
    %c47_201 = arith.constant 47 : index
    %1041 = memref.load %arg4[%c47_201] : memref<216xf32, #tpu.memory_space<smem>>
    %1042 = vector.broadcast %1041 : f32 to vector<16x128xf32>
    %1043 = arith.mulf %1042, %1036 : vector<16x128xf32>
    %1044 = arith.addf %1033, %1043 : vector<16x128xf32>
    %c1_i32_202 = arith.constant 1 : i32
    %1045 = tpu.dynamic_rotate %717 by %c1_i32_202 dim 1 : vector<16x128xf32>, i32 -> vector<16x128xf32>
    %cst_203 = arith.constant 0.000000e+00 : f32
    %1046 = vector.broadcast %cst_203 : f32 to vector<16x128xf32>
    %1047 = arith.select %723, %1045, %1046 : vector<16x128xi1>, vector<16x128xf32>
    %c15_204 = arith.constant 15 : index
    %1048 = memref.load %arg4[%c15_204] : memref<216xf32, #tpu.memory_space<smem>>
    %1049 = vector.broadcast %1048 : f32 to vector<16x128xf32>
    %1050 = arith.mulf %1049, %1047 : vector<16x128xf32>
    %1051 = arith.addf %1040, %1050 : vector<16x128xf32>
    %c51_205 = arith.constant 51 : index
    %1052 = memref.load %arg4[%c51_205] : memref<216xf32, #tpu.memory_space<smem>>
    %1053 = vector.broadcast %1052 : f32 to vector<16x128xf32>
    %1054 = arith.mulf %1053, %1047 : vector<16x128xf32>
    %1055 = arith.addf %1044, %1054 : vector<16x128xf32>
    %c19_206 = arith.constant 19 : index
    %1056 = memref.load %arg4[%c19_206] : memref<216xf32, #tpu.memory_space<smem>>
    %1057 = vector.broadcast %1056 : f32 to vector<16x128xf32>
    %1058 = arith.mulf %1057, %717 : vector<16x128xf32>
    %1059 = arith.addf %1051, %1058 : vector<16x128xf32>
    %c55_207 = arith.constant 55 : index
    %1060 = memref.load %arg4[%c55_207] : memref<216xf32, #tpu.memory_space<smem>>
    %1061 = vector.broadcast %1060 : f32 to vector<16x128xf32>
    %1062 = arith.mulf %1061, %717 : vector<16x128xf32>
    %1063 = arith.addf %1055, %1062 : vector<16x128xf32>
    %c127_i32_208 = arith.constant 127 : i32
    %1064 = tpu.dynamic_rotate %717 by %c127_i32_208 dim 1 : vector<16x128xf32>, i32 -> vector<16x128xf32>
    %cst_209 = arith.constant 0.000000e+00 : f32
    %1065 = vector.broadcast %cst_209 : f32 to vector<16x128xf32>
    %1066 = arith.select %725, %1064, %1065 : vector<16x128xi1>, vector<16x128xf32>
    %c23_210 = arith.constant 23 : index
    %1067 = memref.load %arg4[%c23_210] : memref<216xf32, #tpu.memory_space<smem>>
    %1068 = vector.broadcast %1067 : f32 to vector<16x128xf32>
    %1069 = arith.mulf %1068, %1066 : vector<16x128xf32>
    %1070 = arith.addf %1059, %1069 : vector<16x128xf32>
    %c59_211 = arith.constant 59 : index
    %1071 = memref.load %arg4[%c59_211] : memref<216xf32, #tpu.memory_space<smem>>
    %1072 = vector.broadcast %1071 : f32 to vector<16x128xf32>
    %1073 = arith.mulf %1072, %1066 : vector<16x128xf32>
    %1074 = arith.addf %1063, %1073 : vector<16x128xf32>
    %c15_i32_212 = arith.constant 15 : i32
    %1075 = tpu.dynamic_rotate %717 by %c15_i32_212 dim 0 : vector<16x128xf32>, i32 -> vector<16x128xf32>
    %cst_213 = arith.constant 0.000000e+00 : f32
    %1076 = vector.broadcast %cst_213 : f32 to vector<16x128xf32>
    %1077 = arith.select %721, %1075, %1076 : vector<16x128xi1>, vector<16x128xf32>
    %c1_i32_214 = arith.constant 1 : i32
    %1078 = tpu.dynamic_rotate %1077 by %c1_i32_214 dim 1 : vector<16x128xf32>, i32 -> vector<16x128xf32>
    %cst_215 = arith.constant 0.000000e+00 : f32
    %1079 = vector.broadcast %cst_215 : f32 to vector<16x128xf32>
    %1080 = arith.select %723, %1078, %1079 : vector<16x128xi1>, vector<16x128xf32>
    %c27_216 = arith.constant 27 : index
    %1081 = memref.load %arg4[%c27_216] : memref<216xf32, #tpu.memory_space<smem>>
    %1082 = vector.broadcast %1081 : f32 to vector<16x128xf32>
    %1083 = arith.mulf %1082, %1080 : vector<16x128xf32>
    %1084 = arith.addf %1070, %1083 : vector<16x128xf32>
    %c63_217 = arith.constant 63 : index
    %1085 = memref.load %arg4[%c63_217] : memref<216xf32, #tpu.memory_space<smem>>
    %1086 = vector.broadcast %1085 : f32 to vector<16x128xf32>
    %1087 = arith.mulf %1086, %1080 : vector<16x128xf32>
    %1088 = arith.addf %1074, %1087 : vector<16x128xf32>
    %c31_218 = arith.constant 31 : index
    %1089 = memref.load %arg4[%c31_218] : memref<216xf32, #tpu.memory_space<smem>>
    %1090 = vector.broadcast %1089 : f32 to vector<16x128xf32>
    %1091 = arith.mulf %1090, %1077 : vector<16x128xf32>
    %1092 = arith.addf %1084, %1091 : vector<16x128xf32>
    %c67_219 = arith.constant 67 : index
    %1093 = memref.load %arg4[%c67_219] : memref<216xf32, #tpu.memory_space<smem>>
    %1094 = vector.broadcast %1093 : f32 to vector<16x128xf32>
    %1095 = arith.mulf %1094, %1077 : vector<16x128xf32>
    %1096 = arith.addf %1088, %1095 : vector<16x128xf32>
    %c127_i32_220 = arith.constant 127 : i32
    %1097 = tpu.dynamic_rotate %1077 by %c127_i32_220 dim 1 : vector<16x128xf32>, i32 -> vector<16x128xf32>
    %cst_221 = arith.constant 0.000000e+00 : f32
    %1098 = vector.broadcast %cst_221 : f32 to vector<16x128xf32>
    %1099 = arith.select %725, %1097, %1098 : vector<16x128xi1>, vector<16x128xf32>
    %c35_222 = arith.constant 35 : index
    %1100 = memref.load %arg4[%c35_222] : memref<216xf32, #tpu.memory_space<smem>>
    %1101 = vector.broadcast %1100 : f32 to vector<16x128xf32>
    %1102 = arith.mulf %1101, %1099 : vector<16x128xf32>
    %1103 = arith.addf %1092, %1102 : vector<16x128xf32>
    %c71_223 = arith.constant 71 : index
    %1104 = memref.load %arg4[%c71_223] : memref<216xf32, #tpu.memory_space<smem>>
    %1105 = vector.broadcast %1104 : f32 to vector<16x128xf32>
    %1106 = arith.mulf %1105, %1099 : vector<16x128xf32>
    %1107 = arith.addf %1096, %1106 : vector<16x128xf32>
    %c0_224 = arith.constant 0 : index
    %1108 = memref.load %arg5[%c0_224] : memref<6xf32, #tpu.memory_space<smem>>
    %1109 = vector.broadcast %1108 : f32 to vector<16x128xf32>
    %1110 = arith.addf %1103, %1109 : vector<16x128xf32>
    %c1_225 = arith.constant 1 : index
    %1111 = memref.load %arg5[%c1_225] : memref<6xf32, #tpu.memory_space<smem>>
    %1112 = vector.broadcast %1111 : f32 to vector<16x128xf32>
    %1113 = arith.addf %1107, %1112 : vector<16x128xf32>
    %c0_226 = arith.constant 0 : index
    %c0_227 = arith.constant 0 : index
    %c0_228 = arith.constant 0 : index
    %1114 = vector.load %arg6[%c0_226, %c0_227, %c0_228] : memref<6x16x128xf32, #tpu.memory_space<vmem>>, vector<1x16x128xf32>
    %1115 = vector.shape_cast %1114 : vector<1x16x128xf32> to vector<16x128xf32>
    %1116 = vector.shape_cast %1110 : vector<16x128xf32> to vector<1x16x128xf32>
    tpu.vector_store %arg6[%c0_226, %c0_227, %c0_228], %1116 {strides = array<i32>} : memref<6x16x128xf32, #tpu.memory_space<vmem>>, vector<1x16x128xf32>,
    %c1_229 = arith.constant 1 : index
    %c0_230 = arith.constant 0 : index
    %c0_231 = arith.constant 0 : index
    %1117 = vector.load %arg6[%c1_229, %c0_230, %c0_231] : memref<6x16x128xf32, #tpu.memory_space<vmem>>, vector<1x16x128xf32>
    %1118 = vector.shape_cast %1117 : vector<1x16x128xf32> to vector<16x128xf32>
    %1119 = vector.shape_cast %1113 : vector<16x128xf32> to vector<1x16x128xf32>
    tpu.vector_store %arg6[%c1_229, %c0_230, %c0_231], %1119 {strides = array<i32>} : memref<6x16x128xf32, #tpu.memory_space<vmem>>, vector<1x16x128xf32>,
    %c15_i32_232 = arith.constant 15 : i32
    %1120 = tpu.dynamic_rotate %714 by %c15_i32_232 dim 0 : vector<16x128xf32>, i32 -> vector<16x128xf32>
    %1121 = arith.addf %714, %1120 : vector<16x128xf32>
    %c127_i32_233 = arith.constant 127 : i32
    %1122 = tpu.dynamic_rotate %1121 by %c127_i32_233 dim 1 : vector<16x128xf32>, i32 -> vector<16x128xf32>
    %1123 = arith.addf %1121, %1122 : vector<16x128xf32>
    %cst_234 = arith.constant 2.500000e-01 : f32
    %1124 = vector.broadcast %cst_234 : f32 to vector<16x128xf32>
    %1125 = arith.mulf %1123, %1124 : vector<16x128xf32>
    %c15_i32_235 = arith.constant 15 : i32
    %1126 = tpu.dynamic_rotate %715 by %c15_i32_235 dim 0 : vector<16x128xf32>, i32 -> vector<16x128xf32>
    %1127 = arith.addf %715, %1126 : vector<16x128xf32>
    %c127_i32_236 = arith.constant 127 : i32
    %1128 = tpu.dynamic_rotate %1127 by %c127_i32_236 dim 1 : vector<16x128xf32>, i32 -> vector<16x128xf32>
    %1129 = arith.addf %1127, %1128 : vector<16x128xf32>
    %cst_237 = arith.constant 2.500000e-01 : f32
    %1130 = vector.broadcast %cst_237 : f32 to vector<16x128xf32>
    %1131 = arith.mulf %1129, %1130 : vector<16x128xf32>
    %c15_i32_238 = arith.constant 15 : i32
    %1132 = tpu.dynamic_rotate %716 by %c15_i32_238 dim 0 : vector<16x128xf32>, i32 -> vector<16x128xf32>
    %1133 = arith.addf %716, %1132 : vector<16x128xf32>
    %c127_i32_239 = arith.constant 127 : i32
    %1134 = tpu.dynamic_rotate %1133 by %c127_i32_239 dim 1 : vector<16x128xf32>, i32 -> vector<16x128xf32>
    %1135 = arith.addf %1133, %1134 : vector<16x128xf32>
    %cst_240 = arith.constant 2.500000e-01 : f32
    %1136 = vector.broadcast %cst_240 : f32 to vector<16x128xf32>
    %1137 = arith.mulf %1135, %1136 : vector<16x128xf32>
    %c15_i32_241 = arith.constant 15 : i32
    %1138 = tpu.dynamic_rotate %717 by %c15_i32_241 dim 0 : vector<16x128xf32>, i32 -> vector<16x128xf32>
    %1139 = arith.addf %717, %1138 : vector<16x128xf32>
    %c127_i32_242 = arith.constant 127 : i32
    %1140 = tpu.dynamic_rotate %1139 by %c127_i32_242 dim 1 : vector<16x128xf32>, i32 -> vector<16x128xf32>
    %1141 = arith.addf %1139, %1140 : vector<16x128xf32>
    %cst_243 = arith.constant 2.500000e-01 : f32
    %1142 = vector.broadcast %cst_243 : f32 to vector<16x128xf32>
    %1143 = arith.mulf %1141, %1142 : vector<16x128xf32>
    %c2_i32 = arith.constant 2 : i32
    %1144 = vector.broadcast %c2_i32 : i32 to vector<16x128xi32>
    %1145 = arith.cmpi sge, %0, %1144 : vector<16x128xi32>
    %c14_i32 = arith.constant 14 : i32
    %1146 = vector.broadcast %c14_i32 : i32 to vector<16x128xi32>
    %1147 = arith.cmpi slt, %0, %1146 : vector<16x128xi32>
    %c2_i32_244 = arith.constant 2 : i32
    %1148 = vector.broadcast %c2_i32_244 : i32 to vector<16x128xi32>
    %1149 = arith.cmpi sge, %17, %1148 : vector<16x128xi32>
    %c14_i32_245 = arith.constant 14 : i32
    %1150 = vector.broadcast %c14_i32_245 : i32 to vector<16x128xi32>
    %1151 = arith.cmpi slt, %17, %1150 : vector<16x128xi32>
    %c2_i32_246 = arith.constant 2 : i32
    %1152 = tpu.dynamic_rotate %1125 by %c2_i32_246 dim 0 : vector<16x128xf32>, i32 -> vector<16x128xf32>
    %cst_247 = arith.constant 0.000000e+00 : f32
    %1153 = vector.broadcast %cst_247 : f32 to vector<16x128xf32>
    %1154 = arith.select %1145, %1152, %1153 : vector<16x128xi1>, vector<16x128xf32>
    %c2_i32_248 = arith.constant 2 : i32
    %1155 = tpu.dynamic_rotate %1154 by %c2_i32_248 dim 1 : vector<16x128xf32>, i32 -> vector<16x128xf32>
    %cst_249 = arith.constant 0.000000e+00 : f32
    %1156 = vector.broadcast %cst_249 : f32 to vector<16x128xf32>
    %1157 = arith.select %1149, %1155, %1156 : vector<16x128xi1>, vector<16x128xf32>
    %c72_250 = arith.constant 72 : index
    %1158 = memref.load %arg4[%c72_250] : memref<216xf32, #tpu.memory_space<smem>>
    %1159 = vector.broadcast %1158 : f32 to vector<16x128xf32>
    %1160 = arith.mulf %1159, %1157 : vector<16x128xf32>
    %c108_251 = arith.constant 108 : index
    %1161 = memref.load %arg4[%c108_251] : memref<216xf32, #tpu.memory_space<smem>>
    %1162 = vector.broadcast %1161 : f32 to vector<16x128xf32>
    %1163 = arith.mulf %1162, %1157 : vector<16x128xf32>
    %c76_252 = arith.constant 76 : index
    %1164 = memref.load %arg4[%c76_252] : memref<216xf32, #tpu.memory_space<smem>>
    %1165 = vector.broadcast %1164 : f32 to vector<16x128xf32>
    %1166 = arith.mulf %1165, %1154 : vector<16x128xf32>
    %1167 = arith.addf %1160, %1166 : vector<16x128xf32>
    %c112_253 = arith.constant 112 : index
    %1168 = memref.load %arg4[%c112_253] : memref<216xf32, #tpu.memory_space<smem>>
    %1169 = vector.broadcast %1168 : f32 to vector<16x128xf32>
    %1170 = arith.mulf %1169, %1154 : vector<16x128xf32>
    %1171 = arith.addf %1163, %1170 : vector<16x128xf32>
    %c126_i32 = arith.constant 126 : i32
    %1172 = tpu.dynamic_rotate %1154 by %c126_i32 dim 1 : vector<16x128xf32>, i32 -> vector<16x128xf32>
    %cst_254 = arith.constant 0.000000e+00 : f32
    %1173 = vector.broadcast %cst_254 : f32 to vector<16x128xf32>
    %1174 = arith.select %1151, %1172, %1173 : vector<16x128xi1>, vector<16x128xf32>
    %c80_255 = arith.constant 80 : index
    %1175 = memref.load %arg4[%c80_255] : memref<216xf32, #tpu.memory_space<smem>>
    %1176 = vector.broadcast %1175 : f32 to vector<16x128xf32>
    %1177 = arith.mulf %1176, %1174 : vector<16x128xf32>
    %1178 = arith.addf %1167, %1177 : vector<16x128xf32>
    %c116_256 = arith.constant 116 : index
    %1179 = memref.load %arg4[%c116_256] : memref<216xf32, #tpu.memory_space<smem>>
    %1180 = vector.broadcast %1179 : f32 to vector<16x128xf32>
    %1181 = arith.mulf %1180, %1174 : vector<16x128xf32>
    %1182 = arith.addf %1171, %1181 : vector<16x128xf32>
    %c2_i32_257 = arith.constant 2 : i32
    %1183 = tpu.dynamic_rotate %1125 by %c2_i32_257 dim 1 : vector<16x128xf32>, i32 -> vector<16x128xf32>
    %cst_258 = arith.constant 0.000000e+00 : f32
    %1184 = vector.broadcast %cst_258 : f32 to vector<16x128xf32>
    %1185 = arith.select %1149, %1183, %1184 : vector<16x128xi1>, vector<16x128xf32>
    %c84_259 = arith.constant 84 : index
    %1186 = memref.load %arg4[%c84_259] : memref<216xf32, #tpu.memory_space<smem>>
    %1187 = vector.broadcast %1186 : f32 to vector<16x128xf32>
    %1188 = arith.mulf %1187, %1185 : vector<16x128xf32>
    %1189 = arith.addf %1178, %1188 : vector<16x128xf32>
    %c120_260 = arith.constant 120 : index
    %1190 = memref.load %arg4[%c120_260] : memref<216xf32, #tpu.memory_space<smem>>
    %1191 = vector.broadcast %1190 : f32 to vector<16x128xf32>
    %1192 = arith.mulf %1191, %1185 : vector<16x128xf32>
    %1193 = arith.addf %1182, %1192 : vector<16x128xf32>
    %c88_261 = arith.constant 88 : index
    %1194 = memref.load %arg4[%c88_261] : memref<216xf32, #tpu.memory_space<smem>>
    %1195 = vector.broadcast %1194 : f32 to vector<16x128xf32>
    %1196 = arith.mulf %1195, %1125 : vector<16x128xf32>
    %1197 = arith.addf %1189, %1196 : vector<16x128xf32>
    %c124_262 = arith.constant 124 : index
    %1198 = memref.load %arg4[%c124_262] : memref<216xf32, #tpu.memory_space<smem>>
    %1199 = vector.broadcast %1198 : f32 to vector<16x128xf32>
    %1200 = arith.mulf %1199, %1125 : vector<16x128xf32>
    %1201 = arith.addf %1193, %1200 : vector<16x128xf32>
    %c126_i32_263 = arith.constant 126 : i32
    %1202 = tpu.dynamic_rotate %1125 by %c126_i32_263 dim 1 : vector<16x128xf32>, i32 -> vector<16x128xf32>
    %cst_264 = arith.constant 0.000000e+00 : f32
    %1203 = vector.broadcast %cst_264 : f32 to vector<16x128xf32>
    %1204 = arith.select %1151, %1202, %1203 : vector<16x128xi1>, vector<16x128xf32>
    %c92_265 = arith.constant 92 : index
    %1205 = memref.load %arg4[%c92_265] : memref<216xf32, #tpu.memory_space<smem>>
    %1206 = vector.broadcast %1205 : f32 to vector<16x128xf32>
    %1207 = arith.mulf %1206, %1204 : vector<16x128xf32>
    %1208 = arith.addf %1197, %1207 : vector<16x128xf32>
    %c128_266 = arith.constant 128 : index
    %1209 = memref.load %arg4[%c128_266] : memref<216xf32, #tpu.memory_space<smem>>
    %1210 = vector.broadcast %1209 : f32 to vector<16x128xf32>
    %1211 = arith.mulf %1210, %1204 : vector<16x128xf32>
    %1212 = arith.addf %1201, %1211 : vector<16x128xf32>
    %c14_i32_267 = arith.constant 14 : i32
    %1213 = tpu.dynamic_rotate %1125 by %c14_i32_267 dim 0 : vector<16x128xf32>, i32 -> vector<16x128xf32>
    %cst_268 = arith.constant 0.000000e+00 : f32
    %1214 = vector.broadcast %cst_268 : f32 to vector<16x128xf32>
    %1215 = arith.select %1147, %1213, %1214 : vector<16x128xi1>, vector<16x128xf32>
    %c2_i32_269 = arith.constant 2 : i32
    %1216 = tpu.dynamic_rotate %1215 by %c2_i32_269 dim 1 : vector<16x128xf32>, i32 -> vector<16x128xf32>
    %cst_270 = arith.constant 0.000000e+00 : f32
    %1217 = vector.broadcast %cst_270 : f32 to vector<16x128xf32>
    %1218 = arith.select %1149, %1216, %1217 : vector<16x128xi1>, vector<16x128xf32>
    %c96_271 = arith.constant 96 : index
    %1219 = memref.load %arg4[%c96_271] : memref<216xf32, #tpu.memory_space<smem>>
    %1220 = vector.broadcast %1219 : f32 to vector<16x128xf32>
    %1221 = arith.mulf %1220, %1218 : vector<16x128xf32>
    %1222 = arith.addf %1208, %1221 : vector<16x128xf32>
    %c132_272 = arith.constant 132 : index
    %1223 = memref.load %arg4[%c132_272] : memref<216xf32, #tpu.memory_space<smem>>
    %1224 = vector.broadcast %1223 : f32 to vector<16x128xf32>
    %1225 = arith.mulf %1224, %1218 : vector<16x128xf32>
    %1226 = arith.addf %1212, %1225 : vector<16x128xf32>
    %c100_273 = arith.constant 100 : index
    %1227 = memref.load %arg4[%c100_273] : memref<216xf32, #tpu.memory_space<smem>>
    %1228 = vector.broadcast %1227 : f32 to vector<16x128xf32>
    %1229 = arith.mulf %1228, %1215 : vector<16x128xf32>
    %1230 = arith.addf %1222, %1229 : vector<16x128xf32>
    %c136_274 = arith.constant 136 : index
    %1231 = memref.load %arg4[%c136_274] : memref<216xf32, #tpu.memory_space<smem>>
    %1232 = vector.broadcast %1231 : f32 to vector<16x128xf32>
    %1233 = arith.mulf %1232, %1215 : vector<16x128xf32>
    %1234 = arith.addf %1226, %1233 : vector<16x128xf32>
    %c126_i32_275 = arith.constant 126 : i32
    %1235 = tpu.dynamic_rotate %1215 by %c126_i32_275 dim 1 : vector<16x128xf32>, i32 -> vector<16x128xf32>
    %cst_276 = arith.constant 0.000000e+00 : f32
    %1236 = vector.broadcast %cst_276 : f32 to vector<16x128xf32>
    %1237 = arith.select %1151, %1235, %1236 : vector<16x128xi1>, vector<16x128xf32>
    %c104_277 = arith.constant 104 : index
    %1238 = memref.load %arg4[%c104_277] : memref<216xf32, #tpu.memory_space<smem>>
    %1239 = vector.broadcast %1238 : f32 to vector<16x128xf32>
    %1240 = arith.mulf %1239, %1237 : vector<16x128xf32>
    %1241 = arith.addf %1230, %1240 : vector<16x128xf32>
    %c140_278 = arith.constant 140 : index
    %1242 = memref.load %arg4[%c140_278] : memref<216xf32, #tpu.memory_space<smem>>
    %1243 = vector.broadcast %1242 : f32 to vector<16x128xf32>
    %1244 = arith.mulf %1243, %1237 : vector<16x128xf32>
    %1245 = arith.addf %1234, %1244 : vector<16x128xf32>
    %c2_i32_279 = arith.constant 2 : i32
    %1246 = tpu.dynamic_rotate %1131 by %c2_i32_279 dim 0 : vector<16x128xf32>, i32 -> vector<16x128xf32>
    %cst_280 = arith.constant 0.000000e+00 : f32
    %1247 = vector.broadcast %cst_280 : f32 to vector<16x128xf32>
    %1248 = arith.select %1145, %1246, %1247 : vector<16x128xi1>, vector<16x128xf32>
    %c2_i32_281 = arith.constant 2 : i32
    %1249 = tpu.dynamic_rotate %1248 by %c2_i32_281 dim 1 : vector<16x128xf32>, i32 -> vector<16x128xf32>
    %cst_282 = arith.constant 0.000000e+00 : f32
    %1250 = vector.broadcast %cst_282 : f32 to vector<16x128xf32>
    %1251 = arith.select %1149, %1249, %1250 : vector<16x128xi1>, vector<16x128xf32>
    %c73_283 = arith.constant 73 : index
    %1252 = memref.load %arg4[%c73_283] : memref<216xf32, #tpu.memory_space<smem>>
    %1253 = vector.broadcast %1252 : f32 to vector<16x128xf32>
    %1254 = arith.mulf %1253, %1251 : vector<16x128xf32>
    %1255 = arith.addf %1241, %1254 : vector<16x128xf32>
    %c109_284 = arith.constant 109 : index
    %1256 = memref.load %arg4[%c109_284] : memref<216xf32, #tpu.memory_space<smem>>
    %1257 = vector.broadcast %1256 : f32 to vector<16x128xf32>
    %1258 = arith.mulf %1257, %1251 : vector<16x128xf32>
    %1259 = arith.addf %1245, %1258 : vector<16x128xf32>
    %c77_285 = arith.constant 77 : index
    %1260 = memref.load %arg4[%c77_285] : memref<216xf32, #tpu.memory_space<smem>>
    %1261 = vector.broadcast %1260 : f32 to vector<16x128xf32>
    %1262 = arith.mulf %1261, %1248 : vector<16x128xf32>
    %1263 = arith.addf %1255, %1262 : vector<16x128xf32>
    %c113_286 = arith.constant 113 : index
    %1264 = memref.load %arg4[%c113_286] : memref<216xf32, #tpu.memory_space<smem>>
    %1265 = vector.broadcast %1264 : f32 to vector<16x128xf32>
    %1266 = arith.mulf %1265, %1248 : vector<16x128xf32>
    %1267 = arith.addf %1259, %1266 : vector<16x128xf32>
    %c126_i32_287 = arith.constant 126 : i32
    %1268 = tpu.dynamic_rotate %1248 by %c126_i32_287 dim 1 : vector<16x128xf32>, i32 -> vector<16x128xf32>
    %cst_288 = arith.constant 0.000000e+00 : f32
    %1269 = vector.broadcast %cst_288 : f32 to vector<16x128xf32>
    %1270 = arith.select %1151, %1268, %1269 : vector<16x128xi1>, vector<16x128xf32>
    %c81_289 = arith.constant 81 : index
    %1271 = memref.load %arg4[%c81_289] : memref<216xf32, #tpu.memory_space<smem>>
    %1272 = vector.broadcast %1271 : f32 to vector<16x128xf32>
    %1273 = arith.mulf %1272, %1270 : vector<16x128xf32>
    %1274 = arith.addf %1263, %1273 : vector<16x128xf32>
    %c117_290 = arith.constant 117 : index
    %1275 = memref.load %arg4[%c117_290] : memref<216xf32, #tpu.memory_space<smem>>
    %1276 = vector.broadcast %1275 : f32 to vector<16x128xf32>
    %1277 = arith.mulf %1276, %1270 : vector<16x128xf32>
    %1278 = arith.addf %1267, %1277 : vector<16x128xf32>
    %c2_i32_291 = arith.constant 2 : i32
    %1279 = tpu.dynamic_rotate %1131 by %c2_i32_291 dim 1 : vector<16x128xf32>, i32 -> vector<16x128xf32>
    %cst_292 = arith.constant 0.000000e+00 : f32
    %1280 = vector.broadcast %cst_292 : f32 to vector<16x128xf32>
    %1281 = arith.select %1149, %1279, %1280 : vector<16x128xi1>, vector<16x128xf32>
    %c85_293 = arith.constant 85 : index
    %1282 = memref.load %arg4[%c85_293] : memref<216xf32, #tpu.memory_space<smem>>
    %1283 = vector.broadcast %1282 : f32 to vector<16x128xf32>
    %1284 = arith.mulf %1283, %1281 : vector<16x128xf32>
    %1285 = arith.addf %1274, %1284 : vector<16x128xf32>
    %c121_294 = arith.constant 121 : index
    %1286 = memref.load %arg4[%c121_294] : memref<216xf32, #tpu.memory_space<smem>>
    %1287 = vector.broadcast %1286 : f32 to vector<16x128xf32>
    %1288 = arith.mulf %1287, %1281 : vector<16x128xf32>
    %1289 = arith.addf %1278, %1288 : vector<16x128xf32>
    %c89_295 = arith.constant 89 : index
    %1290 = memref.load %arg4[%c89_295] : memref<216xf32, #tpu.memory_space<smem>>
    %1291 = vector.broadcast %1290 : f32 to vector<16x128xf32>
    %1292 = arith.mulf %1291, %1131 : vector<16x128xf32>
    %1293 = arith.addf %1285, %1292 : vector<16x128xf32>
    %c125_296 = arith.constant 125 : index
    %1294 = memref.load %arg4[%c125_296] : memref<216xf32, #tpu.memory_space<smem>>
    %1295 = vector.broadcast %1294 : f32 to vector<16x128xf32>
    %1296 = arith.mulf %1295, %1131 : vector<16x128xf32>
    %1297 = arith.addf %1289, %1296 : vector<16x128xf32>
    %c126_i32_297 = arith.constant 126 : i32
    %1298 = tpu.dynamic_rotate %1131 by %c126_i32_297 dim 1 : vector<16x128xf32>, i32 -> vector<16x128xf32>
    %cst_298 = arith.constant 0.000000e+00 : f32
    %1299 = vector.broadcast %cst_298 : f32 to vector<16x128xf32>
    %1300 = arith.select %1151, %1298, %1299 : vector<16x128xi1>, vector<16x128xf32>
    %c93_299 = arith.constant 93 : index
    %1301 = memref.load %arg4[%c93_299] : memref<216xf32, #tpu.memory_space<smem>>
    %1302 = vector.broadcast %1301 : f32 to vector<16x128xf32>
    %1303 = arith.mulf %1302, %1300 : vector<16x128xf32>
    %1304 = arith.addf %1293, %1303 : vector<16x128xf32>
    %c129_300 = arith.constant 129 : index
    %1305 = memref.load %arg4[%c129_300] : memref<216xf32, #tpu.memory_space<smem>>
    %1306 = vector.broadcast %1305 : f32 to vector<16x128xf32>
    %1307 = arith.mulf %1306, %1300 : vector<16x128xf32>
    %1308 = arith.addf %1297, %1307 : vector<16x128xf32>
    %c14_i32_301 = arith.constant 14 : i32
    %1309 = tpu.dynamic_rotate %1131 by %c14_i32_301 dim 0 : vector<16x128xf32>, i32 -> vector<16x128xf32>
    %cst_302 = arith.constant 0.000000e+00 : f32
    %1310 = vector.broadcast %cst_302 : f32 to vector<16x128xf32>
    %1311 = arith.select %1147, %1309, %1310 : vector<16x128xi1>, vector<16x128xf32>
    %c2_i32_303 = arith.constant 2 : i32
    %1312 = tpu.dynamic_rotate %1311 by %c2_i32_303 dim 1 : vector<16x128xf32>, i32 -> vector<16x128xf32>
    %cst_304 = arith.constant 0.000000e+00 : f32
    %1313 = vector.broadcast %cst_304 : f32 to vector<16x128xf32>
    %1314 = arith.select %1149, %1312, %1313 : vector<16x128xi1>, vector<16x128xf32>
    %c97_305 = arith.constant 97 : index
    %1315 = memref.load %arg4[%c97_305] : memref<216xf32, #tpu.memory_space<smem>>
    %1316 = vector.broadcast %1315 : f32 to vector<16x128xf32>
    %1317 = arith.mulf %1316, %1314 : vector<16x128xf32>
    %1318 = arith.addf %1304, %1317 : vector<16x128xf32>
    %c133_306 = arith.constant 133 : index
    %1319 = memref.load %arg4[%c133_306] : memref<216xf32, #tpu.memory_space<smem>>
    %1320 = vector.broadcast %1319 : f32 to vector<16x128xf32>
    %1321 = arith.mulf %1320, %1314 : vector<16x128xf32>
    %1322 = arith.addf %1308, %1321 : vector<16x128xf32>
    %c101_307 = arith.constant 101 : index
    %1323 = memref.load %arg4[%c101_307] : memref<216xf32, #tpu.memory_space<smem>>
    %1324 = vector.broadcast %1323 : f32 to vector<16x128xf32>
    %1325 = arith.mulf %1324, %1311 : vector<16x128xf32>
    %1326 = arith.addf %1318, %1325 : vector<16x128xf32>
    %c137_308 = arith.constant 137 : index
    %1327 = memref.load %arg4[%c137_308] : memref<216xf32, #tpu.memory_space<smem>>
    %1328 = vector.broadcast %1327 : f32 to vector<16x128xf32>
    %1329 = arith.mulf %1328, %1311 : vector<16x128xf32>
    %1330 = arith.addf %1322, %1329 : vector<16x128xf32>
    %c126_i32_309 = arith.constant 126 : i32
    %1331 = tpu.dynamic_rotate %1311 by %c126_i32_309 dim 1 : vector<16x128xf32>, i32 -> vector<16x128xf32>
    %cst_310 = arith.constant 0.000000e+00 : f32
    %1332 = vector.broadcast %cst_310 : f32 to vector<16x128xf32>
    %1333 = arith.select %1151, %1331, %1332 : vector<16x128xi1>, vector<16x128xf32>
    %c105_311 = arith.constant 105 : index
    %1334 = memref.load %arg4[%c105_311] : memref<216xf32, #tpu.memory_space<smem>>
    %1335 = vector.broadcast %1334 : f32 to vector<16x128xf32>
    %1336 = arith.mulf %1335, %1333 : vector<16x128xf32>
    %1337 = arith.addf %1326, %1336 : vector<16x128xf32>
    %c141_312 = arith.constant 141 : index
    %1338 = memref.load %arg4[%c141_312] : memref<216xf32, #tpu.memory_space<smem>>
    %1339 = vector.broadcast %1338 : f32 to vector<16x128xf32>
    %1340 = arith.mulf %1339, %1333 : vector<16x128xf32>
    %1341 = arith.addf %1330, %1340 : vector<16x128xf32>
    %c2_i32_313 = arith.constant 2 : i32
    %1342 = tpu.dynamic_rotate %1137 by %c2_i32_313 dim 0 : vector<16x128xf32>, i32 -> vector<16x128xf32>
    %cst_314 = arith.constant 0.000000e+00 : f32
    %1343 = vector.broadcast %cst_314 : f32 to vector<16x128xf32>
    %1344 = arith.select %1145, %1342, %1343 : vector<16x128xi1>, vector<16x128xf32>
    %c2_i32_315 = arith.constant 2 : i32
    %1345 = tpu.dynamic_rotate %1344 by %c2_i32_315 dim 1 : vector<16x128xf32>, i32 -> vector<16x128xf32>
    %cst_316 = arith.constant 0.000000e+00 : f32
    %1346 = vector.broadcast %cst_316 : f32 to vector<16x128xf32>
    %1347 = arith.select %1149, %1345, %1346 : vector<16x128xi1>, vector<16x128xf32>
    %c74_317 = arith.constant 74 : index
    %1348 = memref.load %arg4[%c74_317] : memref<216xf32, #tpu.memory_space<smem>>
    %1349 = vector.broadcast %1348 : f32 to vector<16x128xf32>
    %1350 = arith.mulf %1349, %1347 : vector<16x128xf32>
    %1351 = arith.addf %1337, %1350 : vector<16x128xf32>
    %c110_318 = arith.constant 110 : index
    %1352 = memref.load %arg4[%c110_318] : memref<216xf32, #tpu.memory_space<smem>>
    %1353 = vector.broadcast %1352 : f32 to vector<16x128xf32>
    %1354 = arith.mulf %1353, %1347 : vector<16x128xf32>
    %1355 = arith.addf %1341, %1354 : vector<16x128xf32>
    %c78_319 = arith.constant 78 : index
    %1356 = memref.load %arg4[%c78_319] : memref<216xf32, #tpu.memory_space<smem>>
    %1357 = vector.broadcast %1356 : f32 to vector<16x128xf32>
    %1358 = arith.mulf %1357, %1344 : vector<16x128xf32>
    %1359 = arith.addf %1351, %1358 : vector<16x128xf32>
    %c114_320 = arith.constant 114 : index
    %1360 = memref.load %arg4[%c114_320] : memref<216xf32, #tpu.memory_space<smem>>
    %1361 = vector.broadcast %1360 : f32 to vector<16x128xf32>
    %1362 = arith.mulf %1361, %1344 : vector<16x128xf32>
    %1363 = arith.addf %1355, %1362 : vector<16x128xf32>
    %c126_i32_321 = arith.constant 126 : i32
    %1364 = tpu.dynamic_rotate %1344 by %c126_i32_321 dim 1 : vector<16x128xf32>, i32 -> vector<16x128xf32>
    %cst_322 = arith.constant 0.000000e+00 : f32
    %1365 = vector.broadcast %cst_322 : f32 to vector<16x128xf32>
    %1366 = arith.select %1151, %1364, %1365 : vector<16x128xi1>, vector<16x128xf32>
    %c82_323 = arith.constant 82 : index
    %1367 = memref.load %arg4[%c82_323] : memref<216xf32, #tpu.memory_space<smem>>
    %1368 = vector.broadcast %1367 : f32 to vector<16x128xf32>
    %1369 = arith.mulf %1368, %1366 : vector<16x128xf32>
    %1370 = arith.addf %1359, %1369 : vector<16x128xf32>
    %c118_324 = arith.constant 118 : index
    %1371 = memref.load %arg4[%c118_324] : memref<216xf32, #tpu.memory_space<smem>>
    %1372 = vector.broadcast %1371 : f32 to vector<16x128xf32>
    %1373 = arith.mulf %1372, %1366 : vector<16x128xf32>
    %1374 = arith.addf %1363, %1373 : vector<16x128xf32>
    %c2_i32_325 = arith.constant 2 : i32
    %1375 = tpu.dynamic_rotate %1137 by %c2_i32_325 dim 1 : vector<16x128xf32>, i32 -> vector<16x128xf32>
    %cst_326 = arith.constant 0.000000e+00 : f32
    %1376 = vector.broadcast %cst_326 : f32 to vector<16x128xf32>
    %1377 = arith.select %1149, %1375, %1376 : vector<16x128xi1>, vector<16x128xf32>
    %c86_327 = arith.constant 86 : index
    %1378 = memref.load %arg4[%c86_327] : memref<216xf32, #tpu.memory_space<smem>>
    %1379 = vector.broadcast %1378 : f32 to vector<16x128xf32>
    %1380 = arith.mulf %1379, %1377 : vector<16x128xf32>
    %1381 = arith.addf %1370, %1380 : vector<16x128xf32>
    %c122_328 = arith.constant 122 : index
    %1382 = memref.load %arg4[%c122_328] : memref<216xf32, #tpu.memory_space<smem>>
    %1383 = vector.broadcast %1382 : f32 to vector<16x128xf32>
    %1384 = arith.mulf %1383, %1377 : vector<16x128xf32>
    %1385 = arith.addf %1374, %1384 : vector<16x128xf32>
    %c90_329 = arith.constant 90 : index
    %1386 = memref.load %arg4[%c90_329] : memref<216xf32, #tpu.memory_space<smem>>
    %1387 = vector.broadcast %1386 : f32 to vector<16x128xf32>
    %1388 = arith.mulf %1387, %1137 : vector<16x128xf32>
    %1389 = arith.addf %1381, %1388 : vector<16x128xf32>
    %c126_330 = arith.constant 126 : index
    %1390 = memref.load %arg4[%c126_330] : memref<216xf32, #tpu.memory_space<smem>>
    %1391 = vector.broadcast %1390 : f32 to vector<16x128xf32>
    %1392 = arith.mulf %1391, %1137 : vector<16x128xf32>
    %1393 = arith.addf %1385, %1392 : vector<16x128xf32>
    %c126_i32_331 = arith.constant 126 : i32
    %1394 = tpu.dynamic_rotate %1137 by %c126_i32_331 dim 1 : vector<16x128xf32>, i32 -> vector<16x128xf32>
    %cst_332 = arith.constant 0.000000e+00 : f32
    %1395 = vector.broadcast %cst_332 : f32 to vector<16x128xf32>
    %1396 = arith.select %1151, %1394, %1395 : vector<16x128xi1>, vector<16x128xf32>
    %c94_333 = arith.constant 94 : index
    %1397 = memref.load %arg4[%c94_333] : memref<216xf32, #tpu.memory_space<smem>>
    %1398 = vector.broadcast %1397 : f32 to vector<16x128xf32>
    %1399 = arith.mulf %1398, %1396 : vector<16x128xf32>
    %1400 = arith.addf %1389, %1399 : vector<16x128xf32>
    %c130_334 = arith.constant 130 : index
    %1401 = memref.load %arg4[%c130_334] : memref<216xf32, #tpu.memory_space<smem>>
    %1402 = vector.broadcast %1401 : f32 to vector<16x128xf32>
    %1403 = arith.mulf %1402, %1396 : vector<16x128xf32>
    %1404 = arith.addf %1393, %1403 : vector<16x128xf32>
    %c14_i32_335 = arith.constant 14 : i32
    %1405 = tpu.dynamic_rotate %1137 by %c14_i32_335 dim 0 : vector<16x128xf32>, i32 -> vector<16x128xf32>
    %cst_336 = arith.constant 0.000000e+00 : f32
    %1406 = vector.broadcast %cst_336 : f32 to vector<16x128xf32>
    %1407 = arith.select %1147, %1405, %1406 : vector<16x128xi1>, vector<16x128xf32>
    %c2_i32_337 = arith.constant 2 : i32
    %1408 = tpu.dynamic_rotate %1407 by %c2_i32_337 dim 1 : vector<16x128xf32>, i32 -> vector<16x128xf32>
    %cst_338 = arith.constant 0.000000e+00 : f32
    %1409 = vector.broadcast %cst_338 : f32 to vector<16x128xf32>
    %1410 = arith.select %1149, %1408, %1409 : vector<16x128xi1>, vector<16x128xf32>
    %c98_339 = arith.constant 98 : index
    %1411 = memref.load %arg4[%c98_339] : memref<216xf32, #tpu.memory_space<smem>>
    %1412 = vector.broadcast %1411 : f32 to vector<16x128xf32>
    %1413 = arith.mulf %1412, %1410 : vector<16x128xf32>
    %1414 = arith.addf %1400, %1413 : vector<16x128xf32>
    %c134_340 = arith.constant 134 : index
    %1415 = memref.load %arg4[%c134_340] : memref<216xf32, #tpu.memory_space<smem>>
    %1416 = vector.broadcast %1415 : f32 to vector<16x128xf32>
    %1417 = arith.mulf %1416, %1410 : vector<16x128xf32>
    %1418 = arith.addf %1404, %1417 : vector<16x128xf32>
    %c102_341 = arith.constant 102 : index
    %1419 = memref.load %arg4[%c102_341] : memref<216xf32, #tpu.memory_space<smem>>
    %1420 = vector.broadcast %1419 : f32 to vector<16x128xf32>
    %1421 = arith.mulf %1420, %1407 : vector<16x128xf32>
    %1422 = arith.addf %1414, %1421 : vector<16x128xf32>
    %c138_342 = arith.constant 138 : index
    %1423 = memref.load %arg4[%c138_342] : memref<216xf32, #tpu.memory_space<smem>>
    %1424 = vector.broadcast %1423 : f32 to vector<16x128xf32>
    %1425 = arith.mulf %1424, %1407 : vector<16x128xf32>
    %1426 = arith.addf %1418, %1425 : vector<16x128xf32>
    %c126_i32_343 = arith.constant 126 : i32
    %1427 = tpu.dynamic_rotate %1407 by %c126_i32_343 dim 1 : vector<16x128xf32>, i32 -> vector<16x128xf32>
    %cst_344 = arith.constant 0.000000e+00 : f32
    %1428 = vector.broadcast %cst_344 : f32 to vector<16x128xf32>
    %1429 = arith.select %1151, %1427, %1428 : vector<16x128xi1>, vector<16x128xf32>
    %c106_345 = arith.constant 106 : index
    %1430 = memref.load %arg4[%c106_345] : memref<216xf32, #tpu.memory_space<smem>>
    %1431 = vector.broadcast %1430 : f32 to vector<16x128xf32>
    %1432 = arith.mulf %1431, %1429 : vector<16x128xf32>
    %1433 = arith.addf %1422, %1432 : vector<16x128xf32>
    %c142_346 = arith.constant 142 : index
    %1434 = memref.load %arg4[%c142_346] : memref<216xf32, #tpu.memory_space<smem>>
    %1435 = vector.broadcast %1434 : f32 to vector<16x128xf32>
    %1436 = arith.mulf %1435, %1429 : vector<16x128xf32>
    %1437 = arith.addf %1426, %1436 : vector<16x128xf32>
    %c2_i32_347 = arith.constant 2 : i32
    %1438 = tpu.dynamic_rotate %1143 by %c2_i32_347 dim 0 : vector<16x128xf32>, i32 -> vector<16x128xf32>
    %cst_348 = arith.constant 0.000000e+00 : f32
    %1439 = vector.broadcast %cst_348 : f32 to vector<16x128xf32>
    %1440 = arith.select %1145, %1438, %1439 : vector<16x128xi1>, vector<16x128xf32>
    %c2_i32_349 = arith.constant 2 : i32
    %1441 = tpu.dynamic_rotate %1440 by %c2_i32_349 dim 1 : vector<16x128xf32>, i32 -> vector<16x128xf32>
    %cst_350 = arith.constant 0.000000e+00 : f32
    %1442 = vector.broadcast %cst_350 : f32 to vector<16x128xf32>
    %1443 = arith.select %1149, %1441, %1442 : vector<16x128xi1>, vector<16x128xf32>
    %c75_351 = arith.constant 75 : index
    %1444 = memref.load %arg4[%c75_351] : memref<216xf32, #tpu.memory_space<smem>>
    %1445 = vector.broadcast %1444 : f32 to vector<16x128xf32>
    %1446 = arith.mulf %1445, %1443 : vector<16x128xf32>
    %1447 = arith.addf %1433, %1446 : vector<16x128xf32>
    %c111_352 = arith.constant 111 : index
    %1448 = memref.load %arg4[%c111_352] : memref<216xf32, #tpu.memory_space<smem>>
    %1449 = vector.broadcast %1448 : f32 to vector<16x128xf32>
    %1450 = arith.mulf %1449, %1443 : vector<16x128xf32>
    %1451 = arith.addf %1437, %1450 : vector<16x128xf32>
    %c79_353 = arith.constant 79 : index
    %1452 = memref.load %arg4[%c79_353] : memref<216xf32, #tpu.memory_space<smem>>
    %1453 = vector.broadcast %1452 : f32 to vector<16x128xf32>
    %1454 = arith.mulf %1453, %1440 : vector<16x128xf32>
    %1455 = arith.addf %1447, %1454 : vector<16x128xf32>
    %c115_354 = arith.constant 115 : index
    %1456 = memref.load %arg4[%c115_354] : memref<216xf32, #tpu.memory_space<smem>>
    %1457 = vector.broadcast %1456 : f32 to vector<16x128xf32>
    %1458 = arith.mulf %1457, %1440 : vector<16x128xf32>
    %1459 = arith.addf %1451, %1458 : vector<16x128xf32>
    %c126_i32_355 = arith.constant 126 : i32
    %1460 = tpu.dynamic_rotate %1440 by %c126_i32_355 dim 1 : vector<16x128xf32>, i32 -> vector<16x128xf32>
    %cst_356 = arith.constant 0.000000e+00 : f32
    %1461 = vector.broadcast %cst_356 : f32 to vector<16x128xf32>
    %1462 = arith.select %1151, %1460, %1461 : vector<16x128xi1>, vector<16x128xf32>
    %c83_357 = arith.constant 83 : index
    %1463 = memref.load %arg4[%c83_357] : memref<216xf32, #tpu.memory_space<smem>>
    %1464 = vector.broadcast %1463 : f32 to vector<16x128xf32>
    %1465 = arith.mulf %1464, %1462 : vector<16x128xf32>
    %1466 = arith.addf %1455, %1465 : vector<16x128xf32>
    %c119_358 = arith.constant 119 : index
    %1467 = memref.load %arg4[%c119_358] : memref<216xf32, #tpu.memory_space<smem>>
    %1468 = vector.broadcast %1467 : f32 to vector<16x128xf32>
    %1469 = arith.mulf %1468, %1462 : vector<16x128xf32>
    %1470 = arith.addf %1459, %1469 : vector<16x128xf32>
    %c2_i32_359 = arith.constant 2 : i32
    %1471 = tpu.dynamic_rotate %1143 by %c2_i32_359 dim 1 : vector<16x128xf32>, i32 -> vector<16x128xf32>
    %cst_360 = arith.constant 0.000000e+00 : f32
    %1472 = vector.broadcast %cst_360 : f32 to vector<16x128xf32>
    %1473 = arith.select %1149, %1471, %1472 : vector<16x128xi1>, vector<16x128xf32>
    %c87_361 = arith.constant 87 : index
    %1474 = memref.load %arg4[%c87_361] : memref<216xf32, #tpu.memory_space<smem>>
    %1475 = vector.broadcast %1474 : f32 to vector<16x128xf32>
    %1476 = arith.mulf %1475, %1473 : vector<16x128xf32>
    %1477 = arith.addf %1466, %1476 : vector<16x128xf32>
    %c123_362 = arith.constant 123 : index
    %1478 = memref.load %arg4[%c123_362] : memref<216xf32, #tpu.memory_space<smem>>
    %1479 = vector.broadcast %1478 : f32 to vector<16x128xf32>
    %1480 = arith.mulf %1479, %1473 : vector<16x128xf32>
    %1481 = arith.addf %1470, %1480 : vector<16x128xf32>
    %c91_363 = arith.constant 91 : index
    %1482 = memref.load %arg4[%c91_363] : memref<216xf32, #tpu.memory_space<smem>>
    %1483 = vector.broadcast %1482 : f32 to vector<16x128xf32>
    %1484 = arith.mulf %1483, %1143 : vector<16x128xf32>
    %1485 = arith.addf %1477, %1484 : vector<16x128xf32>
    %c127_364 = arith.constant 127 : index
    %1486 = memref.load %arg4[%c127_364] : memref<216xf32, #tpu.memory_space<smem>>
    %1487 = vector.broadcast %1486 : f32 to vector<16x128xf32>
    %1488 = arith.mulf %1487, %1143 : vector<16x128xf32>
    %1489 = arith.addf %1481, %1488 : vector<16x128xf32>
    %c126_i32_365 = arith.constant 126 : i32
    %1490 = tpu.dynamic_rotate %1143 by %c126_i32_365 dim 1 : vector<16x128xf32>, i32 -> vector<16x128xf32>
    %cst_366 = arith.constant 0.000000e+00 : f32
    %1491 = vector.broadcast %cst_366 : f32 to vector<16x128xf32>
    %1492 = arith.select %1151, %1490, %1491 : vector<16x128xi1>, vector<16x128xf32>
    %c95_367 = arith.constant 95 : index
    %1493 = memref.load %arg4[%c95_367] : memref<216xf32, #tpu.memory_space<smem>>
    %1494 = vector.broadcast %1493 : f32 to vector<16x128xf32>
    %1495 = arith.mulf %1494, %1492 : vector<16x128xf32>
    %1496 = arith.addf %1485, %1495 : vector<16x128xf32>
    %c131_368 = arith.constant 131 : index
    %1497 = memref.load %arg4[%c131_368] : memref<216xf32, #tpu.memory_space<smem>>
    %1498 = vector.broadcast %1497 : f32 to vector<16x128xf32>
    %1499 = arith.mulf %1498, %1492 : vector<16x128xf32>
    %1500 = arith.addf %1489, %1499 : vector<16x128xf32>
    %c14_i32_369 = arith.constant 14 : i32
    %1501 = tpu.dynamic_rotate %1143 by %c14_i32_369 dim 0 : vector<16x128xf32>, i32 -> vector<16x128xf32>
    %cst_370 = arith.constant 0.000000e+00 : f32
    %1502 = vector.broadcast %cst_370 : f32 to vector<16x128xf32>
    %1503 = arith.select %1147, %1501, %1502 : vector<16x128xi1>, vector<16x128xf32>
    %c2_i32_371 = arith.constant 2 : i32
    %1504 = tpu.dynamic_rotate %1503 by %c2_i32_371 dim 1 : vector<16x128xf32>, i32 -> vector<16x128xf32>
    %cst_372 = arith.constant 0.000000e+00 : f32
    %1505 = vector.broadcast %cst_372 : f32 to vector<16x128xf32>
    %1506 = arith.select %1149, %1504, %1505 : vector<16x128xi1>, vector<16x128xf32>
    %c99_373 = arith.constant 99 : index
    %1507 = memref.load %arg4[%c99_373] : memref<216xf32, #tpu.memory_space<smem>>
    %1508 = vector.broadcast %1507 : f32 to vector<16x128xf32>
    %1509 = arith.mulf %1508, %1506 : vector<16x128xf32>
    %1510 = arith.addf %1496, %1509 : vector<16x128xf32>
    %c135_374 = arith.constant 135 : index
    %1511 = memref.load %arg4[%c135_374] : memref<216xf32, #tpu.memory_space<smem>>
    %1512 = vector.broadcast %1511 : f32 to vector<16x128xf32>
    %1513 = arith.mulf %1512, %1506 : vector<16x128xf32>
    %1514 = arith.addf %1500, %1513 : vector<16x128xf32>
    %c103_375 = arith.constant 103 : index
    %1515 = memref.load %arg4[%c103_375] : memref<216xf32, #tpu.memory_space<smem>>
    %1516 = vector.broadcast %1515 : f32 to vector<16x128xf32>
    %1517 = arith.mulf %1516, %1503 : vector<16x128xf32>
    %1518 = arith.addf %1510, %1517 : vector<16x128xf32>
    %c139_376 = arith.constant 139 : index
    %1519 = memref.load %arg4[%c139_376] : memref<216xf32, #tpu.memory_space<smem>>
    %1520 = vector.broadcast %1519 : f32 to vector<16x128xf32>
    %1521 = arith.mulf %1520, %1503 : vector<16x128xf32>
    %1522 = arith.addf %1514, %1521 : vector<16x128xf32>
    %c126_i32_377 = arith.constant 126 : i32
    %1523 = tpu.dynamic_rotate %1503 by %c126_i32_377 dim 1 : vector<16x128xf32>, i32 -> vector<16x128xf32>
    %cst_378 = arith.constant 0.000000e+00 : f32
    %1524 = vector.broadcast %cst_378 : f32 to vector<16x128xf32>
    %1525 = arith.select %1151, %1523, %1524 : vector<16x128xi1>, vector<16x128xf32>
    %c107_379 = arith.constant 107 : index
    %1526 = memref.load %arg4[%c107_379] : memref<216xf32, #tpu.memory_space<smem>>
    %1527 = vector.broadcast %1526 : f32 to vector<16x128xf32>
    %1528 = arith.mulf %1527, %1525 : vector<16x128xf32>
    %1529 = arith.addf %1518, %1528 : vector<16x128xf32>
    %c143_380 = arith.constant 143 : index
    %1530 = memref.load %arg4[%c143_380] : memref<216xf32, #tpu.memory_space<smem>>
    %1531 = vector.broadcast %1530 : f32 to vector<16x128xf32>
    %1532 = arith.mulf %1531, %1525 : vector<16x128xf32>
    %1533 = arith.addf %1522, %1532 : vector<16x128xf32>
    %c2_381 = arith.constant 2 : index
    %1534 = memref.load %arg5[%c2_381] : memref<6xf32, #tpu.memory_space<smem>>
    %1535 = vector.broadcast %1534 : f32 to vector<16x128xf32>
    %1536 = arith.addf %1529, %1535 : vector<16x128xf32>
    %c3_382 = arith.constant 3 : index
    %1537 = memref.load %arg5[%c3_382] : memref<6xf32, #tpu.memory_space<smem>>
    %1538 = vector.broadcast %1537 : f32 to vector<16x128xf32>
    %1539 = arith.addf %1533, %1538 : vector<16x128xf32>
    %c2_383 = arith.constant 2 : index
    %c0_384 = arith.constant 0 : index
    %c0_385 = arith.constant 0 : index
    %1540 = vector.load %arg6[%c2_383, %c0_384, %c0_385] : memref<6x16x128xf32, #tpu.memory_space<vmem>>, vector<1x16x128xf32>
    %1541 = vector.shape_cast %1540 : vector<1x16x128xf32> to vector<16x128xf32>
    %1542 = vector.shape_cast %1536 : vector<16x128xf32> to vector<1x16x128xf32>
    tpu.vector_store %arg6[%c2_383, %c0_384, %c0_385], %1542 {strides = array<i32>} : memref<6x16x128xf32, #tpu.memory_space<vmem>>, vector<1x16x128xf32>,
    %c3_386 = arith.constant 3 : index
    %c0_387 = arith.constant 0 : index
    %c0_388 = arith.constant 0 : index
    %1543 = vector.load %arg6[%c3_386, %c0_387, %c0_388] : memref<6x16x128xf32, #tpu.memory_space<vmem>>, vector<1x16x128xf32>
    %1544 = vector.shape_cast %1543 : vector<1x16x128xf32> to vector<16x128xf32>
    %1545 = vector.shape_cast %1539 : vector<16x128xf32> to vector<1x16x128xf32>
    tpu.vector_store %arg6[%c3_386, %c0_387, %c0_388], %1545 {strides = array<i32>} : memref<6x16x128xf32, #tpu.memory_space<vmem>>, vector<1x16x128xf32>,
    %c15_i32_389 = arith.constant 15 : i32
    %1546 = tpu.dynamic_rotate %714 by %c15_i32_389 dim 0 : vector<16x128xf32>, i32 -> vector<16x128xf32>
    %1547 = arith.addf %714, %1546 : vector<16x128xf32>
    %c14_i32_390 = arith.constant 14 : i32
    %1548 = tpu.dynamic_rotate %1547 by %c14_i32_390 dim 0 : vector<16x128xf32>, i32 -> vector<16x128xf32>
    %1549 = arith.addf %1547, %1548 : vector<16x128xf32>
    %c127_i32_391 = arith.constant 127 : i32
    %1550 = tpu.dynamic_rotate %1549 by %c127_i32_391 dim 1 : vector<16x128xf32>, i32 -> vector<16x128xf32>
    %1551 = arith.addf %1549, %1550 : vector<16x128xf32>
    %c126_i32_392 = arith.constant 126 : i32
    %1552 = tpu.dynamic_rotate %1551 by %c126_i32_392 dim 1 : vector<16x128xf32>, i32 -> vector<16x128xf32>
    %1553 = arith.addf %1551, %1552 : vector<16x128xf32>
    %cst_393 = arith.constant 6.250000e-02 : f32
    %1554 = vector.broadcast %cst_393 : f32 to vector<16x128xf32>
    %1555 = arith.mulf %1553, %1554 : vector<16x128xf32>
    %c15_i32_394 = arith.constant 15 : i32
    %1556 = tpu.dynamic_rotate %715 by %c15_i32_394 dim 0 : vector<16x128xf32>, i32 -> vector<16x128xf32>
    %1557 = arith.addf %715, %1556 : vector<16x128xf32>
    %c14_i32_395 = arith.constant 14 : i32
    %1558 = tpu.dynamic_rotate %1557 by %c14_i32_395 dim 0 : vector<16x128xf32>, i32 -> vector<16x128xf32>
    %1559 = arith.addf %1557, %1558 : vector<16x128xf32>
    %c127_i32_396 = arith.constant 127 : i32
    %1560 = tpu.dynamic_rotate %1559 by %c127_i32_396 dim 1 : vector<16x128xf32>, i32 -> vector<16x128xf32>
    %1561 = arith.addf %1559, %1560 : vector<16x128xf32>
    %c126_i32_397 = arith.constant 126 : i32
    %1562 = tpu.dynamic_rotate %1561 by %c126_i32_397 dim 1 : vector<16x128xf32>, i32 -> vector<16x128xf32>
    %1563 = arith.addf %1561, %1562 : vector<16x128xf32>
    %cst_398 = arith.constant 6.250000e-02 : f32
    %1564 = vector.broadcast %cst_398 : f32 to vector<16x128xf32>
    %1565 = arith.mulf %1563, %1564 : vector<16x128xf32>
    %c15_i32_399 = arith.constant 15 : i32
    %1566 = tpu.dynamic_rotate %716 by %c15_i32_399 dim 0 : vector<16x128xf32>, i32 -> vector<16x128xf32>
    %1567 = arith.addf %716, %1566 : vector<16x128xf32>
    %c14_i32_400 = arith.constant 14 : i32
    %1568 = tpu.dynamic_rotate %1567 by %c14_i32_400 dim 0 : vector<16x128xf32>, i32 -> vector<16x128xf32>
    %1569 = arith.addf %1567, %1568 : vector<16x128xf32>
    %c127_i32_401 = arith.constant 127 : i32
    %1570 = tpu.dynamic_rotate %1569 by %c127_i32_401 dim 1 : vector<16x128xf32>, i32 -> vector<16x128xf32>
    %1571 = arith.addf %1569, %1570 : vector<16x128xf32>
    %c126_i32_402 = arith.constant 126 : i32
    %1572 = tpu.dynamic_rotate %1571 by %c126_i32_402 dim 1 : vector<16x128xf32>, i32 -> vector<16x128xf32>
    %1573 = arith.addf %1571, %1572 : vector<16x128xf32>
    %cst_403 = arith.constant 6.250000e-02 : f32
    %1574 = vector.broadcast %cst_403 : f32 to vector<16x128xf32>
    %1575 = arith.mulf %1573, %1574 : vector<16x128xf32>
    %c15_i32_404 = arith.constant 15 : i32
    %1576 = tpu.dynamic_rotate %717 by %c15_i32_404 dim 0 : vector<16x128xf32>, i32 -> vector<16x128xf32>
    %1577 = arith.addf %717, %1576 : vector<16x128xf32>
    %c14_i32_405 = arith.constant 14 : i32
    %1578 = tpu.dynamic_rotate %1577 by %c14_i32_405 dim 0 : vector<16x128xf32>, i32 -> vector<16x128xf32>
    %1579 = arith.addf %1577, %1578 : vector<16x128xf32>
    %c127_i32_406 = arith.constant 127 : i32
    %1580 = tpu.dynamic_rotate %1579 by %c127_i32_406 dim 1 : vector<16x128xf32>, i32 -> vector<16x128xf32>
    %1581 = arith.addf %1579, %1580 : vector<16x128xf32>
    %c126_i32_407 = arith.constant 126 : i32
    %1582 = tpu.dynamic_rotate %1581 by %c126_i32_407 dim 1 : vector<16x128xf32>, i32 -> vector<16x128xf32>
    %1583 = arith.addf %1581, %1582 : vector<16x128xf32>
    %cst_408 = arith.constant 6.250000e-02 : f32
    %1584 = vector.broadcast %cst_408 : f32 to vector<16x128xf32>
    %1585 = arith.mulf %1583, %1584 : vector<16x128xf32>
    %c4_i32 = arith.constant 4 : i32
    %1586 = vector.broadcast %c4_i32 : i32 to vector<16x128xi32>
    %1587 = arith.cmpi sge, %0, %1586 : vector<16x128xi32>
    %c12_i32 = arith.constant 12 : i32
    %1588 = vector.broadcast %c12_i32 : i32 to vector<16x128xi32>
    %1589 = arith.cmpi slt, %0, %1588 : vector<16x128xi32>
    %c4_i32_409 = arith.constant 4 : i32
    %1590 = vector.broadcast %c4_i32_409 : i32 to vector<16x128xi32>
    %1591 = arith.cmpi sge, %17, %1590 : vector<16x128xi32>
    %c12_i32_410 = arith.constant 12 : i32
    %1592 = vector.broadcast %c12_i32_410 : i32 to vector<16x128xi32>
    %1593 = arith.cmpi slt, %17, %1592 : vector<16x128xi32>
    %c4_i32_411 = arith.constant 4 : i32
    %1594 = tpu.dynamic_rotate %1555 by %c4_i32_411 dim 0 : vector<16x128xf32>, i32 -> vector<16x128xf32>
    %cst_412 = arith.constant 0.000000e+00 : f32
    %1595 = vector.broadcast %cst_412 : f32 to vector<16x128xf32>
    %1596 = arith.select %1587, %1594, %1595 : vector<16x128xi1>, vector<16x128xf32>
    %c4_i32_413 = arith.constant 4 : i32
    %1597 = tpu.dynamic_rotate %1596 by %c4_i32_413 dim 1 : vector<16x128xf32>, i32 -> vector<16x128xf32>
    %cst_414 = arith.constant 0.000000e+00 : f32
    %1598 = vector.broadcast %cst_414 : f32 to vector<16x128xf32>
    %1599 = arith.select %1591, %1597, %1598 : vector<16x128xi1>, vector<16x128xf32>
    %c144 = arith.constant 144 : index
    %1600 = memref.load %arg4[%c144] : memref<216xf32, #tpu.memory_space<smem>>
    %1601 = vector.broadcast %1600 : f32 to vector<16x128xf32>
    %1602 = arith.mulf %1601, %1599 : vector<16x128xf32>
    %c180 = arith.constant 180 : index
    %1603 = memref.load %arg4[%c180] : memref<216xf32, #tpu.memory_space<smem>>
    %1604 = vector.broadcast %1603 : f32 to vector<16x128xf32>
    %1605 = arith.mulf %1604, %1599 : vector<16x128xf32>
    %c148 = arith.constant 148 : index
    %1606 = memref.load %arg4[%c148] : memref<216xf32, #tpu.memory_space<smem>>
    %1607 = vector.broadcast %1606 : f32 to vector<16x128xf32>
    %1608 = arith.mulf %1607, %1596 : vector<16x128xf32>
    %1609 = arith.addf %1602, %1608 : vector<16x128xf32>
    %c184 = arith.constant 184 : index
    %1610 = memref.load %arg4[%c184] : memref<216xf32, #tpu.memory_space<smem>>
    %1611 = vector.broadcast %1610 : f32 to vector<16x128xf32>
    %1612 = arith.mulf %1611, %1596 : vector<16x128xf32>
    %1613 = arith.addf %1605, %1612 : vector<16x128xf32>
    %c124_i32 = arith.constant 124 : i32
    %1614 = tpu.dynamic_rotate %1596 by %c124_i32 dim 1 : vector<16x128xf32>, i32 -> vector<16x128xf32>
    %cst_415 = arith.constant 0.000000e+00 : f32
    %1615 = vector.broadcast %cst_415 : f32 to vector<16x128xf32>
    %1616 = arith.select %1593, %1614, %1615 : vector<16x128xi1>, vector<16x128xf32>
    %c152 = arith.constant 152 : index
    %1617 = memref.load %arg4[%c152] : memref<216xf32, #tpu.memory_space<smem>>
    %1618 = vector.broadcast %1617 : f32 to vector<16x128xf32>
    %1619 = arith.mulf %1618, %1616 : vector<16x128xf32>
    %1620 = arith.addf %1609, %1619 : vector<16x128xf32>
    %c188 = arith.constant 188 : index
    %1621 = memref.load %arg4[%c188] : memref<216xf32, #tpu.memory_space<smem>>
    %1622 = vector.broadcast %1621 : f32 to vector<16x128xf32>
    %1623 = arith.mulf %1622, %1616 : vector<16x128xf32>
    %1624 = arith.addf %1613, %1623 : vector<16x128xf32>
    %c4_i32_416 = arith.constant 4 : i32
    %1625 = tpu.dynamic_rotate %1555 by %c4_i32_416 dim 1 : vector<16x128xf32>, i32 -> vector<16x128xf32>
    %cst_417 = arith.constant 0.000000e+00 : f32
    %1626 = vector.broadcast %cst_417 : f32 to vector<16x128xf32>
    %1627 = arith.select %1591, %1625, %1626 : vector<16x128xi1>, vector<16x128xf32>
    %c156 = arith.constant 156 : index
    %1628 = memref.load %arg4[%c156] : memref<216xf32, #tpu.memory_space<smem>>
    %1629 = vector.broadcast %1628 : f32 to vector<16x128xf32>
    %1630 = arith.mulf %1629, %1627 : vector<16x128xf32>
    %1631 = arith.addf %1620, %1630 : vector<16x128xf32>
    %c192 = arith.constant 192 : index
    %1632 = memref.load %arg4[%c192] : memref<216xf32, #tpu.memory_space<smem>>
    %1633 = vector.broadcast %1632 : f32 to vector<16x128xf32>
    %1634 = arith.mulf %1633, %1627 : vector<16x128xf32>
    %1635 = arith.addf %1624, %1634 : vector<16x128xf32>
    %c160 = arith.constant 160 : index
    %1636 = memref.load %arg4[%c160] : memref<216xf32, #tpu.memory_space<smem>>
    %1637 = vector.broadcast %1636 : f32 to vector<16x128xf32>
    %1638 = arith.mulf %1637, %1555 : vector<16x128xf32>
    %1639 = arith.addf %1631, %1638 : vector<16x128xf32>
    %c196 = arith.constant 196 : index
    %1640 = memref.load %arg4[%c196] : memref<216xf32, #tpu.memory_space<smem>>
    %1641 = vector.broadcast %1640 : f32 to vector<16x128xf32>
    %1642 = arith.mulf %1641, %1555 : vector<16x128xf32>
    %1643 = arith.addf %1635, %1642 : vector<16x128xf32>
    %c124_i32_418 = arith.constant 124 : i32
    %1644 = tpu.dynamic_rotate %1555 by %c124_i32_418 dim 1 : vector<16x128xf32>, i32 -> vector<16x128xf32>
    %cst_419 = arith.constant 0.000000e+00 : f32
    %1645 = vector.broadcast %cst_419 : f32 to vector<16x128xf32>
    %1646 = arith.select %1593, %1644, %1645 : vector<16x128xi1>, vector<16x128xf32>
    %c164 = arith.constant 164 : index
    %1647 = memref.load %arg4[%c164] : memref<216xf32, #tpu.memory_space<smem>>
    %1648 = vector.broadcast %1647 : f32 to vector<16x128xf32>
    %1649 = arith.mulf %1648, %1646 : vector<16x128xf32>
    %1650 = arith.addf %1639, %1649 : vector<16x128xf32>
    %c200 = arith.constant 200 : index
    %1651 = memref.load %arg4[%c200] : memref<216xf32, #tpu.memory_space<smem>>
    %1652 = vector.broadcast %1651 : f32 to vector<16x128xf32>
    %1653 = arith.mulf %1652, %1646 : vector<16x128xf32>
    %1654 = arith.addf %1643, %1653 : vector<16x128xf32>
    %c12_i32_420 = arith.constant 12 : i32
    %1655 = tpu.dynamic_rotate %1555 by %c12_i32_420 dim 0 : vector<16x128xf32>, i32 -> vector<16x128xf32>
    %cst_421 = arith.constant 0.000000e+00 : f32
    %1656 = vector.broadcast %cst_421 : f32 to vector<16x128xf32>
    %1657 = arith.select %1589, %1655, %1656 : vector<16x128xi1>, vector<16x128xf32>
    %c4_i32_422 = arith.constant 4 : i32
    %1658 = tpu.dynamic_rotate %1657 by %c4_i32_422 dim 1 : vector<16x128xf32>, i32 -> vector<16x128xf32>
    %cst_423 = arith.constant 0.000000e+00 : f32
    %1659 = vector.broadcast %cst_423 : f32 to vector<16x128xf32>
    %1660 = arith.select %1591, %1658, %1659 : vector<16x128xi1>, vector<16x128xf32>
    %c168 = arith.constant 168 : index
    %1661 = memref.load %arg4[%c168] : memref<216xf32, #tpu.memory_space<smem>>
    %1662 = vector.broadcast %1661 : f32 to vector<16x128xf32>
    %1663 = arith.mulf %1662, %1660 : vector<16x128xf32>
    %1664 = arith.addf %1650, %1663 : vector<16x128xf32>
    %c204 = arith.constant 204 : index
    %1665 = memref.load %arg4[%c204] : memref<216xf32, #tpu.memory_space<smem>>
    %1666 = vector.broadcast %1665 : f32 to vector<16x128xf32>
    %1667 = arith.mulf %1666, %1660 : vector<16x128xf32>
    %1668 = arith.addf %1654, %1667 : vector<16x128xf32>
    %c172 = arith.constant 172 : index
    %1669 = memref.load %arg4[%c172] : memref<216xf32, #tpu.memory_space<smem>>
    %1670 = vector.broadcast %1669 : f32 to vector<16x128xf32>
    %1671 = arith.mulf %1670, %1657 : vector<16x128xf32>
    %1672 = arith.addf %1664, %1671 : vector<16x128xf32>
    %c208 = arith.constant 208 : index
    %1673 = memref.load %arg4[%c208] : memref<216xf32, #tpu.memory_space<smem>>
    %1674 = vector.broadcast %1673 : f32 to vector<16x128xf32>
    %1675 = arith.mulf %1674, %1657 : vector<16x128xf32>
    %1676 = arith.addf %1668, %1675 : vector<16x128xf32>
    %c124_i32_424 = arith.constant 124 : i32
    %1677 = tpu.dynamic_rotate %1657 by %c124_i32_424 dim 1 : vector<16x128xf32>, i32 -> vector<16x128xf32>
    %cst_425 = arith.constant 0.000000e+00 : f32
    %1678 = vector.broadcast %cst_425 : f32 to vector<16x128xf32>
    %1679 = arith.select %1593, %1677, %1678 : vector<16x128xi1>, vector<16x128xf32>
    %c176 = arith.constant 176 : index
    %1680 = memref.load %arg4[%c176] : memref<216xf32, #tpu.memory_space<smem>>
    %1681 = vector.broadcast %1680 : f32 to vector<16x128xf32>
    %1682 = arith.mulf %1681, %1679 : vector<16x128xf32>
    %1683 = arith.addf %1672, %1682 : vector<16x128xf32>
    %c212 = arith.constant 212 : index
    %1684 = memref.load %arg4[%c212] : memref<216xf32, #tpu.memory_space<smem>>
    %1685 = vector.broadcast %1684 : f32 to vector<16x128xf32>
    %1686 = arith.mulf %1685, %1679 : vector<16x128xf32>
    %1687 = arith.addf %1676, %1686 : vector<16x128xf32>
    %c4_i32_426 = arith.constant 4 : i32
    %1688 = tpu.dynamic_rotate %1565 by %c4_i32_426 dim 0 : vector<16x128xf32>, i32 -> vector<16x128xf32>
    %cst_427 = arith.constant 0.000000e+00 : f32
    %1689 = vector.broadcast %cst_427 : f32 to vector<16x128xf32>
    %1690 = arith.select %1587, %1688, %1689 : vector<16x128xi1>, vector<16x128xf32>
    %c4_i32_428 = arith.constant 4 : i32
    %1691 = tpu.dynamic_rotate %1690 by %c4_i32_428 dim 1 : vector<16x128xf32>, i32 -> vector<16x128xf32>
    %cst_429 = arith.constant 0.000000e+00 : f32
    %1692 = vector.broadcast %cst_429 : f32 to vector<16x128xf32>
    %1693 = arith.select %1591, %1691, %1692 : vector<16x128xi1>, vector<16x128xf32>
    %c145 = arith.constant 145 : index
    %1694 = memref.load %arg4[%c145] : memref<216xf32, #tpu.memory_space<smem>>
    %1695 = vector.broadcast %1694 : f32 to vector<16x128xf32>
    %1696 = arith.mulf %1695, %1693 : vector<16x128xf32>
    %1697 = arith.addf %1683, %1696 : vector<16x128xf32>
    %c181 = arith.constant 181 : index
    %1698 = memref.load %arg4[%c181] : memref<216xf32, #tpu.memory_space<smem>>
    %1699 = vector.broadcast %1698 : f32 to vector<16x128xf32>
    %1700 = arith.mulf %1699, %1693 : vector<16x128xf32>
    %1701 = arith.addf %1687, %1700 : vector<16x128xf32>
    %c149 = arith.constant 149 : index
    %1702 = memref.load %arg4[%c149] : memref<216xf32, #tpu.memory_space<smem>>
    %1703 = vector.broadcast %1702 : f32 to vector<16x128xf32>
    %1704 = arith.mulf %1703, %1690 : vector<16x128xf32>
    %1705 = arith.addf %1697, %1704 : vector<16x128xf32>
    %c185 = arith.constant 185 : index
    %1706 = memref.load %arg4[%c185] : memref<216xf32, #tpu.memory_space<smem>>
    %1707 = vector.broadcast %1706 : f32 to vector<16x128xf32>
    %1708 = arith.mulf %1707, %1690 : vector<16x128xf32>
    %1709 = arith.addf %1701, %1708 : vector<16x128xf32>
    %c124_i32_430 = arith.constant 124 : i32
    %1710 = tpu.dynamic_rotate %1690 by %c124_i32_430 dim 1 : vector<16x128xf32>, i32 -> vector<16x128xf32>
    %cst_431 = arith.constant 0.000000e+00 : f32
    %1711 = vector.broadcast %cst_431 : f32 to vector<16x128xf32>
    %1712 = arith.select %1593, %1710, %1711 : vector<16x128xi1>, vector<16x128xf32>
    %c153 = arith.constant 153 : index
    %1713 = memref.load %arg4[%c153] : memref<216xf32, #tpu.memory_space<smem>>
    %1714 = vector.broadcast %1713 : f32 to vector<16x128xf32>
    %1715 = arith.mulf %1714, %1712 : vector<16x128xf32>
    %1716 = arith.addf %1705, %1715 : vector<16x128xf32>
    %c189 = arith.constant 189 : index
    %1717 = memref.load %arg4[%c189] : memref<216xf32, #tpu.memory_space<smem>>
    %1718 = vector.broadcast %1717 : f32 to vector<16x128xf32>
    %1719 = arith.mulf %1718, %1712 : vector<16x128xf32>
    %1720 = arith.addf %1709, %1719 : vector<16x128xf32>
    %c4_i32_432 = arith.constant 4 : i32
    %1721 = tpu.dynamic_rotate %1565 by %c4_i32_432 dim 1 : vector<16x128xf32>, i32 -> vector<16x128xf32>
    %cst_433 = arith.constant 0.000000e+00 : f32
    %1722 = vector.broadcast %cst_433 : f32 to vector<16x128xf32>
    %1723 = arith.select %1591, %1721, %1722 : vector<16x128xi1>, vector<16x128xf32>
    %c157 = arith.constant 157 : index
    %1724 = memref.load %arg4[%c157] : memref<216xf32, #tpu.memory_space<smem>>
    %1725 = vector.broadcast %1724 : f32 to vector<16x128xf32>
    %1726 = arith.mulf %1725, %1723 : vector<16x128xf32>
    %1727 = arith.addf %1716, %1726 : vector<16x128xf32>
    %c193 = arith.constant 193 : index
    %1728 = memref.load %arg4[%c193] : memref<216xf32, #tpu.memory_space<smem>>
    %1729 = vector.broadcast %1728 : f32 to vector<16x128xf32>
    %1730 = arith.mulf %1729, %1723 : vector<16x128xf32>
    %1731 = arith.addf %1720, %1730 : vector<16x128xf32>
    %c161 = arith.constant 161 : index
    %1732 = memref.load %arg4[%c161] : memref<216xf32, #tpu.memory_space<smem>>
    %1733 = vector.broadcast %1732 : f32 to vector<16x128xf32>
    %1734 = arith.mulf %1733, %1565 : vector<16x128xf32>
    %1735 = arith.addf %1727, %1734 : vector<16x128xf32>
    %c197 = arith.constant 197 : index
    %1736 = memref.load %arg4[%c197] : memref<216xf32, #tpu.memory_space<smem>>
    %1737 = vector.broadcast %1736 : f32 to vector<16x128xf32>
    %1738 = arith.mulf %1737, %1565 : vector<16x128xf32>
    %1739 = arith.addf %1731, %1738 : vector<16x128xf32>
    %c124_i32_434 = arith.constant 124 : i32
    %1740 = tpu.dynamic_rotate %1565 by %c124_i32_434 dim 1 : vector<16x128xf32>, i32 -> vector<16x128xf32>
    %cst_435 = arith.constant 0.000000e+00 : f32
    %1741 = vector.broadcast %cst_435 : f32 to vector<16x128xf32>
    %1742 = arith.select %1593, %1740, %1741 : vector<16x128xi1>, vector<16x128xf32>
    %c165 = arith.constant 165 : index
    %1743 = memref.load %arg4[%c165] : memref<216xf32, #tpu.memory_space<smem>>
    %1744 = vector.broadcast %1743 : f32 to vector<16x128xf32>
    %1745 = arith.mulf %1744, %1742 : vector<16x128xf32>
    %1746 = arith.addf %1735, %1745 : vector<16x128xf32>
    %c201 = arith.constant 201 : index
    %1747 = memref.load %arg4[%c201] : memref<216xf32, #tpu.memory_space<smem>>
    %1748 = vector.broadcast %1747 : f32 to vector<16x128xf32>
    %1749 = arith.mulf %1748, %1742 : vector<16x128xf32>
    %1750 = arith.addf %1739, %1749 : vector<16x128xf32>
    %c12_i32_436 = arith.constant 12 : i32
    %1751 = tpu.dynamic_rotate %1565 by %c12_i32_436 dim 0 : vector<16x128xf32>, i32 -> vector<16x128xf32>
    %cst_437 = arith.constant 0.000000e+00 : f32
    %1752 = vector.broadcast %cst_437 : f32 to vector<16x128xf32>
    %1753 = arith.select %1589, %1751, %1752 : vector<16x128xi1>, vector<16x128xf32>
    %c4_i32_438 = arith.constant 4 : i32
    %1754 = tpu.dynamic_rotate %1753 by %c4_i32_438 dim 1 : vector<16x128xf32>, i32 -> vector<16x128xf32>
    %cst_439 = arith.constant 0.000000e+00 : f32
    %1755 = vector.broadcast %cst_439 : f32 to vector<16x128xf32>
    %1756 = arith.select %1591, %1754, %1755 : vector<16x128xi1>, vector<16x128xf32>
    %c169 = arith.constant 169 : index
    %1757 = memref.load %arg4[%c169] : memref<216xf32, #tpu.memory_space<smem>>
    %1758 = vector.broadcast %1757 : f32 to vector<16x128xf32>
    %1759 = arith.mulf %1758, %1756 : vector<16x128xf32>
    %1760 = arith.addf %1746, %1759 : vector<16x128xf32>
    %c205 = arith.constant 205 : index
    %1761 = memref.load %arg4[%c205] : memref<216xf32, #tpu.memory_space<smem>>
    %1762 = vector.broadcast %1761 : f32 to vector<16x128xf32>
    %1763 = arith.mulf %1762, %1756 : vector<16x128xf32>
    %1764 = arith.addf %1750, %1763 : vector<16x128xf32>
    %c173 = arith.constant 173 : index
    %1765 = memref.load %arg4[%c173] : memref<216xf32, #tpu.memory_space<smem>>
    %1766 = vector.broadcast %1765 : f32 to vector<16x128xf32>
    %1767 = arith.mulf %1766, %1753 : vector<16x128xf32>
    %1768 = arith.addf %1760, %1767 : vector<16x128xf32>
    %c209 = arith.constant 209 : index
    %1769 = memref.load %arg4[%c209] : memref<216xf32, #tpu.memory_space<smem>>
    %1770 = vector.broadcast %1769 : f32 to vector<16x128xf32>
    %1771 = arith.mulf %1770, %1753 : vector<16x128xf32>
    %1772 = arith.addf %1764, %1771 : vector<16x128xf32>
    %c124_i32_440 = arith.constant 124 : i32
    %1773 = tpu.dynamic_rotate %1753 by %c124_i32_440 dim 1 : vector<16x128xf32>, i32 -> vector<16x128xf32>
    %cst_441 = arith.constant 0.000000e+00 : f32
    %1774 = vector.broadcast %cst_441 : f32 to vector<16x128xf32>
    %1775 = arith.select %1593, %1773, %1774 : vector<16x128xi1>, vector<16x128xf32>
    %c177 = arith.constant 177 : index
    %1776 = memref.load %arg4[%c177] : memref<216xf32, #tpu.memory_space<smem>>
    %1777 = vector.broadcast %1776 : f32 to vector<16x128xf32>
    %1778 = arith.mulf %1777, %1775 : vector<16x128xf32>
    %1779 = arith.addf %1768, %1778 : vector<16x128xf32>
    %c213 = arith.constant 213 : index
    %1780 = memref.load %arg4[%c213] : memref<216xf32, #tpu.memory_space<smem>>
    %1781 = vector.broadcast %1780 : f32 to vector<16x128xf32>
    %1782 = arith.mulf %1781, %1775 : vector<16x128xf32>
    %1783 = arith.addf %1772, %1782 : vector<16x128xf32>
    %c4_i32_442 = arith.constant 4 : i32
    %1784 = tpu.dynamic_rotate %1575 by %c4_i32_442 dim 0 : vector<16x128xf32>, i32 -> vector<16x128xf32>
    %cst_443 = arith.constant 0.000000e+00 : f32
    %1785 = vector.broadcast %cst_443 : f32 to vector<16x128xf32>
    %1786 = arith.select %1587, %1784, %1785 : vector<16x128xi1>, vector<16x128xf32>
    %c4_i32_444 = arith.constant 4 : i32
    %1787 = tpu.dynamic_rotate %1786 by %c4_i32_444 dim 1 : vector<16x128xf32>, i32 -> vector<16x128xf32>
    %cst_445 = arith.constant 0.000000e+00 : f32
    %1788 = vector.broadcast %cst_445 : f32 to vector<16x128xf32>
    %1789 = arith.select %1591, %1787, %1788 : vector<16x128xi1>, vector<16x128xf32>
    %c146 = arith.constant 146 : index
    %1790 = memref.load %arg4[%c146] : memref<216xf32, #tpu.memory_space<smem>>
    %1791 = vector.broadcast %1790 : f32 to vector<16x128xf32>
    %1792 = arith.mulf %1791, %1789 : vector<16x128xf32>
    %1793 = arith.addf %1779, %1792 : vector<16x128xf32>
    %c182 = arith.constant 182 : index
    %1794 = memref.load %arg4[%c182] : memref<216xf32, #tpu.memory_space<smem>>
    %1795 = vector.broadcast %1794 : f32 to vector<16x128xf32>
    %1796 = arith.mulf %1795, %1789 : vector<16x128xf32>
    %1797 = arith.addf %1783, %1796 : vector<16x128xf32>
    %c150 = arith.constant 150 : index
    %1798 = memref.load %arg4[%c150] : memref<216xf32, #tpu.memory_space<smem>>
    %1799 = vector.broadcast %1798 : f32 to vector<16x128xf32>
    %1800 = arith.mulf %1799, %1786 : vector<16x128xf32>
    %1801 = arith.addf %1793, %1800 : vector<16x128xf32>
    %c186 = arith.constant 186 : index
    %1802 = memref.load %arg4[%c186] : memref<216xf32, #tpu.memory_space<smem>>
    %1803 = vector.broadcast %1802 : f32 to vector<16x128xf32>
    %1804 = arith.mulf %1803, %1786 : vector<16x128xf32>
    %1805 = arith.addf %1797, %1804 : vector<16x128xf32>
    %c124_i32_446 = arith.constant 124 : i32
    %1806 = tpu.dynamic_rotate %1786 by %c124_i32_446 dim 1 : vector<16x128xf32>, i32 -> vector<16x128xf32>
    %cst_447 = arith.constant 0.000000e+00 : f32
    %1807 = vector.broadcast %cst_447 : f32 to vector<16x128xf32>
    %1808 = arith.select %1593, %1806, %1807 : vector<16x128xi1>, vector<16x128xf32>
    %c154 = arith.constant 154 : index
    %1809 = memref.load %arg4[%c154] : memref<216xf32, #tpu.memory_space<smem>>
    %1810 = vector.broadcast %1809 : f32 to vector<16x128xf32>
    %1811 = arith.mulf %1810, %1808 : vector<16x128xf32>
    %1812 = arith.addf %1801, %1811 : vector<16x128xf32>
    %c190 = arith.constant 190 : index
    %1813 = memref.load %arg4[%c190] : memref<216xf32, #tpu.memory_space<smem>>
    %1814 = vector.broadcast %1813 : f32 to vector<16x128xf32>
    %1815 = arith.mulf %1814, %1808 : vector<16x128xf32>
    %1816 = arith.addf %1805, %1815 : vector<16x128xf32>
    %c4_i32_448 = arith.constant 4 : i32
    %1817 = tpu.dynamic_rotate %1575 by %c4_i32_448 dim 1 : vector<16x128xf32>, i32 -> vector<16x128xf32>
    %cst_449 = arith.constant 0.000000e+00 : f32
    %1818 = vector.broadcast %cst_449 : f32 to vector<16x128xf32>
    %1819 = arith.select %1591, %1817, %1818 : vector<16x128xi1>, vector<16x128xf32>
    %c158 = arith.constant 158 : index
    %1820 = memref.load %arg4[%c158] : memref<216xf32, #tpu.memory_space<smem>>
    %1821 = vector.broadcast %1820 : f32 to vector<16x128xf32>
    %1822 = arith.mulf %1821, %1819 : vector<16x128xf32>
    %1823 = arith.addf %1812, %1822 : vector<16x128xf32>
    %c194 = arith.constant 194 : index
    %1824 = memref.load %arg4[%c194] : memref<216xf32, #tpu.memory_space<smem>>
    %1825 = vector.broadcast %1824 : f32 to vector<16x128xf32>
    %1826 = arith.mulf %1825, %1819 : vector<16x128xf32>
    %1827 = arith.addf %1816, %1826 : vector<16x128xf32>
    %c162 = arith.constant 162 : index
    %1828 = memref.load %arg4[%c162] : memref<216xf32, #tpu.memory_space<smem>>
    %1829 = vector.broadcast %1828 : f32 to vector<16x128xf32>
    %1830 = arith.mulf %1829, %1575 : vector<16x128xf32>
    %1831 = arith.addf %1823, %1830 : vector<16x128xf32>
    %c198 = arith.constant 198 : index
    %1832 = memref.load %arg4[%c198] : memref<216xf32, #tpu.memory_space<smem>>
    %1833 = vector.broadcast %1832 : f32 to vector<16x128xf32>
    %1834 = arith.mulf %1833, %1575 : vector<16x128xf32>
    %1835 = arith.addf %1827, %1834 : vector<16x128xf32>
    %c124_i32_450 = arith.constant 124 : i32
    %1836 = tpu.dynamic_rotate %1575 by %c124_i32_450 dim 1 : vector<16x128xf32>, i32 -> vector<16x128xf32>
    %cst_451 = arith.constant 0.000000e+00 : f32
    %1837 = vector.broadcast %cst_451 : f32 to vector<16x128xf32>
    %1838 = arith.select %1593, %1836, %1837 : vector<16x128xi1>, vector<16x128xf32>
    %c166 = arith.constant 166 : index
    %1839 = memref.load %arg4[%c166] : memref<216xf32, #tpu.memory_space<smem>>
    %1840 = vector.broadcast %1839 : f32 to vector<16x128xf32>
    %1841 = arith.mulf %1840, %1838 : vector<16x128xf32>
    %1842 = arith.addf %1831, %1841 : vector<16x128xf32>
    %c202 = arith.constant 202 : index
    %1843 = memref.load %arg4[%c202] : memref<216xf32, #tpu.memory_space<smem>>
    %1844 = vector.broadcast %1843 : f32 to vector<16x128xf32>
    %1845 = arith.mulf %1844, %1838 : vector<16x128xf32>
    %1846 = arith.addf %1835, %1845 : vector<16x128xf32>
    %c12_i32_452 = arith.constant 12 : i32
    %1847 = tpu.dynamic_rotate %1575 by %c12_i32_452 dim 0 : vector<16x128xf32>, i32 -> vector<16x128xf32>
    %cst_453 = arith.constant 0.000000e+00 : f32
    %1848 = vector.broadcast %cst_453 : f32 to vector<16x128xf32>
    %1849 = arith.select %1589, %1847, %1848 : vector<16x128xi1>, vector<16x128xf32>
    %c4_i32_454 = arith.constant 4 : i32
    %1850 = tpu.dynamic_rotate %1849 by %c4_i32_454 dim 1 : vector<16x128xf32>, i32 -> vector<16x128xf32>
    %cst_455 = arith.constant 0.000000e+00 : f32
    %1851 = vector.broadcast %cst_455 : f32 to vector<16x128xf32>
    %1852 = arith.select %1591, %1850, %1851 : vector<16x128xi1>, vector<16x128xf32>
    %c170 = arith.constant 170 : index
    %1853 = memref.load %arg4[%c170] : memref<216xf32, #tpu.memory_space<smem>>
    %1854 = vector.broadcast %1853 : f32 to vector<16x128xf32>
    %1855 = arith.mulf %1854, %1852 : vector<16x128xf32>
    %1856 = arith.addf %1842, %1855 : vector<16x128xf32>
    %c206 = arith.constant 206 : index
    %1857 = memref.load %arg4[%c206] : memref<216xf32, #tpu.memory_space<smem>>
    %1858 = vector.broadcast %1857 : f32 to vector<16x128xf32>
    %1859 = arith.mulf %1858, %1852 : vector<16x128xf32>
    %1860 = arith.addf %1846, %1859 : vector<16x128xf32>
    %c174 = arith.constant 174 : index
    %1861 = memref.load %arg4[%c174] : memref<216xf32, #tpu.memory_space<smem>>
    %1862 = vector.broadcast %1861 : f32 to vector<16x128xf32>
    %1863 = arith.mulf %1862, %1849 : vector<16x128xf32>
    %1864 = arith.addf %1856, %1863 : vector<16x128xf32>
    %c210 = arith.constant 210 : index
    %1865 = memref.load %arg4[%c210] : memref<216xf32, #tpu.memory_space<smem>>
    %1866 = vector.broadcast %1865 : f32 to vector<16x128xf32>
    %1867 = arith.mulf %1866, %1849 : vector<16x128xf32>
    %1868 = arith.addf %1860, %1867 : vector<16x128xf32>
    %c124_i32_456 = arith.constant 124 : i32
    %1869 = tpu.dynamic_rotate %1849 by %c124_i32_456 dim 1 : vector<16x128xf32>, i32 -> vector<16x128xf32>
    %cst_457 = arith.constant 0.000000e+00 : f32
    %1870 = vector.broadcast %cst_457 : f32 to vector<16x128xf32>
    %1871 = arith.select %1593, %1869, %1870 : vector<16x128xi1>, vector<16x128xf32>
    %c178 = arith.constant 178 : index
    %1872 = memref.load %arg4[%c178] : memref<216xf32, #tpu.memory_space<smem>>
    %1873 = vector.broadcast %1872 : f32 to vector<16x128xf32>
    %1874 = arith.mulf %1873, %1871 : vector<16x128xf32>
    %1875 = arith.addf %1864, %1874 : vector<16x128xf32>
    %c214 = arith.constant 214 : index
    %1876 = memref.load %arg4[%c214] : memref<216xf32, #tpu.memory_space<smem>>
    %1877 = vector.broadcast %1876 : f32 to vector<16x128xf32>
    %1878 = arith.mulf %1877, %1871 : vector<16x128xf32>
    %1879 = arith.addf %1868, %1878 : vector<16x128xf32>
    %c4_i32_458 = arith.constant 4 : i32
    %1880 = tpu.dynamic_rotate %1585 by %c4_i32_458 dim 0 : vector<16x128xf32>, i32 -> vector<16x128xf32>
    %cst_459 = arith.constant 0.000000e+00 : f32
    %1881 = vector.broadcast %cst_459 : f32 to vector<16x128xf32>
    %1882 = arith.select %1587, %1880, %1881 : vector<16x128xi1>, vector<16x128xf32>
    %c4_i32_460 = arith.constant 4 : i32
    %1883 = tpu.dynamic_rotate %1882 by %c4_i32_460 dim 1 : vector<16x128xf32>, i32 -> vector<16x128xf32>
    %cst_461 = arith.constant 0.000000e+00 : f32
    %1884 = vector.broadcast %cst_461 : f32 to vector<16x128xf32>
    %1885 = arith.select %1591, %1883, %1884 : vector<16x128xi1>, vector<16x128xf32>
    %c147 = arith.constant 147 : index
    %1886 = memref.load %arg4[%c147] : memref<216xf32, #tpu.memory_space<smem>>
    %1887 = vector.broadcast %1886 : f32 to vector<16x128xf32>
    %1888 = arith.mulf %1887, %1885 : vector<16x128xf32>
    %1889 = arith.addf %1875, %1888 : vector<16x128xf32>
    %c183 = arith.constant 183 : index
    %1890 = memref.load %arg4[%c183] : memref<216xf32, #tpu.memory_space<smem>>
    %1891 = vector.broadcast %1890 : f32 to vector<16x128xf32>
    %1892 = arith.mulf %1891, %1885 : vector<16x128xf32>
    %1893 = arith.addf %1879, %1892 : vector<16x128xf32>
    %c151 = arith.constant 151 : index
    %1894 = memref.load %arg4[%c151] : memref<216xf32, #tpu.memory_space<smem>>
    %1895 = vector.broadcast %1894 : f32 to vector<16x128xf32>
    %1896 = arith.mulf %1895, %1882 : vector<16x128xf32>
    %1897 = arith.addf %1889, %1896 : vector<16x128xf32>
    %c187 = arith.constant 187 : index
    %1898 = memref.load %arg4[%c187] : memref<216xf32, #tpu.memory_space<smem>>
    %1899 = vector.broadcast %1898 : f32 to vector<16x128xf32>
    %1900 = arith.mulf %1899, %1882 : vector<16x128xf32>
    %1901 = arith.addf %1893, %1900 : vector<16x128xf32>
    %c124_i32_462 = arith.constant 124 : i32
    %1902 = tpu.dynamic_rotate %1882 by %c124_i32_462 dim 1 : vector<16x128xf32>, i32 -> vector<16x128xf32>
    %cst_463 = arith.constant 0.000000e+00 : f32
    %1903 = vector.broadcast %cst_463 : f32 to vector<16x128xf32>
    %1904 = arith.select %1593, %1902, %1903 : vector<16x128xi1>, vector<16x128xf32>
    %c155 = arith.constant 155 : index
    %1905 = memref.load %arg4[%c155] : memref<216xf32, #tpu.memory_space<smem>>
    %1906 = vector.broadcast %1905 : f32 to vector<16x128xf32>
    %1907 = arith.mulf %1906, %1904 : vector<16x128xf32>
    %1908 = arith.addf %1897, %1907 : vector<16x128xf32>
    %c191 = arith.constant 191 : index
    %1909 = memref.load %arg4[%c191] : memref<216xf32, #tpu.memory_space<smem>>
    %1910 = vector.broadcast %1909 : f32 to vector<16x128xf32>
    %1911 = arith.mulf %1910, %1904 : vector<16x128xf32>
    %1912 = arith.addf %1901, %1911 : vector<16x128xf32>
    %c4_i32_464 = arith.constant 4 : i32
    %1913 = tpu.dynamic_rotate %1585 by %c4_i32_464 dim 1 : vector<16x128xf32>, i32 -> vector<16x128xf32>
    %cst_465 = arith.constant 0.000000e+00 : f32
    %1914 = vector.broadcast %cst_465 : f32 to vector<16x128xf32>
    %1915 = arith.select %1591, %1913, %1914 : vector<16x128xi1>, vector<16x128xf32>
    %c159 = arith.constant 159 : index
    %1916 = memref.load %arg4[%c159] : memref<216xf32, #tpu.memory_space<smem>>
    %1917 = vector.broadcast %1916 : f32 to vector<16x128xf32>
    %1918 = arith.mulf %1917, %1915 : vector<16x128xf32>
    %1919 = arith.addf %1908, %1918 : vector<16x128xf32>
    %c195 = arith.constant 195 : index
    %1920 = memref.load %arg4[%c195] : memref<216xf32, #tpu.memory_space<smem>>
    %1921 = vector.broadcast %1920 : f32 to vector<16x128xf32>
    %1922 = arith.mulf %1921, %1915 : vector<16x128xf32>
    %1923 = arith.addf %1912, %1922 : vector<16x128xf32>
    %c163 = arith.constant 163 : index
    %1924 = memref.load %arg4[%c163] : memref<216xf32, #tpu.memory_space<smem>>
    %1925 = vector.broadcast %1924 : f32 to vector<16x128xf32>
    %1926 = arith.mulf %1925, %1585 : vector<16x128xf32>
    %1927 = arith.addf %1919, %1926 : vector<16x128xf32>
    %c199 = arith.constant 199 : index
    %1928 = memref.load %arg4[%c199] : memref<216xf32, #tpu.memory_space<smem>>
    %1929 = vector.broadcast %1928 : f32 to vector<16x128xf32>
    %1930 = arith.mulf %1929, %1585 : vector<16x128xf32>
    %1931 = arith.addf %1923, %1930 : vector<16x128xf32>
    %c124_i32_466 = arith.constant 124 : i32
    %1932 = tpu.dynamic_rotate %1585 by %c124_i32_466 dim 1 : vector<16x128xf32>, i32 -> vector<16x128xf32>
    %cst_467 = arith.constant 0.000000e+00 : f32
    %1933 = vector.broadcast %cst_467 : f32 to vector<16x128xf32>
    %1934 = arith.select %1593, %1932, %1933 : vector<16x128xi1>, vector<16x128xf32>
    %c167 = arith.constant 167 : index
    %1935 = memref.load %arg4[%c167] : memref<216xf32, #tpu.memory_space<smem>>
    %1936 = vector.broadcast %1935 : f32 to vector<16x128xf32>
    %1937 = arith.mulf %1936, %1934 : vector<16x128xf32>
    %1938 = arith.addf %1927, %1937 : vector<16x128xf32>
    %c203 = arith.constant 203 : index
    %1939 = memref.load %arg4[%c203] : memref<216xf32, #tpu.memory_space<smem>>
    %1940 = vector.broadcast %1939 : f32 to vector<16x128xf32>
    %1941 = arith.mulf %1940, %1934 : vector<16x128xf32>
    %1942 = arith.addf %1931, %1941 : vector<16x128xf32>
    %c12_i32_468 = arith.constant 12 : i32
    %1943 = tpu.dynamic_rotate %1585 by %c12_i32_468 dim 0 : vector<16x128xf32>, i32 -> vector<16x128xf32>
    %cst_469 = arith.constant 0.000000e+00 : f32
    %1944 = vector.broadcast %cst_469 : f32 to vector<16x128xf32>
    %1945 = arith.select %1589, %1943, %1944 : vector<16x128xi1>, vector<16x128xf32>
    %c4_i32_470 = arith.constant 4 : i32
    %1946 = tpu.dynamic_rotate %1945 by %c4_i32_470 dim 1 : vector<16x128xf32>, i32 -> vector<16x128xf32>
    %cst_471 = arith.constant 0.000000e+00 : f32
    %1947 = vector.broadcast %cst_471 : f32 to vector<16x128xf32>
    %1948 = arith.select %1591, %1946, %1947 : vector<16x128xi1>, vector<16x128xf32>
    %c171 = arith.constant 171 : index
    %1949 = memref.load %arg4[%c171] : memref<216xf32, #tpu.memory_space<smem>>
    %1950 = vector.broadcast %1949 : f32 to vector<16x128xf32>
    %1951 = arith.mulf %1950, %1948 : vector<16x128xf32>
    %1952 = arith.addf %1938, %1951 : vector<16x128xf32>
    %c207 = arith.constant 207 : index
    %1953 = memref.load %arg4[%c207] : memref<216xf32, #tpu.memory_space<smem>>
    %1954 = vector.broadcast %1953 : f32 to vector<16x128xf32>
    %1955 = arith.mulf %1954, %1948 : vector<16x128xf32>
    %1956 = arith.addf %1942, %1955 : vector<16x128xf32>
    %c175 = arith.constant 175 : index
    %1957 = memref.load %arg4[%c175] : memref<216xf32, #tpu.memory_space<smem>>
    %1958 = vector.broadcast %1957 : f32 to vector<16x128xf32>
    %1959 = arith.mulf %1958, %1945 : vector<16x128xf32>
    %1960 = arith.addf %1952, %1959 : vector<16x128xf32>
    %c211 = arith.constant 211 : index
    %1961 = memref.load %arg4[%c211] : memref<216xf32, #tpu.memory_space<smem>>
    %1962 = vector.broadcast %1961 : f32 to vector<16x128xf32>
    %1963 = arith.mulf %1962, %1945 : vector<16x128xf32>
    %1964 = arith.addf %1956, %1963 : vector<16x128xf32>
    %c124_i32_472 = arith.constant 124 : i32
    %1965 = tpu.dynamic_rotate %1945 by %c124_i32_472 dim 1 : vector<16x128xf32>, i32 -> vector<16x128xf32>
    %cst_473 = arith.constant 0.000000e+00 : f32
    %1966 = vector.broadcast %cst_473 : f32 to vector<16x128xf32>
    %1967 = arith.select %1593, %1965, %1966 : vector<16x128xi1>, vector<16x128xf32>
    %c179 = arith.constant 179 : index
    %1968 = memref.load %arg4[%c179] : memref<216xf32, #tpu.memory_space<smem>>
    %1969 = vector.broadcast %1968 : f32 to vector<16x128xf32>
    %1970 = arith.mulf %1969, %1967 : vector<16x128xf32>
    %1971 = arith.addf %1960, %1970 : vector<16x128xf32>
    %c215 = arith.constant 215 : index
    %1972 = memref.load %arg4[%c215] : memref<216xf32, #tpu.memory_space<smem>>
    %1973 = vector.broadcast %1972 : f32 to vector<16x128xf32>
    %1974 = arith.mulf %1973, %1967 : vector<16x128xf32>
    %1975 = arith.addf %1964, %1974 : vector<16x128xf32>
    %c4_474 = arith.constant 4 : index
    %1976 = memref.load %arg5[%c4_474] : memref<6xf32, #tpu.memory_space<smem>>
    %1977 = vector.broadcast %1976 : f32 to vector<16x128xf32>
    %1978 = arith.addf %1971, %1977 : vector<16x128xf32>
    %c5_475 = arith.constant 5 : index
    %1979 = memref.load %arg5[%c5_475] : memref<6xf32, #tpu.memory_space<smem>>
    %1980 = vector.broadcast %1979 : f32 to vector<16x128xf32>
    %1981 = arith.addf %1975, %1980 : vector<16x128xf32>
    %c4_476 = arith.constant 4 : index
    %c0_477 = arith.constant 0 : index
    %c0_478 = arith.constant 0 : index
    %1982 = vector.load %arg6[%c4_476, %c0_477, %c0_478] : memref<6x16x128xf32, #tpu.memory_space<vmem>>, vector<1x16x128xf32>
    %1983 = vector.shape_cast %1982 : vector<1x16x128xf32> to vector<16x128xf32>
    %1984 = vector.shape_cast %1978 : vector<16x128xf32> to vector<1x16x128xf32>
    tpu.vector_store %arg6[%c4_476, %c0_477, %c0_478], %1984 {strides = array<i32>} : memref<6x16x128xf32, #tpu.memory_space<vmem>>, vector<1x16x128xf32>,
    %c5_479 = arith.constant 5 : index
    %c0_480 = arith.constant 0 : index
    %c0_481 = arith.constant 0 : index
    %1985 = vector.load %arg6[%c5_479, %c0_480, %c0_481] : memref<6x16x128xf32, #tpu.memory_space<vmem>>, vector<1x16x128xf32>
    %1986 = vector.shape_cast %1985 : vector<1x16x128xf32> to vector<16x128xf32>
    %1987 = vector.shape_cast %1981 : vector<16x128xf32> to vector<1x16x128xf32>
    tpu.vector_store %arg6[%c5_479, %c0_480, %c0_481], %1987 {strides = array<i32>} : memref<6x16x128xf32, #tpu.memory_space<vmem>>, vector<1x16x128xf32>,
    return
  }
  func.func @transform_0(%arg0: i32) -> (i32, i32, i32) {
    %c0_i32 = arith.constant 0 : i32
    %c0_i32_0 = arith.constant 0 : i32
    %c0_i32_1 = arith.constant 0 : i32
    %c0_i32_2 = arith.constant 0 : i32
    return %c0_i32, %c0_i32_0, %c0_i32_1 : i32, i32, i32
  }
  func.func @transform_1(%arg0: i32) -> i32 {
    %c0_i32 = arith.constant 0 : i32
    %c0_i32_0 = arith.constant 0 : i32
    return %c0_i32 : i32
  }
  func.func @transform_2(%arg0: i32) -> i32 {
    %c0_i32 = arith.constant 0 : i32
    %c0_i32_0 = arith.constant 0 : i32
    return %c0_i32 : i32
  }
  func.func @transform_3(%arg0: i32) -> i32 {
    %c0_i32 = arith.constant 0 : i32
    %c0_i32_0 = arith.constant 0 : i32
    return %c0_i32 : i32
  }
  func.func @transform_4(%arg0: i32) -> i32 {
    %c0_i32 = arith.constant 0 : i32
    %c0_i32_0 = arith.constant 0 : i32
    return %c0_i32 : i32
  }
  func.func @transform_5(%arg0: i32) -> (i32, i32, i32) {
    %c0_i32 = arith.constant 0 : i32
    %c0_i32_0 = arith.constant 0 : i32
    %c0_i32_1 = arith.constant 0 : i32
    %c0_i32_2 = arith.constant 0 : i32
    return %c0_i32, %c0_i32_0, %c0_i32_1 : i32, i32, i32
  }
}

</mosaic_0001>

<llo_original>
// kernel: base_model_with_multiscale_forward.1
$region0: #{base_model_with_multiscale_forward.1}
  #allocation0 [shape = 'u32[]', space=smem, size = 0x4, offset = 0x4, fixed_abs, tag = 'smem constant byte address 0x4 - core index']
  #allocation1 [shape = 'u32[144,128]{1,0:T(1,128)}', space=vmem, size = 0x12000, scoped, tag = 'internal scratch']
  %s0 = inlined_call_operand.vmem [shape: f32[4,16,128], index: 0, kind: input, shape index: {}]
  %s1 = inlined_call_operand.vmem [shape: f32[144], index: 1, kind: input, shape index: {}]
  %s2 = inlined_call_operand.vmem [shape: f32[4], index: 2, kind: input, shape index: {}]
  %s3 = inlined_call_operand.vmem [shape: f32[216], index: 3, kind: input, shape index: {}]
  %s4 = inlined_call_operand.vmem [shape: f32[6], index: 4, kind: input, shape index: {}]
  %s5 = inlined_call_operand.vmem [shape: f32[6,16,128], index: 5, kind: output, shape index: {}]
  %s6 = sld [smem:[#allocation0]]
  $region46: #{base_model_with_multiscale_forward.1} parent=0
    _
  %s8 = ssub.s32 1, %s6
  %s9 = scalar_select 0, %s8, %s6
  $region1: #{base_model_with_multiscale_forward.1} parent=0
    #allocation2 [shape = 'u8[1024]{0}', space=smem, size = 0x400, scoped, tag = 'input window, operand 1, single buffered']
    #allocation3 [shape = 's32[1]{0}', space=sflag, size = 0x4, scoped, tag = 'scoped memory for base_model_with_multiscale_forward.1']
    #allocation4 [shape = 'u8[512]{0}', space=smem, size = 0x200, scoped, tag = 'input window, operand 2, single buffered']
    #allocation5 [shape = 's32[1]{0}', space=sflag, size = 0x4, scoped, tag = 'scoped memory for base_model_with_multiscale_forward.1']
    #allocation6 [shape = 'u8[1024]{0}', space=smem, size = 0x400, scoped, tag = 'input window, operand 3, single buffered']
    #allocation7 [shape = 'u8[512]{0}', space=smem, size = 0x200, scoped, tag = 'input window, operand 4, single buffered']
    #allocation8 [shape = 's32[1]{0}', space=sflag, size = 0x4, scoped, tag = 'scoped memory for base_model_with_multiscale_forward.1']
    %10 = vsyncpa [#allocation3], 0
    %11 = vsyncpa [#allocation5], 0
    %12 = vsyncpa [#allocation8], 0
    // Predicated region
    $region2: #{base_model_with_multiscale_forward.1} parent=1 // pred_check
      _
    $region3: #{base_model_with_multiscale_forward.1} parent=1 // pred_check_branch
      %14 = sbr.rel (0) target = $region5
    $region4: #{base_model_with_multiscale_forward.1} parent=1 // pred_region
      _
    $region5: #{base_model_with_multiscale_forward.1} parent=1 // pred_fallthru
      _
    // Predicated region
    $region6: #{base_model_with_multiscale_forward.1} parent=1 // pred_check
      _
    $region7: #{base_model_with_multiscale_forward.1} parent=1 // pred_check_branch
      %16 = sbr.rel (0) target = $region9
    $region8: #{base_model_with_multiscale_forward.1} parent=1 // pred_region
      %s18 = ssub.s32 32, 32
      %19 = vsyncadd [#allocation3], %s18
      %s21 = sshll.u32 %s1, 4
      %s22 = int_to_ptr.vmem [resolvable:$true] %s21
      %24 = dma.vmem_to_smem %s22, 32, [#allocation2], [#allocation3]
    $region9: #{base_model_with_multiscale_forward.1} parent=1 // pred_fallthru
      _
    // Predicated region
    $region10: #{base_model_with_multiscale_forward.1} parent=1 // pred_check
      _
    $region11: #{base_model_with_multiscale_forward.1} parent=1 // pred_check_branch
      %26 = sbr.rel (0) target = $region13
    $region12: #{base_model_with_multiscale_forward.1} parent=1 // pred_region
      %s28 = ssub.s32 16, 16
      %29 = vsyncadd [#allocation5], %s28
      %s31 = sshll.u32 %s2, 4
      %s32 = int_to_ptr.vmem [resolvable:$true] %s31
      %34 = dma.vmem_to_smem %s32, 16, [#allocation4], [#allocation5]
    $region13: #{base_model_with_multiscale_forward.1} parent=1 // pred_fallthru
      _
    // Predicated region
    $region14: #{base_model_with_multiscale_forward.1} parent=1 // pred_check
      _
    $region15: #{base_model_with_multiscale_forward.1} parent=1 // pred_check_branch
      %36 = sbr.rel (0) target = $region17
    $region16: #{base_model_with_multiscale_forward.1} parent=1 // pred_region
      %s38 = ssub.s32 32, 32
      %39 = vsyncadd [#allocation5], %s38
      %s41 = sshll.u32 %s3, 4
      %s42 = int_to_ptr.vmem [resolvable:$true] %s41
      %44 = dma.vmem_to_smem %s42, 32, [#allocation6], [#allocation5]
    $region17: #{base_model_with_multiscale_forward.1} parent=1 // pred_fallthru
      _
    // Predicated region
    $region18: #{base_model_with_multiscale_forward.1} parent=1 // pred_check
      _
    $region19: #{base_model_with_multiscale_forward.1} parent=1 // pred_check_branch
      %46 = sbr.rel (0) target = $region21
    $region20: #{base_model_with_multiscale_forward.1} parent=1 // pred_region
      %s48 = ssub.s32 16, 16
      %49 = vsyncadd [#allocation8], %s48
      %s51 = sshll.u32 %s4, 4
      %s52 = int_to_ptr.vmem [resolvable:$true] %s51
      %54 = dma.vmem_to_smem %s52, 16, [#allocation7], [#allocation8]
    $region21: #{base_model_with_multiscale_forward.1} parent=1 // pred_fallthru
      _
    // Predicated region
    $region22: #{base_model_with_multiscale_forward.1} parent=1 // pred_check
      _
    $region23: #{base_model_with_multiscale_forward.1} parent=1 // pred_check_branch
      %56 = sbr.rel (0) target = $region25
    $region24: #{base_model_with_multiscale_forward.1} parent=1 // pred_region
      %57 = dma.done [#allocation3], 32
    $region25: #{base_model_with_multiscale_forward.1} parent=1 // pred_fallthru
      _
    // Predicated region
    $region26: #{base_model_with_multiscale_forward.1} parent=1 // pred_check
      _
    $region27: #{base_model_with_multiscale_forward.1} parent=1 // pred_check_branch
      %59 = sbr.rel (0) target = $region29
    $region28: #{base_model_with_multiscale_forward.1} parent=1 // pred_region
      %60 = dma.done [#allocation5], 16
    $region29: #{base_model_with_multiscale_forward.1} parent=1 // pred_fallthru
      _
    // Predicated region
    $region30: #{base_model_with_multiscale_forward.1} parent=1 // pred_check
      _
    $region31: #{base_model_with_multiscale_forward.1} parent=1 // pred_check_branch
      %62 = sbr.rel (0) target = $region33
    $region32: #{base_model_with_multiscale_forward.1} parent=1 // pred_region
      %63 = dma.done [#allocation5], 32
    $region33: #{base_model_with_multiscale_forward.1} parent=1 // pred_fallthru
      _
    // Predicated region
    $region34: #{base_model_with_multiscale_forward.1} parent=1 // pred_check
      _
    $region35: #{base_model_with_multiscale_forward.1} parent=1 // pred_check_branch
      %65 = sbr.rel (0) target = $region37
    $region36: #{base_model_with_multiscale_forward.1} parent=1 // pred_region
      %66 = dma.done [#allocation8], 16
    $region37: #{base_model_with_multiscale_forward.1} parent=1 // pred_fallthru
      _
    %67 = sfence
    %v68 = vlaneseq
    %v69 = vshrl.u32 %v68, 7
    %v70 = vadd.s32 %v69, 8
    %v71 = vlaneseq
    %v72 = vand.u32 %v71, 127
    %vm73 = vcmp.lt.s32.totalorder %v72, 0
    %v74 = vsub.s32 0, %v72
    %v75 = vsel %vm73, %v74, %v72
    %v76 = vshrl.u32 %v75, 4
    %v77 = vand.u32 %v75, 15
    %v78 = vsub.s32 0, %v77
    %v79 = vsel %vm73, %v78, %v77
    %vm80 = vcmp.ne.s32.totalorder %v79, 0
    %vm81 = vcmp.lt.s32.totalorder %v79, 0
    %vm82 = vmand %vm81, %vm80
    %v83 = vadd.s32 %v79, 16
    %v84 = vsel %vm82, %v83, %v79
    %v85 = vld [vmem:[%s0] sm:$0xff]
    %v86 = vld [vmem:[%s0 + $0x8] sm:$0xff]
    %s87 = scalar_lea.vmem %s0, 16
    %v88 = vld [vmem:[%s87] sm:$0xff]
    %v89 = vld [vmem:[%s87 + $0x8] sm:$0xff]
    %s90 = scalar_lea.vmem %s0, 32
    %v91 = vld [vmem:[%s90] sm:$0xff]
    %v92 = vld [vmem:[%s90 + $0x8] sm:$0xff]
    %s93 = scalar_lea.vmem %s0, 48
    %v94 = vld [vmem:[%s93] sm:$0xff]
    %v95 = vld [vmem:[%s93 + $0x8] sm:$0xff]
    %vm96 = vcmp.ge.s32.totalorder %v69, 1
    %vm97 = vcmp.ge.s32.totalorder %v70, 1
    %vm98 = vcmp.lt.s32.totalorder %v69, 15
    %vm99 = vcmp.lt.s32.totalorder %v70, 15
    %vm100 = vcmp.ge.s32.totalorder %v84, 1
    %vm101 = vcmp.lt.s32.totalorder %v84, 15
    %v102 = vrot.slane %v85, 7
    %v103 = vrot.slane %v86, 7
    %vm104 = vcmp.lt.s32.totalorder %v69, 1
    %v105 = vsel %vm104, %v102, %v103
    %v106 = vsel %vm104, %v103, %v102
    %v107 = vsel %vm96, %v106, 0.0
    %v108 = vsel %vm97, %v105, 0.0
    %109 = vrot.lane.b32.xlu0 %v107, 1
    %v110 = vpop.permute.xlu0 %109
    %111 = vrot.lane.b32.xlu0 %v108, 1
    %v112 = vpop.permute.xlu0 %111
    %v113 = vsel %vm100, %v110, 0.0
    %v114 = vsel %vm100, %v112, 0.0
    %s115 = sld [smem:[#allocation2]]
    %v116 = vstv %s115
    %v117 = vmul.f32 %v116, %v113
    %v118 = vmul.f32 %v116, %v114
    %s119 = sld [smem:[#allocation2 + $0x24]]
    %v120 = vstv %s119
    %v121 = vmul.f32 %v120, %v113
    %v122 = vmul.f32 %v120, %v114
    %s123 = sld [smem:[#allocation2 + $0x48]]
    %v124 = vstv %s123
    %v125 = vmul.f32 %v124, %v113
    %v126 = vmul.f32 %v124, %v114
    %s127 = sld [smem:[#allocation2 + $0x6c]]
    %v128 = vstv %s127
    %v129 = vmul.f32 %v128, %v113
    %v130 = vmul.f32 %v128, %v114
    %s131 = sld [smem:[#allocation2 + $0x4]]
    %v132 = vstv %s131
    %v133 = vmul.f32 %v132, %v107
    %v134 = vmul.f32 %v132, %v108
    %v135 = vadd.f32 %v117, %v133
    %v136 = vadd.f32 %v118, %v134
    %s137 = sld [smem:[#allocation2 + $0x28]]
    %v138 = vstv %s137
    %v139 = vmul.f32 %v138, %v107
    %v140 = vmul.f32 %v138, %v108
    %v141 = vadd.f32 %v121, %v139
    %v142 = vadd.f32 %v122, %v140
    %s143 = sld [smem:[#allocation2 + $0x4c]]
    %v144 = vstv %s143
    %v145 = vmul.f32 %v144, %v107
    %v146 = vmul.f32 %v144, %v108
    %v147 = vadd.f32 %v125, %v145
    %v148 = vadd.f32 %v126, %v146
    %s149 = sld [smem:[#allocation2 + $0x70]]
    %v150 = vstv %s149
    %v151 = vmul.f32 %v150, %v107
    %v152 = vmul.f32 %v150, %v108
    %v153 = vadd.f32 %v129, %v151
    %v154 = vadd.f32 %v130, %v152
    %155 = vrot.lane.b32.xlu0 %v107, 127
    %v156 = vpop.permute.xlu0 %155
    %157 = vrot.lane.b32.xlu0 %v108, 127
    %v158 = vpop.permute.xlu0 %157
    %v159 = vsel %vm101, %v156, 0.0
    %v160 = vsel %vm101, %v158, 0.0
    %s161 = sld [smem:[#allocation2 + $0x8]]
    %v162 = vstv %s161
    %v163 = vmul.f32 %v162, %v159
    %v164 = vmul.f32 %v162, %v160
    %v165 = vadd.f32 %v135, %v163
    %v166 = vadd.f32 %v136, %v164
    %s167 = sld [smem:[#allocation2 + $0x2c]]
    %v168 = vstv %s167
    %v169 = vmul.f32 %v168, %v159
    %v170 = vmul.f32 %v168, %v160
    %v171 = vadd.f32 %v141, %v169
    %v172 = vadd.f32 %v142, %v170
    %s173 = sld [smem:[#allocation2 + $0x50]]
    %v174 = vstv %s173
    %v175 = vmul.f32 %v174, %v159
    %v176 = vmul.f32 %v174, %v160
    %v177 = vadd.f32 %v147, %v175
    %v178 = vadd.f32 %v148, %v176
    %s179 = sld [smem:[#allocation2 + $0x74]]
    %v180 = vstv %s179
    %v181 = vmul.f32 %v180, %v159
    %v182 = vmul.f32 %v180, %v160
    %v183 = vadd.f32 %v153, %v181
    %v184 = vadd.f32 %v154, %v182
    %185 = vrot.lane.b32.xlu0 %v85, 1
    %v186 = vpop.permute.xlu0 %185
    %187 = vrot.lane.b32.xlu0 %v86, 1
    %v188 = vpop.permute.xlu0 %187
    %v189 = vsel %vm100, %v186, 0.0
    %v190 = vsel %vm100, %v188, 0.0
    %s191 = sld [smem:[#allocation2 + $0xc]]
    %v192 = vstv %s191
    %v193 = vmul.f32 %v192, %v189
    %v194 = vmul.f32 %v192, %v190
    %v195 = vadd.f32 %v165, %v193
    %v196 = vadd.f32 %v166, %v194
    %s197 = sld [smem:[#allocation2 + $0x30]]
    %v198 = vstv %s197
    %v199 = vmul.f32 %v198, %v189
    %v200 = vmul.f32 %v198, %v190
    %v201 = vadd.f32 %v171, %v199
    %v202 = vadd.f32 %v172, %v200
    %s203 = sld [smem:[#allocation2 + $0x54]]
    %v204 = vstv %s203
    %v205 = vmul.f32 %v204, %v189
    %v206 = vmul.f32 %v204, %v190
    %v207 = vadd.f32 %v177, %v205
    %v208 = vadd.f32 %v178, %v206
    %s209 = sld [smem:[#allocation2 + $0x78]]
    %v210 = vstv %s209
    %v211 = vmul.f32 %v210, %v189
    %v212 = vmul.f32 %v210, %v190
    %v213 = vadd.f32 %v183, %v211
    %v214 = vadd.f32 %v184, %v212
    %s215 = sld [smem:[#allocation2 + $0x10]]
    %v216 = vstv %s215
    %v217 = vmul.f32 %v216, %v85
    %v218 = vmul.f32 %v216, %v86
    %v219 = vadd.f32 %v195, %v217
    %v220 = vadd.f32 %v196, %v218
    %s221 = sld [smem:[#allocation2 + $0x34]]
    %v222 = vstv %s221
    %v223 = vmul.f32 %v222, %v85
    %v224 = vmul.f32 %v222, %v86
    %v225 = vadd.f32 %v201, %v223
    %v226 = vadd.f32 %v202, %v224
    %s227 = sld [smem:[#allocation2 + $0x58]]
    %v228 = vstv %s227
    %v229 = vmul.f32 %v228, %v85
    %v230 = vmul.f32 %v228, %v86
    %v231 = vadd.f32 %v207, %v229
    %v232 = vadd.f32 %v208, %v230
    %s233 = sld [smem:[#allocation2 + $0x7c]]
    %v234 = vstv %s233
    %v235 = vmul.f32 %v234, %v85
    %v236 = vmul.f32 %v234, %v86
    %v237 = vadd.f32 %v213, %v235
    %v238 = vadd.f32 %v214, %v236
    %239 = vrot.lane.b32.xlu0 %v85, 127
    %v240 = vpop.permute.xlu0 %239
    %241 = vrot.lane.b32.xlu0 %v86, 127
    %v242 = vpop.permute.xlu0 %241
    %v243 = vsel %vm101, %v240, 0.0
    %v244 = vsel %vm101, %v242, 0.0
    %s245 = sld [smem:[#allocation2 + $0x14]]
    %v246 = vstv %s245
    %v247 = vmul.f32 %v246, %v243
    %v248 = vmul.f32 %v246, %v244
    %v249 = vadd.f32 %v219, %v247
    %v250 = vadd.f32 %v220, %v248
    %s251 = sld [smem:[#allocation2 + $0x38]]
    %v252 = vstv %s251
    %v253 = vmul.f32 %v252, %v243
    %v254 = vmul.f32 %v252, %v244
    %v255 = vadd.f32 %v225, %v253
    %v256 = vadd.f32 %v226, %v254
    %s257 = sld [smem:[#allocation2 + $0x5c]]
    %v258 = vstv %s257
    %v259 = vmul.f32 %v258, %v243
    %v260 = vmul.f32 %v258, %v244
    %v261 = vadd.f32 %v231, %v259
    %v262 = vadd.f32 %v232, %v260
    %s263 = sld [smem:[#allocation2 + $0x80]]
    %v264 = vstv %s263
    %v265 = vmul.f32 %v264, %v243
    %v266 = vmul.f32 %v264, %v244
    %v267 = vadd.f32 %v237, %v265
    %v268 = vadd.f32 %v238, %v266
    %v269 = vrot.slane %v85, 1
    %v270 = vrot.slane %v86, 1
    %vm271 = vcmp.lt.s32.totalorder %v69, 7
    %v272 = vsel %vm271, %v269, %v270
    %v273 = vsel %vm271, %v270, %v269
    %v274 = vsel %vm98, %v272, 0.0
    %v275 = vsel %vm99, %v273, 0.0
    %276 = vrot.lane.b32.xlu0 %v274, 1
    %v277 = vpop.permute.xlu0 %276
    %278 = vrot.lane.b32.xlu0 %v275, 1
    %v279 = vpop.permute.xlu0 %278
    %v280 = vsel %vm100, %v277, 0.0
    %v281 = vsel %vm100, %v279, 0.0
    %s282 = sld [smem:[#allocation2 + $0x18]]
    %v283 = vstv %s282
    %v284 = vmul.f32 %v283, %v280
    %v285 = vmul.f32 %v283, %v281
    %v286 = vadd.f32 %v249, %v284
    %v287 = vadd.f32 %v250, %v285
    %s288 = sld [smem:[#allocation2 + $0x3c]]
    %v289 = vstv %s288
    %v290 = vmul.f32 %v289, %v280
    %v291 = vmul.f32 %v289, %v281
    %v292 = vadd.f32 %v255, %v290
    %v293 = vadd.f32 %v256, %v291
    %s294 = sld [smem:[#allocation2 + $0x60]]
    %v295 = vstv %s294
    %v296 = vmul.f32 %v295, %v280
    %v297 = vmul.f32 %v295, %v281
    %v298 = vadd.f32 %v261, %v296
    %v299 = vadd.f32 %v262, %v297
    %s300 = sld [smem:[#allocation2 + $0x84]]
    %v301 = vstv %s300
    %v302 = vmul.f32 %v301, %v280
    %v303 = vmul.f32 %v301, %v281
    %v304 = vadd.f32 %v267, %v302
    %v305 = vadd.f32 %v268, %v303
    %s306 = sld [smem:[#allocation2 + $0x1c]]
    %v307 = vstv %s306
    %v308 = vmul.f32 %v307, %v274
    %v309 = vmul.f32 %v307, %v275
    %v310 = vadd.f32 %v286, %v308
    %v311 = vadd.f32 %v287, %v309
    %s312 = sld [smem:[#allocation2 + $0x40]]
    %v313 = vstv %s312
    %v314 = vmul.f32 %v313, %v274
    %v315 = vmul.f32 %v313, %v275
    %v316 = vadd.f32 %v292, %v314
    %v317 = vadd.f32 %v293, %v315
    %s318 = sld [smem:[#allocation2 + $0x64]]
    %v319 = vstv %s318
    %v320 = vmul.f32 %v319, %v274
    %v321 = vmul.f32 %v319, %v275
    %v322 = vadd.f32 %v298, %v320
    %v323 = vadd.f32 %v299, %v321
    %s324 = sld [smem:[#allocation2 + $0x88]]
    %v325 = vstv %s324
    %v326 = vmul.f32 %v325, %v274
    %v327 = vmul.f32 %v325, %v275
    %v328 = vadd.f32 %v304, %v326
    %v329 = vadd.f32 %v305, %v327
    %330 = vrot.lane.b32.xlu0 %v274, 127
    %v331 = vpop.permute.xlu0 %330
    %332 = vrot.lane.b32.xlu0 %v275, 127
    %v333 = vpop.permute.xlu0 %332
    %v334 = vsel %vm101, %v331, 0.0
    %v335 = vsel %vm101, %v333, 0.0
    %s336 = sld [smem:[#allocation2 + $0x20]]
    %v337 = vstv %s336
    %v338 = vmul.f32 %v337, %v334
    %v339 = vmul.f32 %v337, %v335
    %v340 = vadd.f32 %v310, %v338
    %v341 = vadd.f32 %v311, %v339
    %s342 = sld [smem:[#allocation2 + $0x44]]
    %v343 = vstv %s342
    %v344 = vmul.f32 %v343, %v334
    %v345 = vmul.f32 %v343, %v335
    %v346 = vadd.f32 %v316, %v344
    %v347 = vadd.f32 %v317, %v345
    %s348 = sld [smem:[#allocation2 + $0x68]]
    %v349 = vstv %s348
    %v350 = vmul.f32 %v349, %v334
    %v351 = vmul.f32 %v349, %v335
    %v352 = vadd.f32 %v322, %v350
    %v353 = vadd.f32 %v323, %v351
    %s354 = sld [smem:[#allocation2 + $0x8c]]
    %v355 = vstv %s354
    %v356 = vmul.f32 %v355, %v334
    %v357 = vmul.f32 %v355, %v335
    %v358 = vadd.f32 %v328, %v356
    %v359 = vadd.f32 %v329, %v357
    %v360 = vrot.slane %v88, 7
    %v361 = vrot.slane %v89, 7
    %v362 = vsel %vm104, %v360, %v361
    %v363 = vsel %vm104, %v361, %v360
    %v364 = vsel %vm96, %v363, 0.0
    %v365 = vsel %vm97, %v362, 0.0
    %366 = vrot.lane.b32.xlu0 %v364, 1
    %v367 = vpop.permute.xlu0 %366
    %368 = vrot.lane.b32.xlu0 %v365, 1
    %v369 = vpop.permute.xlu0 %368
    %v370 = vsel %vm100, %v367, 0.0
    %v371 = vsel %vm100, %v369, 0.0
    %s372 = sld [smem:[#allocation2 + $0x1]]
    %v373 = vstv %s372
    %v374 = vmul.f32 %v373, %v370
    %v375 = vmul.f32 %v373, %v371
    %v376 = vadd.f32 %v340, %v374
    %v377 = vadd.f32 %v341, %v375
    %s378 = sld [smem:[#allocation2 + $0x25]]
    %v379 = vstv %s378
    %v380 = vmul.f32 %v379, %v370
    %v381 = vmul.f32 %v379, %v371
    %v382 = vadd.f32 %v346, %v380
    %v383 = vadd.f32 %v347, %v381
    %s384 = sld [smem:[#allocation2 + $0x49]]
    %v385 = vstv %s384
    %v386 = vmul.f32 %v385, %v370
    %v387 = vmul.f32 %v385, %v371
    %v388 = vadd.f32 %v352, %v386
    %v389 = vadd.f32 %v353, %v387
    %s390 = sld [smem:[#allocation2 + $0x6d]]
    %v391 = vstv %s390
    %v392 = vmul.f32 %v391, %v370
    %v393 = vmul.f32 %v391, %v371
    %v394 = vadd.f32 %v358, %v392
    %v395 = vadd.f32 %v359, %v393
    %s396 = sld [smem:[#allocation2 + $0x5]]
    %v397 = vstv %s396
    %v398 = vmul.f32 %v397, %v364
    %v399 = vmul.f32 %v397, %v365
    %v400 = vadd.f32 %v376, %v398
    %v401 = vadd.f32 %v377, %v399
    %s402 = sld [smem:[#allocation2 + $0x29]]
    %v403 = vstv %s402
    %v404 = vmul.f32 %v403, %v364
    %v405 = vmul.f32 %v403, %v365
    %v406 = vadd.f32 %v382, %v404
    %v407 = vadd.f32 %v383, %v405
    %s408 = sld [smem:[#allocation2 + $0x4d]]
    %v409 = vstv %s408
    %v410 = vmul.f32 %v409, %v364
    %v411 = vmul.f32 %v409, %v365
    %v412 = vadd.f32 %v388, %v410
    %v413 = vadd.f32 %v389, %v411
    %s414 = sld [smem:[#allocation2 + $0x71]]
    %v415 = vstv %s414
    %v416 = vmul.f32 %v415, %v364
    %v417 = vmul.f32 %v415, %v365
    %v418 = vadd.f32 %v394, %v416
    %v419 = vadd.f32 %v395, %v417
    %420 = vrot.lane.b32.xlu0 %v364, 127
    %v421 = vpop.permute.xlu0 %420
    %422 = vrot.lane.b32.xlu0 %v365, 127
    %v423 = vpop.permute.xlu0 %422
    %v424 = vsel %vm101, %v421, 0.0
    %v425 = vsel %vm101, %v423, 0.0
    %s426 = sld [smem:[#allocation2 + $0x9]]
    %v427 = vstv %s426
    %v428 = vmul.f32 %v427, %v424
    %v429 = vmul.f32 %v427, %v425
    %v430 = vadd.f32 %v400, %v428
    %v431 = vadd.f32 %v401, %v429
    %s432 = sld [smem:[#allocation2 + $0x2d]]
    %v433 = vstv %s432
    %v434 = vmul.f32 %v433, %v424
    %v435 = vmul.f32 %v433, %v425
    %v436 = vadd.f32 %v406, %v434
    %v437 = vadd.f32 %v407, %v435
    %s438 = sld [smem:[#allocation2 + $0x51]]
    %v439 = vstv %s438
    %v440 = vmul.f32 %v439, %v424
    %v441 = vmul.f32 %v439, %v425
    %v442 = vadd.f32 %v412, %v440
    %v443 = vadd.f32 %v413, %v441
    %s444 = sld [smem:[#allocation2 + $0x75]]
    %v445 = vstv %s444
    %v446 = vmul.f32 %v445, %v424
    %v447 = vmul.f32 %v445, %v425
    %v448 = vadd.f32 %v418, %v446
    %v449 = vadd.f32 %v419, %v447
    %450 = vrot.lane.b32.xlu0 %v88, 1
    %v451 = vpop.permute.xlu0 %450
    %452 = vrot.lane.b32.xlu0 %v89, 1
    %v453 = vpop.permute.xlu0 %452
    %v454 = vsel %vm100, %v451, 0.0
    %v455 = vsel %vm100, %v453, 0.0
    %s456 = sld [smem:[#allocation2 + $0xd]]
    %v457 = vstv %s456
    %v458 = vmul.f32 %v457, %v454
    %v459 = vmul.f32 %v457, %v455
    %v460 = vadd.f32 %v430, %v458
    %v461 = vadd.f32 %v431, %v459
    %s462 = sld [smem:[#allocation2 + $0x31]]
    %v463 = vstv %s462
    %v464 = vmul.f32 %v463, %v454
    %v465 = vmul.f32 %v463, %v455
    %v466 = vadd.f32 %v436, %v464
    %v467 = vadd.f32 %v437, %v465
    %s468 = sld [smem:[#allocation2 + $0x55]]
    %v469 = vstv %s468
    %v470 = vmul.f32 %v469, %v454
    %v471 = vmul.f32 %v469, %v455
    %v472 = vadd.f32 %v442, %v470
    %v473 = vadd.f32 %v443, %v471
    %s474 = sld [smem:[#allocation2 + $0x79]]
    %v475 = vstv %s474
    %v476 = vmul.f32 %v475, %v454
    %v477 = vmul.f32 %v475, %v455
    %v478 = vadd.f32 %v448, %v476
    %v479 = vadd.f32 %v449, %v477
    %s480 = sld [smem:[#allocation2 + $0x11]]
    %v481 = vstv %s480
    %v482 = vmul.f32 %v481, %v88
    %v483 = vmul.f32 %v481, %v89
    %v484 = vadd.f32 %v460, %v482
    %v485 = vadd.f32 %v461, %v483
    %s486 = sld [smem:[#allocation2 + $0x35]]
    %v487 = vstv %s486
    %v488 = vmul.f32 %v487, %v88
    %v489 = vmul.f32 %v487, %v89
    %v490 = vadd.f32 %v466, %v488
    %v491 = vadd.f32 %v467, %v489
    %s492 = sld [smem:[#allocation2 + $0x59]]
    %v493 = vstv %s492
    %v494 = vmul.f32 %v493, %v88
    %v495 = vmul.f32 %v493, %v89
    %v496 = vadd.f32 %v472, %v494
    %v497 = vadd.f32 %v473, %v495
    %s498 = sld [smem:[#allocation2 + $0x7d]]
    %v499 = vstv %s498
    %v500 = vmul.f32 %v499, %v88
    %v501 = vmul.f32 %v499, %v89
    %v502 = vadd.f32 %v478, %v500
    %v503 = vadd.f32 %v479, %v501
    %504 = vrot.lane.b32.xlu0 %v88, 127
    %v505 = vpop.permute.xlu0 %504
    %506 = vrot.lane.b32.xlu0 %v89, 127
    %v507 = vpop.permute.xlu0 %506
    %v508 = vsel %vm101, %v505, 0.0
    %v509 = vsel %vm101, %v507, 0.0
    %s510 = sld [smem:[#allocation2 + $0x15]]
    %v511 = vstv %s510
    %v512 = vmul.f32 %v511, %v508
    %v513 = vmul.f32 %v511, %v509
    %v514 = vadd.f32 %v484, %v512
    %v515 = vadd.f32 %v485, %v513
    %s516 = sld [smem:[#allocation2 + $0x39]]
    %v517 = vstv %s516
    %v518 = vmul.f32 %v517, %v508
    %v519 = vmul.f32 %v517, %v509
    %v520 = vadd.f32 %v490, %v518
    %v521 = vadd.f32 %v491, %v519
    %s522 = sld [smem:[#allocation2 + $0x5d]]
    %v523 = vstv %s522
    %v524 = vmul.f32 %v523, %v508
    %v525 = vmul.f32 %v523, %v509
    %v526 = vadd.f32 %v496, %v524
    %v527 = vadd.f32 %v497, %v525
    %s528 = sld [smem:[#allocation2 + $0x81]]
    %v529 = vstv %s528
    %v530 = vmul.f32 %v529, %v508
    %v531 = vmul.f32 %v529, %v509
    %v532 = vadd.f32 %v502, %v530
    %v533 = vadd.f32 %v503, %v531
    %v534 = vrot.slane %v88, 1
    %v535 = vrot.slane %v89, 1
    %v536 = vsel %vm271, %v534, %v535
    %v537 = vsel %vm271, %v535, %v534
    %v538 = vsel %vm98, %v536, 0.0
    %v539 = vsel %vm99, %v537, 0.0
    %540 = vrot.lane.b32.xlu0 %v538, 1
    %v541 = vpop.permute.xlu0 %540
    %542 = vrot.lane.b32.xlu0 %v539, 1
    %v543 = vpop.permute.xlu0 %542
    %v544 = vsel %vm100, %v541, 0.0
    %v545 = vsel %vm100, %v543, 0.0
    %s546 = sld [smem:[#allocation2 + $0x19]]
    %v547 = vstv %s546
    %v548 = vmul.f32 %v547, %v544
    %v549 = vmul.f32 %v547, %v545
    %v550 = vadd.f32 %v514, %v548
    %v551 = vadd.f32 %v515, %v549
    %s552 = sld [smem:[#allocation2 + $0x3d]]
    %v553 = vstv %s552
    %v554 = vmul.f32 %v553, %v544
    %v555 = vmul.f32 %v553, %v545
    %v556 = vadd.f32 %v520, %v554
    %v557 = vadd.f32 %v521, %v555
    %s558 = sld [smem:[#allocation2 + $0x61]]
    %v559 = vstv %s558
    %v560 = vmul.f32 %v559, %v544
    %v561 = vmul.f32 %v559, %v545
    %v562 = vadd.f32 %v526, %v560
    %v563 = vadd.f32 %v527, %v561
    %s564 = sld [smem:[#allocation2 + $0x85]]
    %v565 = vstv %s564
    %v566 = vmul.f32 %v565, %v544
    %v567 = vmul.f32 %v565, %v545
    %v568 = vadd.f32 %v532, %v566
    %v569 = vadd.f32 %v533, %v567
    %s570 = sld [smem:[#allocation2 + $0x1d]]
    %v571 = vstv %s570
    %v572 = vmul.f32 %v571, %v538
    %v573 = vmul.f32 %v571, %v539
    %v574 = vadd.f32 %v550, %v572
    %v575 = vadd.f32 %v551, %v573
    %s576 = sld [smem:[#allocation2 + $0x41]]
    %v577 = vstv %s576
    %v578 = vmul.f32 %v577, %v538
    %v579 = vmul.f32 %v577, %v539
    %v580 = vadd.f32 %v556, %v578
    %v581 = vadd.f32 %v557, %v579
    %s582 = sld [smem:[#allocation2 + $0x65]]
    %v583 = vstv %s582
    %v584 = vmul.f32 %v583, %v538
    %v585 = vmul.f32 %v583, %v539
    %v586 = vadd.f32 %v562, %v584
    %v587 = vadd.f32 %v563, %v585
    %s588 = sld [smem:[#allocation2 + $0x89]]
    %v589 = vstv %s588
    %v590 = vmul.f32 %v589, %v538
    %v591 = vmul.f32 %v589, %v539
    %v592 = vadd.f32 %v568, %v590
    %v593 = vadd.f32 %v569, %v591
    %594 = vrot.lane.b32.xlu0 %v538, 127
    %v595 = vpop.permute.xlu0 %594
    %596 = vrot.lane.b32.xlu0 %v539, 127
    %v597 = vpop.permute.xlu0 %596
    %v598 = vsel %vm101, %v595, 0.0
    %v599 = vsel %vm101, %v597, 0.0
    %s600 = sld [smem:[#allocation2 + $0x21]]
    %v601 = vstv %s600
    %v602 = vmul.f32 %v601, %v598
    %v603 = vmul.f32 %v601, %v599
    %v604 = vadd.f32 %v574, %v602
    %v605 = vadd.f32 %v575, %v603
    %s606 = sld [smem:[#allocation2 + $0x45]]
    %v607 = vstv %s606
    %v608 = vmul.f32 %v607, %v598
    %v609 = vmul.f32 %v607, %v599
    %v610 = vadd.f32 %v580, %v608
    %v611 = vadd.f32 %v581, %v609
    %s612 = sld [smem:[#allocation2 + $0x69]]
    %v613 = vstv %s612
    %v614 = vmul.f32 %v613, %v598
    %v615 = vmul.f32 %v613, %v599
    %v616 = vadd.f32 %v586, %v614
    %v617 = vadd.f32 %v587, %v615
    %s618 = sld [smem:[#allocation2 + $0x8d]]
    %v619 = vstv %s618
    %v620 = vmul.f32 %v619, %v598
    %v621 = vmul.f32 %v619, %v599
    %v622 = vadd.f32 %v592, %v620
    %v623 = vadd.f32 %v593, %v621
    %v624 = vrot.slane %v91, 7
    %v625 = vrot.slane %v92, 7
    %v626 = vsel %vm104, %v624, %v625
    %v627 = vsel %vm104, %v625, %v624
    %v628 = vsel %vm96, %v627, 0.0
    %v629 = vsel %vm97, %v626, 0.0
    %630 = vrot.lane.b32.xlu0 %v628, 1
    %v631 = vpop.permute.xlu0 %630
    %632 = vrot.lane.b32.xlu0 %v629, 1
    %v633 = vpop.permute.xlu0 %632
    %v634 = vsel %vm100, %v631, 0.0
    %v635 = vsel %vm100, %v633, 0.0
    %s636 = sld [smem:[#allocation2 + $0x2]]
    %v637 = vstv %s636
    %v638 = vmul.f32 %v637, %v634
    %v639 = vmul.f32 %v637, %v635
    %v640 = vadd.f32 %v604, %v638
    %v641 = vadd.f32 %v605, %v639
    %s642 = sld [smem:[#allocation2 + $0x26]]
    %v643 = vstv %s642
    %v644 = vmul.f32 %v643, %v634
    %v645 = vmul.f32 %v643, %v635
    %v646 = vadd.f32 %v610, %v644
    %v647 = vadd.f32 %v611, %v645
    %s648 = sld [smem:[#allocation2 + $0x4a]]
    %v649 = vstv %s648
    %v650 = vmul.f32 %v649, %v634
    %v651 = vmul.f32 %v649, %v635
    %v652 = vadd.f32 %v616, %v650
    %v653 = vadd.f32 %v617, %v651
    %s654 = sld [smem:[#allocation2 + $0x6e]]
    %v655 = vstv %s654
    %v656 = vmul.f32 %v655, %v634
    %v657 = vmul.f32 %v655, %v635
    %v658 = vadd.f32 %v622, %v656
    %v659 = vadd.f32 %v623, %v657
    %s660 = sld [smem:[#allocation2 + $0x6]]
    %v661 = vstv %s660
    %v662 = vmul.f32 %v661, %v628
    %v663 = vmul.f32 %v661, %v629
    %v664 = vadd.f32 %v640, %v662
    %v665 = vadd.f32 %v641, %v663
    %s666 = sld [smem:[#allocation2 + $0x2a]]
    %v667 = vstv %s666
    %v668 = vmul.f32 %v667, %v628
    %v669 = vmul.f32 %v667, %v629
    %v670 = vadd.f32 %v646, %v668
    %v671 = vadd.f32 %v647, %v669
    %s672 = sld [smem:[#allocation2 + $0x4e]]
    %v673 = vstv %s672
    %v674 = vmul.f32 %v673, %v628
    %v675 = vmul.f32 %v673, %v629
    %v676 = vadd.f32 %v652, %v674
    %v677 = vadd.f32 %v653, %v675
    %s678 = sld [smem:[#allocation2 + $0x72]]
    %v679 = vstv %s678
    %v680 = vmul.f32 %v679, %v628
    %v681 = vmul.f32 %v679, %v629
    %v682 = vadd.f32 %v658, %v680
    %v683 = vadd.f32 %v659, %v681
    %684 = vrot.lane.b32.xlu0 %v628, 127
    %v685 = vpop.permute.xlu0 %684
    %686 = vrot.lane.b32.xlu0 %v629, 127
    %v687 = vpop.permute.xlu0 %686
    %v688 = vsel %vm101, %v685, 0.0
    %v689 = vsel %vm101, %v687, 0.0
    %s690 = sld [smem:[#allocation2 + $0xa]]
    %v691 = vstv %s690
    %v692 = vmul.f32 %v691, %v688
    %v693 = vmul.f32 %v691, %v689
    %v694 = vadd.f32 %v664, %v692
    %v695 = vadd.f32 %v665, %v693
    %s696 = sld [smem:[#allocation2 + $0x2e]]
    %v697 = vstv %s696
    %v698 = vmul.f32 %v697, %v688
    %v699 = vmul.f32 %v697, %v689
    %v700 = vadd.f32 %v670, %v698
    %v701 = vadd.f32 %v671, %v699
    %s702 = sld [smem:[#allocation2 + $0x52]]
    %v703 = vstv %s702
    %v704 = vmul.f32 %v703, %v688
    %v705 = vmul.f32 %v703, %v689
    %v706 = vadd.f32 %v676, %v704
    %v707 = vadd.f32 %v677, %v705
    %s708 = sld [smem:[#allocation2 + $0x76]]
    %v709 = vstv %s708
    %v710 = vmul.f32 %v709, %v688
    %v711 = vmul.f32 %v709, %v689
    %v712 = vadd.f32 %v682, %v710
    %v713 = vadd.f32 %v683, %v711
    %714 = vrot.lane.b32.xlu0 %v91, 1
    %v715 = vpop.permute.xlu0 %714
    %716 = vrot.lane.b32.xlu0 %v92, 1
    %v717 = vpop.permute.xlu0 %716
    %v718 = vsel %vm100, %v715, 0.0
    %v719 = vsel %vm100, %v717, 0.0
    %s720 = sld [smem:[#allocation2 + $0xe]]
    %v721 = vstv %s720
    %v722 = vmul.f32 %v721, %v718
    %v723 = vmul.f32 %v721, %v719
    %v724 = vadd.f32 %v694, %v722
    %v725 = vadd.f32 %v695, %v723
    %s726 = sld [smem:[#allocation2 + $0x32]]
    %v727 = vstv %s726
    %v728 = vmul.f32 %v727, %v718
    %v729 = vmul.f32 %v727, %v719
    %v730 = vadd.f32 %v700, %v728
    %v731 = vadd.f32 %v701, %v729
    %s732 = sld [smem:[#allocation2 + $0x56]]
    %v733 = vstv %s732
    %v734 = vmul.f32 %v733, %v718
    %v735 = vmul.f32 %v733, %v719
    %v736 = vadd.f32 %v706, %v734
    %v737 = vadd.f32 %v707, %v735
    %s738 = sld [smem:[#allocation2 + $0x7a]]
    %v739 = vstv %s738
    %v740 = vmul.f32 %v739, %v718
    %v741 = vmul.f32 %v739, %v719
    %v742 = vadd.f32 %v712, %v740
    %v743 = vadd.f32 %v713, %v741
    %s744 = sld [smem:[#allocation2 + $0x12]]
    %v745 = vstv %s744
    %v746 = vmul.f32 %v745, %v91
    %v747 = vmul.f32 %v745, %v92
    %v748 = vadd.f32 %v724, %v746
    %v749 = vadd.f32 %v725, %v747
    %s750 = sld [smem:[#allocation2 + $0x36]]
    %v751 = vstv %s750
    %v752 = vmul.f32 %v751, %v91
    %v753 = vmul.f32 %v751, %v92
    %v754 = vadd.f32 %v730, %v752
    %v755 = vadd.f32 %v731, %v753
    %s756 = sld [smem:[#allocation2 + $0x5a]]
    %v757 = vstv %s756
    %v758 = vmul.f32 %v757, %v91
    %v759 = vmul.f32 %v757, %v92
    %v760 = vadd.f32 %v736, %v758
    %v761 = vadd.f32 %v737, %v759
    %s762 = sld [smem:[#allocation2 + $0x7e]]
    %v763 = vstv %s762
    %v764 = vmul.f32 %v763, %v91
    %v765 = vmul.f32 %v763, %v92
    %v766 = vadd.f32 %v742, %v764
    %v767 = vadd.f32 %v743, %v765
    %768 = vrot.lane.b32.xlu0 %v91, 127
    %v769 = vpop.permute.xlu0 %768
    %770 = vrot.lane.b32.xlu0 %v92, 127
    %v771 = vpop.permute.xlu0 %770
    %v772 = vsel %vm101, %v769, 0.0
    %v773 = vsel %vm101, %v771, 0.0
    %s774 = sld [smem:[#allocation2 + $0x16]]
    %v775 = vstv %s774
    %v776 = vmul.f32 %v775, %v772
    %v777 = vmul.f32 %v775, %v773
    %v778 = vadd.f32 %v748, %v776
    %v779 = vadd.f32 %v749, %v777
    %s780 = sld [smem:[#allocation2 + $0x3a]]
    %v781 = vstv %s780
    %v782 = vmul.f32 %v781, %v772
    %v783 = vmul.f32 %v781, %v773
    %v784 = vadd.f32 %v754, %v782
    %v785 = vadd.f32 %v755, %v783
    %s786 = sld [smem:[#allocation2 + $0x5e]]
    %v787 = vstv %s786
    %v788 = vmul.f32 %v787, %v772
    %v789 = vmul.f32 %v787, %v773
    %v790 = vadd.f32 %v760, %v788
    %v791 = vadd.f32 %v761, %v789
    %s792 = sld [smem:[#allocation2 + $0x82]]
    %v793 = vstv %s792
    %v794 = vmul.f32 %v793, %v772
    %v795 = vmul.f32 %v793, %v773
    %v796 = vadd.f32 %v766, %v794
    %v797 = vadd.f32 %v767, %v795
    %v798 = vrot.slane %v91, 1
    %v799 = vrot.slane %v92, 1
    %v800 = vsel %vm271, %v798, %v799
    %v801 = vsel %vm271, %v799, %v798
    %v802 = vsel %vm98, %v800, 0.0
    %v803 = vsel %vm99, %v801, 0.0
    %804 = vrot.lane.b32.xlu0 %v802, 1
    %v805 = vpop.permute.xlu0 %804
    %806 = vrot.lane.b32.xlu0 %v803, 1
    %v807 = vpop.permute.xlu0 %806
    %v808 = vsel %vm100, %v805, 0.0
    %v809 = vsel %vm100, %v807, 0.0
    %s810 = sld [smem:[#allocation2 + $0x1a]]
    %v811 = vstv %s810
    %v812 = vmul.f32 %v811, %v808
    %v813 = vmul.f32 %v811, %v809
    %v814 = vadd.f32 %v778, %v812
    %v815 = vadd.f32 %v779, %v813
    %s816 = sld [smem:[#allocation2 + $0x3e]]
    %v817 = vstv %s816
    %v818 = vmul.f32 %v817, %v808
    %v819 = vmul.f32 %v817, %v809
    %v820 = vadd.f32 %v784, %v818
    %v821 = vadd.f32 %v785, %v819
    %s822 = sld [smem:[#allocation2 + $0x62]]
    %v823 = vstv %s822
    %v824 = vmul.f32 %v823, %v808
    %v825 = vmul.f32 %v823, %v809
    %v826 = vadd.f32 %v790, %v824
    %v827 = vadd.f32 %v791, %v825
    %s828 = sld [smem:[#allocation2 + $0x86]]
    %v829 = vstv %s828
    %v830 = vmul.f32 %v829, %v808
    %v831 = vmul.f32 %v829, %v809
    %v832 = vadd.f32 %v796, %v830
    %v833 = vadd.f32 %v797, %v831
    %s834 = sld [smem:[#allocation2 + $0x1e]]
    %v835 = vstv %s834
    %v836 = vmul.f32 %v835, %v802
    %v837 = vmul.f32 %v835, %v803
    %v838 = vadd.f32 %v814, %v836
    %v839 = vadd.f32 %v815, %v837
    %s840 = sld [smem:[#allocation2 + $0x42]]
    %v841 = vstv %s840
    %v842 = vmul.f32 %v841, %v802
    %v843 = vmul.f32 %v841, %v803
    %v844 = vadd.f32 %v820, %v842
    %v845 = vadd.f32 %v821, %v843
    %s846 = sld [smem:[#allocation2 + $0x66]]
    %v847 = vstv %s846
    %v848 = vmul.f32 %v847, %v802
    %v849 = vmul.f32 %v847, %v803
    %v850 = vadd.f32 %v826, %v848
    %v851 = vadd.f32 %v827, %v849
    %s852 = sld [smem:[#allocation2 + $0x8a]]
    %v853 = vstv %s852
    %v854 = vmul.f32 %v853, %v802
    %v855 = vmul.f32 %v853, %v803
    %v856 = vadd.f32 %v832, %v854
    %v857 = vadd.f32 %v833, %v855
    %858 = vrot.lane.b32.xlu0 %v802, 127
    %v859 = vpop.permute.xlu0 %858
    %860 = vrot.lane.b32.xlu0 %v803, 127
    %v861 = vpop.permute.xlu0 %860
    %v862 = vsel %vm101, %v859, 0.0
    %v863 = vsel %vm101, %v861, 0.0
    %s864 = sld [smem:[#allocation2 + $0x22]]
    %v865 = vstv %s864
    %v866 = vmul.f32 %v865, %v862
    %v867 = vmul.f32 %v865, %v863
    %v868 = vadd.f32 %v838, %v866
    %v869 = vadd.f32 %v839, %v867
    %s870 = sld [smem:[#allocation2 + $0x46]]
    %v871 = vstv %s870
    %v872 = vmul.f32 %v871, %v862
    %v873 = vmul.f32 %v871, %v863
    %v874 = vadd.f32 %v844, %v872
    %v875 = vadd.f32 %v845, %v873
    %s876 = sld [smem:[#allocation2 + $0x6a]]
    %v877 = vstv %s876
    %v878 = vmul.f32 %v877, %v862
    %v879 = vmul.f32 %v877, %v863
    %v880 = vadd.f32 %v850, %v878
    %v881 = vadd.f32 %v851, %v879
    %s882 = sld [smem:[#allocation2 + $0x8e]]
    %v883 = vstv %s882
    %v884 = vmul.f32 %v883, %v862
    %v885 = vmul.f32 %v883, %v863
    %v886 = vadd.f32 %v856, %v884
    %v887 = vadd.f32 %v857, %v885
    %v888 = vrot.slane %v94, 7
    %v889 = vrot.slane %v95, 7
    %v890 = vsel %vm104, %v888, %v889
    %v891 = vsel %vm104, %v889, %v888
    %v892 = vsel %vm96, %v891, 0.0
    %v893 = vsel %vm97, %v890, 0.0
    %894 = vrot.lane.b32.xlu0 %v892, 1
    %v895 = vpop.permute.xlu0 %894
    %896 = vrot.lane.b32.xlu0 %v893, 1
    %v897 = vpop.permute.xlu0 %896
    %v898 = vsel %vm100, %v895, 0.0
    %v899 = vsel %vm100, %v897, 0.0
    %s900 = sld [smem:[#allocation2 + $0x3]]
    %v901 = vstv %s900
    %v902 = vmul.f32 %v901, %v898
    %v903 = vmul.f32 %v901, %v899
    %v904 = vadd.f32 %v868, %v902
    %v905 = vadd.f32 %v869, %v903
    %s906 = sld [smem:[#allocation2 + $0x27]]
    %v907 = vstv %s906
    %v908 = vmul.f32 %v907, %v898
    %v909 = vmul.f32 %v907, %v899
    %v910 = vadd.f32 %v874, %v908
    %v911 = vadd.f32 %v875, %v909
    %s912 = sld [smem:[#allocation2 + $0x4b]]
    %v913 = vstv %s912
    %v914 = vmul.f32 %v913, %v898
    %v915 = vmul.f32 %v913, %v899
    %v916 = vadd.f32 %v880, %v914
    %v917 = vadd.f32 %v881, %v915
    %s918 = sld [smem:[#allocation2 + $0x6f]]
    %v919 = vstv %s918
    %v920 = vmul.f32 %v919, %v898
    %v921 = vmul.f32 %v919, %v899
    %v922 = vadd.f32 %v886, %v920
    %v923 = vadd.f32 %v887, %v921
    %s924 = sld [smem:[#allocation2 + $0x7]]
    %v925 = vstv %s924
    %v926 = vmul.f32 %v925, %v892
    %v927 = vmul.f32 %v925, %v893
    %v928 = vadd.f32 %v904, %v926
    %v929 = vadd.f32 %v905, %v927
    %s930 = sld [smem:[#allocation2 + $0x2b]]
    %v931 = vstv %s930
    %v932 = vmul.f32 %v931, %v892
    %v933 = vmul.f32 %v931, %v893
    %v934 = vadd.f32 %v910, %v932
    %v935 = vadd.f32 %v911, %v933
    %s936 = sld [smem:[#allocation2 + $0x4f]]
    %v937 = vstv %s936
    %v938 = vmul.f32 %v937, %v892
    %v939 = vmul.f32 %v937, %v893
    %v940 = vadd.f32 %v916, %v938
    %v941 = vadd.f32 %v917, %v939
    %s942 = sld [smem:[#allocation2 + $0x73]]
    %v943 = vstv %s942
    %v944 = vmul.f32 %v943, %v892
    %v945 = vmul.f32 %v943, %v893
    %v946 = vadd.f32 %v922, %v944
    %v947 = vadd.f32 %v923, %v945
    %948 = vrot.lane.b32.xlu0 %v892, 127
    %v949 = vpop.permute.xlu0 %948
    %950 = vrot.lane.b32.xlu0 %v893, 127
    %v951 = vpop.permute.xlu0 %950
    %v952 = vsel %vm101, %v949, 0.0
    %v953 = vsel %vm101, %v951, 0.0
    %s954 = sld [smem:[#allocation2 + $0xb]]
    %v955 = vstv %s954
    %v956 = vmul.f32 %v955, %v952
    %v957 = vmul.f32 %v955, %v953
    %v958 = vadd.f32 %v928, %v956
    %v959 = vadd.f32 %v929, %v957
    %s960 = sld [smem:[#allocation2 + $0x2f]]
    %v961 = vstv %s960
    %v962 = vmul.f32 %v961, %v952
    %v963 = vmul.f32 %v961, %v953
    %v964 = vadd.f32 %v934, %v962
    %v965 = vadd.f32 %v935, %v963
    %s966 = sld [smem:[#allocation2 + $0x53]]
    %v967 = vstv %s966
    %v968 = vmul.f32 %v967, %v952
    %v969 = vmul.f32 %v967, %v953
    %v970 = vadd.f32 %v940, %v968
    %v971 = vadd.f32 %v941, %v969
    %s972 = sld [smem:[#allocation2 + $0x77]]
    %v973 = vstv %s972
    %v974 = vmul.f32 %v973, %v952
    %v975 = vmul.f32 %v973, %v953
    %v976 = vadd.f32 %v946, %v974
    %v977 = vadd.f32 %v947, %v975
    %978 = vrot.lane.b32.xlu0 %v94, 1
    %v979 = vpop.permute.xlu0 %978
    %980 = vrot.lane.b32.xlu0 %v95, 1
    %v981 = vpop.permute.xlu0 %980
    %v982 = vsel %vm100, %v979, 0.0
    %v983 = vsel %vm100, %v981, 0.0
    %s984 = sld [smem:[#allocation2 + $0xf]]
    %v985 = vstv %s984
    %v986 = vmul.f32 %v985, %v982
    %v987 = vmul.f32 %v985, %v983
    %v988 = vadd.f32 %v958, %v986
    %v989 = vadd.f32 %v959, %v987
    %s990 = sld [smem:[#allocation2 + $0x33]]
    %v991 = vstv %s990
    %v992 = vmul.f32 %v991, %v982
    %v993 = vmul.f32 %v991, %v983
    %v994 = vadd.f32 %v964, %v992
    %v995 = vadd.f32 %v965, %v993
    %s996 = sld [smem:[#allocation2 + $0x57]]
    %v997 = vstv %s996
    %v998 = vmul.f32 %v997, %v982
    %v999 = vmul.f32 %v997, %v983
    %v1000 = vadd.f32 %v970, %v998
    %v1001 = vadd.f32 %v971, %v999
    %s1002 = sld [smem:[#allocation2 + $0x7b]]
    %v1003 = vstv %s1002
    %v1004 = vmul.f32 %v1003, %v982
    %v1005 = vmul.f32 %v1003, %v983
    %v1006 = vadd.f32 %v976, %v1004
    %v1007 = vadd.f32 %v977, %v1005
    %s1008 = sld [smem:[#allocation2 + $0x13]]
    %v1009 = vstv %s1008
    %v1010 = vmul.f32 %v1009, %v94
    %v1011 = vmul.f32 %v1009, %v95
    %v1012 = vadd.f32 %v988, %v1010
    %v1013 = vadd.f32 %v989, %v1011
    %s1014 = sld [smem:[#allocation2 + $0x37]]
    %v1015 = vstv %s1014
    %v1016 = vmul.f32 %v1015, %v94
    %v1017 = vmul.f32 %v1015, %v95
    %v1018 = vadd.f32 %v994, %v1016
    %v1019 = vadd.f32 %v995, %v1017
    %s1020 = sld [smem:[#allocation2 + $0x5b]]
    %v1021 = vstv %s1020
    %v1022 = vmul.f32 %v1021, %v94
    %v1023 = vmul.f32 %v1021, %v95
    %v1024 = vadd.f32 %v1000, %v1022
    %v1025 = vadd.f32 %v1001, %v1023
    %s1026 = sld [smem:[#allocation2 + $0x7f]]
    %v1027 = vstv %s1026
    %v1028 = vmul.f32 %v1027, %v94
    %v1029 = vmul.f32 %v1027, %v95
    %v1030 = vadd.f32 %v1006, %v1028
    %v1031 = vadd.f32 %v1007, %v1029
    %1032 = vrot.lane.b32.xlu0 %v94, 127
    %v1033 = vpop.permute.xlu0 %1032
    %1034 = vrot.lane.b32.xlu0 %v95, 127
    %v1035 = vpop.permute.xlu0 %1034
    %v1036 = vsel %vm101, %v1033, 0.0
    %v1037 = vsel %vm101, %v1035, 0.0
    %s1038 = sld [smem:[#allocation2 + $0x17]]
    %v1039 = vstv %s1038
    %v1040 = vmul.f32 %v1039, %v1036
    %v1041 = vmul.f32 %v1039, %v1037
    %v1042 = vadd.f32 %v1012, %v1040
    %v1043 = vadd.f32 %v1013, %v1041
    %s1044 = sld [smem:[#allocation2 + $0x3b]]
    %v1045 = vstv %s1044
    %v1046 = vmul.f32 %v1045, %v1036
    %v1047 = vmul.f32 %v1045, %v1037
    %v1048 = vadd.f32 %v1018, %v1046
    %v1049 = vadd.f32 %v1019, %v1047
    %s1050 = sld [smem:[#allocation2 + $0x5f]]
    %v1051 = vstv %s1050
    %v1052 = vmul.f32 %v1051, %v1036
    %v1053 = vmul.f32 %v1051, %v1037
    %v1054 = vadd.f32 %v1024, %v1052
    %v1055 = vadd.f32 %v1025, %v1053
    %s1056 = sld [smem:[#allocation2 + $0x83]]
    %v1057 = vstv %s1056
    %v1058 = vmul.f32 %v1057, %v1036
    %v1059 = vmul.f32 %v1057, %v1037
    %v1060 = vadd.f32 %v1030, %v1058
    %v1061 = vadd.f32 %v1031, %v1059
    %v1062 = vrot.slane %v94, 1
    %v1063 = vrot.slane %v95, 1
    %v1064 = vsel %vm271, %v1062, %v1063
    %v1065 = vsel %vm271, %v1063, %v1062
    %v1066 = vsel %vm98, %v1064, 0.0
    %v1067 = vsel %vm99, %v1065, 0.0
    %1068 = vrot.lane.b32.xlu0 %v1066, 1
    %v1069 = vpop.permute.xlu0 %1068
    %1070 = vrot.lane.b32.xlu0 %v1067, 1
    %v1071 = vpop.permute.xlu0 %1070
    %v1072 = vsel %vm100, %v1069, 0.0
    %v1073 = vsel %vm100, %v1071, 0.0
    %s1074 = sld [smem:[#allocation2 + $0x1b]]
    %v1075 = vstv %s1074
    %v1076 = vmul.f32 %v1075, %v1072
    %v1077 = vmul.f32 %v1075, %v1073
    %v1078 = vadd.f32 %v1042, %v1076
    %v1079 = vadd.f32 %v1043, %v1077
    %s1080 = sld [smem:[#allocation2 + $0x3f]]
    %v1081 = vstv %s1080
    %v1082 = vmul.f32 %v1081, %v1072
    %v1083 = vmul.f32 %v1081, %v1073
    %v1084 = vadd.f32 %v1048, %v1082
    %v1085 = vadd.f32 %v1049, %v1083
    %s1086 = sld [smem:[#allocation2 + $0x63]]
    %v1087 = vstv %s1086
    %v1088 = vmul.f32 %v1087, %v1072
    %v1089 = vmul.f32 %v1087, %v1073
    %v1090 = vadd.f32 %v1054, %v1088
    %v1091 = vadd.f32 %v1055, %v1089
    %s1092 = sld [smem:[#allocation2 + $0x87]]
    %v1093 = vstv %s1092
    %v1094 = vmul.f32 %v1093, %v1072
    %v1095 = vmul.f32 %v1093, %v1073
    %v1096 = vadd.f32 %v1060, %v1094
    %v1097 = vadd.f32 %v1061, %v1095
    %s1098 = sld [smem:[#allocation2 + $0x1f]]
    %v1099 = vstv %s1098
    %v1100 = vmul.f32 %v1099, %v1066
    %v1101 = vmul.f32 %v1099, %v1067
    %v1102 = vadd.f32 %v1078, %v1100
    %v1103 = vadd.f32 %v1079, %v1101
    %s1104 = sld [smem:[#allocation2 + $0x43]]
    %v1105 = vstv %s1104
    %v1106 = vmul.f32 %v1105, %v1066
    %v1107 = vmul.f32 %v1105, %v1067
    %v1108 = vadd.f32 %v1084, %v1106
    %v1109 = vadd.f32 %v1085, %v1107
    %s1110 = sld [smem:[#allocation2 + $0x67]]
    %v1111 = vstv %s1110
    %v1112 = vmul.f32 %v1111, %v1066
    %v1113 = vmul.f32 %v1111, %v1067
    %v1114 = vadd.f32 %v1090, %v1112
    %v1115 = vadd.f32 %v1091, %v1113
    %s1116 = sld [smem:[#allocation2 + $0x8b]]
    %v1117 = vstv %s1116
    %v1118 = vmul.f32 %v1117, %v1066
    %v1119 = vmul.f32 %v1117, %v1067
    %v1120 = vadd.f32 %v1096, %v1118
    %v1121 = vadd.f32 %v1097, %v1119
    %1122 = vrot.lane.b32.xlu0 %v1066, 127
    %v1123 = vpop.permute.xlu0 %1122
    %1124 = vrot.lane.b32.xlu0 %v1067, 127
    %v1125 = vpop.permute.xlu0 %1124
    %v1126 = vsel %vm101, %v1123, 0.0
    %v1127 = vsel %vm101, %v1125, 0.0
    %s1128 = sld [smem:[#allocation2 + $0x23]]
    %v1129 = vstv %s1128
    %v1130 = vmul.f32 %v1129, %v1126
    %v1131 = vmul.f32 %v1129, %v1127
    %v1132 = vadd.f32 %v1102, %v1130
    %v1133 = vadd.f32 %v1103, %v1131
    %s1134 = sld [smem:[#allocation2 + $0x47]]
    %v1135 = vstv %s1134
    %v1136 = vmul.f32 %v1135, %v1126
    %v1137 = vmul.f32 %v1135, %v1127
    %v1138 = vadd.f32 %v1108, %v1136
    %v1139 = vadd.f32 %v1109, %v1137
    %s1140 = sld [smem:[#allocation2 + $0x6b]]
    %v1141 = vstv %s1140
    %v1142 = vmul.f32 %v1141, %v1126
    %v1143 = vmul.f32 %v1141, %v1127
    %v1144 = vadd.f32 %v1114, %v1142
    %v1145 = vadd.f32 %v1115, %v1143
    %s1146 = sld [smem:[#allocation2 + $0x8f]]
    %v1147 = vstv %s1146
    %v1148 = vmul.f32 %v1147, %v1126
    %v1149 = vmul.f32 %v1147, %v1127
    %v1150 = vadd.f32 %v1120, %v1148
    %v1151 = vadd.f32 %v1121, %v1149
    %s1152 = sld [smem:[#allocation4]]
    %v1153 = vstv %s1152
    %v1154 = vadd.f32 %v1132, %v1153
    %v1155 = vadd.f32 %v1133, %v1153
    %s1156 = sld [smem:[#allocation4 + $0x1]]
    %v1157 = vstv %s1156
    %v1158 = vadd.f32 %v1138, %v1157
    %v1159 = vadd.f32 %v1139, %v1157
    %s1160 = sld [smem:[#allocation4 + $0x2]]
    %v1161 = vstv %s1160
    %v1162 = vadd.f32 %v1144, %v1161
    %v1163 = vadd.f32 %v1145, %v1161
    %s1164 = sld [smem:[#allocation4 + $0x3]]
    %v1165 = vstv %s1164
    %v1166 = vadd.f32 %v1150, %v1165
    %v1167 = vadd.f32 %v1151, %v1165
    %v1168 = vtanh.pop %v1154
    %v1169 = vtanh.pop %v1155
    %v1170 = vtanh.pop %v1158
    %v1171 = vtanh.pop %v1159
    %v1172 = vtanh.pop %v1162
    %v1173 = vtanh.pop %v1163
    %v1174 = vtanh.pop %v1166
    %v1175 = vtanh.pop %v1167
    %v1176 = vrot.slane %v1168, 7
    %v1177 = vrot.slane %v1169, 7
    %v1178 = vsel %vm104, %v1176, %v1177
    %v1179 = vsel %vm104, %v1177, %v1176
    %v1180 = vsel %vm96, %v1179, 0.0
    %v1181 = vsel %vm97, %v1178, 0.0
    %1182 = vrot.lane.b32.xlu0 %v1180, 1
    %v1183 = vpop.permute.xlu0 %1182
    %1184 = vrot.lane.b32.xlu0 %v1181, 1
    %v1185 = vpop.permute.xlu0 %1184
    %v1186 = vsel %vm100, %v1183, 0.0
    %v1187 = vsel %vm100, %v1185, 0.0
    %s1188 = sld [smem:[#allocation6]]
    %v1189 = vstv %s1188
    %v1190 = vmul.f32 %v1189, %v1186
    %v1191 = vmul.f32 %v1189, %v1187
    %s1192 = sld [smem:[#allocation6 + $0x24]]
    %v1193 = vstv %s1192
    %v1194 = vmul.f32 %v1193, %v1186
    %v1195 = vmul.f32 %v1193, %v1187
    %s1196 = sld [smem:[#allocation6 + $0x4]]
    %v1197 = vstv %s1196
    %v1198 = vmul.f32 %v1197, %v1180
    %v1199 = vmul.f32 %v1197, %v1181
    %v1200 = vadd.f32 %v1190, %v1198
    %v1201 = vadd.f32 %v1191, %v1199
    %s1202 = sld [smem:[#allocation6 + $0x28]]
    %v1203 = vstv %s1202
    %v1204 = vmul.f32 %v1203, %v1180
    %v1205 = vmul.f32 %v1203, %v1181
    %v1206 = vadd.f32 %v1194, %v1204
    %v1207 = vadd.f32 %v1195, %v1205
    %1208 = vrot.lane.b32.xlu0 %v1180, 127
    %v1209 = vpop.permute.xlu0 %1208
    %1210 = vrot.lane.b32.xlu0 %v1181, 127
    %v1211 = vpop.permute.xlu0 %1210
    %v1212 = vsel %vm101, %v1209, 0.0
    %v1213 = vsel %vm101, %v1211, 0.0
    %s1214 = sld [smem:[#allocation6 + $0x8]]
    %v1215 = vstv %s1214
    %v1216 = vmul.f32 %v1215, %v1212
    %v1217 = vmul.f32 %v1215, %v1213
    %v1218 = vadd.f32 %v1200, %v1216
    %v1219 = vadd.f32 %v1201, %v1217
    %s1220 = sld [smem:[#allocation6 + $0x2c]]
    %v1221 = vstv %s1220
    %v1222 = vmul.f32 %v1221, %v1212
    %v1223 = vmul.f32 %v1221, %v1213
    %v1224 = vadd.f32 %v1206, %v1222
    %v1225 = vadd.f32 %v1207, %v1223
    %1226 = vrot.lane.b32.xlu0 %v1168, 1
    %v1227 = vpop.permute.xlu0 %1226
    %1228 = vrot.lane.b32.xlu0 %v1169, 1
    %v1229 = vpop.permute.xlu0 %1228
    %v1230 = vsel %vm100, %v1227, 0.0
    %v1231 = vsel %vm100, %v1229, 0.0
    %s1232 = sld [smem:[#allocation6 + $0xc]]
    %v1233 = vstv %s1232
    %v1234 = vmul.f32 %v1233, %v1230
    %v1235 = vmul.f32 %v1233, %v1231
    %v1236 = vadd.f32 %v1218, %v1234
    %v1237 = vadd.f32 %v1219, %v1235
    %s1238 = sld [smem:[#allocation6 + $0x30]]
    %v1239 = vstv %s1238
    %v1240 = vmul.f32 %v1239, %v1230
    %v1241 = vmul.f32 %v1239, %v1231
    %v1242 = vadd.f32 %v1224, %v1240
    %v1243 = vadd.f32 %v1225, %v1241
    %s1244 = sld [smem:[#allocation6 + $0x10]]
    %v1245 = vstv %s1244
    %v1246 = vmul.f32 %v1245, %v1168
    %v1247 = vmul.f32 %v1245, %v1169
    %v1248 = vadd.f32 %v1236, %v1246
    %v1249 = vadd.f32 %v1237, %v1247
    %s1250 = sld [smem:[#allocation6 + $0x34]]
    %v1251 = vstv %s1250
    %v1252 = vmul.f32 %v1251, %v1168
    %v1253 = vmul.f32 %v1251, %v1169
    %v1254 = vadd.f32 %v1242, %v1252
    %v1255 = vadd.f32 %v1243, %v1253
    %1256 = vrot.lane.b32.xlu0 %v1168, 127
    %v1257 = vpop.permute.xlu0 %1256
    %1258 = vrot.lane.b32.xlu0 %v1169, 127
    %v1259 = vpop.permute.xlu0 %1258
    %v1260 = vsel %vm101, %v1257, 0.0
    %v1261 = vsel %vm101, %v1259, 0.0
    %s1262 = sld [smem:[#allocation6 + $0x14]]
    %v1263 = vstv %s1262
    %v1264 = vmul.f32 %v1263, %v1260
    %v1265 = vmul.f32 %v1263, %v1261
    %v1266 = vadd.f32 %v1248, %v1264
    %v1267 = vadd.f32 %v1249, %v1265
    %s1268 = sld [smem:[#allocation6 + $0x38]]
    %v1269 = vstv %s1268
    %v1270 = vmul.f32 %v1269, %v1260
    %v1271 = vmul.f32 %v1269, %v1261
    %v1272 = vadd.f32 %v1254, %v1270
    %v1273 = vadd.f32 %v1255, %v1271
    %v1274 = vrot.slane %v1168, 1
    %v1275 = vrot.slane %v1169, 1
    %v1276 = vsel %vm271, %v1274, %v1275
    %v1277 = vsel %vm271, %v1275, %v1274
    %v1278 = vsel %vm98, %v1276, 0.0
    %v1279 = vsel %vm99, %v1277, 0.0
    %1280 = vrot.lane.b32.xlu0 %v1278, 1
    %v1281 = vpop.permute.xlu0 %1280
    %1282 = vrot.lane.b32.xlu0 %v1279, 1
    %v1283 = vpop.permute.xlu0 %1282
    %v1284 = vsel %vm100, %v1281, 0.0
    %v1285 = vsel %vm100, %v1283, 0.0
    %s1286 = sld [smem:[#allocation6 + $0x18]]
    %v1287 = vstv %s1286
    %v1288 = vmul.f32 %v1287, %v1284
    %v1289 = vmul.f32 %v1287, %v1285
    %v1290 = vadd.f32 %v1266, %v1288
    %v1291 = vadd.f32 %v1267, %v1289
    %s1292 = sld [smem:[#allocation6 + $0x3c]]
    %v1293 = vstv %s1292
    %v1294 = vmul.f32 %v1293, %v1284
    %v1295 = vmul.f32 %v1293, %v1285
    %v1296 = vadd.f32 %v1272, %v1294
    %v1297 = vadd.f32 %v1273, %v1295
    %s1298 = sld [smem:[#allocation6 + $0x1c]]
    %v1299 = vstv %s1298
    %v1300 = vmul.f32 %v1299, %v1278
    %v1301 = vmul.f32 %v1299, %v1279
    %v1302 = vadd.f32 %v1290, %v1300
    %v1303 = vadd.f32 %v1291, %v1301
    %s1304 = sld [smem:[#allocation6 + $0x40]]
    %v1305 = vstv %s1304
    %v1306 = vmul.f32 %v1305, %v1278
    %v1307 = vmul.f32 %v1305, %v1279
    %v1308 = vadd.f32 %v1296, %v1306
    %v1309 = vadd.f32 %v1297, %v1307
    %1310 = vrot.lane.b32.xlu0 %v1278, 127
    %v1311 = vpop.permute.xlu0 %1310
    %1312 = vrot.lane.b32.xlu0 %v1279, 127
    %v1313 = vpop.permute.xlu0 %1312
    %v1314 = vsel %vm101, %v1311, 0.0
    %v1315 = vsel %vm101, %v1313, 0.0
    %s1316 = sld [smem:[#allocation6 + $0x20]]
    %v1317 = vstv %s1316
    %v1318 = vmul.f32 %v1317, %v1314
    %v1319 = vmul.f32 %v1317, %v1315
    %v1320 = vadd.f32 %v1302, %v1318
    %v1321 = vadd.f32 %v1303, %v1319
    %s1322 = sld [smem:[#allocation6 + $0x44]]
    %v1323 = vstv %s1322
    %v1324 = vmul.f32 %v1323, %v1314
    %v1325 = vmul.f32 %v1323, %v1315
    %v1326 = vadd.f32 %v1308, %v1324
    %v1327 = vadd.f32 %v1309, %v1325
    %v1328 = vrot.slane %v1170, 7
    %v1329 = vrot.slane %v1171, 7
    %v1330 = vsel %vm104, %v1328, %v1329
    %v1331 = vsel %vm104, %v1329, %v1328
    %v1332 = vsel %vm96, %v1331, 0.0
    %v1333 = vsel %vm97, %v1330, 0.0
    %1334 = vrot.lane.b32.xlu0 %v1332, 1
    %v1335 = vpop.permute.xlu0 %1334
    %1336 = vrot.lane.b32.xlu0 %v1333, 1
    %v1337 = vpop.permute.xlu0 %1336
    %v1338 = vsel %vm100, %v1335, 0.0
    %v1339 = vsel %vm100, %v1337, 0.0
    %s1340 = sld [smem:[#allocation6 + $0x1]]
    %v1341 = vstv %s1340
    %v1342 = vmul.f32 %v1341, %v1338
    %v1343 = vmul.f32 %v1341, %v1339
    %v1344 = vadd.f32 %v1320, %v1342
    %v1345 = vadd.f32 %v1321, %v1343
    %s1346 = sld [smem:[#allocation6 + $0x25]]
    %v1347 = vstv %s1346
    %v1348 = vmul.f32 %v1347, %v1338
    %v1349 = vmul.f32 %v1347, %v1339
    %v1350 = vadd.f32 %v1326, %v1348
    %v1351 = vadd.f32 %v1327, %v1349
    %s1352 = sld [smem:[#allocation6 + $0x5]]
    %v1353 = vstv %s1352
    %v1354 = vmul.f32 %v1353, %v1332
    %v1355 = vmul.f32 %v1353, %v1333
    %v1356 = vadd.f32 %v1344, %v1354
    %v1357 = vadd.f32 %v1345, %v1355
    %s1358 = sld [smem:[#allocation6 + $0x29]]
    %v1359 = vstv %s1358
    %v1360 = vmul.f32 %v1359, %v1332
    %v1361 = vmul.f32 %v1359, %v1333
    %v1362 = vadd.f32 %v1350, %v1360
    %v1363 = vadd.f32 %v1351, %v1361
    %1364 = vrot.lane.b32.xlu0 %v1332, 127
    %v1365 = vpop.permute.xlu0 %1364
    %1366 = vrot.lane.b32.xlu0 %v1333, 127
    %v1367 = vpop.permute.xlu0 %1366
    %v1368 = vsel %vm101, %v1365, 0.0
    %v1369 = vsel %vm101, %v1367, 0.0
    %s1370 = sld [smem:[#allocation6 + $0x9]]
    %v1371 = vstv %s1370
    %v1372 = vmul.f32 %v1371, %v1368
    %v1373 = vmul.f32 %v1371, %v1369
    %v1374 = vadd.f32 %v1356, %v1372
    %v1375 = vadd.f32 %v1357, %v1373
    %s1376 = sld [smem:[#allocation6 + $0x2d]]
    %v1377 = vstv %s1376
    %v1378 = vmul.f32 %v1377, %v1368
    %v1379 = vmul.f32 %v1377, %v1369
    %v1380 = vadd.f32 %v1362, %v1378
    %v1381 = vadd.f32 %v1363, %v1379
    %1382 = vrot.lane.b32.xlu0 %v1170, 1
    %v1383 = vpop.permute.xlu0 %1382
    %1384 = vrot.lane.b32.xlu0 %v1171, 1
    %v1385 = vpop.permute.xlu0 %1384
    %v1386 = vsel %vm100, %v1383, 0.0
    %v1387 = vsel %vm100, %v1385, 0.0
    %s1388 = sld [smem:[#allocation6 + $0xd]]
    %v1389 = vstv %s1388
    %v1390 = vmul.f32 %v1389, %v1386
    %v1391 = vmul.f32 %v1389, %v1387
    %v1392 = vadd.f32 %v1374, %v1390
    %v1393 = vadd.f32 %v1375, %v1391
    %s1394 = sld [smem:[#allocation6 + $0x31]]
    %v1395 = vstv %s1394
    %v1396 = vmul.f32 %v1395, %v1386
    %v1397 = vmul.f32 %v1395, %v1387
    %v1398 = vadd.f32 %v1380, %v1396
    %v1399 = vadd.f32 %v1381, %v1397
    %s1400 = sld [smem:[#allocation6 + $0x11]]
    %v1401 = vstv %s1400
    %v1402 = vmul.f32 %v1401, %v1170
    %v1403 = vmul.f32 %v1401, %v1171
    %v1404 = vadd.f32 %v1392, %v1402
    %v1405 = vadd.f32 %v1393, %v1403
    %s1406 = sld [smem:[#allocation6 + $0x35]]
    %v1407 = vstv %s1406
    %v1408 = vmul.f32 %v1407, %v1170
    %v1409 = vmul.f32 %v1407, %v1171
    %v1410 = vadd.f32 %v1398, %v1408
    %v1411 = vadd.f32 %v1399, %v1409
    %1412 = vrot.lane.b32.xlu0 %v1170, 127
    %v1413 = vpop.permute.xlu0 %1412
    %1414 = vrot.lane.b32.xlu0 %v1171, 127
    %v1415 = vpop.permute.xlu0 %1414
    %v1416 = vsel %vm101, %v1413, 0.0
    %v1417 = vsel %vm101, %v1415, 0.0
    %s1418 = sld [smem:[#allocation6 + $0x15]]
    %v1419 = vstv %s1418
    %v1420 = vmul.f32 %v1419, %v1416
    %v1421 = vmul.f32 %v1419, %v1417
    %v1422 = vadd.f32 %v1404, %v1420
    %v1423 = vadd.f32 %v1405, %v1421
    %s1424 = sld [smem:[#allocation6 + $0x39]]
    %v1425 = vstv %s1424
    %v1426 = vmul.f32 %v1425, %v1416
    %v1427 = vmul.f32 %v1425, %v1417
    %v1428 = vadd.f32 %v1410, %v1426
    %v1429 = vadd.f32 %v1411, %v1427
    %v1430 = vrot.slane %v1170, 1
    %v1431 = vrot.slane %v1171, 1
    %v1432 = vsel %vm271, %v1430, %v1431
    %v1433 = vsel %vm271, %v1431, %v1430
    %v1434 = vsel %vm98, %v1432, 0.0
    %v1435 = vsel %vm99, %v1433, 0.0
    %1436 = vrot.lane.b32.xlu0 %v1434, 1
    %v1437 = vpop.permute.xlu0 %1436
    %1438 = vrot.lane.b32.xlu0 %v1435, 1
    %v1439 = vpop.permute.xlu0 %1438
    %v1440 = vsel %vm100, %v1437, 0.0
    %v1441 = vsel %vm100, %v1439, 0.0
    %s1442 = sld [smem:[#allocation6 + $0x19]]
    %v1443 = vstv %s1442
    %v1444 = vmul.f32 %v1443, %v1440
    %v1445 = vmul.f32 %v1443, %v1441
    %v1446 = vadd.f32 %v1422, %v1444
    %v1447 = vadd.f32 %v1423, %v1445
    %s1448 = sld [smem:[#allocation6 + $0x3d]]
    %v1449 = vstv %s1448
    %v1450 = vmul.f32 %v1449, %v1440
    %v1451 = vmul.f32 %v1449, %v1441
    %v1452 = vadd.f32 %v1428, %v1450
    %v1453 = vadd.f32 %v1429, %v1451
    %s1454 = sld [smem:[#allocation6 + $0x1d]]
    %v1455 = vstv %s1454
    %v1456 = vmul.f32 %v1455, %v1434
    %v1457 = vmul.f32 %v1455, %v1435
    %v1458 = vadd.f32 %v1446, %v1456
    %v1459 = vadd.f32 %v1447, %v1457
    %s1460 = sld [smem:[#allocation6 + $0x41]]
    %v1461 = vstv %s1460
    %v1462 = vmul.f32 %v1461, %v1434
    %v1463 = vmul.f32 %v1461, %v1435
    %v1464 = vadd.f32 %v1452, %v1462
    %v1465 = vadd.f32 %v1453, %v1463
    %1466 = vrot.lane.b32.xlu0 %v1434, 127
    %v1467 = vpop.permute.xlu0 %1466
    %1468 = vrot.lane.b32.xlu0 %v1435, 127
    %v1469 = vpop.permute.xlu0 %1468
    %v1470 = vsel %vm101, %v1467, 0.0
    %v1471 = vsel %vm101, %v1469, 0.0
    %s1472 = sld [smem:[#allocation6 + $0x21]]
    %v1473 = vstv %s1472
    %v1474 = vmul.f32 %v1473, %v1470
    %v1475 = vmul.f32 %v1473, %v1471
    %v1476 = vadd.f32 %v1458, %v1474
    %v1477 = vadd.f32 %v1459, %v1475
    %s1478 = sld [smem:[#allocation6 + $0x45]]
    %v1479 = vstv %s1478
    %v1480 = vmul.f32 %v1479, %v1470
    %v1481 = vmul.f32 %v1479, %v1471
    %v1482 = vadd.f32 %v1464, %v1480
    %v1483 = vadd.f32 %v1465, %v1481
    %v1484 = vrot.slane %v1172, 7
    %v1485 = vrot.slane %v1173, 7
    %v1486 = vsel %vm104, %v1484, %v1485
    %v1487 = vsel %vm104, %v1485, %v1484
    %v1488 = vsel %vm96, %v1487, 0.0
    %v1489 = vsel %vm97, %v1486, 0.0
    %1490 = vrot.lane.b32.xlu0 %v1488, 1
    %v1491 = vpop.permute.xlu0 %1490
    %1492 = vrot.lane.b32.xlu0 %v1489, 1
    %v1493 = vpop.permute.xlu0 %1492
    %v1494 = vsel %vm100, %v1491, 0.0
    %v1495 = vsel %vm100, %v1493, 0.0
    %s1496 = sld [smem:[#allocation6 + $0x2]]
    %v1497 = vstv %s1496
    %v1498 = vmul.f32 %v1497, %v1494
    %v1499 = vmul.f32 %v1497, %v1495
    %v1500 = vadd.f32 %v1476, %v1498
    %v1501 = vadd.f32 %v1477, %v1499
    %s1502 = sld [smem:[#allocation6 + $0x26]]
    %v1503 = vstv %s1502
    %v1504 = vmul.f32 %v1503, %v1494
    %v1505 = vmul.f32 %v1503, %v1495
    %v1506 = vadd.f32 %v1482, %v1504
    %v1507 = vadd.f32 %v1483, %v1505
    %s1508 = sld [smem:[#allocation6 + $0x6]]
    %v1509 = vstv %s1508
    %v1510 = vmul.f32 %v1509, %v1488
    %v1511 = vmul.f32 %v1509, %v1489
    %v1512 = vadd.f32 %v1500, %v1510
    %v1513 = vadd.f32 %v1501, %v1511
    %s1514 = sld [smem:[#allocation6 + $0x2a]]
    %v1515 = vstv %s1514
    %v1516 = vmul.f32 %v1515, %v1488
    %v1517 = vmul.f32 %v1515, %v1489
    %v1518 = vadd.f32 %v1506, %v1516
    %v1519 = vadd.f32 %v1507, %v1517
    %1520 = vrot.lane.b32.xlu0 %v1488, 127
    %v1521 = vpop.permute.xlu0 %1520
    %1522 = vrot.lane.b32.xlu0 %v1489, 127
    %v1523 = vpop.permute.xlu0 %1522
    %v1524 = vsel %vm101, %v1521, 0.0
    %v1525 = vsel %vm101, %v1523, 0.0
    %s1526 = sld [smem:[#allocation6 + $0xa]]
    %v1527 = vstv %s1526
    %v1528 = vmul.f32 %v1527, %v1524
    %v1529 = vmul.f32 %v1527, %v1525
    %v1530 = vadd.f32 %v1512, %v1528
    %v1531 = vadd.f32 %v1513, %v1529
    %s1532 = sld [smem:[#allocation6 + $0x2e]]
    %v1533 = vstv %s1532
    %v1534 = vmul.f32 %v1533, %v1524
    %v1535 = vmul.f32 %v1533, %v1525
    %v1536 = vadd.f32 %v1518, %v1534
    %v1537 = vadd.f32 %v1519, %v1535
    %1538 = vrot.lane.b32.xlu0 %v1172, 1
    %v1539 = vpop.permute.xlu0 %1538
    %1540 = vrot.lane.b32.xlu0 %v1173, 1
    %v1541 = vpop.permute.xlu0 %1540
    %v1542 = vsel %vm100, %v1539, 0.0
    %v1543 = vsel %vm100, %v1541, 0.0
    %s1544 = sld [smem:[#allocation6 + $0xe]]
    %v1545 = vstv %s1544
    %v1546 = vmul.f32 %v1545, %v1542
    %v1547 = vmul.f32 %v1545, %v1543
    %v1548 = vadd.f32 %v1530, %v1546
    %v1549 = vadd.f32 %v1531, %v1547
    %s1550 = sld [smem:[#allocation6 + $0x32]]
    %v1551 = vstv %s1550
    %v1552 = vmul.f32 %v1551, %v1542
    %v1553 = vmul.f32 %v1551, %v1543
    %v1554 = vadd.f32 %v1536, %v1552
    %v1555 = vadd.f32 %v1537, %v1553
    %s1556 = sld [smem:[#allocation6 + $0x12]]
    %v1557 = vstv %s1556
    %v1558 = vmul.f32 %v1557, %v1172
    %v1559 = vmul.f32 %v1557, %v1173
    %v1560 = vadd.f32 %v1548, %v1558
    %v1561 = vadd.f32 %v1549, %v1559
    %s1562 = sld [smem:[#allocation6 + $0x36]]
    %v1563 = vstv %s1562
    %v1564 = vmul.f32 %v1563, %v1172
    %v1565 = vmul.f32 %v1563, %v1173
    %v1566 = vadd.f32 %v1554, %v1564
    %v1567 = vadd.f32 %v1555, %v1565
    %1568 = vrot.lane.b32.xlu0 %v1172, 127
    %v1569 = vpop.permute.xlu0 %1568
    %1570 = vrot.lane.b32.xlu0 %v1173, 127
    %v1571 = vpop.permute.xlu0 %1570
    %v1572 = vsel %vm101, %v1569, 0.0
    %v1573 = vsel %vm101, %v1571, 0.0
    %s1574 = sld [smem:[#allocation6 + $0x16]]
    %v1575 = vstv %s1574
    %v1576 = vmul.f32 %v1575, %v1572
    %v1577 = vmul.f32 %v1575, %v1573
    %v1578 = vadd.f32 %v1560, %v1576
    %v1579 = vadd.f32 %v1561, %v1577
    %s1580 = sld [smem:[#allocation6 + $0x3a]]
    %v1581 = vstv %s1580
    %v1582 = vmul.f32 %v1581, %v1572
    %v1583 = vmul.f32 %v1581, %v1573
    %v1584 = vadd.f32 %v1566, %v1582
    %v1585 = vadd.f32 %v1567, %v1583
    %v1586 = vrot.slane %v1172, 1
    %v1587 = vrot.slane %v1173, 1
    %v1588 = vsel %vm271, %v1586, %v1587
    %v1589 = vsel %vm271, %v1587, %v1586
    %v1590 = vsel %vm98, %v1588, 0.0
    %v1591 = vsel %vm99, %v1589, 0.0
    %1592 = vrot.lane.b32.xlu0 %v1590, 1
    %v1593 = vpop.permute.xlu0 %1592
    %1594 = vrot.lane.b32.xlu0 %v1591, 1
    %v1595 = vpop.permute.xlu0 %1594
    %v1596 = vsel %vm100, %v1593, 0.0
    %v1597 = vsel %vm100, %v1595, 0.0
    %s1598 = sld [smem:[#allocation6 + $0x1a]]
    %v1599 = vstv %s1598
    %v1600 = vmul.f32 %v1599, %v1596
    %v1601 = vmul.f32 %v1599, %v1597
    %v1602 = vadd.f32 %v1578, %v1600
    %v1603 = vadd.f32 %v1579, %v1601
    %s1604 = sld [smem:[#allocation6 + $0x3e]]
    %v1605 = vstv %s1604
    %v1606 = vmul.f32 %v1605, %v1596
    %v1607 = vmul.f32 %v1605, %v1597
    %v1608 = vadd.f32 %v1584, %v1606
    %v1609 = vadd.f32 %v1585, %v1607
    %s1610 = sld [smem:[#allocation6 + $0x1e]]
    %v1611 = vstv %s1610
    %v1612 = vmul.f32 %v1611, %v1590
    %v1613 = vmul.f32 %v1611, %v1591
    %v1614 = vadd.f32 %v1602, %v1612
    %v1615 = vadd.f32 %v1603, %v1613
    %s1616 = sld [smem:[#allocation6 + $0x42]]
    %v1617 = vstv %s1616
    %v1618 = vmul.f32 %v1617, %v1590
    %v1619 = vmul.f32 %v1617, %v1591
    %v1620 = vadd.f32 %v1608, %v1618
    %v1621 = vadd.f32 %v1609, %v1619
    %1622 = vrot.lane.b32.xlu0 %v1590, 127
    %v1623 = vpop.permute.xlu0 %1622
    %1624 = vrot.lane.b32.xlu0 %v1591, 127
    %v1625 = vpop.permute.xlu0 %1624
    %v1626 = vsel %vm101, %v1623, 0.0
    %v1627 = vsel %vm101, %v1625, 0.0
    %s1628 = sld [smem:[#allocation6 + $0x22]]
    %v1629 = vstv %s1628
    %v1630 = vmul.f32 %v1629, %v1626
    %v1631 = vmul.f32 %v1629, %v1627
    %v1632 = vadd.f32 %v1614, %v1630
    %v1633 = vadd.f32 %v1615, %v1631
    %s1634 = sld [smem:[#allocation6 + $0x46]]
    %v1635 = vstv %s1634
    %v1636 = vmul.f32 %v1635, %v1626
    %v1637 = vmul.f32 %v1635, %v1627
    %v1638 = vadd.f32 %v1620, %v1636
    %v1639 = vadd.f32 %v1621, %v1637
    %v1640 = vrot.slane %v1174, 7
    %v1641 = vrot.slane %v1175, 7
    %v1642 = vsel %vm104, %v1640, %v1641
    %v1643 = vsel %vm104, %v1641, %v1640
    %v1644 = vsel %vm96, %v1643, 0.0
    %v1645 = vsel %vm97, %v1642, 0.0
    %1646 = vrot.lane.b32.xlu0 %v1644, 1
    %v1647 = vpop.permute.xlu0 %1646
    %1648 = vrot.lane.b32.xlu0 %v1645, 1
    %v1649 = vpop.permute.xlu0 %1648
    %v1650 = vsel %vm100, %v1647, 0.0
    %v1651 = vsel %vm100, %v1649, 0.0
    %s1652 = sld [smem:[#allocation6 + $0x3]]
    %v1653 = vstv %s1652
    %v1654 = vmul.f32 %v1653, %v1650
    %v1655 = vmul.f32 %v1653, %v1651
    %v1656 = vadd.f32 %v1632, %v1654
    %v1657 = vadd.f32 %v1633, %v1655
    %s1658 = sld [smem:[#allocation6 + $0x27]]
    %v1659 = vstv %s1658
    %v1660 = vmul.f32 %v1659, %v1650
    %v1661 = vmul.f32 %v1659, %v1651
    %v1662 = vadd.f32 %v1638, %v1660
    %v1663 = vadd.f32 %v1639, %v1661
    %s1664 = sld [smem:[#allocation6 + $0x7]]
    %v1665 = vstv %s1664
    %v1666 = vmul.f32 %v1665, %v1644
    %v1667 = vmul.f32 %v1665, %v1645
    %v1668 = vadd.f32 %v1656, %v1666
    %v1669 = vadd.f32 %v1657, %v1667
    %s1670 = sld [smem:[#allocation6 + $0x2b]]
    %v1671 = vstv %s1670
    %v1672 = vmul.f32 %v1671, %v1644
    %v1673 = vmul.f32 %v1671, %v1645
    %v1674 = vadd.f32 %v1662, %v1672
    %v1675 = vadd.f32 %v1663, %v1673
    %1676 = vrot.lane.b32.xlu0 %v1644, 127
    %v1677 = vpop.permute.xlu0 %1676
    %1678 = vrot.lane.b32.xlu0 %v1645, 127
    %v1679 = vpop.permute.xlu0 %1678
    %v1680 = vsel %vm101, %v1677, 0.0
    %v1681 = vsel %vm101, %v1679, 0.0
    %s1682 = sld [smem:[#allocation6 + $0xb]]
    %v1683 = vstv %s1682
    %v1684 = vmul.f32 %v1683, %v1680
    %v1685 = vmul.f32 %v1683, %v1681
    %v1686 = vadd.f32 %v1668, %v1684
    %v1687 = vadd.f32 %v1669, %v1685
    %s1688 = sld [smem:[#allocation6 + $0x2f]]
    %v1689 = vstv %s1688
    %v1690 = vmul.f32 %v1689, %v1680
    %v1691 = vmul.f32 %v1689, %v1681
    %v1692 = vadd.f32 %v1674, %v1690
    %v1693 = vadd.f32 %v1675, %v1691
    %1694 = vrot.lane.b32.xlu0 %v1174, 1
    %v1695 = vpop.permute.xlu0 %1694
    %1696 = vrot.lane.b32.xlu0 %v1175, 1
    %v1697 = vpop.permute.xlu0 %1696
    %v1698 = vsel %vm100, %v1695, 0.0
    %v1699 = vsel %vm100, %v1697, 0.0
    %s1700 = sld [smem:[#allocation6 + $0xf]]
    %v1701 = vstv %s1700
    %v1702 = vmul.f32 %v1701, %v1698
    %v1703 = vmul.f32 %v1701, %v1699
    %v1704 = vadd.f32 %v1686, %v1702
    %v1705 = vadd.f32 %v1687, %v1703
    %s1706 = sld [smem:[#allocation6 + $0x33]]
    %v1707 = vstv %s1706
    %v1708 = vmul.f32 %v1707, %v1698
    %v1709 = vmul.f32 %v1707, %v1699
    %v1710 = vadd.f32 %v1692, %v1708
    %v1711 = vadd.f32 %v1693, %v1709
    %s1712 = sld [smem:[#allocation6 + $0x13]]
    %v1713 = vstv %s1712
    %v1714 = vmul.f32 %v1713, %v1174
    %v1715 = vmul.f32 %v1713, %v1175
    %v1716 = vadd.f32 %v1704, %v1714
    %v1717 = vadd.f32 %v1705, %v1715
    %s1718 = sld [smem:[#allocation6 + $0x37]]
    %v1719 = vstv %s1718
    %v1720 = vmul.f32 %v1719, %v1174
    %v1721 = vmul.f32 %v1719, %v1175
    %v1722 = vadd.f32 %v1710, %v1720
    %v1723 = vadd.f32 %v1711, %v1721
    %1724 = vrot.lane.b32.xlu0 %v1174, 127
    %v1725 = vpop.permute.xlu0 %1724
    %1726 = vrot.lane.b32.xlu0 %v1175, 127
    %v1727 = vpop.permute.xlu0 %1726
    %v1728 = vsel %vm101, %v1725, 0.0
    %v1729 = vsel %vm101, %v1727, 0.0
    %s1730 = sld [smem:[#allocation6 + $0x17]]
    %v1731 = vstv %s1730
    %v1732 = vmul.f32 %v1731, %v1728
    %v1733 = vmul.f32 %v1731, %v1729
    %v1734 = vadd.f32 %v1716, %v1732
    %v1735 = vadd.f32 %v1717, %v1733
    %s1736 = sld [smem:[#allocation6 + $0x3b]]
    %v1737 = vstv %s1736
    %v1738 = vmul.f32 %v1737, %v1728
    %v1739 = vmul.f32 %v1737, %v1729
    %v1740 = vadd.f32 %v1722, %v1738
    %v1741 = vadd.f32 %v1723, %v1739
    %v1742 = vrot.slane %v1174, 1
    %v1743 = vrot.slane %v1175, 1
    %v1744 = vsel %vm271, %v1742, %v1743
    %v1745 = vsel %vm271, %v1743, %v1742
    %v1746 = vsel %vm98, %v1744, 0.0
    %v1747 = vsel %vm99, %v1745, 0.0
    %1748 = vrot.lane.b32.xlu0 %v1746, 1
    %v1749 = vpop.permute.xlu0 %1748
    %1750 = vrot.lane.b32.xlu0 %v1747, 1
    %v1751 = vpop.permute.xlu0 %1750
    %v1752 = vsel %vm100, %v1749, 0.0
    %v1753 = vsel %vm100, %v1751, 0.0
    %s1754 = sld [smem:[#allocation6 + $0x1b]]
    %v1755 = vstv %s1754
    %v1756 = vmul.f32 %v1755, %v1752
    %v1757 = vmul.f32 %v1755, %v1753
    %v1758 = vadd.f32 %v1734, %v1756
    %v1759 = vadd.f32 %v1735, %v1757
    %s1760 = sld [smem:[#allocation6 + $0x3f]]
    %v1761 = vstv %s1760
    %v1762 = vmul.f32 %v1761, %v1752
    %v1763 = vmul.f32 %v1761, %v1753
    %v1764 = vadd.f32 %v1740, %v1762
    %v1765 = vadd.f32 %v1741, %v1763
    %s1766 = sld [smem:[#allocation6 + $0x1f]]
    %v1767 = vstv %s1766
    %v1768 = vmul.f32 %v1767, %v1746
    %v1769 = vmul.f32 %v1767, %v1747
    %v1770 = vadd.f32 %v1758, %v1768
    %v1771 = vadd.f32 %v1759, %v1769
    %s1772 = sld [smem:[#allocation6 + $0x43]]
    %v1773 = vstv %s1772
    %v1774 = vmul.f32 %v1773, %v1746
    %v1775 = vmul.f32 %v1773, %v1747
    %v1776 = vadd.f32 %v1764, %v1774
    %v1777 = vadd.f32 %v1765, %v1775
    %1778 = vrot.lane.b32.xlu0 %v1746, 127
    %v1779 = vpop.permute.xlu0 %1778
    %1780 = vrot.lane.b32.xlu0 %v1747, 127
    %v1781 = vpop.permute.xlu0 %1780
    %v1782 = vsel %vm101, %v1779, 0.0
    %v1783 = vsel %vm101, %v1781, 0.0
    %s1784 = sld [smem:[#allocation6 + $0x23]]
    %v1785 = vstv %s1784
    %v1786 = vmul.f32 %v1785, %v1782
    %v1787 = vmul.f32 %v1785, %v1783
    %v1788 = vadd.f32 %v1770, %v1786
    %v1789 = vadd.f32 %v1771, %v1787
    %s1790 = sld [smem:[#allocation6 + $0x47]]
    %v1791 = vstv %s1790
    %v1792 = vmul.f32 %v1791, %v1782
    %v1793 = vmul.f32 %v1791, %v1783
    %v1794 = vadd.f32 %v1776, %v1792
    %v1795 = vadd.f32 %v1777, %v1793
    %s1796 = sld [smem:[#allocation7]]
    %v1797 = vstv %s1796
    %v1798 = vadd.f32 %v1788, %v1797
    %v1799 = vadd.f32 %v1789, %v1797
    %s1800 = sld [smem:[#allocation7 + $0x1]]
    %v1801 = vstv %s1800
    %v1802 = vadd.f32 %v1794, %v1801
    %v1803 = vadd.f32 %v1795, %v1801
    %1804 = vst [vmem:[%s5] sm:$0xff] %v1798
    %1805 = vst [vmem:[%s5 + $0x8] sm:$0xff] %v1799
    %s1806 = scalar_lea.vmem %s5, 16
    %1807 = vst [vmem:[%s1806] sm:$0xff] %v1802
    %1808 = vst [vmem:[%s1806 + $0x8] sm:$0xff] %v1803
    %v1809 = vadd.f32 %v1168, %v1276
    %v1810 = vadd.f32 %v1169, %v1277
    %1811 = vrot.lane.b32.xlu0 %v1809, 127
    %v1812 = vpop.permute.xlu0 %1811
    %1813 = vrot.lane.b32.xlu0 %v1810, 127
    %v1814 = vpop.permute.xlu0 %1813
    %v1815 = vadd.f32 %v1809, %v1812
    %v1816 = vadd.f32 %v1810, %v1814
    %v1817 = vmul.f32 %v1815, 0.25
    %v1818 = vmul.f32 %v1816, 0.25
    %v1819 = vadd.f32 %v1170, %v1432
    %v1820 = vadd.f32 %v1171, %v1433
    %1821 = vrot.lane.b32.xlu0 %v1819, 127
    %v1822 = vpop.permute.xlu0 %1821
    %1823 = vrot.lane.b32.xlu0 %v1820, 127
    %v1824 = vpop.permute.xlu0 %1823
    %v1825 = vadd.f32 %v1819, %v1822
    %v1826 = vadd.f32 %v1820, %v1824
    %v1827 = vmul.f32 %v1825, 0.25
    %v1828 = vmul.f32 %v1826, 0.25
    %v1829 = vadd.f32 %v1172, %v1588
    %v1830 = vadd.f32 %v1173, %v1589
    %1831 = vrot.lane.b32.xlu0 %v1829, 127
    %v1832 = vpop.permute.xlu0 %1831
    %1833 = vrot.lane.b32.xlu0 %v1830, 127
    %v1834 = vpop.permute.xlu0 %1833
    %v1835 = vadd.f32 %v1829, %v1832
    %v1836 = vadd.f32 %v1830, %v1834
    %v1837 = vmul.f32 %v1835, 0.25
    %v1838 = vmul.f32 %v1836, 0.25
    %v1839 = vadd.f32 %v1174, %v1744
    %v1840 = vadd.f32 %v1175, %v1745
    %1841 = vrot.lane.b32.xlu0 %v1839, 127
    %v1842 = vpop.permute.xlu0 %1841
    %1843 = vrot.lane.b32.xlu0 %v1840, 127
    %v1844 = vpop.permute.xlu0 %1843
    %v1845 = vadd.f32 %v1839, %v1842
    %v1846 = vadd.f32 %v1840, %v1844
    %v1847 = vmul.f32 %v1845, 0.25
    %v1848 = vmul.f32 %v1846, 0.25
    %vm1849 = vcmp.ge.s32.totalorder %v69, 2
    %vm1850 = vcmp.ge.s32.totalorder %v70, 2
    %vm1851 = vcmp.lt.s32.totalorder %v69, 14
    %vm1852 = vcmp.lt.s32.totalorder %v70, 14
    %vm1853 = vcmp.ge.s32.totalorder %v84, 2
    %vm1854 = vcmp.lt.s32.totalorder %v84, 14
    %v1855 = vrot.slane %v1817, 6
    %v1856 = vrot.slane %v1818, 6
    %vm1857 = vcmp.lt.s32.totalorder %v69, 2
    %v1858 = vsel %vm1857, %v1855, %v1856
    %v1859 = vsel %vm1857, %v1856, %v1855
    %v1860 = vsel %vm1849, %v1859, 0.0
    %v1861 = vsel %vm1850, %v1858, 0.0
    %1862 = vrot.lane.b32.xlu0 %v1860, 2
    %v1863 = vpop.permute.xlu0 %1862
    %1864 = vrot.lane.b32.xlu0 %v1861, 2
    %v1865 = vpop.permute.xlu0 %1864
    %v1866 = vsel %vm1853, %v1863, 0.0
    %v1867 = vsel %vm1853, %v1865, 0.0
    %s1868 = sld [smem:[#allocation6 + $0x48]]
    %v1869 = vstv %s1868
    %v1870 = vmul.f32 %v1869, %v1866
    %v1871 = vmul.f32 %v1869, %v1867
    %s1872 = sld [smem:[#allocation6 + $0x6c]]
    %v1873 = vstv %s1872
    %v1874 = vmul.f32 %v1873, %v1866
    %v1875 = vmul.f32 %v1873, %v1867
    %s1876 = sld [smem:[#allocation6 + $0x4c]]
    %v1877 = vstv %s1876
    %v1878 = vmul.f32 %v1877, %v1860
    %v1879 = vmul.f32 %v1877, %v1861
    %v1880 = vadd.f32 %v1870, %v1878
    %v1881 = vadd.f32 %v1871, %v1879
    %s1882 = sld [smem:[#allocation6 + $0x70]]
    %v1883 = vstv %s1882
    %v1884 = vmul.f32 %v1883, %v1860
    %v1885 = vmul.f32 %v1883, %v1861
    %v1886 = vadd.f32 %v1874, %v1884
    %v1887 = vadd.f32 %v1875, %v1885
    %1888 = vrot.lane.b32.xlu0 %v1860, 126
    %v1889 = vpop.permute.xlu0 %1888
    %1890 = vrot.lane.b32.xlu0 %v1861, 126
    %v1891 = vpop.permute.xlu0 %1890
    %v1892 = vsel %vm1854, %v1889, 0.0
    %v1893 = vsel %vm1854, %v1891, 0.0
    %s1894 = sld [smem:[#allocation6 + $0x50]]
    %v1895 = vstv %s1894
    %v1896 = vmul.f32 %v1895, %v1892
    %v1897 = vmul.f32 %v1895, %v1893
    %v1898 = vadd.f32 %v1880, %v1896
    %v1899 = vadd.f32 %v1881, %v1897
    %s1900 = sld [smem:[#allocation6 + $0x74]]
    %v1901 = vstv %s1900
    %v1902 = vmul.f32 %v1901, %v1892
    %v1903 = vmul.f32 %v1901, %v1893
    %v1904 = vadd.f32 %v1886, %v1902
    %v1905 = vadd.f32 %v1887, %v1903
    %1906 = vrot.lane.b32.xlu0 %v1817, 2
    %v1907 = vpop.permute.xlu0 %1906
    %1908 = vrot.lane.b32.xlu0 %v1818, 2
    %v1909 = vpop.permute.xlu0 %1908
    %v1910 = vsel %vm1853, %v1907, 0.0
    %v1911 = vsel %vm1853, %v1909, 0.0
    %s1912 = sld [smem:[#allocation6 + $0x54]]
    %v1913 = vstv %s1912
    %v1914 = vmul.f32 %v1913, %v1910
    %v1915 = vmul.f32 %v1913, %v1911
    %v1916 = vadd.f32 %v1898, %v1914
    %v1917 = vadd.f32 %v1899, %v1915
    %s1918 = sld [smem:[#allocation6 + $0x78]]
    %v1919 = vstv %s1918
    %v1920 = vmul.f32 %v1919, %v1910
    %v1921 = vmul.f32 %v1919, %v1911
    %v1922 = vadd.f32 %v1904, %v1920
    %v1923 = vadd.f32 %v1905, %v1921
    %s1924 = sld [smem:[#allocation6 + $0x58]]
    %v1925 = vstv %s1924
    %v1926 = vmul.f32 %v1925, %v1817
    %v1927 = vmul.f32 %v1925, %v1818
    %v1928 = vadd.f32 %v1916, %v1926
    %v1929 = vadd.f32 %v1917, %v1927
    %s1930 = sld [smem:[#allocation6 + $0x7c]]
    %v1931 = vstv %s1930
    %v1932 = vmul.f32 %v1931, %v1817
    %v1933 = vmul.f32 %v1931, %v1818
    %v1934 = vadd.f32 %v1922, %v1932
    %v1935 = vadd.f32 %v1923, %v1933
    %1936 = vrot.lane.b32.xlu0 %v1817, 126
    %v1937 = vpop.permute.xlu0 %1936
    %1938 = vrot.lane.b32.xlu0 %v1818, 126
    %v1939 = vpop.permute.xlu0 %1938
    %v1940 = vsel %vm1854, %v1937, 0.0
    %v1941 = vsel %vm1854, %v1939, 0.0
    %s1942 = sld [smem:[#allocation6 + $0x5c]]
    %v1943 = vstv %s1942
    %v1944 = vmul.f32 %v1943, %v1940
    %v1945 = vmul.f32 %v1943, %v1941
    %v1946 = vadd.f32 %v1928, %v1944
    %v1947 = vadd.f32 %v1929, %v1945
    %s1948 = sld [smem:[#allocation6 + $0x80]]
    %v1949 = vstv %s1948
    %v1950 = vmul.f32 %v1949, %v1940
    %v1951 = vmul.f32 %v1949, %v1941
    %v1952 = vadd.f32 %v1934, %v1950
    %v1953 = vadd.f32 %v1935, %v1951
    %v1954 = vrot.slane %v1817, 2
    %v1955 = vrot.slane %v1818, 2
    %vm1956 = vcmp.lt.s32.totalorder %v69, 6
    %v1957 = vsel %vm1956, %v1954, %v1955
    %v1958 = vsel %vm1956, %v1955, %v1954
    %v1959 = vsel %vm1851, %v1957, 0.0
    %v1960 = vsel %vm1852, %v1958, 0.0
    %1961 = vrot.lane.b32.xlu0 %v1959, 2
    %v1962 = vpop.permute.xlu0 %1961
    %1963 = vrot.lane.b32.xlu0 %v1960, 2
    %v1964 = vpop.permute.xlu0 %1963
    %v1965 = vsel %vm1853, %v1962, 0.0
    %v1966 = vsel %vm1853, %v1964, 0.0
    %s1967 = sld [smem:[#allocation6 + $0x60]]
    %v1968 = vstv %s1967
    %v1969 = vmul.f32 %v1968, %v1965
    %v1970 = vmul.f32 %v1968, %v1966
    %v1971 = vadd.f32 %v1946, %v1969
    %v1972 = vadd.f32 %v1947, %v1970
    %s1973 = sld [smem:[#allocation6 + $0x84]]
    %v1974 = vstv %s1973
    %v1975 = vmul.f32 %v1974, %v1965
    %v1976 = vmul.f32 %v1974, %v1966
    %v1977 = vadd.f32 %v1952, %v1975
    %v1978 = vadd.f32 %v1953, %v1976
    %s1979 = sld [smem:[#allocation6 + $0x64]]
    %v1980 = vstv %s1979
    %v1981 = vmul.f32 %v1980, %v1959
    %v1982 = vmul.f32 %v1980, %v1960
    %v1983 = vadd.f32 %v1971, %v1981
    %v1984 = vadd.f32 %v1972, %v1982
    %s1985 = sld [smem:[#allocation6 + $0x88]]
    %v1986 = vstv %s1985
    %v1987 = vmul.f32 %v1986, %v1959
    %v1988 = vmul.f32 %v1986, %v1960
    %v1989 = vadd.f32 %v1977, %v1987
    %v1990 = vadd.f32 %v1978, %v1988
    %1991 = vrot.lane.b32.xlu0 %v1959, 126
    %v1992 = vpop.permute.xlu0 %1991
    %1993 = vrot.lane.b32.xlu0 %v1960, 126
    %v1994 = vpop.permute.xlu0 %1993
    %v1995 = vsel %vm1854, %v1992, 0.0
    %v1996 = vsel %vm1854, %v1994, 0.0
    %s1997 = sld [smem:[#allocation6 + $0x68]]
    %v1998 = vstv %s1997
    %v1999 = vmul.f32 %v1998, %v1995
    %v2000 = vmul.f32 %v1998, %v1996
    %v2001 = vadd.f32 %v1983, %v1999
    %v2002 = vadd.f32 %v1984, %v2000
    %s2003 = sld [smem:[#allocation6 + $0x8c]]
    %v2004 = vstv %s2003
    %v2005 = vmul.f32 %v2004, %v1995
    %v2006 = vmul.f32 %v2004, %v1996
    %v2007 = vadd.f32 %v1989, %v2005
    %v2008 = vadd.f32 %v1990, %v2006
    %v2009 = vrot.slane %v1827, 6
    %v2010 = vrot.slane %v1828, 6
    %v2011 = vsel %vm1857, %v2009, %v2010
    %v2012 = vsel %vm1857, %v2010, %v2009
    %v2013 = vsel %vm1849, %v2012, 0.0
    %v2014 = vsel %vm1850, %v2011, 0.0
    %2015 = vrot.lane.b32.xlu0 %v2013, 2
    %v2016 = vpop.permute.xlu0 %2015
    %2017 = vrot.lane.b32.xlu0 %v2014, 2
    %v2018 = vpop.permute.xlu0 %2017
    %v2019 = vsel %vm1853, %v2016, 0.0
    %v2020 = vsel %vm1853, %v2018, 0.0
    %s2021 = sld [smem:[#allocation6 + $0x49]]
    %v2022 = vstv %s2021
    %v2023 = vmul.f32 %v2022, %v2019
    %v2024 = vmul.f32 %v2022, %v2020
    %v2025 = vadd.f32 %v2001, %v2023
    %v2026 = vadd.f32 %v2002, %v2024
    %s2027 = sld [smem:[#allocation6 + $0x6d]]
    %v2028 = vstv %s2027
    %v2029 = vmul.f32 %v2028, %v2019
    %v2030 = vmul.f32 %v2028, %v2020
    %v2031 = vadd.f32 %v2007, %v2029
    %v2032 = vadd.f32 %v2008, %v2030
    %s2033 = sld [smem:[#allocation6 + $0x4d]]
    %v2034 = vstv %s2033
    %v2035 = vmul.f32 %v2034, %v2013
    %v2036 = vmul.f32 %v2034, %v2014
    %v2037 = vadd.f32 %v2025, %v2035
    %v2038 = vadd.f32 %v2026, %v2036
    %s2039 = sld [smem:[#allocation6 + $0x71]]
    %v2040 = vstv %s2039
    %v2041 = vmul.f32 %v2040, %v2013
    %v2042 = vmul.f32 %v2040, %v2014
    %v2043 = vadd.f32 %v2031, %v2041
    %v2044 = vadd.f32 %v2032, %v2042
    %2045 = vrot.lane.b32.xlu0 %v2013, 126
    %v2046 = vpop.permute.xlu0 %2045
    %2047 = vrot.lane.b32.xlu0 %v2014, 126
    %v2048 = vpop.permute.xlu0 %2047
    %v2049 = vsel %vm1854, %v2046, 0.0
    %v2050 = vsel %vm1854, %v2048, 0.0
    %s2051 = sld [smem:[#allocation6 + $0x51]]
    %v2052 = vstv %s2051
    %v2053 = vmul.f32 %v2052, %v2049
    %v2054 = vmul.f32 %v2052, %v2050
    %v2055 = vadd.f32 %v2037, %v2053
    %v2056 = vadd.f32 %v2038, %v2054
    %s2057 = sld [smem:[#allocation6 + $0x75]]
    %v2058 = vstv %s2057
    %v2059 = vmul.f32 %v2058, %v2049
    %v2060 = vmul.f32 %v2058, %v2050
    %v2061 = vadd.f32 %v2043, %v2059
    %v2062 = vadd.f32 %v2044, %v2060
    %2063 = vrot.lane.b32.xlu0 %v1827, 2
    %v2064 = vpop.permute.xlu0 %2063
    %2065 = vrot.lane.b32.xlu0 %v1828, 2
    %v2066 = vpop.permute.xlu0 %2065
    %v2067 = vsel %vm1853, %v2064, 0.0
    %v2068 = vsel %vm1853, %v2066, 0.0
    %s2069 = sld [smem:[#allocation6 + $0x55]]
    %v2070 = vstv %s2069
    %v2071 = vmul.f32 %v2070, %v2067
    %v2072 = vmul.f32 %v2070, %v2068
    %v2073 = vadd.f32 %v2055, %v2071
    %v2074 = vadd.f32 %v2056, %v2072
    %s2075 = sld [smem:[#allocation6 + $0x79]]
    %v2076 = vstv %s2075
    %v2077 = vmul.f32 %v2076, %v2067
    %v2078 = vmul.f32 %v2076, %v2068
    %v2079 = vadd.f32 %v2061, %v2077
    %v2080 = vadd.f32 %v2062, %v2078
    %s2081 = sld [smem:[#allocation6 + $0x59]]
    %v2082 = vstv %s2081
    %v2083 = vmul.f32 %v2082, %v1827
    %v2084 = vmul.f32 %v2082, %v1828
    %v2085 = vadd.f32 %v2073, %v2083
    %v2086 = vadd.f32 %v2074, %v2084
    %s2087 = sld [smem:[#allocation6 + $0x7d]]
    %v2088 = vstv %s2087
    %v2089 = vmul.f32 %v2088, %v1827
    %v2090 = vmul.f32 %v2088, %v1828
    %v2091 = vadd.f32 %v2079, %v2089
    %v2092 = vadd.f32 %v2080, %v2090
    %2093 = vrot.lane.b32.xlu0 %v1827, 126
    %v2094 = vpop.permute.xlu0 %2093
    %2095 = vrot.lane.b32.xlu0 %v1828, 126
    %v2096 = vpop.permute.xlu0 %2095
    %v2097 = vsel %vm1854, %v2094, 0.0
    %v2098 = vsel %vm1854, %v2096, 0.0
    %s2099 = sld [smem:[#allocation6 + $0x5d]]
    %v2100 = vstv %s2099
    %v2101 = vmul.f32 %v2100, %v2097
    %v2102 = vmul.f32 %v2100, %v2098
    %v2103 = vadd.f32 %v2085, %v2101
    %v2104 = vadd.f32 %v2086, %v2102
    %s2105 = sld [smem:[#allocation6 + $0x81]]
    %v2106 = vstv %s2105
    %v2107 = vmul.f32 %v2106, %v2097
    %v2108 = vmul.f32 %v2106, %v2098
    %v2109 = vadd.f32 %v2091, %v2107
    %v2110 = vadd.f32 %v2092, %v2108
    %v2111 = vrot.slane %v1827, 2
    %v2112 = vrot.slane %v1828, 2
    %v2113 = vsel %vm1956, %v2111, %v2112
    %v2114 = vsel %vm1956, %v2112, %v2111
    %v2115 = vsel %vm1851, %v2113, 0.0
    %v2116 = vsel %vm1852, %v2114, 0.0
    %2117 = vrot.lane.b32.xlu0 %v2115, 2
    %v2118 = vpop.permute.xlu0 %2117
    %2119 = vrot.lane.b32.xlu0 %v2116, 2
    %v2120 = vpop.permute.xlu0 %2119
    %v2121 = vsel %vm1853, %v2118, 0.0
    %v2122 = vsel %vm1853, %v2120, 0.0
    %s2123 = sld [smem:[#allocation6 + $0x61]]
    %v2124 = vstv %s2123
    %v2125 = vmul.f32 %v2124, %v2121
    %v2126 = vmul.f32 %v2124, %v2122
    %v2127 = vadd.f32 %v2103, %v2125
    %v2128 = vadd.f32 %v2104, %v2126
    %s2129 = sld [smem:[#allocation6 + $0x85]]
    %v2130 = vstv %s2129
    %v2131 = vmul.f32 %v2130, %v2121
    %v2132 = vmul.f32 %v2130, %v2122
    %v2133 = vadd.f32 %v2109, %v2131
    %v2134 = vadd.f32 %v2110, %v2132
    %s2135 = sld [smem:[#allocation6 + $0x65]]
    %v2136 = vstv %s2135
    %v2137 = vmul.f32 %v2136, %v2115
    %v2138 = vmul.f32 %v2136, %v2116
    %v2139 = vadd.f32 %v2127, %v2137
    %v2140 = vadd.f32 %v2128, %v2138
    %s2141 = sld [smem:[#allocation6 + $0x89]]
    %v2142 = vstv %s2141
    %v2143 = vmul.f32 %v2142, %v2115
    %v2144 = vmul.f32 %v2142, %v2116
    %v2145 = vadd.f32 %v2133, %v2143
    %v2146 = vadd.f32 %v2134, %v2144
    %2147 = vrot.lane.b32.xlu0 %v2115, 126
    %v2148 = vpop.permute.xlu0 %2147
    %2149 = vrot.lane.b32.xlu0 %v2116, 126
    %v2150 = vpop.permute.xlu0 %2149
    %v2151 = vsel %vm1854, %v2148, 0.0
    %v2152 = vsel %vm1854, %v2150, 0.0
    %s2153 = sld [smem:[#allocation6 + $0x69]]
    %v2154 = vstv %s2153
    %v2155 = vmul.f32 %v2154, %v2151
    %v2156 = vmul.f32 %v2154, %v2152
    %v2157 = vadd.f32 %v2139, %v2155
    %v2158 = vadd.f32 %v2140, %v2156
    %s2159 = sld [smem:[#allocation6 + $0x8d]]
    %v2160 = vstv %s2159
    %v2161 = vmul.f32 %v2160, %v2151
    %v2162 = vmul.f32 %v2160, %v2152
    %v2163 = vadd.f32 %v2145, %v2161
    %v2164 = vadd.f32 %v2146, %v2162
    %v2165 = vrot.slane %v1837, 6
    %v2166 = vrot.slane %v1838, 6
    %v2167 = vsel %vm1857, %v2165, %v2166
    %v2168 = vsel %vm1857, %v2166, %v2165
    %v2169 = vsel %vm1849, %v2168, 0.0
    %v2170 = vsel %vm1850, %v2167, 0.0
    %2171 = vrot.lane.b32.xlu0 %v2169, 2
    %v2172 = vpop.permute.xlu0 %2171
    %2173 = vrot.lane.b32.xlu0 %v2170, 2
    %v2174 = vpop.permute.xlu0 %2173
    %v2175 = vsel %vm1853, %v2172, 0.0
    %v2176 = vsel %vm1853, %v2174, 0.0
    %s2177 = sld [smem:[#allocation6 + $0x4a]]
    %v2178 = vstv %s2177
    %v2179 = vmul.f32 %v2178, %v2175
    %v2180 = vmul.f32 %v2178, %v2176
    %v2181 = vadd.f32 %v2157, %v2179
    %v2182 = vadd.f32 %v2158, %v2180
    %s2183 = sld [smem:[#allocation6 + $0x6e]]
    %v2184 = vstv %s2183
    %v2185 = vmul.f32 %v2184, %v2175
    %v2186 = vmul.f32 %v2184, %v2176
    %v2187 = vadd.f32 %v2163, %v2185
    %v2188 = vadd.f32 %v2164, %v2186
    %s2189 = sld [smem:[#allocation6 + $0x4e]]
    %v2190 = vstv %s2189
    %v2191 = vmul.f32 %v2190, %v2169
    %v2192 = vmul.f32 %v2190, %v2170
    %v2193 = vadd.f32 %v2181, %v2191
    %v2194 = vadd.f32 %v2182, %v2192
    %s2195 = sld [smem:[#allocation6 + $0x72]]
    %v2196 = vstv %s2195
    %v2197 = vmul.f32 %v2196, %v2169
    %v2198 = vmul.f32 %v2196, %v2170
    %v2199 = vadd.f32 %v2187, %v2197
    %v2200 = vadd.f32 %v2188, %v2198
    %2201 = vrot.lane.b32.xlu0 %v2169, 126
    %v2202 = vpop.permute.xlu0 %2201
    %2203 = vrot.lane.b32.xlu0 %v2170, 126
    %v2204 = vpop.permute.xlu0 %2203
    %v2205 = vsel %vm1854, %v2202, 0.0
    %v2206 = vsel %vm1854, %v2204, 0.0
    %s2207 = sld [smem:[#allocation6 + $0x52]]
    %v2208 = vstv %s2207
    %v2209 = vmul.f32 %v2208, %v2205
    %v2210 = vmul.f32 %v2208, %v2206
    %v2211 = vadd.f32 %v2193, %v2209
    %v2212 = vadd.f32 %v2194, %v2210
    %s2213 = sld [smem:[#allocation6 + $0x76]]
    %v2214 = vstv %s2213
    %v2215 = vmul.f32 %v2214, %v2205
    %v2216 = vmul.f32 %v2214, %v2206
    %v2217 = vadd.f32 %v2199, %v2215
    %v2218 = vadd.f32 %v2200, %v2216
    %2219 = vrot.lane.b32.xlu0 %v1837, 2
    %v2220 = vpop.permute.xlu0 %2219
    %2221 = vrot.lane.b32.xlu0 %v1838, 2
    %v2222 = vpop.permute.xlu0 %2221
    %v2223 = vsel %vm1853, %v2220, 0.0
    %v2224 = vsel %vm1853, %v2222, 0.0
    %s2225 = sld [smem:[#allocation6 + $0x56]]
    %v2226 = vstv %s2225
    %v2227 = vmul.f32 %v2226, %v2223
    %v2228 = vmul.f32 %v2226, %v2224
    %v2229 = vadd.f32 %v2211, %v2227
    %v2230 = vadd.f32 %v2212, %v2228
    %s2231 = sld [smem:[#allocation6 + $0x7a]]
    %v2232 = vstv %s2231
    %v2233 = vmul.f32 %v2232, %v2223
    %v2234 = vmul.f32 %v2232, %v2224
    %v2235 = vadd.f32 %v2217, %v2233
    %v2236 = vadd.f32 %v2218, %v2234
    %s2237 = sld [smem:[#allocation6 + $0x5a]]
    %v2238 = vstv %s2237
    %v2239 = vmul.f32 %v2238, %v1837
    %v2240 = vmul.f32 %v2238, %v1838
    %v2241 = vadd.f32 %v2229, %v2239
    %v2242 = vadd.f32 %v2230, %v2240
    %s2243 = sld [smem:[#allocation6 + $0x7e]]
    %v2244 = vstv %s2243
    %v2245 = vmul.f32 %v2244, %v1837
    %v2246 = vmul.f32 %v2244, %v1838
    %v2247 = vadd.f32 %v2235, %v2245
    %v2248 = vadd.f32 %v2236, %v2246
    %2249 = vrot.lane.b32.xlu0 %v1837, 126
    %v2250 = vpop.permute.xlu0 %2249
    %2251 = vrot.lane.b32.xlu0 %v1838, 126
    %v2252 = vpop.permute.xlu0 %2251
    %v2253 = vsel %vm1854, %v2250, 0.0
    %v2254 = vsel %vm1854, %v2252, 0.0
    %s2255 = sld [smem:[#allocation6 + $0x5e]]
    %v2256 = vstv %s2255
    %v2257 = vmul.f32 %v2256, %v2253
    %v2258 = vmul.f32 %v2256, %v2254
    %v2259 = vadd.f32 %v2241, %v2257
    %v2260 = vadd.f32 %v2242, %v2258
    %s2261 = sld [smem:[#allocation6 + $0x82]]
    %v2262 = vstv %s2261
    %v2263 = vmul.f32 %v2262, %v2253
    %v2264 = vmul.f32 %v2262, %v2254
    %v2265 = vadd.f32 %v2247, %v2263
    %v2266 = vadd.f32 %v2248, %v2264
    %v2267 = vrot.slane %v1837, 2
    %v2268 = vrot.slane %v1838, 2
    %v2269 = vsel %vm1956, %v2267, %v2268
    %v2270 = vsel %vm1956, %v2268, %v2267
    %v2271 = vsel %vm1851, %v2269, 0.0
    %v2272 = vsel %vm1852, %v2270, 0.0
    %2273 = vrot.lane.b32.xlu0 %v2271, 2
    %v2274 = vpop.permute.xlu0 %2273
    %2275 = vrot.lane.b32.xlu0 %v2272, 2
    %v2276 = vpop.permute.xlu0 %2275
    %v2277 = vsel %vm1853, %v2274, 0.0
    %v2278 = vsel %vm1853, %v2276, 0.0
    %s2279 = sld [smem:[#allocation6 + $0x62]]
    %v2280 = vstv %s2279
    %v2281 = vmul.f32 %v2280, %v2277
    %v2282 = vmul.f32 %v2280, %v2278
    %v2283 = vadd.f32 %v2259, %v2281
    %v2284 = vadd.f32 %v2260, %v2282
    %s2285 = sld [smem:[#allocation6 + $0x86]]
    %v2286 = vstv %s2285
    %v2287 = vmul.f32 %v2286, %v2277
    %v2288 = vmul.f32 %v2286, %v2278
    %v2289 = vadd.f32 %v2265, %v2287
    %v2290 = vadd.f32 %v2266, %v2288
    %s2291 = sld [smem:[#allocation6 + $0x66]]
    %v2292 = vstv %s2291
    %v2293 = vmul.f32 %v2292, %v2271
    %v2294 = vmul.f32 %v2292, %v2272
    %v2295 = vadd.f32 %v2283, %v2293
    %v2296 = vadd.f32 %v2284, %v2294
    %s2297 = sld [smem:[#allocation6 + $0x8a]]
    %v2298 = vstv %s2297
    %v2299 = vmul.f32 %v2298, %v2271
    %v2300 = vmul.f32 %v2298, %v2272
    %v2301 = vadd.f32 %v2289, %v2299
    %v2302 = vadd.f32 %v2290, %v2300
    %2303 = vrot.lane.b32.xlu0 %v2271, 126
    %v2304 = vpop.permute.xlu0 %2303
    %2305 = vrot.lane.b32.xlu0 %v2272, 126
    %v2306 = vpop.permute.xlu0 %2305
    %v2307 = vsel %vm1854, %v2304, 0.0
    %v2308 = vsel %vm1854, %v2306, 0.0
    %s2309 = sld [smem:[#allocation6 + $0x6a]]
    %v2310 = vstv %s2309
    %v2311 = vmul.f32 %v2310, %v2307
    %v2312 = vmul.f32 %v2310, %v2308
    %v2313 = vadd.f32 %v2295, %v2311
    %v2314 = vadd.f32 %v2296, %v2312
    %s2315 = sld [smem:[#allocation6 + $0x8e]]
    %v2316 = vstv %s2315
    %v2317 = vmul.f32 %v2316, %v2307
    %v2318 = vmul.f32 %v2316, %v2308
    %v2319 = vadd.f32 %v2301, %v2317
    %v2320 = vadd.f32 %v2302, %v2318
    %v2321 = vrot.slane %v1847, 6
    %v2322 = vrot.slane %v1848, 6
    %v2323 = vsel %vm1857, %v2321, %v2322
    %v2324 = vsel %vm1857, %v2322, %v2321
    %v2325 = vsel %vm1849, %v2324, 0.0
    %v2326 = vsel %vm1850, %v2323, 0.0
    %2327 = vrot.lane.b32.xlu0 %v2325, 2
    %v2328 = vpop.permute.xlu0 %2327
    %2329 = vrot.lane.b32.xlu0 %v2326, 2
    %v2330 = vpop.permute.xlu0 %2329
    %v2331 = vsel %vm1853, %v2328, 0.0
    %v2332 = vsel %vm1853, %v2330, 0.0
    %s2333 = sld [smem:[#allocation6 + $0x4b]]
    %v2334 = vstv %s2333
    %v2335 = vmul.f32 %v2334, %v2331
    %v2336 = vmul.f32 %v2334, %v2332
    %v2337 = vadd.f32 %v2313, %v2335
    %v2338 = vadd.f32 %v2314, %v2336
    %s2339 = sld [smem:[#allocation6 + $0x6f]]
    %v2340 = vstv %s2339
    %v2341 = vmul.f32 %v2340, %v2331
    %v2342 = vmul.f32 %v2340, %v2332
    %v2343 = vadd.f32 %v2319, %v2341
    %v2344 = vadd.f32 %v2320, %v2342
    %s2345 = sld [smem:[#allocation6 + $0x4f]]
    %v2346 = vstv %s2345
    %v2347 = vmul.f32 %v2346, %v2325
    %v2348 = vmul.f32 %v2346, %v2326
    %v2349 = vadd.f32 %v2337, %v2347
    %v2350 = vadd.f32 %v2338, %v2348
    %s2351 = sld [smem:[#allocation6 + $0x73]]
    %v2352 = vstv %s2351
    %v2353 = vmul.f32 %v2352, %v2325
    %v2354 = vmul.f32 %v2352, %v2326
    %v2355 = vadd.f32 %v2343, %v2353
    %v2356 = vadd.f32 %v2344, %v2354
    %2357 = vrot.lane.b32.xlu0 %v2325, 126
    %v2358 = vpop.permute.xlu0 %2357
    %2359 = vrot.lane.b32.xlu0 %v2326, 126
    %v2360 = vpop.permute.xlu0 %2359
    %v2361 = vsel %vm1854, %v2358, 0.0
    %v2362 = vsel %vm1854, %v2360, 0.0
    %s2363 = sld [smem:[#allocation6 + $0x53]]
    %v2364 = vstv %s2363
    %v2365 = vmul.f32 %v2364, %v2361
    %v2366 = vmul.f32 %v2364, %v2362
    %v2367 = vadd.f32 %v2349, %v2365
    %v2368 = vadd.f32 %v2350, %v2366
    %s2369 = sld [smem:[#allocation6 + $0x77]]
    %v2370 = vstv %s2369
    %v2371 = vmul.f32 %v2370, %v2361
    %v2372 = vmul.f32 %v2370, %v2362
    %v2373 = vadd.f32 %v2355, %v2371
    %v2374 = vadd.f32 %v2356, %v2372
    %2375 = vrot.lane.b32.xlu0 %v1847, 2
    %v2376 = vpop.permute.xlu0 %2375
    %2377 = vrot.lane.b32.xlu0 %v1848, 2
    %v2378 = vpop.permute.xlu0 %2377
    %v2379 = vsel %vm1853, %v2376, 0.0
    %v2380 = vsel %vm1853, %v2378, 0.0
    %s2381 = sld [smem:[#allocation6 + $0x57]]
    %v2382 = vstv %s2381
    %v2383 = vmul.f32 %v2382, %v2379
    %v2384 = vmul.f32 %v2382, %v2380
    %v2385 = vadd.f32 %v2367, %v2383
    %v2386 = vadd.f32 %v2368, %v2384
    %s2387 = sld [smem:[#allocation6 + $0x7b]]
    %v2388 = vstv %s2387
    %v2389 = vmul.f32 %v2388, %v2379
    %v2390 = vmul.f32 %v2388, %v2380
    %v2391 = vadd.f32 %v2373, %v2389
    %v2392 = vadd.f32 %v2374, %v2390
    %s2393 = sld [smem:[#allocation6 + $0x5b]]
    %v2394 = vstv %s2393
    %v2395 = vmul.f32 %v2394, %v1847
    %v2396 = vmul.f32 %v2394, %v1848
    %v2397 = vadd.f32 %v2385, %v2395
    %v2398 = vadd.f32 %v2386, %v2396
    %s2399 = sld [smem:[#allocation6 + $0x7f]]
    %v2400 = vstv %s2399
    %v2401 = vmul.f32 %v2400, %v1847
    %v2402 = vmul.f32 %v2400, %v1848
    %v2403 = vadd.f32 %v2391, %v2401
    %v2404 = vadd.f32 %v2392, %v2402
    %2405 = vrot.lane.b32.xlu0 %v1847, 126
    %v2406 = vpop.permute.xlu0 %2405
    %2407 = vrot.lane.b32.xlu0 %v1848, 126
    %v2408 = vpop.permute.xlu0 %2407
    %v2409 = vsel %vm1854, %v2406, 0.0
    %v2410 = vsel %vm1854, %v2408, 0.0
    %s2411 = sld [smem:[#allocation6 + $0x5f]]
    %v2412 = vstv %s2411
    %v2413 = vmul.f32 %v2412, %v2409
    %v2414 = vmul.f32 %v2412, %v2410
    %v2415 = vadd.f32 %v2397, %v2413
    %v2416 = vadd.f32 %v2398, %v2414
    %s2417 = sld [smem:[#allocation6 + $0x83]]
    %v2418 = vstv %s2417
    %v2419 = vmul.f32 %v2418, %v2409
    %v2420 = vmul.f32 %v2418, %v2410
    %v2421 = vadd.f32 %v2403, %v2419
    %v2422 = vadd.f32 %v2404, %v2420
    %v2423 = vrot.slane %v1847, 2
    %v2424 = vrot.slane %v1848, 2
    %v2425 = vsel %vm1956, %v2423, %v2424
    %v2426 = vsel %vm1956, %v2424, %v2423
    %v2427 = vsel %vm1851, %v2425, 0.0
    %v2428 = vsel %vm1852, %v2426, 0.0
    %2429 = vrot.lane.b32.xlu0 %v2427, 2
    %v2430 = vpop.permute.xlu0 %2429
    %2431 = vrot.lane.b32.xlu0 %v2428, 2
    %v2432 = vpop.permute.xlu0 %2431
    %v2433 = vsel %vm1853, %v2430, 0.0
    %v2434 = vsel %vm1853, %v2432, 0.0
    %s2435 = sld [smem:[#allocation6 + $0x63]]
    %v2436 = vstv %s2435
    %v2437 = vmul.f32 %v2436, %v2433
    %v2438 = vmul.f32 %v2436, %v2434
    %v2439 = vadd.f32 %v2415, %v2437
    %v2440 = vadd.f32 %v2416, %v2438
    %s2441 = sld [smem:[#allocation6 + $0x87]]
    %v2442 = vstv %s2441
    %v2443 = vmul.f32 %v2442, %v2433
    %v2444 = vmul.f32 %v2442, %v2434
    %v2445 = vadd.f32 %v2421, %v2443
    %v2446 = vadd.f32 %v2422, %v2444
    %s2447 = sld [smem:[#allocation6 + $0x67]]
    %v2448 = vstv %s2447
    %v2449 = vmul.f32 %v2448, %v2427
    %v2450 = vmul.f32 %v2448, %v2428
    %v2451 = vadd.f32 %v2439, %v2449
    %v2452 = vadd.f32 %v2440, %v2450
    %s2453 = sld [smem:[#allocation6 + $0x8b]]
    %v2454 = vstv %s2453
    %v2455 = vmul.f32 %v2454, %v2427
    %v2456 = vmul.f32 %v2454, %v2428
    %v2457 = vadd.f32 %v2445, %v2455
    %v2458 = vadd.f32 %v2446, %v2456
    %2459 = vrot.lane.b32.xlu0 %v2427, 126
    %v2460 = vpop.permute.xlu0 %2459
    %2461 = vrot.lane.b32.xlu0 %v2428, 126
    %v2462 = vpop.permute.xlu0 %2461
    %v2463 = vsel %vm1854, %v2460, 0.0
    %v2464 = vsel %vm1854, %v2462, 0.0
    %s2465 = sld [smem:[#allocation6 + $0x6b]]
    %v2466 = vstv %s2465
    %v2467 = vmul.f32 %v2466, %v2463
    %v2468 = vmul.f32 %v2466, %v2464
    %v2469 = vadd.f32 %v2451, %v2467
    %v2470 = vadd.f32 %v2452, %v2468
    %s2471 = sld [smem:[#allocation6 + $0x8f]]
    %v2472 = vstv %s2471
    %v2473 = vmul.f32 %v2472, %v2463
    %v2474 = vmul.f32 %v2472, %v2464
    %v2475 = vadd.f32 %v2457, %v2473
    %v2476 = vadd.f32 %v2458, %v2474
    %s2477 = sld [smem:[#allocation7 + $0x2]]
    %v2478 = vstv %s2477
    %v2479 = vadd.f32 %v2469, %v2478
    %v2480 = vadd.f32 %v2470, %v2478
    %s2481 = sld [smem:[#allocation7 + $0x3]]
    %v2482 = vstv %s2481
    %v2483 = vadd.f32 %v2475, %v2482
    %v2484 = vadd.f32 %v2476, %v2482
    %s2485 = scalar_lea.vmem %s5, 32
    %2486 = vst [vmem:[%s2485] sm:$0xff] %v2479
    %2487 = vst [vmem:[%s2485 + $0x8] sm:$0xff] %v2480
    %s2488 = scalar_lea.vmem %s5, 48
    %2489 = vst [vmem:[%s2488] sm:$0xff] %v2483
    %2490 = vst [vmem:[%s2488 + $0x8] sm:$0xff] %v2484
    %v2491 = vrot.slane %v1809, 2
    %v2492 = vrot.slane %v1810, 2
    %v2493 = vsel %vm1956, %v2491, %v2492
    %v2494 = vsel %vm1956, %v2492, %v2491
    %v2495 = vadd.f32 %v1809, %v2493
    %v2496 = vadd.f32 %v1810, %v2494
    %2497 = vrot.lane.b32.xlu0 %v2495, 127
    %v2498 = vpop.permute.xlu0 %2497
    %2499 = vrot.lane.b32.xlu0 %v2496, 127
    %v2500 = vpop.permute.xlu0 %2499
    %v2501 = vadd.f32 %v2495, %v2498
    %v2502 = vadd.f32 %v2496, %v2500
    %2503 = vrot.lane.b32.xlu0 %v2501, 126
    %v2504 = vpop.permute.xlu0 %2503
    %2505 = vrot.lane.b32.xlu0 %v2502, 126
    %v2506 = vpop.permute.xlu0 %2505
    %v2507 = vadd.f32 %v2501, %v2504
    %v2508 = vadd.f32 %v2502, %v2506
    %v2509 = vmul.f32 %v2507, 0.0625
    %v2510 = vmul.f32 %v2508, 0.0625
    %v2511 = vrot.slane %v1819, 2
    %v2512 = vrot.slane %v1820, 2
    %v2513 = vsel %vm1956, %v2511, %v2512
    %v2514 = vsel %vm1956, %v2512, %v2511
    %v2515 = vadd.f32 %v1819, %v2513
    %v2516 = vadd.f32 %v1820, %v2514
    %2517 = vrot.lane.b32.xlu0 %v2515, 127
    %v2518 = vpop.permute.xlu0 %2517
    %2519 = vrot.lane.b32.xlu0 %v2516, 127
    %v2520 = vpop.permute.xlu0 %2519
    %v2521 = vadd.f32 %v2515, %v2518
    %v2522 = vadd.f32 %v2516, %v2520
    %2523 = vrot.lane.b32.xlu0 %v2521, 126
    %v2524 = vpop.permute.xlu0 %2523
    %2525 = vrot.lane.b32.xlu0 %v2522, 126
    %v2526 = vpop.permute.xlu0 %2525
    %v2527 = vadd.f32 %v2521, %v2524
    %v2528 = vadd.f32 %v2522, %v2526
    %v2529 = vmul.f32 %v2527, 0.0625
    %v2530 = vmul.f32 %v2528, 0.0625
    %v2531 = vrot.slane %v1829, 2
    %v2532 = vrot.slane %v1830, 2
    %v2533 = vsel %vm1956, %v2531, %v2532
    %v2534 = vsel %vm1956, %v2532, %v2531
    %v2535 = vadd.f32 %v1829, %v2533
    %v2536 = vadd.f32 %v1830, %v2534
    %2537 = vrot.lane.b32.xlu0 %v2535, 127
    %v2538 = vpop.permute.xlu0 %2537
    %2539 = vrot.lane.b32.xlu0 %v2536, 127
    %v2540 = vpop.permute.xlu0 %2539
    %v2541 = vadd.f32 %v2535, %v2538
    %v2542 = vadd.f32 %v2536, %v2540
    %2543 = vrot.lane.b32.xlu0 %v2541, 126
    %v2544 = vpop.permute.xlu0 %2543
    %2545 = vrot.lane.b32.xlu0 %v2542, 126
    %v2546 = vpop.permute.xlu0 %2545
    %v2547 = vadd.f32 %v2541, %v2544
    %v2548 = vadd.f32 %v2542, %v2546
    %v2549 = vmul.f32 %v2547, 0.0625
    %v2550 = vmul.f32 %v2548, 0.0625
    %v2551 = vrot.slane %v1839, 2
    %v2552 = vrot.slane %v1840, 2
    %v2553 = vsel %vm1956, %v2551, %v2552
    %v2554 = vsel %vm1956, %v2552, %v2551
    %v2555 = vadd.f32 %v1839, %v2553
    %v2556 = vadd.f32 %v1840, %v2554
    %2557 = vrot.lane.b32.xlu0 %v2555, 127
    %v2558 = vpop.permute.xlu0 %2557
    %2559 = vrot.lane.b32.xlu0 %v2556, 127
    %v2560 = vpop.permute.xlu0 %2559
    %v2561 = vadd.f32 %v2555, %v2558
    %v2562 = vadd.f32 %v2556, %v2560
    %2563 = vrot.lane.b32.xlu0 %v2561, 126
    %v2564 = vpop.permute.xlu0 %2563
    %2565 = vrot.lane.b32.xlu0 %v2562, 126
    %v2566 = vpop.permute.xlu0 %2565
    %v2567 = vadd.f32 %v2561, %v2564
    %v2568 = vadd.f32 %v2562, %v2566
    %v2569 = vmul.f32 %v2567, 0.0625
    %v2570 = vmul.f32 %v2568, 0.0625
    %vm2571 = vcmp.ge.s32.totalorder %v69, 4
    %vm2572 = vcmp.ge.s32.totalorder %v70, 4
    %vm2573 = vcmp.lt.s32.totalorder %v69, 12
    %vm2574 = vcmp.lt.s32.totalorder %v70, 12
    %vm2575 = vcmp.ge.s32.totalorder %v84, 4
    %vm2576 = vcmp.lt.s32.totalorder %v84, 12
    %v2577 = vrot.slane %v2509, 4
    %v2578 = vrot.slane %v2510, 4
    %vm2579 = vcmp.lt.s32.totalorder %v69, 4
    %v2580 = vsel %vm2579, %v2577, %v2578
    %v2581 = vsel %vm2579, %v2578, %v2577
    %v2582 = vsel %vm2571, %v2581, 0.0
    %v2583 = vsel %vm2572, %v2580, 0.0
    %2584 = vrot.lane.b32.xlu0 %v2582, 4
    %v2585 = vpop.permute.xlu0 %2584
    %2586 = vrot.lane.b32.xlu0 %v2583, 4
    %v2587 = vpop.permute.xlu0 %2586
    %v2588 = vsel %vm2575, %v2585, 0.0
    %v2589 = vsel %vm2575, %v2587, 0.0
    %s2590 = sld [smem:[#allocation6 + $0x90]]
    %v2591 = vstv %s2590
    %v2592 = vmul.f32 %v2591, %v2588
    %v2593 = vmul.f32 %v2591, %v2589
    %s2594 = sld [smem:[#allocation6 + $0xb4]]
    %v2595 = vstv %s2594
    %v2596 = vmul.f32 %v2595, %v2588
    %v2597 = vmul.f32 %v2595, %v2589
    %s2598 = sld [smem:[#allocation6 + $0x94]]
    %v2599 = vstv %s2598
    %v2600 = vmul.f32 %v2599, %v2582
    %v2601 = vmul.f32 %v2599, %v2583
    %v2602 = vadd.f32 %v2592, %v2600
    %v2603 = vadd.f32 %v2593, %v2601
    %s2604 = sld [smem:[#allocation6 + $0xb8]]
    %v2605 = vstv %s2604
    %v2606 = vmul.f32 %v2605, %v2582
    %v2607 = vmul.f32 %v2605, %v2583
    %v2608 = vadd.f32 %v2596, %v2606
    %v2609 = vadd.f32 %v2597, %v2607
    %2610 = vrot.lane.b32.xlu0 %v2582, 124
    %v2611 = vpop.permute.xlu0 %2610
    %2612 = vrot.lane.b32.xlu0 %v2583, 124
    %v2613 = vpop.permute.xlu0 %2612
    %v2614 = vsel %vm2576, %v2611, 0.0
    %v2615 = vsel %vm2576, %v2613, 0.0
    %s2616 = sld [smem:[#allocation6 + $0x98]]
    %v2617 = vstv %s2616
    %v2618 = vmul.f32 %v2617, %v2614
    %v2619 = vmul.f32 %v2617, %v2615
    %v2620 = vadd.f32 %v2602, %v2618
    %v2621 = vadd.f32 %v2603, %v2619
    %s2622 = sld [smem:[#allocation6 + $0xbc]]
    %v2623 = vstv %s2622
    %v2624 = vmul.f32 %v2623, %v2614
    %v2625 = vmul.f32 %v2623, %v2615
    %v2626 = vadd.f32 %v2608, %v2624
    %v2627 = vadd.f32 %v2609, %v2625
    %2628 = vrot.lane.b32.xlu0 %v2509, 4
    %v2629 = vpop.permute.xlu0 %2628
    %2630 = vrot.lane.b32.xlu0 %v2510, 4
    %v2631 = vpop.permute.xlu0 %2630
    %v2632 = vsel %vm2575, %v2629, 0.0
    %v2633 = vsel %vm2575, %v2631, 0.0
    %s2634 = sld [smem:[#allocation6 + $0x9c]]
    %v2635 = vstv %s2634
    %v2636 = vmul.f32 %v2635, %v2632
    %v2637 = vmul.f32 %v2635, %v2633
    %v2638 = vadd.f32 %v2620, %v2636
    %v2639 = vadd.f32 %v2621, %v2637
    %s2640 = sld [smem:[#allocation6 + $0xc0]]
    %v2641 = vstv %s2640
    %v2642 = vmul.f32 %v2641, %v2632
    %v2643 = vmul.f32 %v2641, %v2633
    %v2644 = vadd.f32 %v2626, %v2642
    %v2645 = vadd.f32 %v2627, %v2643
    %s2646 = sld [smem:[#allocation6 + $0xa0]]
    %v2647 = vstv %s2646
    %v2648 = vmul.f32 %v2647, %v2509
    %v2649 = vmul.f32 %v2647, %v2510
    %v2650 = vadd.f32 %v2638, %v2648
    %v2651 = vadd.f32 %v2639, %v2649
    %s2652 = sld [smem:[#allocation6 + $0xc4]]
    %v2653 = vstv %s2652
    %v2654 = vmul.f32 %v2653, %v2509
    %v2655 = vmul.f32 %v2653, %v2510
    %v2656 = vadd.f32 %v2644, %v2654
    %v2657 = vadd.f32 %v2645, %v2655
    %2658 = vrot.lane.b32.xlu0 %v2509, 124
    %v2659 = vpop.permute.xlu0 %2658
    %2660 = vrot.lane.b32.xlu0 %v2510, 124
    %v2661 = vpop.permute.xlu0 %2660
    %v2662 = vsel %vm2576, %v2659, 0.0
    %v2663 = vsel %vm2576, %v2661, 0.0
    %s2664 = sld [smem:[#allocation6 + $0xa4]]
    %v2665 = vstv %s2664
    %v2666 = vmul.f32 %v2665, %v2662
    %v2667 = vmul.f32 %v2665, %v2663
    %v2668 = vadd.f32 %v2650, %v2666
    %v2669 = vadd.f32 %v2651, %v2667
    %s2670 = sld [smem:[#allocation6 + $0xc8]]
    %v2671 = vstv %s2670
    %v2672 = vmul.f32 %v2671, %v2662
    %v2673 = vmul.f32 %v2671, %v2663
    %v2674 = vadd.f32 %v2656, %v2672
    %v2675 = vadd.f32 %v2657, %v2673
    %v2676 = vsel %vm2573, %v2580, 0.0
    %v2677 = vsel %vm2574, %v2581, 0.0
    %2678 = vrot.lane.b32.xlu0 %v2676, 4
    %v2679 = vpop.permute.xlu0 %2678
    %2680 = vrot.lane.b32.xlu0 %v2677, 4
    %v2681 = vpop.permute.xlu0 %2680
    %v2682 = vsel %vm2575, %v2679, 0.0
    %v2683 = vsel %vm2575, %v2681, 0.0
    %s2684 = sld [smem:[#allocation6 + $0xa8]]
    %v2685 = vstv %s2684
    %v2686 = vmul.f32 %v2685, %v2682
    %v2687 = vmul.f32 %v2685, %v2683
    %v2688 = vadd.f32 %v2668, %v2686
    %v2689 = vadd.f32 %v2669, %v2687
    %s2690 = sld [smem:[#allocation6 + $0xcc]]
    %v2691 = vstv %s2690
    %v2692 = vmul.f32 %v2691, %v2682
    %v2693 = vmul.f32 %v2691, %v2683
    %v2694 = vadd.f32 %v2674, %v2692
    %v2695 = vadd.f32 %v2675, %v2693
    %s2696 = sld [smem:[#allocation6 + $0xac]]
    %v2697 = vstv %s2696
    %v2698 = vmul.f32 %v2697, %v2676
    %v2699 = vmul.f32 %v2697, %v2677
    %v2700 = vadd.f32 %v2688, %v2698
    %v2701 = vadd.f32 %v2689, %v2699
    %s2702 = sld [smem:[#allocation6 + $0xd0]]
    %v2703 = vstv %s2702
    %v2704 = vmul.f32 %v2703, %v2676
    %v2705 = vmul.f32 %v2703, %v2677
    %v2706 = vadd.f32 %v2694, %v2704
    %v2707 = vadd.f32 %v2695, %v2705
    %2708 = vrot.lane.b32.xlu0 %v2676, 124
    %v2709 = vpop.permute.xlu0 %2708
    %2710 = vrot.lane.b32.xlu0 %v2677, 124
    %v2711 = vpop.permute.xlu0 %2710
    %v2712 = vsel %vm2576, %v2709, 0.0
    %v2713 = vsel %vm2576, %v2711, 0.0
    %s2714 = sld [smem:[#allocation6 + $0xb0]]
    %v2715 = vstv %s2714
    %v2716 = vmul.f32 %v2715, %v2712
    %v2717 = vmul.f32 %v2715, %v2713
    %v2718 = vadd.f32 %v2700, %v2716
    %v2719 = vadd.f32 %v2701, %v2717
    %s2720 = sld [smem:[#allocation6 + $0xd4]]
    %v2721 = vstv %s2720
    %v2722 = vmul.f32 %v2721, %v2712
    %v2723 = vmul.f32 %v2721, %v2713
    %v2724 = vadd.f32 %v2706, %v2722
    %v2725 = vadd.f32 %v2707, %v2723
    %v2726 = vrot.slane %v2529, 4
    %v2727 = vrot.slane %v2530, 4
    %v2728 = vsel %vm2579, %v2726, %v2727
    %v2729 = vsel %vm2579, %v2727, %v2726
    %v2730 = vsel %vm2571, %v2729, 0.0
    %v2731 = vsel %vm2572, %v2728, 0.0
    %2732 = vrot.lane.b32.xlu0 %v2730, 4
    %v2733 = vpop.permute.xlu0 %2732
    %2734 = vrot.lane.b32.xlu0 %v2731, 4
    %v2735 = vpop.permute.xlu0 %2734
    %v2736 = vsel %vm2575, %v2733, 0.0
    %v2737 = vsel %vm2575, %v2735, 0.0
    %s2738 = sld [smem:[#allocation6 + $0x91]]
    %v2739 = vstv %s2738
    %v2740 = vmul.f32 %v2739, %v2736
    %v2741 = vmul.f32 %v2739, %v2737
    %v2742 = vadd.f32 %v2718, %v2740
    %v2743 = vadd.f32 %v2719, %v2741
    %s2744 = sld [smem:[#allocation6 + $0xb5]]
    %v2745 = vstv %s2744
    %v2746 = vmul.f32 %v2745, %v2736
    %v2747 = vmul.f32 %v2745, %v2737
    %v2748 = vadd.f32 %v2724, %v2746
    %v2749 = vadd.f32 %v2725, %v2747
    %s2750 = sld [smem:[#allocation6 + $0x95]]
    %v2751 = vstv %s2750
    %v2752 = vmul.f32 %v2751, %v2730
    %v2753 = vmul.f32 %v2751, %v2731
    %v2754 = vadd.f32 %v2742, %v2752
    %v2755 = vadd.f32 %v2743, %v2753
    %s2756 = sld [smem:[#allocation6 + $0xb9]]
    %v2757 = vstv %s2756
    %v2758 = vmul.f32 %v2757, %v2730
    %v2759 = vmul.f32 %v2757, %v2731
    %v2760 = vadd.f32 %v2748, %v2758
    %v2761 = vadd.f32 %v2749, %v2759
    %2762 = vrot.lane.b32.xlu0 %v2730, 124
    %v2763 = vpop.permute.xlu0 %2762
    %2764 = vrot.lane.b32.xlu0 %v2731, 124
    %v2765 = vpop.permute.xlu0 %2764
    %v2766 = vsel %vm2576, %v2763, 0.0
    %v2767 = vsel %vm2576, %v2765, 0.0
    %s2768 = sld [smem:[#allocation6 + $0x99]]
    %v2769 = vstv %s2768
    %v2770 = vmul.f32 %v2769, %v2766
    %v2771 = vmul.f32 %v2769, %v2767
    %v2772 = vadd.f32 %v2754, %v2770
    %v2773 = vadd.f32 %v2755, %v2771
    %s2774 = sld [smem:[#allocation6 + $0xbd]]
    %v2775 = vstv %s2774
    %v2776 = vmul.f32 %v2775, %v2766
    %v2777 = vmul.f32 %v2775, %v2767
    %v2778 = vadd.f32 %v2760, %v2776
    %v2779 = vadd.f32 %v2761, %v2777
    %2780 = vrot.lane.b32.xlu0 %v2529, 4
    %v2781 = vpop.permute.xlu0 %2780
    %2782 = vrot.lane.b32.xlu0 %v2530, 4
    %v2783 = vpop.permute.xlu0 %2782
    %v2784 = vsel %vm2575, %v2781, 0.0
    %v2785 = vsel %vm2575, %v2783, 0.0
    %s2786 = sld [smem:[#allocation6 + $0x9d]]
    %v2787 = vstv %s2786
    %v2788 = vmul.f32 %v2787, %v2784
    %v2789 = vmul.f32 %v2787, %v2785
    %v2790 = vadd.f32 %v2772, %v2788
    %v2791 = vadd.f32 %v2773, %v2789
    %s2792 = sld [smem:[#allocation6 + $0xc1]]
    %v2793 = vstv %s2792
    %v2794 = vmul.f32 %v2793, %v2784
    %v2795 = vmul.f32 %v2793, %v2785
    %v2796 = vadd.f32 %v2778, %v2794
    %v2797 = vadd.f32 %v2779, %v2795
    %s2798 = sld [smem:[#allocation6 + $0xa1]]
    %v2799 = vstv %s2798
    %v2800 = vmul.f32 %v2799, %v2529
    %v2801 = vmul.f32 %v2799, %v2530
    %v2802 = vadd.f32 %v2790, %v2800
    %v2803 = vadd.f32 %v2791, %v2801
    %s2804 = sld [smem:[#allocation6 + $0xc5]]
    %v2805 = vstv %s2804
    %v2806 = vmul.f32 %v2805, %v2529
    %v2807 = vmul.f32 %v2805, %v2530
    %v2808 = vadd.f32 %v2796, %v2806
    %v2809 = vadd.f32 %v2797, %v2807
    %2810 = vrot.lane.b32.xlu0 %v2529, 124
    %v2811 = vpop.permute.xlu0 %2810
    %2812 = vrot.lane.b32.xlu0 %v2530, 124
    %v2813 = vpop.permute.xlu0 %2812
    %v2814 = vsel %vm2576, %v2811, 0.0
    %v2815 = vsel %vm2576, %v2813, 0.0
    %s2816 = sld [smem:[#allocation6 + $0xa5]]
    %v2817 = vstv %s2816
    %v2818 = vmul.f32 %v2817, %v2814
    %v2819 = vmul.f32 %v2817, %v2815
    %v2820 = vadd.f32 %v2802, %v2818
    %v2821 = vadd.f32 %v2803, %v2819
    %s2822 = sld [smem:[#allocation6 + $0xc9]]
    %v2823 = vstv %s2822
    %v2824 = vmul.f32 %v2823, %v2814
    %v2825 = vmul.f32 %v2823, %v2815
    %v2826 = vadd.f32 %v2808, %v2824
    %v2827 = vadd.f32 %v2809, %v2825
    %v2828 = vsel %vm2573, %v2728, 0.0
    %v2829 = vsel %vm2574, %v2729, 0.0
    %2830 = vrot.lane.b32.xlu0 %v2828, 4
    %v2831 = vpop.permute.xlu0 %2830
    %2832 = vrot.lane.b32.xlu0 %v2829, 4
    %v2833 = vpop.permute.xlu0 %2832
    %v2834 = vsel %vm2575, %v2831, 0.0
    %v2835 = vsel %vm2575, %v2833, 0.0
    %s2836 = sld [smem:[#allocation6 + $0xa9]]
    %v2837 = vstv %s2836
    %v2838 = vmul.f32 %v2837, %v2834
    %v2839 = vmul.f32 %v2837, %v2835
    %v2840 = vadd.f32 %v2820, %v2838
    %v2841 = vadd.f32 %v2821, %v2839
    %s2842 = sld [smem:[#allocation6 + $0xcd]]
    %v2843 = vstv %s2842
    %v2844 = vmul.f32 %v2843, %v2834
    %v2845 = vmul.f32 %v2843, %v2835
    %v2846 = vadd.f32 %v2826, %v2844
    %v2847 = vadd.f32 %v2827, %v2845
    %s2848 = sld [smem:[#allocation6 + $0xad]]
    %v2849 = vstv %s2848
    %v2850 = vmul.f32 %v2849, %v2828
    %v2851 = vmul.f32 %v2849, %v2829
    %v2852 = vadd.f32 %v2840, %v2850
    %v2853 = vadd.f32 %v2841, %v2851
    %s2854 = sld [smem:[#allocation6 + $0xd1]]
    %v2855 = vstv %s2854
    %v2856 = vmul.f32 %v2855, %v2828
    %v2857 = vmul.f32 %v2855, %v2829
    %v2858 = vadd.f32 %v2846, %v2856
    %v2859 = vadd.f32 %v2847, %v2857
    %2860 = vrot.lane.b32.xlu0 %v2828, 124
    %v2861 = vpop.permute.xlu0 %2860
    %2862 = vrot.lane.b32.xlu0 %v2829, 124
    %v2863 = vpop.permute.xlu0 %2862
    %v2864 = vsel %vm2576, %v2861, 0.0
    %v2865 = vsel %vm2576, %v2863, 0.0
    %s2866 = sld [smem:[#allocation6 + $0xb1]]
    %v2867 = vstv %s2866
    %v2868 = vmul.f32 %v2867, %v2864
    %v2869 = vmul.f32 %v2867, %v2865
    %v2870 = vadd.f32 %v2852, %v2868
    %v2871 = vadd.f32 %v2853, %v2869
    %s2872 = sld [smem:[#allocation6 + $0xd5]]
    %v2873 = vstv %s2872
    %v2874 = vmul.f32 %v2873, %v2864
    %v2875 = vmul.f32 %v2873, %v2865
    %v2876 = vadd.f32 %v2858, %v2874
    %v2877 = vadd.f32 %v2859, %v2875
    %v2878 = vrot.slane %v2549, 4
    %v2879 = vrot.slane %v2550, 4
    %v2880 = vsel %vm2579, %v2878, %v2879
    %v2881 = vsel %vm2579, %v2879, %v2878
    %v2882 = vsel %vm2571, %v2881, 0.0
    %v2883 = vsel %vm2572, %v2880, 0.0
    %2884 = vrot.lane.b32.xlu0 %v2882, 4
    %v2885 = vpop.permute.xlu0 %2884
    %2886 = vrot.lane.b32.xlu0 %v2883, 4
    %v2887 = vpop.permute.xlu0 %2886
    %v2888 = vsel %vm2575, %v2885, 0.0
    %v2889 = vsel %vm2575, %v2887, 0.0
    %s2890 = sld [smem:[#allocation6 + $0x92]]
    %v2891 = vstv %s2890
    %v2892 = vmul.f32 %v2891, %v2888
    %v2893 = vmul.f32 %v2891, %v2889
    %v2894 = vadd.f32 %v2870, %v2892
    %v2895 = vadd.f32 %v2871, %v2893
    %s2896 = sld [smem:[#allocation6 + $0xb6]]
    %v2897 = vstv %s2896
    %v2898 = vmul.f32 %v2897, %v2888
    %v2899 = vmul.f32 %v2897, %v2889
    %v2900 = vadd.f32 %v2876, %v2898
    %v2901 = vadd.f32 %v2877, %v2899
    %s2902 = sld [smem:[#allocation6 + $0x96]]
    %v2903 = vstv %s2902
    %v2904 = vmul.f32 %v2903, %v2882
    %v2905 = vmul.f32 %v2903, %v2883
    %v2906 = vadd.f32 %v2894, %v2904
    %v2907 = vadd.f32 %v2895, %v2905
    %s2908 = sld [smem:[#allocation6 + $0xba]]
    %v2909 = vstv %s2908
    %v2910 = vmul.f32 %v2909, %v2882
    %v2911 = vmul.f32 %v2909, %v2883
    %v2912 = vadd.f32 %v2900, %v2910
    %v2913 = vadd.f32 %v2901, %v2911
    %2914 = vrot.lane.b32.xlu0 %v2882, 124
    %v2915 = vpop.permute.xlu0 %2914
    %2916 = vrot.lane.b32.xlu0 %v2883, 124
    %v2917 = vpop.permute.xlu0 %2916
    %v2918 = vsel %vm2576, %v2915, 0.0
    %v2919 = vsel %vm2576, %v2917, 0.0
    %s2920 = sld [smem:[#allocation6 + $0x9a]]
    %v2921 = vstv %s2920
    %v2922 = vmul.f32 %v2921, %v2918
    %v2923 = vmul.f32 %v2921, %v2919
    %v2924 = vadd.f32 %v2906, %v2922
    %v2925 = vadd.f32 %v2907, %v2923
    %s2926 = sld [smem:[#allocation6 + $0xbe]]
    %v2927 = vstv %s2926
    %v2928 = vmul.f32 %v2927, %v2918
    %v2929 = vmul.f32 %v2927, %v2919
    %v2930 = vadd.f32 %v2912, %v2928
    %v2931 = vadd.f32 %v2913, %v2929
    %2932 = vrot.lane.b32.xlu0 %v2549, 4
    %v2933 = vpop.permute.xlu0 %2932
    %2934 = vrot.lane.b32.xlu0 %v2550, 4
    %v2935 = vpop.permute.xlu0 %2934
    %v2936 = vsel %vm2575, %v2933, 0.0
    %v2937 = vsel %vm2575, %v2935, 0.0
    %s2938 = sld [smem:[#allocation6 + $0x9e]]
    %v2939 = vstv %s2938
    %v2940 = vmul.f32 %v2939, %v2936
    %v2941 = vmul.f32 %v2939, %v2937
    %v2942 = vadd.f32 %v2924, %v2940
    %v2943 = vadd.f32 %v2925, %v2941
    %s2944 = sld [smem:[#allocation6 + $0xc2]]
    %v2945 = vstv %s2944
    %v2946 = vmul.f32 %v2945, %v2936
    %v2947 = vmul.f32 %v2945, %v2937
    %v2948 = vadd.f32 %v2930, %v2946
    %v2949 = vadd.f32 %v2931, %v2947
    %s2950 = sld [smem:[#allocation6 + $0xa2]]
    %v2951 = vstv %s2950
    %v2952 = vmul.f32 %v2951, %v2549
    %v2953 = vmul.f32 %v2951, %v2550
    %v2954 = vadd.f32 %v2942, %v2952
    %v2955 = vadd.f32 %v2943, %v2953
    %s2956 = sld [smem:[#allocation6 + $0xc6]]
    %v2957 = vstv %s2956
    %v2958 = vmul.f32 %v2957, %v2549
    %v2959 = vmul.f32 %v2957, %v2550
    %v2960 = vadd.f32 %v2948, %v2958
    %v2961 = vadd.f32 %v2949, %v2959
    %2962 = vrot.lane.b32.xlu0 %v2549, 124
    %v2963 = vpop.permute.xlu0 %2962
    %2964 = vrot.lane.b32.xlu0 %v2550, 124
    %v2965 = vpop.permute.xlu0 %2964
    %v2966 = vsel %vm2576, %v2963, 0.0
    %v2967 = vsel %vm2576, %v2965, 0.0
    %s2968 = sld [smem:[#allocation6 + $0xa6]]
    %v2969 = vstv %s2968
    %v2970 = vmul.f32 %v2969, %v2966
    %v2971 = vmul.f32 %v2969, %v2967
    %v2972 = vadd.f32 %v2954, %v2970
    %v2973 = vadd.f32 %v2955, %v2971
    %s2974 = sld [smem:[#allocation6 + $0xca]]
    %v2975 = vstv %s2974
    %v2976 = vmul.f32 %v2975, %v2966
    %v2977 = vmul.f32 %v2975, %v2967
    %v2978 = vadd.f32 %v2960, %v2976
    %v2979 = vadd.f32 %v2961, %v2977
    %v2980 = vsel %vm2573, %v2880, 0.0
    %v2981 = vsel %vm2574, %v2881, 0.0
    %2982 = vrot.lane.b32.xlu0 %v2980, 4
    %v2983 = vpop.permute.xlu0 %2982
    %2984 = vrot.lane.b32.xlu0 %v2981, 4
    %v2985 = vpop.permute.xlu0 %2984
    %v2986 = vsel %vm2575, %v2983, 0.0
    %v2987 = vsel %vm2575, %v2985, 0.0
    %s2988 = sld [smem:[#allocation6 + $0xaa]]
    %v2989 = vstv %s2988
    %v2990 = vmul.f32 %v2989, %v2986
    %v2991 = vmul.f32 %v2989, %v2987
    %v2992 = vadd.f32 %v2972, %v2990
    %v2993 = vadd.f32 %v2973, %v2991
    %s2994 = sld [smem:[#allocation6 + $0xce]]
    %v2995 = vstv %s2994
    %v2996 = vmul.f32 %v2995, %v2986
    %v2997 = vmul.f32 %v2995, %v2987
    %v2998 = vadd.f32 %v2978, %v2996
    %v2999 = vadd.f32 %v2979, %v2997
    %s3000 = sld [smem:[#allocation6 + $0xae]]
    %v3001 = vstv %s3000
    %v3002 = vmul.f32 %v3001, %v2980
    %v3003 = vmul.f32 %v3001, %v2981
    %v3004 = vadd.f32 %v2992, %v3002
    %v3005 = vadd.f32 %v2993, %v3003
    %s3006 = sld [smem:[#allocation6 + $0xd2]]
    %v3007 = vstv %s3006
    %v3008 = vmul.f32 %v3007, %v2980
    %v3009 = vmul.f32 %v3007, %v2981
    %v3010 = vadd.f32 %v2998, %v3008
    %v3011 = vadd.f32 %v2999, %v3009
    %3012 = vrot.lane.b32.xlu0 %v2980, 124
    %v3013 = vpop.permute.xlu0 %3012
    %3014 = vrot.lane.b32.xlu0 %v2981, 124
    %v3015 = vpop.permute.xlu0 %3014
    %v3016 = vsel %vm2576, %v3013, 0.0
    %v3017 = vsel %vm2576, %v3015, 0.0
    %s3018 = sld [smem:[#allocation6 + $0xb2]]
    %v3019 = vstv %s3018
    %v3020 = vmul.f32 %v3019, %v3016
    %v3021 = vmul.f32 %v3019, %v3017
    %v3022 = vadd.f32 %v3004, %v3020
    %v3023 = vadd.f32 %v3005, %v3021
    %s3024 = sld [smem:[#allocation6 + $0xd6]]
    %v3025 = vstv %s3024
    %v3026 = vmul.f32 %v3025, %v3016
    %v3027 = vmul.f32 %v3025, %v3017
    %v3028 = vadd.f32 %v3010, %v3026
    %v3029 = vadd.f32 %v3011, %v3027
    %v3030 = vrot.slane %v2569, 4
    %v3031 = vrot.slane %v2570, 4
    %v3032 = vsel %vm2579, %v3030, %v3031
    %v3033 = vsel %vm2579, %v3031, %v3030
    %v3034 = vsel %vm2571, %v3033, 0.0
    %v3035 = vsel %vm2572, %v3032, 0.0
    %3036 = vrot.lane.b32.xlu0 %v3034, 4
    %v3037 = vpop.permute.xlu0 %3036
    %3038 = vrot.lane.b32.xlu0 %v3035, 4
    %v3039 = vpop.permute.xlu0 %3038
    %v3040 = vsel %vm2575, %v3037, 0.0
    %v3041 = vsel %vm2575, %v3039, 0.0
    %s3042 = sld [smem:[#allocation6 + $0x93]]
    %v3043 = vstv %s3042
    %v3044 = vmul.f32 %v3043, %v3040
    %v3045 = vmul.f32 %v3043, %v3041
    %v3046 = vadd.f32 %v3022, %v3044
    %v3047 = vadd.f32 %v3023, %v3045
    %s3048 = sld [smem:[#allocation6 + $0xb7]]
    %v3049 = vstv %s3048
    %v3050 = vmul.f32 %v3049, %v3040
    %v3051 = vmul.f32 %v3049, %v3041
    %v3052 = vadd.f32 %v3028, %v3050
    %v3053 = vadd.f32 %v3029, %v3051
    %s3054 = sld [smem:[#allocation6 + $0x97]]
    %v3055 = vstv %s3054
    %v3056 = vmul.f32 %v3055, %v3034
    %v3057 = vmul.f32 %v3055, %v3035
    %v3058 = vadd.f32 %v3046, %v3056
    %v3059 = vadd.f32 %v3047, %v3057
    %s3060 = sld [smem:[#allocation6 + $0xbb]]
    %v3061 = vstv %s3060
    %v3062 = vmul.f32 %v3061, %v3034
    %v3063 = vmul.f32 %v3061, %v3035
    %v3064 = vadd.f32 %v3052, %v3062
    %v3065 = vadd.f32 %v3053, %v3063
    %3066 = vrot.lane.b32.xlu0 %v3034, 124
    %v3067 = vpop.permute.xlu0 %3066
    %3068 = vrot.lane.b32.xlu0 %v3035, 124
    %v3069 = vpop.permute.xlu0 %3068
    %v3070 = vsel %vm2576, %v3067, 0.0
    %v3071 = vsel %vm2576, %v3069, 0.0
    %s3072 = sld [smem:[#allocation6 + $0x9b]]
    %v3073 = vstv %s3072
    %v3074 = vmul.f32 %v3073, %v3070
    %v3075 = vmul.f32 %v3073, %v3071
    %v3076 = vadd.f32 %v3058, %v3074
    %v3077 = vadd.f32 %v3059, %v3075
    %s3078 = sld [smem:[#allocation6 + $0xbf]]
    %v3079 = vstv %s3078
    %v3080 = vmul.f32 %v3079, %v3070
    %v3081 = vmul.f32 %v3079, %v3071
    %v3082 = vadd.f32 %v3064, %v3080
    %v3083 = vadd.f32 %v3065, %v3081
    %3084 = vrot.lane.b32.xlu0 %v2569, 4
    %v3085 = vpop.permute.xlu0 %3084
    %3086 = vrot.lane.b32.xlu0 %v2570, 4
    %v3087 = vpop.permute.xlu0 %3086
    %v3088 = vsel %vm2575, %v3085, 0.0
    %v3089 = vsel %vm2575, %v3087, 0.0
    %s3090 = sld [smem:[#allocation6 + $0x9f]]
    %v3091 = vstv %s3090
    %v3092 = vmul.f32 %v3091, %v3088
    %v3093 = vmul.f32 %v3091, %v3089
    %v3094 = vadd.f32 %v3076, %v3092
    %v3095 = vadd.f32 %v3077, %v3093
    %s3096 = sld [smem:[#allocation6 + $0xc3]]
    %v3097 = vstv %s3096
    %v3098 = vmul.f32 %v3097, %v3088
    %v3099 = vmul.f32 %v3097, %v3089
    %v3100 = vadd.f32 %v3082, %v3098
    %v3101 = vadd.f32 %v3083, %v3099
    %s3102 = sld [smem:[#allocation6 + $0xa3]]
    %v3103 = vstv %s3102
    %v3104 = vmul.f32 %v3103, %v2569
    %v3105 = vmul.f32 %v3103, %v2570
    %v3106 = vadd.f32 %v3094, %v3104
    %v3107 = vadd.f32 %v3095, %v3105
    %s3108 = sld [smem:[#allocation6 + $0xc7]]
    %v3109 = vstv %s3108
    %v3110 = vmul.f32 %v3109, %v2569
    %v3111 = vmul.f32 %v3109, %v2570
    %v3112 = vadd.f32 %v3100, %v3110
    %v3113 = vadd.f32 %v3101, %v3111
    %3114 = vrot.lane.b32.xlu0 %v2569, 124
    %v3115 = vpop.permute.xlu0 %3114
    %3116 = vrot.lane.b32.xlu0 %v2570, 124
    %v3117 = vpop.permute.xlu0 %3116
    %v3118 = vsel %vm2576, %v3115, 0.0
    %v3119 = vsel %vm2576, %v3117, 0.0
    %s3120 = sld [smem:[#allocation6 + $0xa7]]
    %v3121 = vstv %s3120
    %v3122 = vmul.f32 %v3121, %v3118
    %v3123 = vmul.f32 %v3121, %v3119
    %v3124 = vadd.f32 %v3106, %v3122
    %v3125 = vadd.f32 %v3107, %v3123
    %s3126 = sld [smem:[#allocation6 + $0xcb]]
    %v3127 = vstv %s3126
    %v3128 = vmul.f32 %v3127, %v3118
    %v3129 = vmul.f32 %v3127, %v3119
    %v3130 = vadd.f32 %v3112, %v3128
    %v3131 = vadd.f32 %v3113, %v3129
    %v3132 = vsel %vm2573, %v3032, 0.0
    %v3133 = vsel %vm2574, %v3033, 0.0
    %3134 = vrot.lane.b32.xlu0 %v3132, 4
    %v3135 = vpop.permute.xlu0 %3134
    %3136 = vrot.lane.b32.xlu0 %v3133, 4
    %v3137 = vpop.permute.xlu0 %3136
    %v3138 = vsel %vm2575, %v3135, 0.0
    %v3139 = vsel %vm2575, %v3137, 0.0
    %s3140 = sld [smem:[#allocation6 + $0xab]]
    %v3141 = vstv %s3140
    %v3142 = vmul.f32 %v3141, %v3138
    %v3143 = vmul.f32 %v3141, %v3139
    %v3144 = vadd.f32 %v3124, %v3142
    %v3145 = vadd.f32 %v3125, %v3143
    %s3146 = sld [smem:[#allocation6 + $0xcf]]
    %v3147 = vstv %s3146
    %v3148 = vmul.f32 %v3147, %v3138
    %v3149 = vmul.f32 %v3147, %v3139
    %v3150 = vadd.f32 %v3130, %v3148
    %v3151 = vadd.f32 %v3131, %v3149
    %s3152 = sld [smem:[#allocation6 + $0xaf]]
    %v3153 = vstv %s3152
    %v3154 = vmul.f32 %v3153, %v3132
    %v3155 = vmul.f32 %v3153, %v3133
    %v3156 = vadd.f32 %v3144, %v3154
    %v3157 = vadd.f32 %v3145, %v3155
    %s3158 = sld [smem:[#allocation6 + $0xd3]]
    %v3159 = vstv %s3158
    %v3160 = vmul.f32 %v3159, %v3132
    %v3161 = vmul.f32 %v3159, %v3133
    %v3162 = vadd.f32 %v3150, %v3160
    %v3163 = vadd.f32 %v3151, %v3161
    %3164 = vrot.lane.b32.xlu0 %v3132, 124
    %v3165 = vpop.permute.xlu0 %3164
    %3166 = vrot.lane.b32.xlu0 %v3133, 124
    %v3167 = vpop.permute.xlu0 %3166
    %v3168 = vsel %vm2576, %v3165, 0.0
    %v3169 = vsel %vm2576, %v3167, 0.0
    %s3170 = sld [smem:[#allocation6 + $0xb3]]
    %v3171 = vstv %s3170
    %v3172 = vmul.f32 %v3171, %v3168
    %v3173 = vmul.f32 %v3171, %v3169
    %v3174 = vadd.f32 %v3156, %v3172
    %v3175 = vadd.f32 %v3157, %v3173
    %s3176 = sld [smem:[#allocation6 + $0xd7]]
    %v3177 = vstv %s3176
    %v3178 = vmul.f32 %v3177, %v3168
    %v3179 = vmul.f32 %v3177, %v3169
    %v3180 = vadd.f32 %v3162, %v3178
    %v3181 = vadd.f32 %v3163, %v3179
    %s3182 = sld [smem:[#allocation7 + $0x4]]
    %v3183 = vstv %s3182
    %v3184 = vadd.f32 %v3174, %v3183
    %v3185 = vadd.f32 %v3175, %v3183
    %s3186 = sld [smem:[#allocation7 + $0x5]]
    %v3187 = vstv %s3186
    %v3188 = vadd.f32 %v3180, %v3187
    %v3189 = vadd.f32 %v3181, %v3187
    %s3190 = scalar_lea.vmem %s5, 64
    %3191 = vst [vmem:[%s3190] sm:$0xff] %v3184
    %3192 = vst [vmem:[%s3190 + $0x8] sm:$0xff] %v3185
    %s3193 = scalar_lea.vmem %s5, 80
    %3194 = vst [vmem:[%s3193] sm:$0xff] %v3188
    %3195 = vst [vmem:[%s3193 + $0x8] sm:$0xff] %v3189
    // Predicated region
    $region38: #{base_model_with_multiscale_forward.1} parent=1 // pred_check
      _
    $region39: #{base_model_with_multiscale_forward.1} parent=1 // pred_check_branch
      %3197 = sbr.rel (0) target = $region41
    $region40: #{base_model_with_multiscale_forward.1} parent=1 // pred_region
      _
    $region41: #{base_model_with_multiscale_forward.1} parent=1 // pred_fallthru
      _
    // Predicated region
    $region42: #{base_model_with_multiscale_forward.1} parent=1 // pred_check
      _
    $region43: #{base_model_with_multiscale_forward.1} parent=1 // pred_check_branch
      %3199 = sbr.rel (0) target = $region45
    $region44: #{base_model_with_multiscale_forward.1} parent=1 // pred_region
      _
    $region45: #{base_model_with_multiscale_forward.1} parent=1 // pred_fallthru
      _
    %3200 = vsyncpa [#allocation3], 1
    %3201 = vsyncpa [#allocation5], 1
    %3202 = vsyncpa [#allocation8], 1

</llo_original>
